<compile_context>
chip_gen: v5e
topology: v5e:2x2
jax: 0.10.0
libtpu: 0.0.40
codegen_flags: <defaults>
</compile_context>

<pallas_src>
import functools

import jax
import jax.numpy as jnp
import numpy as np
from jax.experimental import pallas as pl
from jax.experimental.pallas import tpu as pltpu

NEG_SLOPE = 0.01  # nn.LeakyReLU default


def _conv_leaky_kernel(x_ref, w_ref, b_ref, o_ref, *,
                       C, KH, KW, stride, toh, OW, n_row_tiles):
    """One (image, output-row-band) tile of  out = leaky_relu(conv2d(x, w) + b).

    x_ref: (1, s*s*C, Hq, Wq)  phase-split padded image (resident across row bands)
    w_ref: (KH*KW, n_out, C)   w_ref[kh*KW + kw] == weight[:, :, kh, kw]
    b_ref: (n_out, 1)
    o_ref: (1, n_out, toh, OW) output row band (NCHW layout)
    """
    s = stride
    if n_row_tiles == 1:
        row0 = 0                                           # fully static indexing
    else:
        row0 = pl.multiple_of(pl.program_id(1) * toh, toh)  # first output row of this band

    b = b_ref[...]                                         # (n_out, 1), broadcasts over OW
    ws = [w_ref[k] for k in range(KH * KW)]                # each (n_out, C)

    for i in range(toh):                                   # static unroll over rows in band
        acc = jnp.zeros((b.shape[0], OW), jnp.float32)
        for kh in range(KH):
            qh, rh = kh // s, kh % s
            for kw in range(KW):
                qw, rw = kw // s, kw % s
                p = rh * s + rw                            # stride phase
                # (C, OW) slice; stride is absorbed by the phase layout -> contiguous slices.
                xs = x_ref[0, pl.ds(p * C, C), row0 + i + qh, pl.ds(qw, OW)]
                acc = acc + jnp.dot(ws[kh * KW + kw], xs,
                                    preferred_element_type=jnp.float32)
        y = acc + b
        y = jnp.where(y >= 0, y, NEG_SLOPE * y)
        o_ref[0, :, i, :] = y.astype(o_ref.dtype)


def _phase_layout(x, KH, KW, stride, padding):
    """Pad x spatially and split by stride phase so every kernel-offset slice is contiguous.

    Returns x_ph of shape (N, s*s*C, Hq, Wq) with
      x_ph[n, (rh*s + rw)*C + c, i, j] == x_padded[n, c, i*s + rh, j*s + rw]
    plus (OH, OW, Hq, Wq).  For stride == 1 this is just the spatially padded input.
    """
    N, C, H, W = x.shape
    s = stride
    Hp, Wp = H + 2 * padding, W + 2 * padding
    OH = (Hp - KH) // s + 1
    OW = (Wp - KW) // s + 1
    Hq, Wq = -(-Hp // s), -(-Wp // s)                      # ceil div
    pad_h = (padding, Hq * s - H - padding)
    pad_w = (padding, Wq * s - W - padding)
    if pad_h != (0, 0) or pad_w != (0, 0):
        x = jnp.pad(x, ((0, 0), (0, 0), pad_h, pad_w))
    if s == 1:
        return x, OH, OW, Hq, Wq
    x = x.reshape(N, C, Hq, s, Wq, s)
    x = x.transpose(0, 3, 5, 1, 2, 4)                      # (N, rh, rw, C, Hq, Wq)
    x = x.reshape(N, s * s * C, Hq, Wq)
    return x, OH, OW, Hq, Wq


def _pick_row_tile(OH, OW, max_lanes=2048, max_unroll=64):
    """Largest row band toh that divides OH, respects the (8,128) block rule
    (toh % 8 == 0 or toh == OH) and keeps per-step work / unroll bounded."""
    cands = [t for t in range(1, OH + 1)
             if OH % t == 0 and (t % 8 == 0 or t == OH)]
    good = [t for t in cands if t * OW <= max_lanes and t <= max_unroll]
    return max(good) if good else min(cands)


@functools.partial(jax.jit, static_argnames=("stride", "padding"))
def leaky_relu_conv2d(x, weight, bias, *, stride, padding=0):
    """x: (N, C, H, W) f32; weight: (n_out, C, KH, KW); bias: (n_out,).
    Returns (N, n_out, OH, OW) f32 == LeakyReLU(Conv2d(x, weight, bias))."""
    N, C, H, W = x.shape
    n_out, Cw, KH, KW = weight.shape
    assert Cw == C
    s = int(stride)

    x_ph, OH, OW, Hq, Wq = _phase_layout(x, KH, KW, s, padding)
    Cph = x_ph.shape[1]                                    # s*s*C
    toh = _pick_row_tile(OH, OW)
    R = OH // toh

    # TODO(synk): images large enough that s*s*C*Hq*Wq*4B exceeds the VMEM budget need H-band
    # tiling with manual halo DMA (pl.ANY + pltpu.make_async_copy); not needed at these shapes.

    w_r = weight.transpose(2, 3, 0, 1).reshape(KH * KW, n_out, C).astype(jnp.float32)
    b_r = bias.reshape(n_out, 1).astype(jnp.float32)

    kernel = functools.partial(_conv_leaky_kernel, C=C, KH=KH, KW=KW,
                               stride=s, toh=toh, OW=OW, n_row_tiles=R)

    out = pl.pallas_call(
        kernel,
        out_shape=jax.ShapeDtypeStruct((N, n_out, OH, OW), jnp.float32),
        grid_spec=pltpu.PrefetchScalarGridSpec(
            num_scalar_prefetch=0,
            grid=(N, R),
            in_specs=[
                # Whole padded image: block index depends only on n, so it is DMA'd once per
                # image and stays resident in VMEM across the inner row-band axis.
                pl.BlockSpec((1, Cph, Hq, Wq), lambda n, r: (n, 0, 0, 0)),
                pl.BlockSpec((KH * KW, n_out, C), lambda n, r: (0, 0, 0)),
                pl.BlockSpec((n_out, 1), lambda n, r: (0, 0)),
            ],
            out_specs=pl.BlockSpec((1, n_out, toh, OW), lambda n, r: (n, 0, r, 0)),
        ),
        compiler_params=pltpu.CompilerParams(
            dimension_semantics=("parallel", "parallel"),
            vmem_limit_bytes=32 * 1024 * 1024,
        ),
    )(x_ph, w_r, b_r)
    return out


def _reference(x, weight, bias, stride, padding):
    """Pure-JAX reference (lax conv) for the correctness check."""
    y = jax.lax.conv_general_dilated(
        x, weight, window_strides=(stride, stride),
        padding=[(padding, padding), (padding, padding)],
        dimension_numbers=("NCHW", "OIHW", "NCHW"))
    y = y + bias.reshape(1, -1, 1, 1)
    return jnp.where(y >= 0, y, NEG_SLOPE * y)


if __name__ == "__main__":
    # Module config (synthetic, deterministic init).
    n_in, n_out, kernel_size, stride, padding = 4, 8, 3, 1, 1
    N, H, W = 2, 16, 16

    key = jax.random.PRNGKey(0)
    kx, kw, kb = jax.random.split(key, 3)

    x = jax.random.normal(kx, (N, n_in, H, W), dtype=jnp.float32)
    # gaussian_weights_init: conv weight ~ N(0, 0.02)
    weight = 0.02 * jax.random.normal(kw, (n_out, n_in, kernel_size, kernel_size),
                                      dtype=jnp.float32)
    # PyTorch default bias init: uniform(-1/sqrt(fan_in), 1/sqrt(fan_in)); emulate deterministically.
    fan_in = n_in * kernel_size * kernel_size
    bound = 1.0 / np.sqrt(fan_in)
    bias = jax.random.uniform(kb, (n_out,), minval=-bound, maxval=bound, dtype=jnp.float32)

    out = leaky_relu_conv2d(x, weight, bias, stride=stride, padding=padding)
    out = jax.block_until_ready(out)

    ref = jax.block_until_ready(_reference(x, weight, bias, stride, padding))
    np.testing.assert_allclose(np.asarray(out), np.asarray(ref), rtol=1e-4, atol=1e-5)

    print("KERNEL_OK")
</pallas_src>

<mosaic_0001>
module attributes {stable_mosaic.version = 11 : i64} {
  func.func @_conv_leaky_kernel(%arg0: i32, %arg1: i32, %arg2: memref<1x4x18x18xf32, #tpu.memory_space<vmem>>, %arg3: memref<9x8x4xf32, #tpu.memory_space<vmem>>, %arg4: memref<8x1xf32, #tpu.memory_space<vmem>>, %arg5: memref<1x8x16x16xf32, #tpu.memory_space<vmem>>) attributes {dimension_semantics = [#tpu.dimension_semantics<parallel>, #tpu.dimension_semantics<parallel>], iteration_bounds = array<i64: 2, 1>, scalar_prefetch = 0 : i64, scratch_operands = 0 : i64, tpu.core_type = #tpu.core_type<tc>, window_params = [{transform_indices = @transform_0, window_bounds = array<i64: 1, 4, 18, 18>}, {pipeline_mode = #tpu.pipeline_mode<synchronous>, transform_indices = @transform_1, window_bounds = array<i64: 9, 8, 4>}, {pipeline_mode = #tpu.pipeline_mode<synchronous>, transform_indices = @transform_2, window_bounds = array<i64: 8, 1>}, {transform_indices = @transform_3, window_bounds = array<i64: 1, 8, 16, 16>}]} {
    %c0 = arith.constant 0 : index
    %c0_0 = arith.constant 0 : index
    %0 = vector.load %arg4[%c0, %c0_0] : memref<8x1xf32, #tpu.memory_space<vmem>>, vector<8x1xf32>
    %c0_1 = arith.constant 0 : index
    %c0_2 = arith.constant 0 : index
    %c0_3 = arith.constant 0 : index
    %1 = vector.load %arg3[%c0_1, %c0_2, %c0_3] : memref<9x8x4xf32, #tpu.memory_space<vmem>>, vector<1x8x4xf32>
    %2 = vector.shape_cast %1 : vector<1x8x4xf32> to vector<8x4xf32>
    %c1 = arith.constant 1 : index
    %c0_4 = arith.constant 0 : index
    %c0_5 = arith.constant 0 : index
    %3 = vector.load %arg3[%c1, %c0_4, %c0_5] : memref<9x8x4xf32, #tpu.memory_space<vmem>>, vector<1x8x4xf32>
    %4 = vector.shape_cast %3 : vector<1x8x4xf32> to vector<8x4xf32>
    %c2 = arith.constant 2 : index
    %c0_6 = arith.constant 0 : index
    %c0_7 = arith.constant 0 : index
    %5 = vector.load %arg3[%c2, %c0_6, %c0_7] : memref<9x8x4xf32, #tpu.memory_space<vmem>>, vector<1x8x4xf32>
    %6 = vector.shape_cast %5 : vector<1x8x4xf32> to vector<8x4xf32>
    %c3 = arith.constant 3 : index
    %c0_8 = arith.constant 0 : index
    %c0_9 = arith.constant 0 : index
    %7 = vector.load %arg3[%c3, %c0_8, %c0_9] : memref<9x8x4xf32, #tpu.memory_space<vmem>>, vector<1x8x4xf32>
    %8 = vector.shape_cast %7 : vector<1x8x4xf32> to vector<8x4xf32>
    %c4 = arith.constant 4 : index
    %c0_10 = arith.constant 0 : index
    %c0_11 = arith.constant 0 : index
    %9 = vector.load %arg3[%c4, %c0_10, %c0_11] : memref<9x8x4xf32, #tpu.memory_space<vmem>>, vector<1x8x4xf32>
    %10 = vector.shape_cast %9 : vector<1x8x4xf32> to vector<8x4xf32>
    %c5 = arith.constant 5 : index
    %c0_12 = arith.constant 0 : index
    %c0_13 = arith.constant 0 : index
    %11 = vector.load %arg3[%c5, %c0_12, %c0_13] : memref<9x8x4xf32, #tpu.memory_space<vmem>>, vector<1x8x4xf32>
    %12 = vector.shape_cast %11 : vector<1x8x4xf32> to vector<8x4xf32>
    %c6 = arith.constant 6 : index
    %c0_14 = arith.constant 0 : index
    %c0_15 = arith.constant 0 : index
    %13 = vector.load %arg3[%c6, %c0_14, %c0_15] : memref<9x8x4xf32, #tpu.memory_space<vmem>>, vector<1x8x4xf32>
    %14 = vector.shape_cast %13 : vector<1x8x4xf32> to vector<8x4xf32>
    %c7 = arith.constant 7 : index
    %c0_16 = arith.constant 0 : index
    %c0_17 = arith.constant 0 : index
    %15 = vector.load %arg3[%c7, %c0_16, %c0_17] : memref<9x8x4xf32, #tpu.memory_space<vmem>>, vector<1x8x4xf32>
    %16 = vector.shape_cast %15 : vector<1x8x4xf32> to vector<8x4xf32>
    %c8 = arith.constant 8 : index
    %c0_18 = arith.constant 0 : index
    %c0_19 = arith.constant 0 : index
    %17 = vector.load %arg3[%c8, %c0_18, %c0_19] : memref<9x8x4xf32, #tpu.memory_space<vmem>>, vector<1x8x4xf32>
    %18 = vector.shape_cast %17 : vector<1x8x4xf32> to vector<8x4xf32>
    %cst = arith.constant 0.000000e+00 : f32
    %19 = vector.broadcast %cst : f32 to vector<8x16xf32>
    %c0_20 = arith.constant 0 : index
    %c0_21 = arith.constant 0 : index
    %c0_22 = arith.constant 0 : index
    %c0_23 = arith.constant 0 : index
    %20 = vector.load %arg2[%c0_20, %c0_21, %c0_22, %c0_23] : memref<1x4x18x18xf32, #tpu.memory_space<vmem>>, vector<1x4x1x16xf32>
    %21 = vector.shape_cast %20 : vector<1x4x1x16xf32> to vector<4x16xf32>
    %cst_24 = arith.constant dense<0.000000e+00> : vector<8x16xf32>
    %22 = tpu.matmul %2, %21, %cst_24 {dimension_numbers = #tpu.dot_dimension_numbers<[1], [0], [0], [1], [0, 0, 1, 1], [], []>} : vector<8x4xf32>, vector<4x16xf32>, vector<8x16xf32> -> vector<8x16xf32>
    %23 = arith.addf %19, %22 : vector<8x16xf32>
    %c0_25 = arith.constant 0 : index
    %c0_26 = arith.constant 0 : index
    %c0_27 = arith.constant 0 : index
    %c1_28 = arith.constant 1 : index
    %24 = vector.load %arg2[%c0_25, %c0_26, %c0_27, %c1_28] : memref<1x4x18x18xf32, #tpu.memory_space<vmem>>, vector<1x4x1x16xf32>
    %25 = vector.shape_cast %24 : vector<1x4x1x16xf32> to vector<4x16xf32>
    %cst_29 = arith.constant dense<0.000000e+00> : vector<8x16xf32>
    %26 = tpu.matmul %4, %25, %cst_29 {dimension_numbers = #tpu.dot_dimension_numbers<[1], [0], [0], [1], [0, 0, 1, 1], [], []>} : vector<8x4xf32>, vector<4x16xf32>, vector<8x16xf32> -> vector<8x16xf32>
    %27 = arith.addf %23, %26 : vector<8x16xf32>
    %c0_30 = arith.constant 0 : index
    %c0_31 = arith.constant 0 : index
    %c0_32 = arith.constant 0 : index
    %c2_33 = arith.constant 2 : index
    %28 = vector.load %arg2[%c0_30, %c0_31, %c0_32, %c2_33] : memref<1x4x18x18xf32, #tpu.memory_space<vmem>>, vector<1x4x1x16xf32>
    %29 = vector.shape_cast %28 : vector<1x4x1x16xf32> to vector<4x16xf32>
    %cst_34 = arith.constant dense<0.000000e+00> : vector<8x16xf32>
    %30 = tpu.matmul %6, %29, %cst_34 {dimension_numbers = #tpu.dot_dimension_numbers<[1], [0], [0], [1], [0, 0, 1, 1], [], []>} : vector<8x4xf32>, vector<4x16xf32>, vector<8x16xf32> -> vector<8x16xf32>
    %31 = arith.addf %27, %30 : vector<8x16xf32>
    %c0_35 = arith.constant 0 : index
    %c0_36 = arith.constant 0 : index
    %c1_37 = arith.constant 1 : index
    %c0_38 = arith.constant 0 : index
    %32 = vector.load %arg2[%c0_35, %c0_36, %c1_37, %c0_38] : memref<1x4x18x18xf32, #tpu.memory_space<vmem>>, vector<1x4x1x16xf32>
    %33 = vector.shape_cast %32 : vector<1x4x1x16xf32> to vector<4x16xf32>
    %cst_39 = arith.constant dense<0.000000e+00> : vector<8x16xf32>
    %34 = tpu.matmul %8, %33, %cst_39 {dimension_numbers = #tpu.dot_dimension_numbers<[1], [0], [0], [1], [0, 0, 1, 1], [], []>} : vector<8x4xf32>, vector<4x16xf32>, vector<8x16xf32> -> vector<8x16xf32>
    %35 = arith.addf %31, %34 : vector<8x16xf32>
    %c0_40 = arith.constant 0 : index
    %c0_41 = arith.constant 0 : index
    %c1_42 = arith.constant 1 : index
    %c1_43 = arith.constant 1 : index
    %36 = vector.load %arg2[%c0_40, %c0_41, %c1_42, %c1_43] : memref<1x4x18x18xf32, #tpu.memory_space<vmem>>, vector<1x4x1x16xf32>
    %37 = vector.shape_cast %36 : vector<1x4x1x16xf32> to vector<4x16xf32>
    %cst_44 = arith.constant dense<0.000000e+00> : vector<8x16xf32>
    %38 = tpu.matmul %10, %37, %cst_44 {dimension_numbers = #tpu.dot_dimension_numbers<[1], [0], [0], [1], [0, 0, 1, 1], [], []>} : vector<8x4xf32>, vector<4x16xf32>, vector<8x16xf32> -> vector<8x16xf32>
    %39 = arith.addf %35, %38 : vector<8x16xf32>
    %c0_45 = arith.constant 0 : index
    %c0_46 = arith.constant 0 : index
    %c1_47 = arith.constant 1 : index
    %c2_48 = arith.constant 2 : index
    %40 = vector.load %arg2[%c0_45, %c0_46, %c1_47, %c2_48] : memref<1x4x18x18xf32, #tpu.memory_space<vmem>>, vector<1x4x1x16xf32>
    %41 = vector.shape_cast %40 : vector<1x4x1x16xf32> to vector<4x16xf32>
    %cst_49 = arith.constant dense<0.000000e+00> : vector<8x16xf32>
    %42 = tpu.matmul %12, %41, %cst_49 {dimension_numbers = #tpu.dot_dimension_numbers<[1], [0], [0], [1], [0, 0, 1, 1], [], []>} : vector<8x4xf32>, vector<4x16xf32>, vector<8x16xf32> -> vector<8x16xf32>
    %43 = arith.addf %39, %42 : vector<8x16xf32>
    %c0_50 = arith.constant 0 : index
    %c0_51 = arith.constant 0 : index
    %c2_52 = arith.constant 2 : index
    %c0_53 = arith.constant 0 : index
    %44 = vector.load %arg2[%c0_50, %c0_51, %c2_52, %c0_53] : memref<1x4x18x18xf32, #tpu.memory_space<vmem>>, vector<1x4x1x16xf32>
    %45 = vector.shape_cast %44 : vector<1x4x1x16xf32> to vector<4x16xf32>
    %cst_54 = arith.constant dense<0.000000e+00> : vector<8x16xf32>
    %46 = tpu.matmul %14, %45, %cst_54 {dimension_numbers = #tpu.dot_dimension_numbers<[1], [0], [0], [1], [0, 0, 1, 1], [], []>} : vector<8x4xf32>, vector<4x16xf32>, vector<8x16xf32> -> vector<8x16xf32>
    %47 = arith.addf %43, %46 : vector<8x16xf32>
    %c0_55 = arith.constant 0 : index
    %c0_56 = arith.constant 0 : index
    %c2_57 = arith.constant 2 : index
    %c1_58 = arith.constant 1 : index
    %48 = vector.load %arg2[%c0_55, %c0_56, %c2_57, %c1_58] : memref<1x4x18x18xf32, #tpu.memory_space<vmem>>, vector<1x4x1x16xf32>
    %49 = vector.shape_cast %48 : vector<1x4x1x16xf32> to vector<4x16xf32>
    %cst_59 = arith.constant dense<0.000000e+00> : vector<8x16xf32>
    %50 = tpu.matmul %16, %49, %cst_59 {dimension_numbers = #tpu.dot_dimension_numbers<[1], [0], [0], [1], [0, 0, 1, 1], [], []>} : vector<8x4xf32>, vector<4x16xf32>, vector<8x16xf32> -> vector<8x16xf32>
    %51 = arith.addf %47, %50 : vector<8x16xf32>
    %c0_60 = arith.constant 0 : index
    %c0_61 = arith.constant 0 : index
    %c2_62 = arith.constant 2 : index
    %c2_63 = arith.constant 2 : index
    %52 = vector.load %arg2[%c0_60, %c0_61, %c2_62, %c2_63] : memref<1x4x18x18xf32, #tpu.memory_space<vmem>>, vector<1x4x1x16xf32>
    %53 = vector.shape_cast %52 : vector<1x4x1x16xf32> to vector<4x16xf32>
    %cst_64 = arith.constant dense<0.000000e+00> : vector<8x16xf32>
    %54 = tpu.matmul %18, %53, %cst_64 {dimension_numbers = #tpu.dot_dimension_numbers<[1], [0], [0], [1], [0, 0, 1, 1], [], []>} : vector<8x4xf32>, vector<4x16xf32>, vector<8x16xf32> -> vector<8x16xf32>
    %55 = arith.addf %51, %54 : vector<8x16xf32>
    %56 = vector.broadcast %0 : vector<8x1xf32> to vector<8x16xf32>
    %57 = arith.addf %55, %56 : vector<8x16xf32>
    %cst_65 = arith.constant 0.000000e+00 : f32
    %58 = vector.broadcast %cst_65 : f32 to vector<8x16xf32>
    %59 = arith.cmpf oge, %57, %58 : vector<8x16xf32>
    %cst_66 = arith.constant 0.00999999977 : f32
    %60 = vector.broadcast %cst_66 : f32 to vector<8x16xf32>
    %61 = arith.mulf %60, %57 : vector<8x16xf32>
    %62 = arith.select %59, %57, %61 : vector<8x16xi1>, vector<8x16xf32>
    %c0_67 = arith.constant 0 : index
    %c0_68 = arith.constant 0 : index
    %c0_69 = arith.constant 0 : index
    %c0_70 = arith.constant 0 : index
    %63 = vector.load %arg5[%c0_67, %c0_68, %c0_69, %c0_70] : memref<1x8x16x16xf32, #tpu.memory_space<vmem>>, vector<1x8x1x16xf32>
    %64 = vector.shape_cast %63 : vector<1x8x1x16xf32> to vector<8x16xf32>
    %65 = vector.shape_cast %62 : vector<8x16xf32> to vector<1x8x1x16xf32>
    tpu.vector_store %arg5[%c0_67, %c0_68, %c0_69, %c0_70], %65 {strides = array<i32>} : memref<1x8x16x16xf32, #tpu.memory_space<vmem>>, vector<1x8x1x16xf32>,
    %cst_71 = arith.constant 0.000000e+00 : f32
    %66 = vector.broadcast %cst_71 : f32 to vector<8x16xf32>
    %c0_72 = arith.constant 0 : index
    %c0_73 = arith.constant 0 : index
    %c1_74 = arith.constant 1 : index
    %c0_75 = arith.constant 0 : index
    %67 = vector.load %arg2[%c0_72, %c0_73, %c1_74, %c0_75] : memref<1x4x18x18xf32, #tpu.memory_space<vmem>>, vector<1x4x1x16xf32>
    %68 = vector.shape_cast %67 : vector<1x4x1x16xf32> to vector<4x16xf32>
    %cst_76 = arith.constant dense<0.000000e+00> : vector<8x16xf32>
    %69 = tpu.matmul %2, %68, %cst_76 {dimension_numbers = #tpu.dot_dimension_numbers<[1], [0], [0], [1], [0, 0, 1, 1], [], []>} : vector<8x4xf32>, vector<4x16xf32>, vector<8x16xf32> -> vector<8x16xf32>
    %70 = arith.addf %66, %69 : vector<8x16xf32>
    %c0_77 = arith.constant 0 : index
    %c0_78 = arith.constant 0 : index
    %c1_79 = arith.constant 1 : index
    %c1_80 = arith.constant 1 : index
    %71 = vector.load %arg2[%c0_77, %c0_78, %c1_79, %c1_80] : memref<1x4x18x18xf32, #tpu.memory_space<vmem>>, vector<1x4x1x16xf32>
    %72 = vector.shape_cast %71 : vector<1x4x1x16xf32> to vector<4x16xf32>
    %cst_81 = arith.constant dense<0.000000e+00> : vector<8x16xf32>
    %73 = tpu.matmul %4, %72, %cst_81 {dimension_numbers = #tpu.dot_dimension_numbers<[1], [0], [0], [1], [0, 0, 1, 1], [], []>} : vector<8x4xf32>, vector<4x16xf32>, vector<8x16xf32> -> vector<8x16xf32>
    %74 = arith.addf %70, %73 : vector<8x16xf32>
    %c0_82 = arith.constant 0 : index
    %c0_83 = arith.constant 0 : index
    %c1_84 = arith.constant 1 : index
    %c2_85 = arith.constant 2 : index
    %75 = vector.load %arg2[%c0_82, %c0_83, %c1_84, %c2_85] : memref<1x4x18x18xf32, #tpu.memory_space<vmem>>, vector<1x4x1x16xf32>
    %76 = vector.shape_cast %75 : vector<1x4x1x16xf32> to vector<4x16xf32>
    %cst_86 = arith.constant dense<0.000000e+00> : vector<8x16xf32>
    %77 = tpu.matmul %6, %76, %cst_86 {dimension_numbers = #tpu.dot_dimension_numbers<[1], [0], [0], [1], [0, 0, 1, 1], [], []>} : vector<8x4xf32>, vector<4x16xf32>, vector<8x16xf32> -> vector<8x16xf32>
    %78 = arith.addf %74, %77 : vector<8x16xf32>
    %c0_87 = arith.constant 0 : index
    %c0_88 = arith.constant 0 : index
    %c2_89 = arith.constant 2 : index
    %c0_90 = arith.constant 0 : index
    %79 = vector.load %arg2[%c0_87, %c0_88, %c2_89, %c0_90] : memref<1x4x18x18xf32, #tpu.memory_space<vmem>>, vector<1x4x1x16xf32>
    %80 = vector.shape_cast %79 : vector<1x4x1x16xf32> to vector<4x16xf32>
    %cst_91 = arith.constant dense<0.000000e+00> : vector<8x16xf32>
    %81 = tpu.matmul %8, %80, %cst_91 {dimension_numbers = #tpu.dot_dimension_numbers<[1], [0], [0], [1], [0, 0, 1, 1], [], []>} : vector<8x4xf32>, vector<4x16xf32>, vector<8x16xf32> -> vector<8x16xf32>
    %82 = arith.addf %78, %81 : vector<8x16xf32>
    %c0_92 = arith.constant 0 : index
    %c0_93 = arith.constant 0 : index
    %c2_94 = arith.constant 2 : index
    %c1_95 = arith.constant 1 : index
    %83 = vector.load %arg2[%c0_92, %c0_93, %c2_94, %c1_95] : memref<1x4x18x18xf32, #tpu.memory_space<vmem>>, vector<1x4x1x16xf32>
    %84 = vector.shape_cast %83 : vector<1x4x1x16xf32> to vector<4x16xf32>
    %cst_96 = arith.constant dense<0.000000e+00> : vector<8x16xf32>
    %85 = tpu.matmul %10, %84, %cst_96 {dimension_numbers = #tpu.dot_dimension_numbers<[1], [0], [0], [1], [0, 0, 1, 1], [], []>} : vector<8x4xf32>, vector<4x16xf32>, vector<8x16xf32> -> vector<8x16xf32>
    %86 = arith.addf %82, %85 : vector<8x16xf32>
    %c0_97 = arith.constant 0 : index
    %c0_98 = arith.constant 0 : index
    %c2_99 = arith.constant 2 : index
    %c2_100 = arith.constant 2 : index
    %87 = vector.load %arg2[%c0_97, %c0_98, %c2_99, %c2_100] : memref<1x4x18x18xf32, #tpu.memory_space<vmem>>, vector<1x4x1x16xf32>
    %88 = vector.shape_cast %87 : vector<1x4x1x16xf32> to vector<4x16xf32>
    %cst_101 = arith.constant dense<0.000000e+00> : vector<8x16xf32>
    %89 = tpu.matmul %12, %88, %cst_101 {dimension_numbers = #tpu.dot_dimension_numbers<[1], [0], [0], [1], [0, 0, 1, 1], [], []>} : vector<8x4xf32>, vector<4x16xf32>, vector<8x16xf32> -> vector<8x16xf32>
    %90 = arith.addf %86, %89 : vector<8x16xf32>
    %c0_102 = arith.constant 0 : index
    %c0_103 = arith.constant 0 : index
    %c3_104 = arith.constant 3 : index
    %c0_105 = arith.constant 0 : index
    %91 = vector.load %arg2[%c0_102, %c0_103, %c3_104, %c0_105] : memref<1x4x18x18xf32, #tpu.memory_space<vmem>>, vector<1x4x1x16xf32>
    %92 = vector.shape_cast %91 : vector<1x4x1x16xf32> to vector<4x16xf32>
    %cst_106 = arith.constant dense<0.000000e+00> : vector<8x16xf32>
    %93 = tpu.matmul %14, %92, %cst_106 {dimension_numbers = #tpu.dot_dimension_numbers<[1], [0], [0], [1], [0, 0, 1, 1], [], []>} : vector<8x4xf32>, vector<4x16xf32>, vector<8x16xf32> -> vector<8x16xf32>
    %94 = arith.addf %90, %93 : vector<8x16xf32>
    %c0_107 = arith.constant 0 : index
    %c0_108 = arith.constant 0 : index
    %c3_109 = arith.constant 3 : index
    %c1_110 = arith.constant 1 : index
    %95 = vector.load %arg2[%c0_107, %c0_108, %c3_109, %c1_110] : memref<1x4x18x18xf32, #tpu.memory_space<vmem>>, vector<1x4x1x16xf32>
    %96 = vector.shape_cast %95 : vector<1x4x1x16xf32> to vector<4x16xf32>
    %cst_111 = arith.constant dense<0.000000e+00> : vector<8x16xf32>
    %97 = tpu.matmul %16, %96, %cst_111 {dimension_numbers = #tpu.dot_dimension_numbers<[1], [0], [0], [1], [0, 0, 1, 1], [], []>} : vector<8x4xf32>, vector<4x16xf32>, vector<8x16xf32> -> vector<8x16xf32>
    %98 = arith.addf %94, %97 : vector<8x16xf32>
    %c0_112 = arith.constant 0 : index
    %c0_113 = arith.constant 0 : index
    %c3_114 = arith.constant 3 : index
    %c2_115 = arith.constant 2 : index
    %99 = vector.load %arg2[%c0_112, %c0_113, %c3_114, %c2_115] : memref<1x4x18x18xf32, #tpu.memory_space<vmem>>, vector<1x4x1x16xf32>
    %100 = vector.shape_cast %99 : vector<1x4x1x16xf32> to vector<4x16xf32>
    %cst_116 = arith.constant dense<0.000000e+00> : vector<8x16xf32>
    %101 = tpu.matmul %18, %100, %cst_116 {dimension_numbers = #tpu.dot_dimension_numbers<[1], [0], [0], [1], [0, 0, 1, 1], [], []>} : vector<8x4xf32>, vector<4x16xf32>, vector<8x16xf32> -> vector<8x16xf32>
    %102 = arith.addf %98, %101 : vector<8x16xf32>
    %103 = vector.broadcast %0 : vector<8x1xf32> to vector<8x16xf32>
    %104 = arith.addf %102, %103 : vector<8x16xf32>
    %cst_117 = arith.constant 0.000000e+00 : f32
    %105 = vector.broadcast %cst_117 : f32 to vector<8x16xf32>
    %106 = arith.cmpf oge, %104, %105 : vector<8x16xf32>
    %cst_118 = arith.constant 0.00999999977 : f32
    %107 = vector.broadcast %cst_118 : f32 to vector<8x16xf32>
    %108 = arith.mulf %107, %104 : vector<8x16xf32>
    %109 = arith.select %106, %104, %108 : vector<8x16xi1>, vector<8x16xf32>
    %c0_119 = arith.constant 0 : index
    %c0_120 = arith.constant 0 : index
    %c1_121 = arith.constant 1 : index
    %c0_122 = arith.constant 0 : index
    %110 = vector.load %arg5[%c0_119, %c0_120, %c1_121, %c0_122] : memref<1x8x16x16xf32, #tpu.memory_space<vmem>>, vector<1x8x1x16xf32>
    %111 = vector.shape_cast %110 : vector<1x8x1x16xf32> to vector<8x16xf32>
    %112 = vector.shape_cast %109 : vector<8x16xf32> to vector<1x8x1x16xf32>
    tpu.vector_store %arg5[%c0_119, %c0_120, %c1_121, %c0_122], %112 {strides = array<i32>} : memref<1x8x16x16xf32, #tpu.memory_space<vmem>>, vector<1x8x1x16xf32>,
    %cst_123 = arith.constant 0.000000e+00 : f32
    %113 = vector.broadcast %cst_123 : f32 to vector<8x16xf32>
    %c0_124 = arith.constant 0 : index
    %c0_125 = arith.constant 0 : index
    %c2_126 = arith.constant 2 : index
    %c0_127 = arith.constant 0 : index
    %114 = vector.load %arg2[%c0_124, %c0_125, %c2_126, %c0_127] : memref<1x4x18x18xf32, #tpu.memory_space<vmem>>, vector<1x4x1x16xf32>
    %115 = vector.shape_cast %114 : vector<1x4x1x16xf32> to vector<4x16xf32>
    %cst_128 = arith.constant dense<0.000000e+00> : vector<8x16xf32>
    %116 = tpu.matmul %2, %115, %cst_128 {dimension_numbers = #tpu.dot_dimension_numbers<[1], [0], [0], [1], [0, 0, 1, 1], [], []>} : vector<8x4xf32>, vector<4x16xf32>, vector<8x16xf32> -> vector<8x16xf32>
    %117 = arith.addf %113, %116 : vector<8x16xf32>
    %c0_129 = arith.constant 0 : index
    %c0_130 = arith.constant 0 : index
    %c2_131 = arith.constant 2 : index
    %c1_132 = arith.constant 1 : index
    %118 = vector.load %arg2[%c0_129, %c0_130, %c2_131, %c1_132] : memref<1x4x18x18xf32, #tpu.memory_space<vmem>>, vector<1x4x1x16xf32>
    %119 = vector.shape_cast %118 : vector<1x4x1x16xf32> to vector<4x16xf32>
    %cst_133 = arith.constant dense<0.000000e+00> : vector<8x16xf32>
    %120 = tpu.matmul %4, %119, %cst_133 {dimension_numbers = #tpu.dot_dimension_numbers<[1], [0], [0], [1], [0, 0, 1, 1], [], []>} : vector<8x4xf32>, vector<4x16xf32>, vector<8x16xf32> -> vector<8x16xf32>
    %121 = arith.addf %117, %120 : vector<8x16xf32>
    %c0_134 = arith.constant 0 : index
    %c0_135 = arith.constant 0 : index
    %c2_136 = arith.constant 2 : index
    %c2_137 = arith.constant 2 : index
    %122 = vector.load %arg2[%c0_134, %c0_135, %c2_136, %c2_137] : memref<1x4x18x18xf32, #tpu.memory_space<vmem>>, vector<1x4x1x16xf32>
    %123 = vector.shape_cast %122 : vector<1x4x1x16xf32> to vector<4x16xf32>
    %cst_138 = arith.constant dense<0.000000e+00> : vector<8x16xf32>
    %124 = tpu.matmul %6, %123, %cst_138 {dimension_numbers = #tpu.dot_dimension_numbers<[1], [0], [0], [1], [0, 0, 1, 1], [], []>} : vector<8x4xf32>, vector<4x16xf32>, vector<8x16xf32> -> vector<8x16xf32>
    %125 = arith.addf %121, %124 : vector<8x16xf32>
    %c0_139 = arith.constant 0 : index
    %c0_140 = arith.constant 0 : index
    %c3_141 = arith.constant 3 : index
    %c0_142 = arith.constant 0 : index
    %126 = vector.load %arg2[%c0_139, %c0_140, %c3_141, %c0_142] : memref<1x4x18x18xf32, #tpu.memory_space<vmem>>, vector<1x4x1x16xf32>
    %127 = vector.shape_cast %126 : vector<1x4x1x16xf32> to vector<4x16xf32>
    %cst_143 = arith.constant dense<0.000000e+00> : vector<8x16xf32>
    %128 = tpu.matmul %8, %127, %cst_143 {dimension_numbers = #tpu.dot_dimension_numbers<[1], [0], [0], [1], [0, 0, 1, 1], [], []>} : vector<8x4xf32>, vector<4x16xf32>, vector<8x16xf32> -> vector<8x16xf32>
    %129 = arith.addf %125, %128 : vector<8x16xf32>
    %c0_144 = arith.constant 0 : index
    %c0_145 = arith.constant 0 : index
    %c3_146 = arith.constant 3 : index
    %c1_147 = arith.constant 1 : index
    %130 = vector.load %arg2[%c0_144, %c0_145, %c3_146, %c1_147] : memref<1x4x18x18xf32, #tpu.memory_space<vmem>>, vector<1x4x1x16xf32>
    %131 = vector.shape_cast %130 : vector<1x4x1x16xf32> to vector<4x16xf32>
    %cst_148 = arith.constant dense<0.000000e+00> : vector<8x16xf32>
    %132 = tpu.matmul %10, %131, %cst_148 {dimension_numbers = #tpu.dot_dimension_numbers<[1], [0], [0], [1], [0, 0, 1, 1], [], []>} : vector<8x4xf32>, vector<4x16xf32>, vector<8x16xf32> -> vector<8x16xf32>
    %133 = arith.addf %129, %132 : vector<8x16xf32>
    %c0_149 = arith.constant 0 : index
    %c0_150 = arith.constant 0 : index
    %c3_151 = arith.constant 3 : index
    %c2_152 = arith.constant 2 : index
    %134 = vector.load %arg2[%c0_149, %c0_150, %c3_151, %c2_152] : memref<1x4x18x18xf32, #tpu.memory_space<vmem>>, vector<1x4x1x16xf32>
    %135 = vector.shape_cast %134 : vector<1x4x1x16xf32> to vector<4x16xf32>
    %cst_153 = arith.constant dense<0.000000e+00> : vector<8x16xf32>
    %136 = tpu.matmul %12, %135, %cst_153 {dimension_numbers = #tpu.dot_dimension_numbers<[1], [0], [0], [1], [0, 0, 1, 1], [], []>} : vector<8x4xf32>, vector<4x16xf32>, vector<8x16xf32> -> vector<8x16xf32>
    %137 = arith.addf %133, %136 : vector<8x16xf32>
    %c0_154 = arith.constant 0 : index
    %c0_155 = arith.constant 0 : index
    %c4_156 = arith.constant 4 : index
    %c0_157 = arith.constant 0 : index
    %138 = vector.load %arg2[%c0_154, %c0_155, %c4_156, %c0_157] : memref<1x4x18x18xf32, #tpu.memory_space<vmem>>, vector<1x4x1x16xf32>
    %139 = vector.shape_cast %138 : vector<1x4x1x16xf32> to vector<4x16xf32>
    %cst_158 = arith.constant dense<0.000000e+00> : vector<8x16xf32>
    %140 = tpu.matmul %14, %139, %cst_158 {dimension_numbers = #tpu.dot_dimension_numbers<[1], [0], [0], [1], [0, 0, 1, 1], [], []>} : vector<8x4xf32>, vector<4x16xf32>, vector<8x16xf32> -> vector<8x16xf32>
    %141 = arith.addf %137, %140 : vector<8x16xf32>
    %c0_159 = arith.constant 0 : index
    %c0_160 = arith.constant 0 : index
    %c4_161 = arith.constant 4 : index
    %c1_162 = arith.constant 1 : index
    %142 = vector.load %arg2[%c0_159, %c0_160, %c4_161, %c1_162] : memref<1x4x18x18xf32, #tpu.memory_space<vmem>>, vector<1x4x1x16xf32>
    %143 = vector.shape_cast %142 : vector<1x4x1x16xf32> to vector<4x16xf32>
    %cst_163 = arith.constant dense<0.000000e+00> : vector<8x16xf32>
    %144 = tpu.matmul %16, %143, %cst_163 {dimension_numbers = #tpu.dot_dimension_numbers<[1], [0], [0], [1], [0, 0, 1, 1], [], []>} : vector<8x4xf32>, vector<4x16xf32>, vector<8x16xf32> -> vector<8x16xf32>
    %145 = arith.addf %141, %144 : vector<8x16xf32>
    %c0_164 = arith.constant 0 : index
    %c0_165 = arith.constant 0 : index
    %c4_166 = arith.constant 4 : index
    %c2_167 = arith.constant 2 : index
    %146 = vector.load %arg2[%c0_164, %c0_165, %c4_166, %c2_167] : memref<1x4x18x18xf32, #tpu.memory_space<vmem>>, vector<1x4x1x16xf32>
    %147 = vector.shape_cast %146 : vector<1x4x1x16xf32> to vector<4x16xf32>
    %cst_168 = arith.constant dense<0.000000e+00> : vector<8x16xf32>
    %148 = tpu.matmul %18, %147, %cst_168 {dimension_numbers = #tpu.dot_dimension_numbers<[1], [0], [0], [1], [0, 0, 1, 1], [], []>} : vector<8x4xf32>, vector<4x16xf32>, vector<8x16xf32> -> vector<8x16xf32>
    %149 = arith.addf %145, %148 : vector<8x16xf32>
    %150 = vector.broadcast %0 : vector<8x1xf32> to vector<8x16xf32>
    %151 = arith.addf %149, %150 : vector<8x16xf32>
    %cst_169 = arith.constant 0.000000e+00 : f32
    %152 = vector.broadcast %cst_169 : f32 to vector<8x16xf32>
    %153 = arith.cmpf oge, %151, %152 : vector<8x16xf32>
    %cst_170 = arith.constant 0.00999999977 : f32
    %154 = vector.broadcast %cst_170 : f32 to vector<8x16xf32>
    %155 = arith.mulf %154, %151 : vector<8x16xf32>
    %156 = arith.select %153, %151, %155 : vector<8x16xi1>, vector<8x16xf32>
    %c0_171 = arith.constant 0 : index
    %c0_172 = arith.constant 0 : index
    %c2_173 = arith.constant 2 : index
    %c0_174 = arith.constant 0 : index
    %157 = vector.load %arg5[%c0_171, %c0_172, %c2_173, %c0_174] : memref<1x8x16x16xf32, #tpu.memory_space<vmem>>, vector<1x8x1x16xf32>
    %158 = vector.shape_cast %157 : vector<1x8x1x16xf32> to vector<8x16xf32>
    %159 = vector.shape_cast %156 : vector<8x16xf32> to vector<1x8x1x16xf32>
    tpu.vector_store %arg5[%c0_171, %c0_172, %c2_173, %c0_174], %159 {strides = array<i32>} : memref<1x8x16x16xf32, #tpu.memory_space<vmem>>, vector<1x8x1x16xf32>,
    %cst_175 = arith.constant 0.000000e+00 : f32
    %160 = vector.broadcast %cst_175 : f32 to vector<8x16xf32>
    %c0_176 = arith.constant 0 : index
    %c0_177 = arith.constant 0 : index
    %c3_178 = arith.constant 3 : index
    %c0_179 = arith.constant 0 : index
    %161 = vector.load %arg2[%c0_176, %c0_177, %c3_178, %c0_179] : memref<1x4x18x18xf32, #tpu.memory_space<vmem>>, vector<1x4x1x16xf32>
    %162 = vector.shape_cast %161 : vector<1x4x1x16xf32> to vector<4x16xf32>
    %cst_180 = arith.constant dense<0.000000e+00> : vector<8x16xf32>
    %163 = tpu.matmul %2, %162, %cst_180 {dimension_numbers = #tpu.dot_dimension_numbers<[1], [0], [0], [1], [0, 0, 1, 1], [], []>} : vector<8x4xf32>, vector<4x16xf32>, vector<8x16xf32> -> vector<8x16xf32>
    %164 = arith.addf %160, %163 : vector<8x16xf32>
    %c0_181 = arith.constant 0 : index
    %c0_182 = arith.constant 0 : index
    %c3_183 = arith.constant 3 : index
    %c1_184 = arith.constant 1 : index
    %165 = vector.load %arg2[%c0_181, %c0_182, %c3_183, %c1_184] : memref<1x4x18x18xf32, #tpu.memory_space<vmem>>, vector<1x4x1x16xf32>
    %166 = vector.shape_cast %165 : vector<1x4x1x16xf32> to vector<4x16xf32>
    %cst_185 = arith.constant dense<0.000000e+00> : vector<8x16xf32>
    %167 = tpu.matmul %4, %166, %cst_185 {dimension_numbers = #tpu.dot_dimension_numbers<[1], [0], [0], [1], [0, 0, 1, 1], [], []>} : vector<8x4xf32>, vector<4x16xf32>, vector<8x16xf32> -> vector<8x16xf32>
    %168 = arith.addf %164, %167 : vector<8x16xf32>
    %c0_186 = arith.constant 0 : index
    %c0_187 = arith.constant 0 : index
    %c3_188 = arith.constant 3 : index
    %c2_189 = arith.constant 2 : index
    %169 = vector.load %arg2[%c0_186, %c0_187, %c3_188, %c2_189] : memref<1x4x18x18xf32, #tpu.memory_space<vmem>>, vector<1x4x1x16xf32>
    %170 = vector.shape_cast %169 : vector<1x4x1x16xf32> to vector<4x16xf32>
    %cst_190 = arith.constant dense<0.000000e+00> : vector<8x16xf32>
    %171 = tpu.matmul %6, %170, %cst_190 {dimension_numbers = #tpu.dot_dimension_numbers<[1], [0], [0], [1], [0, 0, 1, 1], [], []>} : vector<8x4xf32>, vector<4x16xf32>, vector<8x16xf32> -> vector<8x16xf32>
    %172 = arith.addf %168, %171 : vector<8x16xf32>
    %c0_191 = arith.constant 0 : index
    %c0_192 = arith.constant 0 : index
    %c4_193 = arith.constant 4 : index
    %c0_194 = arith.constant 0 : index
    %173 = vector.load %arg2[%c0_191, %c0_192, %c4_193, %c0_194] : memref<1x4x18x18xf32, #tpu.memory_space<vmem>>, vector<1x4x1x16xf32>
    %174 = vector.shape_cast %173 : vector<1x4x1x16xf32> to vector<4x16xf32>
    %cst_195 = arith.constant dense<0.000000e+00> : vector<8x16xf32>
    %175 = tpu.matmul %8, %174, %cst_195 {dimension_numbers = #tpu.dot_dimension_numbers<[1], [0], [0], [1], [0, 0, 1, 1], [], []>} : vector<8x4xf32>, vector<4x16xf32>, vector<8x16xf32> -> vector<8x16xf32>
    %176 = arith.addf %172, %175 : vector<8x16xf32>
    %c0_196 = arith.constant 0 : index
    %c0_197 = arith.constant 0 : index
    %c4_198 = arith.constant 4 : index
    %c1_199 = arith.constant 1 : index
    %177 = vector.load %arg2[%c0_196, %c0_197, %c4_198, %c1_199] : memref<1x4x18x18xf32, #tpu.memory_space<vmem>>, vector<1x4x1x16xf32>
    %178 = vector.shape_cast %177 : vector<1x4x1x16xf32> to vector<4x16xf32>
    %cst_200 = arith.constant dense<0.000000e+00> : vector<8x16xf32>
    %179 = tpu.matmul %10, %178, %cst_200 {dimension_numbers = #tpu.dot_dimension_numbers<[1], [0], [0], [1], [0, 0, 1, 1], [], []>} : vector<8x4xf32>, vector<4x16xf32>, vector<8x16xf32> -> vector<8x16xf32>
    %180 = arith.addf %176, %179 : vector<8x16xf32>
    %c0_201 = arith.constant 0 : index
    %c0_202 = arith.constant 0 : index
    %c4_203 = arith.constant 4 : index
    %c2_204 = arith.constant 2 : index
    %181 = vector.load %arg2[%c0_201, %c0_202, %c4_203, %c2_204] : memref<1x4x18x18xf32, #tpu.memory_space<vmem>>, vector<1x4x1x16xf32>
    %182 = vector.shape_cast %181 : vector<1x4x1x16xf32> to vector<4x16xf32>
    %cst_205 = arith.constant dense<0.000000e+00> : vector<8x16xf32>
    %183 = tpu.matmul %12, %182, %cst_205 {dimension_numbers = #tpu.dot_dimension_numbers<[1], [0], [0], [1], [0, 0, 1, 1], [], []>} : vector<8x4xf32>, vector<4x16xf32>, vector<8x16xf32> -> vector<8x16xf32>
    %184 = arith.addf %180, %183 : vector<8x16xf32>
    %c0_206 = arith.constant 0 : index
    %c0_207 = arith.constant 0 : index
    %c5_208 = arith.constant 5 : index
    %c0_209 = arith.constant 0 : index
    %185 = vector.load %arg2[%c0_206, %c0_207, %c5_208, %c0_209] : memref<1x4x18x18xf32, #tpu.memory_space<vmem>>, vector<1x4x1x16xf32>
    %186 = vector.shape_cast %185 : vector<1x4x1x16xf32> to vector<4x16xf32>
    %cst_210 = arith.constant dense<0.000000e+00> : vector<8x16xf32>
    %187 = tpu.matmul %14, %186, %cst_210 {dimension_numbers = #tpu.dot_dimension_numbers<[1], [0], [0], [1], [0, 0, 1, 1], [], []>} : vector<8x4xf32>, vector<4x16xf32>, vector<8x16xf32> -> vector<8x16xf32>
    %188 = arith.addf %184, %187 : vector<8x16xf32>
    %c0_211 = arith.constant 0 : index
    %c0_212 = arith.constant 0 : index
    %c5_213 = arith.constant 5 : index
    %c1_214 = arith.constant 1 : index
    %189 = vector.load %arg2[%c0_211, %c0_212, %c5_213, %c1_214] : memref<1x4x18x18xf32, #tpu.memory_space<vmem>>, vector<1x4x1x16xf32>
    %190 = vector.shape_cast %189 : vector<1x4x1x16xf32> to vector<4x16xf32>
    %cst_215 = arith.constant dense<0.000000e+00> : vector<8x16xf32>
    %191 = tpu.matmul %16, %190, %cst_215 {dimension_numbers = #tpu.dot_dimension_numbers<[1], [0], [0], [1], [0, 0, 1, 1], [], []>} : vector<8x4xf32>, vector<4x16xf32>, vector<8x16xf32> -> vector<8x16xf32>
    %192 = arith.addf %188, %191 : vector<8x16xf32>
    %c0_216 = arith.constant 0 : index
    %c0_217 = arith.constant 0 : index
    %c5_218 = arith.constant 5 : index
    %c2_219 = arith.constant 2 : index
    %193 = vector.load %arg2[%c0_216, %c0_217, %c5_218, %c2_219] : memref<1x4x18x18xf32, #tpu.memory_space<vmem>>, vector<1x4x1x16xf32>
    %194 = vector.shape_cast %193 : vector<1x4x1x16xf32> to vector<4x16xf32>
    %cst_220 = arith.constant dense<0.000000e+00> : vector<8x16xf32>
    %195 = tpu.matmul %18, %194, %cst_220 {dimension_numbers = #tpu.dot_dimension_numbers<[1], [0], [0], [1], [0, 0, 1, 1], [], []>} : vector<8x4xf32>, vector<4x16xf32>, vector<8x16xf32> -> vector<8x16xf32>
    %196 = arith.addf %192, %195 : vector<8x16xf32>
    %197 = vector.broadcast %0 : vector<8x1xf32> to vector<8x16xf32>
    %198 = arith.addf %196, %197 : vector<8x16xf32>
    %cst_221 = arith.constant 0.000000e+00 : f32
    %199 = vector.broadcast %cst_221 : f32 to vector<8x16xf32>
    %200 = arith.cmpf oge, %198, %199 : vector<8x16xf32>
    %cst_222 = arith.constant 0.00999999977 : f32
    %201 = vector.broadcast %cst_222 : f32 to vector<8x16xf32>
    %202 = arith.mulf %201, %198 : vector<8x16xf32>
    %203 = arith.select %200, %198, %202 : vector<8x16xi1>, vector<8x16xf32>
    %c0_223 = arith.constant 0 : index
    %c0_224 = arith.constant 0 : index
    %c3_225 = arith.constant 3 : index
    %c0_226 = arith.constant 0 : index
    %204 = vector.load %arg5[%c0_223, %c0_224, %c3_225, %c0_226] : memref<1x8x16x16xf32, #tpu.memory_space<vmem>>, vector<1x8x1x16xf32>
    %205 = vector.shape_cast %204 : vector<1x8x1x16xf32> to vector<8x16xf32>
    %206 = vector.shape_cast %203 : vector<8x16xf32> to vector<1x8x1x16xf32>
    tpu.vector_store %arg5[%c0_223, %c0_224, %c3_225, %c0_226], %206 {strides = array<i32>} : memref<1x8x16x16xf32, #tpu.memory_space<vmem>>, vector<1x8x1x16xf32>,
    %cst_227 = arith.constant 0.000000e+00 : f32
    %207 = vector.broadcast %cst_227 : f32 to vector<8x16xf32>
    %c0_228 = arith.constant 0 : index
    %c0_229 = arith.constant 0 : index
    %c4_230 = arith.constant 4 : index
    %c0_231 = arith.constant 0 : index
    %208 = vector.load %arg2[%c0_228, %c0_229, %c4_230, %c0_231] : memref<1x4x18x18xf32, #tpu.memory_space<vmem>>, vector<1x4x1x16xf32>
    %209 = vector.shape_cast %208 : vector<1x4x1x16xf32> to vector<4x16xf32>
    %cst_232 = arith.constant dense<0.000000e+00> : vector<8x16xf32>
    %210 = tpu.matmul %2, %209, %cst_232 {dimension_numbers = #tpu.dot_dimension_numbers<[1], [0], [0], [1], [0, 0, 1, 1], [], []>} : vector<8x4xf32>, vector<4x16xf32>, vector<8x16xf32> -> vector<8x16xf32>
    %211 = arith.addf %207, %210 : vector<8x16xf32>
    %c0_233 = arith.constant 0 : index
    %c0_234 = arith.constant 0 : index
    %c4_235 = arith.constant 4 : index
    %c1_236 = arith.constant 1 : index
    %212 = vector.load %arg2[%c0_233, %c0_234, %c4_235, %c1_236] : memref<1x4x18x18xf32, #tpu.memory_space<vmem>>, vector<1x4x1x16xf32>
    %213 = vector.shape_cast %212 : vector<1x4x1x16xf32> to vector<4x16xf32>
    %cst_237 = arith.constant dense<0.000000e+00> : vector<8x16xf32>
    %214 = tpu.matmul %4, %213, %cst_237 {dimension_numbers = #tpu.dot_dimension_numbers<[1], [0], [0], [1], [0, 0, 1, 1], [], []>} : vector<8x4xf32>, vector<4x16xf32>, vector<8x16xf32> -> vector<8x16xf32>
    %215 = arith.addf %211, %214 : vector<8x16xf32>
    %c0_238 = arith.constant 0 : index
    %c0_239 = arith.constant 0 : index
    %c4_240 = arith.constant 4 : index
    %c2_241 = arith.constant 2 : index
    %216 = vector.load %arg2[%c0_238, %c0_239, %c4_240, %c2_241] : memref<1x4x18x18xf32, #tpu.memory_space<vmem>>, vector<1x4x1x16xf32>
    %217 = vector.shape_cast %216 : vector<1x4x1x16xf32> to vector<4x16xf32>
    %cst_242 = arith.constant dense<0.000000e+00> : vector<8x16xf32>
    %218 = tpu.matmul %6, %217, %cst_242 {dimension_numbers = #tpu.dot_dimension_numbers<[1], [0], [0], [1], [0, 0, 1, 1], [], []>} : vector<8x4xf32>, vector<4x16xf32>, vector<8x16xf32> -> vector<8x16xf32>
    %219 = arith.addf %215, %218 : vector<8x16xf32>
    %c0_243 = arith.constant 0 : index
    %c0_244 = arith.constant 0 : index
    %c5_245 = arith.constant 5 : index
    %c0_246 = arith.constant 0 : index
    %220 = vector.load %arg2[%c0_243, %c0_244, %c5_245, %c0_246] : memref<1x4x18x18xf32, #tpu.memory_space<vmem>>, vector<1x4x1x16xf32>
    %221 = vector.shape_cast %220 : vector<1x4x1x16xf32> to vector<4x16xf32>
    %cst_247 = arith.constant dense<0.000000e+00> : vector<8x16xf32>
    %222 = tpu.matmul %8, %221, %cst_247 {dimension_numbers = #tpu.dot_dimension_numbers<[1], [0], [0], [1], [0, 0, 1, 1], [], []>} : vector<8x4xf32>, vector<4x16xf32>, vector<8x16xf32> -> vector<8x16xf32>
    %223 = arith.addf %219, %222 : vector<8x16xf32>
    %c0_248 = arith.constant 0 : index
    %c0_249 = arith.constant 0 : index
    %c5_250 = arith.constant 5 : index
    %c1_251 = arith.constant 1 : index
    %224 = vector.load %arg2[%c0_248, %c0_249, %c5_250, %c1_251] : memref<1x4x18x18xf32, #tpu.memory_space<vmem>>, vector<1x4x1x16xf32>
    %225 = vector.shape_cast %224 : vector<1x4x1x16xf32> to vector<4x16xf32>
    %cst_252 = arith.constant dense<0.000000e+00> : vector<8x16xf32>
    %226 = tpu.matmul %10, %225, %cst_252 {dimension_numbers = #tpu.dot_dimension_numbers<[1], [0], [0], [1], [0, 0, 1, 1], [], []>} : vector<8x4xf32>, vector<4x16xf32>, vector<8x16xf32> -> vector<8x16xf32>
    %227 = arith.addf %223, %226 : vector<8x16xf32>
    %c0_253 = arith.constant 0 : index
    %c0_254 = arith.constant 0 : index
    %c5_255 = arith.constant 5 : index
    %c2_256 = arith.constant 2 : index
    %228 = vector.load %arg2[%c0_253, %c0_254, %c5_255, %c2_256] : memref<1x4x18x18xf32, #tpu.memory_space<vmem>>, vector<1x4x1x16xf32>
    %229 = vector.shape_cast %228 : vector<1x4x1x16xf32> to vector<4x16xf32>
    %cst_257 = arith.constant dense<0.000000e+00> : vector<8x16xf32>
    %230 = tpu.matmul %12, %229, %cst_257 {dimension_numbers = #tpu.dot_dimension_numbers<[1], [0], [0], [1], [0, 0, 1, 1], [], []>} : vector<8x4xf32>, vector<4x16xf32>, vector<8x16xf32> -> vector<8x16xf32>
    %231 = arith.addf %227, %230 : vector<8x16xf32>
    %c0_258 = arith.constant 0 : index
    %c0_259 = arith.constant 0 : index
    %c6_260 = arith.constant 6 : index
    %c0_261 = arith.constant 0 : index
    %232 = vector.load %arg2[%c0_258, %c0_259, %c6_260, %c0_261] : memref<1x4x18x18xf32, #tpu.memory_space<vmem>>, vector<1x4x1x16xf32>
    %233 = vector.shape_cast %232 : vector<1x4x1x16xf32> to vector<4x16xf32>
    %cst_262 = arith.constant dense<0.000000e+00> : vector<8x16xf32>
    %234 = tpu.matmul %14, %233, %cst_262 {dimension_numbers = #tpu.dot_dimension_numbers<[1], [0], [0], [1], [0, 0, 1, 1], [], []>} : vector<8x4xf32>, vector<4x16xf32>, vector<8x16xf32> -> vector<8x16xf32>
    %235 = arith.addf %231, %234 : vector<8x16xf32>
    %c0_263 = arith.constant 0 : index
    %c0_264 = arith.constant 0 : index
    %c6_265 = arith.constant 6 : index
    %c1_266 = arith.constant 1 : index
    %236 = vector.load %arg2[%c0_263, %c0_264, %c6_265, %c1_266] : memref<1x4x18x18xf32, #tpu.memory_space<vmem>>, vector<1x4x1x16xf32>
    %237 = vector.shape_cast %236 : vector<1x4x1x16xf32> to vector<4x16xf32>
    %cst_267 = arith.constant dense<0.000000e+00> : vector<8x16xf32>
    %238 = tpu.matmul %16, %237, %cst_267 {dimension_numbers = #tpu.dot_dimension_numbers<[1], [0], [0], [1], [0, 0, 1, 1], [], []>} : vector<8x4xf32>, vector<4x16xf32>, vector<8x16xf32> -> vector<8x16xf32>
    %239 = arith.addf %235, %238 : vector<8x16xf32>
    %c0_268 = arith.constant 0 : index
    %c0_269 = arith.constant 0 : index
    %c6_270 = arith.constant 6 : index
    %c2_271 = arith.constant 2 : index
    %240 = vector.load %arg2[%c0_268, %c0_269, %c6_270, %c2_271] : memref<1x4x18x18xf32, #tpu.memory_space<vmem>>, vector<1x4x1x16xf32>
    %241 = vector.shape_cast %240 : vector<1x4x1x16xf32> to vector<4x16xf32>
    %cst_272 = arith.constant dense<0.000000e+00> : vector<8x16xf32>
    %242 = tpu.matmul %18, %241, %cst_272 {dimension_numbers = #tpu.dot_dimension_numbers<[1], [0], [0], [1], [0, 0, 1, 1], [], []>} : vector<8x4xf32>, vector<4x16xf32>, vector<8x16xf32> -> vector<8x16xf32>
    %243 = arith.addf %239, %242 : vector<8x16xf32>
    %244 = vector.broadcast %0 : vector<8x1xf32> to vector<8x16xf32>
    %245 = arith.addf %243, %244 : vector<8x16xf32>
    %cst_273 = arith.constant 0.000000e+00 : f32
    %246 = vector.broadcast %cst_273 : f32 to vector<8x16xf32>
    %247 = arith.cmpf oge, %245, %246 : vector<8x16xf32>
    %cst_274 = arith.constant 0.00999999977 : f32
    %248 = vector.broadcast %cst_274 : f32 to vector<8x16xf32>
    %249 = arith.mulf %248, %245 : vector<8x16xf32>
    %250 = arith.select %247, %245, %249 : vector<8x16xi1>, vector<8x16xf32>
    %c0_275 = arith.constant 0 : index
    %c0_276 = arith.constant 0 : index
    %c4_277 = arith.constant 4 : index
    %c0_278 = arith.constant 0 : index
    %251 = vector.load %arg5[%c0_275, %c0_276, %c4_277, %c0_278] : memref<1x8x16x16xf32, #tpu.memory_space<vmem>>, vector<1x8x1x16xf32>
    %252 = vector.shape_cast %251 : vector<1x8x1x16xf32> to vector<8x16xf32>
    %253 = vector.shape_cast %250 : vector<8x16xf32> to vector<1x8x1x16xf32>
    tpu.vector_store %arg5[%c0_275, %c0_276, %c4_277, %c0_278], %253 {strides = array<i32>} : memref<1x8x16x16xf32, #tpu.memory_space<vmem>>, vector<1x8x1x16xf32>,
    %cst_279 = arith.constant 0.000000e+00 : f32
    %254 = vector.broadcast %cst_279 : f32 to vector<8x16xf32>
    %c0_280 = arith.constant 0 : index
    %c0_281 = arith.constant 0 : index
    %c5_282 = arith.constant 5 : index
    %c0_283 = arith.constant 0 : index
    %255 = vector.load %arg2[%c0_280, %c0_281, %c5_282, %c0_283] : memref<1x4x18x18xf32, #tpu.memory_space<vmem>>, vector<1x4x1x16xf32>
    %256 = vector.shape_cast %255 : vector<1x4x1x16xf32> to vector<4x16xf32>
    %cst_284 = arith.constant dense<0.000000e+00> : vector<8x16xf32>
    %257 = tpu.matmul %2, %256, %cst_284 {dimension_numbers = #tpu.dot_dimension_numbers<[1], [0], [0], [1], [0, 0, 1, 1], [], []>} : vector<8x4xf32>, vector<4x16xf32>, vector<8x16xf32> -> vector<8x16xf32>
    %258 = arith.addf %254, %257 : vector<8x16xf32>
    %c0_285 = arith.constant 0 : index
    %c0_286 = arith.constant 0 : index
    %c5_287 = arith.constant 5 : index
    %c1_288 = arith.constant 1 : index
    %259 = vector.load %arg2[%c0_285, %c0_286, %c5_287, %c1_288] : memref<1x4x18x18xf32, #tpu.memory_space<vmem>>, vector<1x4x1x16xf32>
    %260 = vector.shape_cast %259 : vector<1x4x1x16xf32> to vector<4x16xf32>
    %cst_289 = arith.constant dense<0.000000e+00> : vector<8x16xf32>
    %261 = tpu.matmul %4, %260, %cst_289 {dimension_numbers = #tpu.dot_dimension_numbers<[1], [0], [0], [1], [0, 0, 1, 1], [], []>} : vector<8x4xf32>, vector<4x16xf32>, vector<8x16xf32> -> vector<8x16xf32>
    %262 = arith.addf %258, %261 : vector<8x16xf32>
    %c0_290 = arith.constant 0 : index
    %c0_291 = arith.constant 0 : index
    %c5_292 = arith.constant 5 : index
    %c2_293 = arith.constant 2 : index
    %263 = vector.load %arg2[%c0_290, %c0_291, %c5_292, %c2_293] : memref<1x4x18x18xf32, #tpu.memory_space<vmem>>, vector<1x4x1x16xf32>
    %264 = vector.shape_cast %263 : vector<1x4x1x16xf32> to vector<4x16xf32>
    %cst_294 = arith.constant dense<0.000000e+00> : vector<8x16xf32>
    %265 = tpu.matmul %6, %264, %cst_294 {dimension_numbers = #tpu.dot_dimension_numbers<[1], [0], [0], [1], [0, 0, 1, 1], [], []>} : vector<8x4xf32>, vector<4x16xf32>, vector<8x16xf32> -> vector<8x16xf32>
    %266 = arith.addf %262, %265 : vector<8x16xf32>
    %c0_295 = arith.constant 0 : index
    %c0_296 = arith.constant 0 : index
    %c6_297 = arith.constant 6 : index
    %c0_298 = arith.constant 0 : index
    %267 = vector.load %arg2[%c0_295, %c0_296, %c6_297, %c0_298] : memref<1x4x18x18xf32, #tpu.memory_space<vmem>>, vector<1x4x1x16xf32>
    %268 = vector.shape_cast %267 : vector<1x4x1x16xf32> to vector<4x16xf32>
    %cst_299 = arith.constant dense<0.000000e+00> : vector<8x16xf32>
    %269 = tpu.matmul %8, %268, %cst_299 {dimension_numbers = #tpu.dot_dimension_numbers<[1], [0], [0], [1], [0, 0, 1, 1], [], []>} : vector<8x4xf32>, vector<4x16xf32>, vector<8x16xf32> -> vector<8x16xf32>
    %270 = arith.addf %266, %269 : vector<8x16xf32>
    %c0_300 = arith.constant 0 : index
    %c0_301 = arith.constant 0 : index
    %c6_302 = arith.constant 6 : index
    %c1_303 = arith.constant 1 : index
    %271 = vector.load %arg2[%c0_300, %c0_301, %c6_302, %c1_303] : memref<1x4x18x18xf32, #tpu.memory_space<vmem>>, vector<1x4x1x16xf32>
    %272 = vector.shape_cast %271 : vector<1x4x1x16xf32> to vector<4x16xf32>
    %cst_304 = arith.constant dense<0.000000e+00> : vector<8x16xf32>
    %273 = tpu.matmul %10, %272, %cst_304 {dimension_numbers = #tpu.dot_dimension_numbers<[1], [0], [0], [1], [0, 0, 1, 1], [], []>} : vector<8x4xf32>, vector<4x16xf32>, vector<8x16xf32> -> vector<8x16xf32>
    %274 = arith.addf %270, %273 : vector<8x16xf32>
    %c0_305 = arith.constant 0 : index
    %c0_306 = arith.constant 0 : index
    %c6_307 = arith.constant 6 : index
    %c2_308 = arith.constant 2 : index
    %275 = vector.load %arg2[%c0_305, %c0_306, %c6_307, %c2_308] : memref<1x4x18x18xf32, #tpu.memory_space<vmem>>, vector<1x4x1x16xf32>
    %276 = vector.shape_cast %275 : vector<1x4x1x16xf32> to vector<4x16xf32>
    %cst_309 = arith.constant dense<0.000000e+00> : vector<8x16xf32>
    %277 = tpu.matmul %12, %276, %cst_309 {dimension_numbers = #tpu.dot_dimension_numbers<[1], [0], [0], [1], [0, 0, 1, 1], [], []>} : vector<8x4xf32>, vector<4x16xf32>, vector<8x16xf32> -> vector<8x16xf32>
    %278 = arith.addf %274, %277 : vector<8x16xf32>
    %c0_310 = arith.constant 0 : index
    %c0_311 = arith.constant 0 : index
    %c7_312 = arith.constant 7 : index
    %c0_313 = arith.constant 0 : index
    %279 = vector.load %arg2[%c0_310, %c0_311, %c7_312, %c0_313] : memref<1x4x18x18xf32, #tpu.memory_space<vmem>>, vector<1x4x1x16xf32>
    %280 = vector.shape_cast %279 : vector<1x4x1x16xf32> to vector<4x16xf32>
    %cst_314 = arith.constant dense<0.000000e+00> : vector<8x16xf32>
    %281 = tpu.matmul %14, %280, %cst_314 {dimension_numbers = #tpu.dot_dimension_numbers<[1], [0], [0], [1], [0, 0, 1, 1], [], []>} : vector<8x4xf32>, vector<4x16xf32>, vector<8x16xf32> -> vector<8x16xf32>
    %282 = arith.addf %278, %281 : vector<8x16xf32>
    %c0_315 = arith.constant 0 : index
    %c0_316 = arith.constant 0 : index
    %c7_317 = arith.constant 7 : index
    %c1_318 = arith.constant 1 : index
    %283 = vector.load %arg2[%c0_315, %c0_316, %c7_317, %c1_318] : memref<1x4x18x18xf32, #tpu.memory_space<vmem>>, vector<1x4x1x16xf32>
    %284 = vector.shape_cast %283 : vector<1x4x1x16xf32> to vector<4x16xf32>
    %cst_319 = arith.constant dense<0.000000e+00> : vector<8x16xf32>
    %285 = tpu.matmul %16, %284, %cst_319 {dimension_numbers = #tpu.dot_dimension_numbers<[1], [0], [0], [1], [0, 0, 1, 1], [], []>} : vector<8x4xf32>, vector<4x16xf32>, vector<8x16xf32> -> vector<8x16xf32>
    %286 = arith.addf %282, %285 : vector<8x16xf32>
    %c0_320 = arith.constant 0 : index
    %c0_321 = arith.constant 0 : index
    %c7_322 = arith.constant 7 : index
    %c2_323 = arith.constant 2 : index
    %287 = vector.load %arg2[%c0_320, %c0_321, %c7_322, %c2_323] : memref<1x4x18x18xf32, #tpu.memory_space<vmem>>, vector<1x4x1x16xf32>
    %288 = vector.shape_cast %287 : vector<1x4x1x16xf32> to vector<4x16xf32>
    %cst_324 = arith.constant dense<0.000000e+00> : vector<8x16xf32>
    %289 = tpu.matmul %18, %288, %cst_324 {dimension_numbers = #tpu.dot_dimension_numbers<[1], [0], [0], [1], [0, 0, 1, 1], [], []>} : vector<8x4xf32>, vector<4x16xf32>, vector<8x16xf32> -> vector<8x16xf32>
    %290 = arith.addf %286, %289 : vector<8x16xf32>
    %291 = vector.broadcast %0 : vector<8x1xf32> to vector<8x16xf32>
    %292 = arith.addf %290, %291 : vector<8x16xf32>
    %cst_325 = arith.constant 0.000000e+00 : f32
    %293 = vector.broadcast %cst_325 : f32 to vector<8x16xf32>
    %294 = arith.cmpf oge, %292, %293 : vector<8x16xf32>
    %cst_326 = arith.constant 0.00999999977 : f32
    %295 = vector.broadcast %cst_326 : f32 to vector<8x16xf32>
    %296 = arith.mulf %295, %292 : vector<8x16xf32>
    %297 = arith.select %294, %292, %296 : vector<8x16xi1>, vector<8x16xf32>
    %c0_327 = arith.constant 0 : index
    %c0_328 = arith.constant 0 : index
    %c5_329 = arith.constant 5 : index
    %c0_330 = arith.constant 0 : index
    %298 = vector.load %arg5[%c0_327, %c0_328, %c5_329, %c0_330] : memref<1x8x16x16xf32, #tpu.memory_space<vmem>>, vector<1x8x1x16xf32>
    %299 = vector.shape_cast %298 : vector<1x8x1x16xf32> to vector<8x16xf32>
    %300 = vector.shape_cast %297 : vector<8x16xf32> to vector<1x8x1x16xf32>
    tpu.vector_store %arg5[%c0_327, %c0_328, %c5_329, %c0_330], %300 {strides = array<i32>} : memref<1x8x16x16xf32, #tpu.memory_space<vmem>>, vector<1x8x1x16xf32>,
    %cst_331 = arith.constant 0.000000e+00 : f32
    %301 = vector.broadcast %cst_331 : f32 to vector<8x16xf32>
    %c0_332 = arith.constant 0 : index
    %c0_333 = arith.constant 0 : index
    %c6_334 = arith.constant 6 : index
    %c0_335 = arith.constant 0 : index
    %302 = vector.load %arg2[%c0_332, %c0_333, %c6_334, %c0_335] : memref<1x4x18x18xf32, #tpu.memory_space<vmem>>, vector<1x4x1x16xf32>
    %303 = vector.shape_cast %302 : vector<1x4x1x16xf32> to vector<4x16xf32>
    %cst_336 = arith.constant dense<0.000000e+00> : vector<8x16xf32>
    %304 = tpu.matmul %2, %303, %cst_336 {dimension_numbers = #tpu.dot_dimension_numbers<[1], [0], [0], [1], [0, 0, 1, 1], [], []>} : vector<8x4xf32>, vector<4x16xf32>, vector<8x16xf32> -> vector<8x16xf32>
    %305 = arith.addf %301, %304 : vector<8x16xf32>
    %c0_337 = arith.constant 0 : index
    %c0_338 = arith.constant 0 : index
    %c6_339 = arith.constant 6 : index
    %c1_340 = arith.constant 1 : index
    %306 = vector.load %arg2[%c0_337, %c0_338, %c6_339, %c1_340] : memref<1x4x18x18xf32, #tpu.memory_space<vmem>>, vector<1x4x1x16xf32>
    %307 = vector.shape_cast %306 : vector<1x4x1x16xf32> to vector<4x16xf32>
    %cst_341 = arith.constant dense<0.000000e+00> : vector<8x16xf32>
    %308 = tpu.matmul %4, %307, %cst_341 {dimension_numbers = #tpu.dot_dimension_numbers<[1], [0], [0], [1], [0, 0, 1, 1], [], []>} : vector<8x4xf32>, vector<4x16xf32>, vector<8x16xf32> -> vector<8x16xf32>
    %309 = arith.addf %305, %308 : vector<8x16xf32>
    %c0_342 = arith.constant 0 : index
    %c0_343 = arith.constant 0 : index
    %c6_344 = arith.constant 6 : index
    %c2_345 = arith.constant 2 : index
    %310 = vector.load %arg2[%c0_342, %c0_343, %c6_344, %c2_345] : memref<1x4x18x18xf32, #tpu.memory_space<vmem>>, vector<1x4x1x16xf32>
    %311 = vector.shape_cast %310 : vector<1x4x1x16xf32> to vector<4x16xf32>
    %cst_346 = arith.constant dense<0.000000e+00> : vector<8x16xf32>
    %312 = tpu.matmul %6, %311, %cst_346 {dimension_numbers = #tpu.dot_dimension_numbers<[1], [0], [0], [1], [0, 0, 1, 1], [], []>} : vector<8x4xf32>, vector<4x16xf32>, vector<8x16xf32> -> vector<8x16xf32>
    %313 = arith.addf %309, %312 : vector<8x16xf32>
    %c0_347 = arith.constant 0 : index
    %c0_348 = arith.constant 0 : index
    %c7_349 = arith.constant 7 : index
    %c0_350 = arith.constant 0 : index
    %314 = vector.load %arg2[%c0_347, %c0_348, %c7_349, %c0_350] : memref<1x4x18x18xf32, #tpu.memory_space<vmem>>, vector<1x4x1x16xf32>
    %315 = vector.shape_cast %314 : vector<1x4x1x16xf32> to vector<4x16xf32>
    %cst_351 = arith.constant dense<0.000000e+00> : vector<8x16xf32>
    %316 = tpu.matmul %8, %315, %cst_351 {dimension_numbers = #tpu.dot_dimension_numbers<[1], [0], [0], [1], [0, 0, 1, 1], [], []>} : vector<8x4xf32>, vector<4x16xf32>, vector<8x16xf32> -> vector<8x16xf32>
    %317 = arith.addf %313, %316 : vector<8x16xf32>
    %c0_352 = arith.constant 0 : index
    %c0_353 = arith.constant 0 : index
    %c7_354 = arith.constant 7 : index
    %c1_355 = arith.constant 1 : index
    %318 = vector.load %arg2[%c0_352, %c0_353, %c7_354, %c1_355] : memref<1x4x18x18xf32, #tpu.memory_space<vmem>>, vector<1x4x1x16xf32>
    %319 = vector.shape_cast %318 : vector<1x4x1x16xf32> to vector<4x16xf32>
    %cst_356 = arith.constant dense<0.000000e+00> : vector<8x16xf32>
    %320 = tpu.matmul %10, %319, %cst_356 {dimension_numbers = #tpu.dot_dimension_numbers<[1], [0], [0], [1], [0, 0, 1, 1], [], []>} : vector<8x4xf32>, vector<4x16xf32>, vector<8x16xf32> -> vector<8x16xf32>
    %321 = arith.addf %317, %320 : vector<8x16xf32>
    %c0_357 = arith.constant 0 : index
    %c0_358 = arith.constant 0 : index
    %c7_359 = arith.constant 7 : index
    %c2_360 = arith.constant 2 : index
    %322 = vector.load %arg2[%c0_357, %c0_358, %c7_359, %c2_360] : memref<1x4x18x18xf32, #tpu.memory_space<vmem>>, vector<1x4x1x16xf32>
    %323 = vector.shape_cast %322 : vector<1x4x1x16xf32> to vector<4x16xf32>
    %cst_361 = arith.constant dense<0.000000e+00> : vector<8x16xf32>
    %324 = tpu.matmul %12, %323, %cst_361 {dimension_numbers = #tpu.dot_dimension_numbers<[1], [0], [0], [1], [0, 0, 1, 1], [], []>} : vector<8x4xf32>, vector<4x16xf32>, vector<8x16xf32> -> vector<8x16xf32>
    %325 = arith.addf %321, %324 : vector<8x16xf32>
    %c0_362 = arith.constant 0 : index
    %c0_363 = arith.constant 0 : index
    %c8_364 = arith.constant 8 : index
    %c0_365 = arith.constant 0 : index
    %326 = vector.load %arg2[%c0_362, %c0_363, %c8_364, %c0_365] : memref<1x4x18x18xf32, #tpu.memory_space<vmem>>, vector<1x4x1x16xf32>
    %327 = vector.shape_cast %326 : vector<1x4x1x16xf32> to vector<4x16xf32>
    %cst_366 = arith.constant dense<0.000000e+00> : vector<8x16xf32>
    %328 = tpu.matmul %14, %327, %cst_366 {dimension_numbers = #tpu.dot_dimension_numbers<[1], [0], [0], [1], [0, 0, 1, 1], [], []>} : vector<8x4xf32>, vector<4x16xf32>, vector<8x16xf32> -> vector<8x16xf32>
    %329 = arith.addf %325, %328 : vector<8x16xf32>
    %c0_367 = arith.constant 0 : index
    %c0_368 = arith.constant 0 : index
    %c8_369 = arith.constant 8 : index
    %c1_370 = arith.constant 1 : index
    %330 = vector.load %arg2[%c0_367, %c0_368, %c8_369, %c1_370] : memref<1x4x18x18xf32, #tpu.memory_space<vmem>>, vector<1x4x1x16xf32>
    %331 = vector.shape_cast %330 : vector<1x4x1x16xf32> to vector<4x16xf32>
    %cst_371 = arith.constant dense<0.000000e+00> : vector<8x16xf32>
    %332 = tpu.matmul %16, %331, %cst_371 {dimension_numbers = #tpu.dot_dimension_numbers<[1], [0], [0], [1], [0, 0, 1, 1], [], []>} : vector<8x4xf32>, vector<4x16xf32>, vector<8x16xf32> -> vector<8x16xf32>
    %333 = arith.addf %329, %332 : vector<8x16xf32>
    %c0_372 = arith.constant 0 : index
    %c0_373 = arith.constant 0 : index
    %c8_374 = arith.constant 8 : index
    %c2_375 = arith.constant 2 : index
    %334 = vector.load %arg2[%c0_372, %c0_373, %c8_374, %c2_375] : memref<1x4x18x18xf32, #tpu.memory_space<vmem>>, vector<1x4x1x16xf32>
    %335 = vector.shape_cast %334 : vector<1x4x1x16xf32> to vector<4x16xf32>
    %cst_376 = arith.constant dense<0.000000e+00> : vector<8x16xf32>
    %336 = tpu.matmul %18, %335, %cst_376 {dimension_numbers = #tpu.dot_dimension_numbers<[1], [0], [0], [1], [0, 0, 1, 1], [], []>} : vector<8x4xf32>, vector<4x16xf32>, vector<8x16xf32> -> vector<8x16xf32>
    %337 = arith.addf %333, %336 : vector<8x16xf32>
    %338 = vector.broadcast %0 : vector<8x1xf32> to vector<8x16xf32>
    %339 = arith.addf %337, %338 : vector<8x16xf32>
    %cst_377 = arith.constant 0.000000e+00 : f32
    %340 = vector.broadcast %cst_377 : f32 to vector<8x16xf32>
    %341 = arith.cmpf oge, %339, %340 : vector<8x16xf32>
    %cst_378 = arith.constant 0.00999999977 : f32
    %342 = vector.broadcast %cst_378 : f32 to vector<8x16xf32>
    %343 = arith.mulf %342, %339 : vector<8x16xf32>
    %344 = arith.select %341, %339, %343 : vector<8x16xi1>, vector<8x16xf32>
    %c0_379 = arith.constant 0 : index
    %c0_380 = arith.constant 0 : index
    %c6_381 = arith.constant 6 : index
    %c0_382 = arith.constant 0 : index
    %345 = vector.load %arg5[%c0_379, %c0_380, %c6_381, %c0_382] : memref<1x8x16x16xf32, #tpu.memory_space<vmem>>, vector<1x8x1x16xf32>
    %346 = vector.shape_cast %345 : vector<1x8x1x16xf32> to vector<8x16xf32>
    %347 = vector.shape_cast %344 : vector<8x16xf32> to vector<1x8x1x16xf32>
    tpu.vector_store %arg5[%c0_379, %c0_380, %c6_381, %c0_382], %347 {strides = array<i32>} : memref<1x8x16x16xf32, #tpu.memory_space<vmem>>, vector<1x8x1x16xf32>,
    %cst_383 = arith.constant 0.000000e+00 : f32
    %348 = vector.broadcast %cst_383 : f32 to vector<8x16xf32>
    %c0_384 = arith.constant 0 : index
    %c0_385 = arith.constant 0 : index
    %c7_386 = arith.constant 7 : index
    %c0_387 = arith.constant 0 : index
    %349 = vector.load %arg2[%c0_384, %c0_385, %c7_386, %c0_387] : memref<1x4x18x18xf32, #tpu.memory_space<vmem>>, vector<1x4x1x16xf32>
    %350 = vector.shape_cast %349 : vector<1x4x1x16xf32> to vector<4x16xf32>
    %cst_388 = arith.constant dense<0.000000e+00> : vector<8x16xf32>
    %351 = tpu.matmul %2, %350, %cst_388 {dimension_numbers = #tpu.dot_dimension_numbers<[1], [0], [0], [1], [0, 0, 1, 1], [], []>} : vector<8x4xf32>, vector<4x16xf32>, vector<8x16xf32> -> vector<8x16xf32>
    %352 = arith.addf %348, %351 : vector<8x16xf32>
    %c0_389 = arith.constant 0 : index
    %c0_390 = arith.constant 0 : index
    %c7_391 = arith.constant 7 : index
    %c1_392 = arith.constant 1 : index
    %353 = vector.load %arg2[%c0_389, %c0_390, %c7_391, %c1_392] : memref<1x4x18x18xf32, #tpu.memory_space<vmem>>, vector<1x4x1x16xf32>
    %354 = vector.shape_cast %353 : vector<1x4x1x16xf32> to vector<4x16xf32>
    %cst_393 = arith.constant dense<0.000000e+00> : vector<8x16xf32>
    %355 = tpu.matmul %4, %354, %cst_393 {dimension_numbers = #tpu.dot_dimension_numbers<[1], [0], [0], [1], [0, 0, 1, 1], [], []>} : vector<8x4xf32>, vector<4x16xf32>, vector<8x16xf32> -> vector<8x16xf32>
    %356 = arith.addf %352, %355 : vector<8x16xf32>
    %c0_394 = arith.constant 0 : index
    %c0_395 = arith.constant 0 : index
    %c7_396 = arith.constant 7 : index
    %c2_397 = arith.constant 2 : index
    %357 = vector.load %arg2[%c0_394, %c0_395, %c7_396, %c2_397] : memref<1x4x18x18xf32, #tpu.memory_space<vmem>>, vector<1x4x1x16xf32>
    %358 = vector.shape_cast %357 : vector<1x4x1x16xf32> to vector<4x16xf32>
    %cst_398 = arith.constant dense<0.000000e+00> : vector<8x16xf32>
    %359 = tpu.matmul %6, %358, %cst_398 {dimension_numbers = #tpu.dot_dimension_numbers<[1], [0], [0], [1], [0, 0, 1, 1], [], []>} : vector<8x4xf32>, vector<4x16xf32>, vector<8x16xf32> -> vector<8x16xf32>
    %360 = arith.addf %356, %359 : vector<8x16xf32>
    %c0_399 = arith.constant 0 : index
    %c0_400 = arith.constant 0 : index
    %c8_401 = arith.constant 8 : index
    %c0_402 = arith.constant 0 : index
    %361 = vector.load %arg2[%c0_399, %c0_400, %c8_401, %c0_402] : memref<1x4x18x18xf32, #tpu.memory_space<vmem>>, vector<1x4x1x16xf32>
    %362 = vector.shape_cast %361 : vector<1x4x1x16xf32> to vector<4x16xf32>
    %cst_403 = arith.constant dense<0.000000e+00> : vector<8x16xf32>
    %363 = tpu.matmul %8, %362, %cst_403 {dimension_numbers = #tpu.dot_dimension_numbers<[1], [0], [0], [1], [0, 0, 1, 1], [], []>} : vector<8x4xf32>, vector<4x16xf32>, vector<8x16xf32> -> vector<8x16xf32>
    %364 = arith.addf %360, %363 : vector<8x16xf32>
    %c0_404 = arith.constant 0 : index
    %c0_405 = arith.constant 0 : index
    %c8_406 = arith.constant 8 : index
    %c1_407 = arith.constant 1 : index
    %365 = vector.load %arg2[%c0_404, %c0_405, %c8_406, %c1_407] : memref<1x4x18x18xf32, #tpu.memory_space<vmem>>, vector<1x4x1x16xf32>
    %366 = vector.shape_cast %365 : vector<1x4x1x16xf32> to vector<4x16xf32>
    %cst_408 = arith.constant dense<0.000000e+00> : vector<8x16xf32>
    %367 = tpu.matmul %10, %366, %cst_408 {dimension_numbers = #tpu.dot_dimension_numbers<[1], [0], [0], [1], [0, 0, 1, 1], [], []>} : vector<8x4xf32>, vector<4x16xf32>, vector<8x16xf32> -> vector<8x16xf32>
    %368 = arith.addf %364, %367 : vector<8x16xf32>
    %c0_409 = arith.constant 0 : index
    %c0_410 = arith.constant 0 : index
    %c8_411 = arith.constant 8 : index
    %c2_412 = arith.constant 2 : index
    %369 = vector.load %arg2[%c0_409, %c0_410, %c8_411, %c2_412] : memref<1x4x18x18xf32, #tpu.memory_space<vmem>>, vector<1x4x1x16xf32>
    %370 = vector.shape_cast %369 : vector<1x4x1x16xf32> to vector<4x16xf32>
    %cst_413 = arith.constant dense<0.000000e+00> : vector<8x16xf32>
    %371 = tpu.matmul %12, %370, %cst_413 {dimension_numbers = #tpu.dot_dimension_numbers<[1], [0], [0], [1], [0, 0, 1, 1], [], []>} : vector<8x4xf32>, vector<4x16xf32>, vector<8x16xf32> -> vector<8x16xf32>
    %372 = arith.addf %368, %371 : vector<8x16xf32>
    %c0_414 = arith.constant 0 : index
    %c0_415 = arith.constant 0 : index
    %c9 = arith.constant 9 : index
    %c0_416 = arith.constant 0 : index
    %373 = vector.load %arg2[%c0_414, %c0_415, %c9, %c0_416] : memref<1x4x18x18xf32, #tpu.memory_space<vmem>>, vector<1x4x1x16xf32>
    %374 = vector.shape_cast %373 : vector<1x4x1x16xf32> to vector<4x16xf32>
    %cst_417 = arith.constant dense<0.000000e+00> : vector<8x16xf32>
    %375 = tpu.matmul %14, %374, %cst_417 {dimension_numbers = #tpu.dot_dimension_numbers<[1], [0], [0], [1], [0, 0, 1, 1], [], []>} : vector<8x4xf32>, vector<4x16xf32>, vector<8x16xf32> -> vector<8x16xf32>
    %376 = arith.addf %372, %375 : vector<8x16xf32>
    %c0_418 = arith.constant 0 : index
    %c0_419 = arith.constant 0 : index
    %c9_420 = arith.constant 9 : index
    %c1_421 = arith.constant 1 : index
    %377 = vector.load %arg2[%c0_418, %c0_419, %c9_420, %c1_421] : memref<1x4x18x18xf32, #tpu.memory_space<vmem>>, vector<1x4x1x16xf32>
    %378 = vector.shape_cast %377 : vector<1x4x1x16xf32> to vector<4x16xf32>
    %cst_422 = arith.constant dense<0.000000e+00> : vector<8x16xf32>
    %379 = tpu.matmul %16, %378, %cst_422 {dimension_numbers = #tpu.dot_dimension_numbers<[1], [0], [0], [1], [0, 0, 1, 1], [], []>} : vector<8x4xf32>, vector<4x16xf32>, vector<8x16xf32> -> vector<8x16xf32>
    %380 = arith.addf %376, %379 : vector<8x16xf32>
    %c0_423 = arith.constant 0 : index
    %c0_424 = arith.constant 0 : index
    %c9_425 = arith.constant 9 : index
    %c2_426 = arith.constant 2 : index
    %381 = vector.load %arg2[%c0_423, %c0_424, %c9_425, %c2_426] : memref<1x4x18x18xf32, #tpu.memory_space<vmem>>, vector<1x4x1x16xf32>
    %382 = vector.shape_cast %381 : vector<1x4x1x16xf32> to vector<4x16xf32>
    %cst_427 = arith.constant dense<0.000000e+00> : vector<8x16xf32>
    %383 = tpu.matmul %18, %382, %cst_427 {dimension_numbers = #tpu.dot_dimension_numbers<[1], [0], [0], [1], [0, 0, 1, 1], [], []>} : vector<8x4xf32>, vector<4x16xf32>, vector<8x16xf32> -> vector<8x16xf32>
    %384 = arith.addf %380, %383 : vector<8x16xf32>
    %385 = vector.broadcast %0 : vector<8x1xf32> to vector<8x16xf32>
    %386 = arith.addf %384, %385 : vector<8x16xf32>
    %cst_428 = arith.constant 0.000000e+00 : f32
    %387 = vector.broadcast %cst_428 : f32 to vector<8x16xf32>
    %388 = arith.cmpf oge, %386, %387 : vector<8x16xf32>
    %cst_429 = arith.constant 0.00999999977 : f32
    %389 = vector.broadcast %cst_429 : f32 to vector<8x16xf32>
    %390 = arith.mulf %389, %386 : vector<8x16xf32>
    %391 = arith.select %388, %386, %390 : vector<8x16xi1>, vector<8x16xf32>
    %c0_430 = arith.constant 0 : index
    %c0_431 = arith.constant 0 : index
    %c7_432 = arith.constant 7 : index
    %c0_433 = arith.constant 0 : index
    %392 = vector.load %arg5[%c0_430, %c0_431, %c7_432, %c0_433] : memref<1x8x16x16xf32, #tpu.memory_space<vmem>>, vector<1x8x1x16xf32>
    %393 = vector.shape_cast %392 : vector<1x8x1x16xf32> to vector<8x16xf32>
    %394 = vector.shape_cast %391 : vector<8x16xf32> to vector<1x8x1x16xf32>
    tpu.vector_store %arg5[%c0_430, %c0_431, %c7_432, %c0_433], %394 {strides = array<i32>} : memref<1x8x16x16xf32, #tpu.memory_space<vmem>>, vector<1x8x1x16xf32>,
    %cst_434 = arith.constant 0.000000e+00 : f32
    %395 = vector.broadcast %cst_434 : f32 to vector<8x16xf32>
    %c0_435 = arith.constant 0 : index
    %c0_436 = arith.constant 0 : index
    %c8_437 = arith.constant 8 : index
    %c0_438 = arith.constant 0 : index
    %396 = vector.load %arg2[%c0_435, %c0_436, %c8_437, %c0_438] : memref<1x4x18x18xf32, #tpu.memory_space<vmem>>, vector<1x4x1x16xf32>
    %397 = vector.shape_cast %396 : vector<1x4x1x16xf32> to vector<4x16xf32>
    %cst_439 = arith.constant dense<0.000000e+00> : vector<8x16xf32>
    %398 = tpu.matmul %2, %397, %cst_439 {dimension_numbers = #tpu.dot_dimension_numbers<[1], [0], [0], [1], [0, 0, 1, 1], [], []>} : vector<8x4xf32>, vector<4x16xf32>, vector<8x16xf32> -> vector<8x16xf32>
    %399 = arith.addf %395, %398 : vector<8x16xf32>
    %c0_440 = arith.constant 0 : index
    %c0_441 = arith.constant 0 : index
    %c8_442 = arith.constant 8 : index
    %c1_443 = arith.constant 1 : index
    %400 = vector.load %arg2[%c0_440, %c0_441, %c8_442, %c1_443] : memref<1x4x18x18xf32, #tpu.memory_space<vmem>>, vector<1x4x1x16xf32>
    %401 = vector.shape_cast %400 : vector<1x4x1x16xf32> to vector<4x16xf32>
    %cst_444 = arith.constant dense<0.000000e+00> : vector<8x16xf32>
    %402 = tpu.matmul %4, %401, %cst_444 {dimension_numbers = #tpu.dot_dimension_numbers<[1], [0], [0], [1], [0, 0, 1, 1], [], []>} : vector<8x4xf32>, vector<4x16xf32>, vector<8x16xf32> -> vector<8x16xf32>
    %403 = arith.addf %399, %402 : vector<8x16xf32>
    %c0_445 = arith.constant 0 : index
    %c0_446 = arith.constant 0 : index
    %c8_447 = arith.constant 8 : index
    %c2_448 = arith.constant 2 : index
    %404 = vector.load %arg2[%c0_445, %c0_446, %c8_447, %c2_448] : memref<1x4x18x18xf32, #tpu.memory_space<vmem>>, vector<1x4x1x16xf32>
    %405 = vector.shape_cast %404 : vector<1x4x1x16xf32> to vector<4x16xf32>
    %cst_449 = arith.constant dense<0.000000e+00> : vector<8x16xf32>
    %406 = tpu.matmul %6, %405, %cst_449 {dimension_numbers = #tpu.dot_dimension_numbers<[1], [0], [0], [1], [0, 0, 1, 1], [], []>} : vector<8x4xf32>, vector<4x16xf32>, vector<8x16xf32> -> vector<8x16xf32>
    %407 = arith.addf %403, %406 : vector<8x16xf32>
    %c0_450 = arith.constant 0 : index
    %c0_451 = arith.constant 0 : index
    %c9_452 = arith.constant 9 : index
    %c0_453 = arith.constant 0 : index
    %408 = vector.load %arg2[%c0_450, %c0_451, %c9_452, %c0_453] : memref<1x4x18x18xf32, #tpu.memory_space<vmem>>, vector<1x4x1x16xf32>
    %409 = vector.shape_cast %408 : vector<1x4x1x16xf32> to vector<4x16xf32>
    %cst_454 = arith.constant dense<0.000000e+00> : vector<8x16xf32>
    %410 = tpu.matmul %8, %409, %cst_454 {dimension_numbers = #tpu.dot_dimension_numbers<[1], [0], [0], [1], [0, 0, 1, 1], [], []>} : vector<8x4xf32>, vector<4x16xf32>, vector<8x16xf32> -> vector<8x16xf32>
    %411 = arith.addf %407, %410 : vector<8x16xf32>
    %c0_455 = arith.constant 0 : index
    %c0_456 = arith.constant 0 : index
    %c9_457 = arith.constant 9 : index
    %c1_458 = arith.constant 1 : index
    %412 = vector.load %arg2[%c0_455, %c0_456, %c9_457, %c1_458] : memref<1x4x18x18xf32, #tpu.memory_space<vmem>>, vector<1x4x1x16xf32>
    %413 = vector.shape_cast %412 : vector<1x4x1x16xf32> to vector<4x16xf32>
    %cst_459 = arith.constant dense<0.000000e+00> : vector<8x16xf32>
    %414 = tpu.matmul %10, %413, %cst_459 {dimension_numbers = #tpu.dot_dimension_numbers<[1], [0], [0], [1], [0, 0, 1, 1], [], []>} : vector<8x4xf32>, vector<4x16xf32>, vector<8x16xf32> -> vector<8x16xf32>
    %415 = arith.addf %411, %414 : vector<8x16xf32>
    %c0_460 = arith.constant 0 : index
    %c0_461 = arith.constant 0 : index
    %c9_462 = arith.constant 9 : index
    %c2_463 = arith.constant 2 : index
    %416 = vector.load %arg2[%c0_460, %c0_461, %c9_462, %c2_463] : memref<1x4x18x18xf32, #tpu.memory_space<vmem>>, vector<1x4x1x16xf32>
    %417 = vector.shape_cast %416 : vector<1x4x1x16xf32> to vector<4x16xf32>
    %cst_464 = arith.constant dense<0.000000e+00> : vector<8x16xf32>
    %418 = tpu.matmul %12, %417, %cst_464 {dimension_numbers = #tpu.dot_dimension_numbers<[1], [0], [0], [1], [0, 0, 1, 1], [], []>} : vector<8x4xf32>, vector<4x16xf32>, vector<8x16xf32> -> vector<8x16xf32>
    %419 = arith.addf %415, %418 : vector<8x16xf32>
    %c0_465 = arith.constant 0 : index
    %c0_466 = arith.constant 0 : index
    %c10 = arith.constant 10 : index
    %c0_467 = arith.constant 0 : index
    %420 = vector.load %arg2[%c0_465, %c0_466, %c10, %c0_467] : memref<1x4x18x18xf32, #tpu.memory_space<vmem>>, vector<1x4x1x16xf32>
    %421 = vector.shape_cast %420 : vector<1x4x1x16xf32> to vector<4x16xf32>
    %cst_468 = arith.constant dense<0.000000e+00> : vector<8x16xf32>
    %422 = tpu.matmul %14, %421, %cst_468 {dimension_numbers = #tpu.dot_dimension_numbers<[1], [0], [0], [1], [0, 0, 1, 1], [], []>} : vector<8x4xf32>, vector<4x16xf32>, vector<8x16xf32> -> vector<8x16xf32>
    %423 = arith.addf %419, %422 : vector<8x16xf32>
    %c0_469 = arith.constant 0 : index
    %c0_470 = arith.constant 0 : index
    %c10_471 = arith.constant 10 : index
    %c1_472 = arith.constant 1 : index
    %424 = vector.load %arg2[%c0_469, %c0_470, %c10_471, %c1_472] : memref<1x4x18x18xf32, #tpu.memory_space<vmem>>, vector<1x4x1x16xf32>
    %425 = vector.shape_cast %424 : vector<1x4x1x16xf32> to vector<4x16xf32>
    %cst_473 = arith.constant dense<0.000000e+00> : vector<8x16xf32>
    %426 = tpu.matmul %16, %425, %cst_473 {dimension_numbers = #tpu.dot_dimension_numbers<[1], [0], [0], [1], [0, 0, 1, 1], [], []>} : vector<8x4xf32>, vector<4x16xf32>, vector<8x16xf32> -> vector<8x16xf32>
    %427 = arith.addf %423, %426 : vector<8x16xf32>
    %c0_474 = arith.constant 0 : index
    %c0_475 = arith.constant 0 : index
    %c10_476 = arith.constant 10 : index
    %c2_477 = arith.constant 2 : index
    %428 = vector.load %arg2[%c0_474, %c0_475, %c10_476, %c2_477] : memref<1x4x18x18xf32, #tpu.memory_space<vmem>>, vector<1x4x1x16xf32>
    %429 = vector.shape_cast %428 : vector<1x4x1x16xf32> to vector<4x16xf32>
    %cst_478 = arith.constant dense<0.000000e+00> : vector<8x16xf32>
    %430 = tpu.matmul %18, %429, %cst_478 {dimension_numbers = #tpu.dot_dimension_numbers<[1], [0], [0], [1], [0, 0, 1, 1], [], []>} : vector<8x4xf32>, vector<4x16xf32>, vector<8x16xf32> -> vector<8x16xf32>
    %431 = arith.addf %427, %430 : vector<8x16xf32>
    %432 = vector.broadcast %0 : vector<8x1xf32> to vector<8x16xf32>
    %433 = arith.addf %431, %432 : vector<8x16xf32>
    %cst_479 = arith.constant 0.000000e+00 : f32
    %434 = vector.broadcast %cst_479 : f32 to vector<8x16xf32>
    %435 = arith.cmpf oge, %433, %434 : vector<8x16xf32>
    %cst_480 = arith.constant 0.00999999977 : f32
    %436 = vector.broadcast %cst_480 : f32 to vector<8x16xf32>
    %437 = arith.mulf %436, %433 : vector<8x16xf32>
    %438 = arith.select %435, %433, %437 : vector<8x16xi1>, vector<8x16xf32>
    %c0_481 = arith.constant 0 : index
    %c0_482 = arith.constant 0 : index
    %c8_483 = arith.constant 8 : index
    %c0_484 = arith.constant 0 : index
    %439 = vector.load %arg5[%c0_481, %c0_482, %c8_483, %c0_484] : memref<1x8x16x16xf32, #tpu.memory_space<vmem>>, vector<1x8x1x16xf32>
    %440 = vector.shape_cast %439 : vector<1x8x1x16xf32> to vector<8x16xf32>
    %441 = vector.shape_cast %438 : vector<8x16xf32> to vector<1x8x1x16xf32>
    tpu.vector_store %arg5[%c0_481, %c0_482, %c8_483, %c0_484], %441 {strides = array<i32>} : memref<1x8x16x16xf32, #tpu.memory_space<vmem>>, vector<1x8x1x16xf32>,
    %cst_485 = arith.constant 0.000000e+00 : f32
    %442 = vector.broadcast %cst_485 : f32 to vector<8x16xf32>
    %c0_486 = arith.constant 0 : index
    %c0_487 = arith.constant 0 : index
    %c9_488 = arith.constant 9 : index
    %c0_489 = arith.constant 0 : index
    %443 = vector.load %arg2[%c0_486, %c0_487, %c9_488, %c0_489] : memref<1x4x18x18xf32, #tpu.memory_space<vmem>>, vector<1x4x1x16xf32>
    %444 = vector.shape_cast %443 : vector<1x4x1x16xf32> to vector<4x16xf32>
    %cst_490 = arith.constant dense<0.000000e+00> : vector<8x16xf32>
    %445 = tpu.matmul %2, %444, %cst_490 {dimension_numbers = #tpu.dot_dimension_numbers<[1], [0], [0], [1], [0, 0, 1, 1], [], []>} : vector<8x4xf32>, vector<4x16xf32>, vector<8x16xf32> -> vector<8x16xf32>
    %446 = arith.addf %442, %445 : vector<8x16xf32>
    %c0_491 = arith.constant 0 : index
    %c0_492 = arith.constant 0 : index
    %c9_493 = arith.constant 9 : index
    %c1_494 = arith.constant 1 : index
    %447 = vector.load %arg2[%c0_491, %c0_492, %c9_493, %c1_494] : memref<1x4x18x18xf32, #tpu.memory_space<vmem>>, vector<1x4x1x16xf32>
    %448 = vector.shape_cast %447 : vector<1x4x1x16xf32> to vector<4x16xf32>
    %cst_495 = arith.constant dense<0.000000e+00> : vector<8x16xf32>
    %449 = tpu.matmul %4, %448, %cst_495 {dimension_numbers = #tpu.dot_dimension_numbers<[1], [0], [0], [1], [0, 0, 1, 1], [], []>} : vector<8x4xf32>, vector<4x16xf32>, vector<8x16xf32> -> vector<8x16xf32>
    %450 = arith.addf %446, %449 : vector<8x16xf32>
    %c0_496 = arith.constant 0 : index
    %c0_497 = arith.constant 0 : index
    %c9_498 = arith.constant 9 : index
    %c2_499 = arith.constant 2 : index
    %451 = vector.load %arg2[%c0_496, %c0_497, %c9_498, %c2_499] : memref<1x4x18x18xf32, #tpu.memory_space<vmem>>, vector<1x4x1x16xf32>
    %452 = vector.shape_cast %451 : vector<1x4x1x16xf32> to vector<4x16xf32>
    %cst_500 = arith.constant dense<0.000000e+00> : vector<8x16xf32>
    %453 = tpu.matmul %6, %452, %cst_500 {dimension_numbers = #tpu.dot_dimension_numbers<[1], [0], [0], [1], [0, 0, 1, 1], [], []>} : vector<8x4xf32>, vector<4x16xf32>, vector<8x16xf32> -> vector<8x16xf32>
    %454 = arith.addf %450, %453 : vector<8x16xf32>
    %c0_501 = arith.constant 0 : index
    %c0_502 = arith.constant 0 : index
    %c10_503 = arith.constant 10 : index
    %c0_504 = arith.constant 0 : index
    %455 = vector.load %arg2[%c0_501, %c0_502, %c10_503, %c0_504] : memref<1x4x18x18xf32, #tpu.memory_space<vmem>>, vector<1x4x1x16xf32>
    %456 = vector.shape_cast %455 : vector<1x4x1x16xf32> to vector<4x16xf32>
    %cst_505 = arith.constant dense<0.000000e+00> : vector<8x16xf32>
    %457 = tpu.matmul %8, %456, %cst_505 {dimension_numbers = #tpu.dot_dimension_numbers<[1], [0], [0], [1], [0, 0, 1, 1], [], []>} : vector<8x4xf32>, vector<4x16xf32>, vector<8x16xf32> -> vector<8x16xf32>
    %458 = arith.addf %454, %457 : vector<8x16xf32>
    %c0_506 = arith.constant 0 : index
    %c0_507 = arith.constant 0 : index
    %c10_508 = arith.constant 10 : index
    %c1_509 = arith.constant 1 : index
    %459 = vector.load %arg2[%c0_506, %c0_507, %c10_508, %c1_509] : memref<1x4x18x18xf32, #tpu.memory_space<vmem>>, vector<1x4x1x16xf32>
    %460 = vector.shape_cast %459 : vector<1x4x1x16xf32> to vector<4x16xf32>
    %cst_510 = arith.constant dense<0.000000e+00> : vector<8x16xf32>
    %461 = tpu.matmul %10, %460, %cst_510 {dimension_numbers = #tpu.dot_dimension_numbers<[1], [0], [0], [1], [0, 0, 1, 1], [], []>} : vector<8x4xf32>, vector<4x16xf32>, vector<8x16xf32> -> vector<8x16xf32>
    %462 = arith.addf %458, %461 : vector<8x16xf32>
    %c0_511 = arith.constant 0 : index
    %c0_512 = arith.constant 0 : index
    %c10_513 = arith.constant 10 : index
    %c2_514 = arith.constant 2 : index
    %463 = vector.load %arg2[%c0_511, %c0_512, %c10_513, %c2_514] : memref<1x4x18x18xf32, #tpu.memory_space<vmem>>, vector<1x4x1x16xf32>
    %464 = vector.shape_cast %463 : vector<1x4x1x16xf32> to vector<4x16xf32>
    %cst_515 = arith.constant dense<0.000000e+00> : vector<8x16xf32>
    %465 = tpu.matmul %12, %464, %cst_515 {dimension_numbers = #tpu.dot_dimension_numbers<[1], [0], [0], [1], [0, 0, 1, 1], [], []>} : vector<8x4xf32>, vector<4x16xf32>, vector<8x16xf32> -> vector<8x16xf32>
    %466 = arith.addf %462, %465 : vector<8x16xf32>
    %c0_516 = arith.constant 0 : index
    %c0_517 = arith.constant 0 : index
    %c11 = arith.constant 11 : index
    %c0_518 = arith.constant 0 : index
    %467 = vector.load %arg2[%c0_516, %c0_517, %c11, %c0_518] : memref<1x4x18x18xf32, #tpu.memory_space<vmem>>, vector<1x4x1x16xf32>
    %468 = vector.shape_cast %467 : vector<1x4x1x16xf32> to vector<4x16xf32>
    %cst_519 = arith.constant dense<0.000000e+00> : vector<8x16xf32>
    %469 = tpu.matmul %14, %468, %cst_519 {dimension_numbers = #tpu.dot_dimension_numbers<[1], [0], [0], [1], [0, 0, 1, 1], [], []>} : vector<8x4xf32>, vector<4x16xf32>, vector<8x16xf32> -> vector<8x16xf32>
    %470 = arith.addf %466, %469 : vector<8x16xf32>
    %c0_520 = arith.constant 0 : index
    %c0_521 = arith.constant 0 : index
    %c11_522 = arith.constant 11 : index
    %c1_523 = arith.constant 1 : index
    %471 = vector.load %arg2[%c0_520, %c0_521, %c11_522, %c1_523] : memref<1x4x18x18xf32, #tpu.memory_space<vmem>>, vector<1x4x1x16xf32>
    %472 = vector.shape_cast %471 : vector<1x4x1x16xf32> to vector<4x16xf32>
    %cst_524 = arith.constant dense<0.000000e+00> : vector<8x16xf32>
    %473 = tpu.matmul %16, %472, %cst_524 {dimension_numbers = #tpu.dot_dimension_numbers<[1], [0], [0], [1], [0, 0, 1, 1], [], []>} : vector<8x4xf32>, vector<4x16xf32>, vector<8x16xf32> -> vector<8x16xf32>
    %474 = arith.addf %470, %473 : vector<8x16xf32>
    %c0_525 = arith.constant 0 : index
    %c0_526 = arith.constant 0 : index
    %c11_527 = arith.constant 11 : index
    %c2_528 = arith.constant 2 : index
    %475 = vector.load %arg2[%c0_525, %c0_526, %c11_527, %c2_528] : memref<1x4x18x18xf32, #tpu.memory_space<vmem>>, vector<1x4x1x16xf32>
    %476 = vector.shape_cast %475 : vector<1x4x1x16xf32> to vector<4x16xf32>
    %cst_529 = arith.constant dense<0.000000e+00> : vector<8x16xf32>
    %477 = tpu.matmul %18, %476, %cst_529 {dimension_numbers = #tpu.dot_dimension_numbers<[1], [0], [0], [1], [0, 0, 1, 1], [], []>} : vector<8x4xf32>, vector<4x16xf32>, vector<8x16xf32> -> vector<8x16xf32>
    %478 = arith.addf %474, %477 : vector<8x16xf32>
    %479 = vector.broadcast %0 : vector<8x1xf32> to vector<8x16xf32>
    %480 = arith.addf %478, %479 : vector<8x16xf32>
    %cst_530 = arith.constant 0.000000e+00 : f32
    %481 = vector.broadcast %cst_530 : f32 to vector<8x16xf32>
    %482 = arith.cmpf oge, %480, %481 : vector<8x16xf32>
    %cst_531 = arith.constant 0.00999999977 : f32
    %483 = vector.broadcast %cst_531 : f32 to vector<8x16xf32>
    %484 = arith.mulf %483, %480 : vector<8x16xf32>
    %485 = arith.select %482, %480, %484 : vector<8x16xi1>, vector<8x16xf32>
    %c0_532 = arith.constant 0 : index
    %c0_533 = arith.constant 0 : index
    %c9_534 = arith.constant 9 : index
    %c0_535 = arith.constant 0 : index
    %486 = vector.load %arg5[%c0_532, %c0_533, %c9_534, %c0_535] : memref<1x8x16x16xf32, #tpu.memory_space<vmem>>, vector<1x8x1x16xf32>
    %487 = vector.shape_cast %486 : vector<1x8x1x16xf32> to vector<8x16xf32>
    %488 = vector.shape_cast %485 : vector<8x16xf32> to vector<1x8x1x16xf32>
    tpu.vector_store %arg5[%c0_532, %c0_533, %c9_534, %c0_535], %488 {strides = array<i32>} : memref<1x8x16x16xf32, #tpu.memory_space<vmem>>, vector<1x8x1x16xf32>,
    %cst_536 = arith.constant 0.000000e+00 : f32
    %489 = vector.broadcast %cst_536 : f32 to vector<8x16xf32>
    %c0_537 = arith.constant 0 : index
    %c0_538 = arith.constant 0 : index
    %c10_539 = arith.constant 10 : index
    %c0_540 = arith.constant 0 : index
    %490 = vector.load %arg2[%c0_537, %c0_538, %c10_539, %c0_540] : memref<1x4x18x18xf32, #tpu.memory_space<vmem>>, vector<1x4x1x16xf32>
    %491 = vector.shape_cast %490 : vector<1x4x1x16xf32> to vector<4x16xf32>
    %cst_541 = arith.constant dense<0.000000e+00> : vector<8x16xf32>
    %492 = tpu.matmul %2, %491, %cst_541 {dimension_numbers = #tpu.dot_dimension_numbers<[1], [0], [0], [1], [0, 0, 1, 1], [], []>} : vector<8x4xf32>, vector<4x16xf32>, vector<8x16xf32> -> vector<8x16xf32>
    %493 = arith.addf %489, %492 : vector<8x16xf32>
    %c0_542 = arith.constant 0 : index
    %c0_543 = arith.constant 0 : index
    %c10_544 = arith.constant 10 : index
    %c1_545 = arith.constant 1 : index
    %494 = vector.load %arg2[%c0_542, %c0_543, %c10_544, %c1_545] : memref<1x4x18x18xf32, #tpu.memory_space<vmem>>, vector<1x4x1x16xf32>
    %495 = vector.shape_cast %494 : vector<1x4x1x16xf32> to vector<4x16xf32>
    %cst_546 = arith.constant dense<0.000000e+00> : vector<8x16xf32>
    %496 = tpu.matmul %4, %495, %cst_546 {dimension_numbers = #tpu.dot_dimension_numbers<[1], [0], [0], [1], [0, 0, 1, 1], [], []>} : vector<8x4xf32>, vector<4x16xf32>, vector<8x16xf32> -> vector<8x16xf32>
    %497 = arith.addf %493, %496 : vector<8x16xf32>
    %c0_547 = arith.constant 0 : index
    %c0_548 = arith.constant 0 : index
    %c10_549 = arith.constant 10 : index
    %c2_550 = arith.constant 2 : index
    %498 = vector.load %arg2[%c0_547, %c0_548, %c10_549, %c2_550] : memref<1x4x18x18xf32, #tpu.memory_space<vmem>>, vector<1x4x1x16xf32>
    %499 = vector.shape_cast %498 : vector<1x4x1x16xf32> to vector<4x16xf32>
    %cst_551 = arith.constant dense<0.000000e+00> : vector<8x16xf32>
    %500 = tpu.matmul %6, %499, %cst_551 {dimension_numbers = #tpu.dot_dimension_numbers<[1], [0], [0], [1], [0, 0, 1, 1], [], []>} : vector<8x4xf32>, vector<4x16xf32>, vector<8x16xf32> -> vector<8x16xf32>
    %501 = arith.addf %497, %500 : vector<8x16xf32>
    %c0_552 = arith.constant 0 : index
    %c0_553 = arith.constant 0 : index
    %c11_554 = arith.constant 11 : index
    %c0_555 = arith.constant 0 : index
    %502 = vector.load %arg2[%c0_552, %c0_553, %c11_554, %c0_555] : memref<1x4x18x18xf32, #tpu.memory_space<vmem>>, vector<1x4x1x16xf32>
    %503 = vector.shape_cast %502 : vector<1x4x1x16xf32> to vector<4x16xf32>
    %cst_556 = arith.constant dense<0.000000e+00> : vector<8x16xf32>
    %504 = tpu.matmul %8, %503, %cst_556 {dimension_numbers = #tpu.dot_dimension_numbers<[1], [0], [0], [1], [0, 0, 1, 1], [], []>} : vector<8x4xf32>, vector<4x16xf32>, vector<8x16xf32> -> vector<8x16xf32>
    %505 = arith.addf %501, %504 : vector<8x16xf32>
    %c0_557 = arith.constant 0 : index
    %c0_558 = arith.constant 0 : index
    %c11_559 = arith.constant 11 : index
    %c1_560 = arith.constant 1 : index
    %506 = vector.load %arg2[%c0_557, %c0_558, %c11_559, %c1_560] : memref<1x4x18x18xf32, #tpu.memory_space<vmem>>, vector<1x4x1x16xf32>
    %507 = vector.shape_cast %506 : vector<1x4x1x16xf32> to vector<4x16xf32>
    %cst_561 = arith.constant dense<0.000000e+00> : vector<8x16xf32>
    %508 = tpu.matmul %10, %507, %cst_561 {dimension_numbers = #tpu.dot_dimension_numbers<[1], [0], [0], [1], [0, 0, 1, 1], [], []>} : vector<8x4xf32>, vector<4x16xf32>, vector<8x16xf32> -> vector<8x16xf32>
    %509 = arith.addf %505, %508 : vector<8x16xf32>
    %c0_562 = arith.constant 0 : index
    %c0_563 = arith.constant 0 : index
    %c11_564 = arith.constant 11 : index
    %c2_565 = arith.constant 2 : index
    %510 = vector.load %arg2[%c0_562, %c0_563, %c11_564, %c2_565] : memref<1x4x18x18xf32, #tpu.memory_space<vmem>>, vector<1x4x1x16xf32>
    %511 = vector.shape_cast %510 : vector<1x4x1x16xf32> to vector<4x16xf32>
    %cst_566 = arith.constant dense<0.000000e+00> : vector<8x16xf32>
    %512 = tpu.matmul %12, %511, %cst_566 {dimension_numbers = #tpu.dot_dimension_numbers<[1], [0], [0], [1], [0, 0, 1, 1], [], []>} : vector<8x4xf32>, vector<4x16xf32>, vector<8x16xf32> -> vector<8x16xf32>
    %513 = arith.addf %509, %512 : vector<8x16xf32>
    %c0_567 = arith.constant 0 : index
    %c0_568 = arith.constant 0 : index
    %c12 = arith.constant 12 : index
    %c0_569 = arith.constant 0 : index
    %514 = vector.load %arg2[%c0_567, %c0_568, %c12, %c0_569] : memref<1x4x18x18xf32, #tpu.memory_space<vmem>>, vector<1x4x1x16xf32>
    %515 = vector.shape_cast %514 : vector<1x4x1x16xf32> to vector<4x16xf32>
    %cst_570 = arith.constant dense<0.000000e+00> : vector<8x16xf32>
    %516 = tpu.matmul %14, %515, %cst_570 {dimension_numbers = #tpu.dot_dimension_numbers<[1], [0], [0], [1], [0, 0, 1, 1], [], []>} : vector<8x4xf32>, vector<4x16xf32>, vector<8x16xf32> -> vector<8x16xf32>
    %517 = arith.addf %513, %516 : vector<8x16xf32>
    %c0_571 = arith.constant 0 : index
    %c0_572 = arith.constant 0 : index
    %c12_573 = arith.constant 12 : index
    %c1_574 = arith.constant 1 : index
    %518 = vector.load %arg2[%c0_571, %c0_572, %c12_573, %c1_574] : memref<1x4x18x18xf32, #tpu.memory_space<vmem>>, vector<1x4x1x16xf32>
    %519 = vector.shape_cast %518 : vector<1x4x1x16xf32> to vector<4x16xf32>
    %cst_575 = arith.constant dense<0.000000e+00> : vector<8x16xf32>
    %520 = tpu.matmul %16, %519, %cst_575 {dimension_numbers = #tpu.dot_dimension_numbers<[1], [0], [0], [1], [0, 0, 1, 1], [], []>} : vector<8x4xf32>, vector<4x16xf32>, vector<8x16xf32> -> vector<8x16xf32>
    %521 = arith.addf %517, %520 : vector<8x16xf32>
    %c0_576 = arith.constant 0 : index
    %c0_577 = arith.constant 0 : index
    %c12_578 = arith.constant 12 : index
    %c2_579 = arith.constant 2 : index
    %522 = vector.load %arg2[%c0_576, %c0_577, %c12_578, %c2_579] : memref<1x4x18x18xf32, #tpu.memory_space<vmem>>, vector<1x4x1x16xf32>
    %523 = vector.shape_cast %522 : vector<1x4x1x16xf32> to vector<4x16xf32>
    %cst_580 = arith.constant dense<0.000000e+00> : vector<8x16xf32>
    %524 = tpu.matmul %18, %523, %cst_580 {dimension_numbers = #tpu.dot_dimension_numbers<[1], [0], [0], [1], [0, 0, 1, 1], [], []>} : vector<8x4xf32>, vector<4x16xf32>, vector<8x16xf32> -> vector<8x16xf32>
    %525 = arith.addf %521, %524 : vector<8x16xf32>
    %526 = vector.broadcast %0 : vector<8x1xf32> to vector<8x16xf32>
    %527 = arith.addf %525, %526 : vector<8x16xf32>
    %cst_581 = arith.constant 0.000000e+00 : f32
    %528 = vector.broadcast %cst_581 : f32 to vector<8x16xf32>
    %529 = arith.cmpf oge, %527, %528 : vector<8x16xf32>
    %cst_582 = arith.constant 0.00999999977 : f32
    %530 = vector.broadcast %cst_582 : f32 to vector<8x16xf32>
    %531 = arith.mulf %530, %527 : vector<8x16xf32>
    %532 = arith.select %529, %527, %531 : vector<8x16xi1>, vector<8x16xf32>
    %c0_583 = arith.constant 0 : index
    %c0_584 = arith.constant 0 : index
    %c10_585 = arith.constant 10 : index
    %c0_586 = arith.constant 0 : index
    %533 = vector.load %arg5[%c0_583, %c0_584, %c10_585, %c0_586] : memref<1x8x16x16xf32, #tpu.memory_space<vmem>>, vector<1x8x1x16xf32>
    %534 = vector.shape_cast %533 : vector<1x8x1x16xf32> to vector<8x16xf32>
    %535 = vector.shape_cast %532 : vector<8x16xf32> to vector<1x8x1x16xf32>
    tpu.vector_store %arg5[%c0_583, %c0_584, %c10_585, %c0_586], %535 {strides = array<i32>} : memref<1x8x16x16xf32, #tpu.memory_space<vmem>>, vector<1x8x1x16xf32>,
    %cst_587 = arith.constant 0.000000e+00 : f32
    %536 = vector.broadcast %cst_587 : f32 to vector<8x16xf32>
    %c0_588 = arith.constant 0 : index
    %c0_589 = arith.constant 0 : index
    %c11_590 = arith.constant 11 : index
    %c0_591 = arith.constant 0 : index
    %537 = vector.load %arg2[%c0_588, %c0_589, %c11_590, %c0_591] : memref<1x4x18x18xf32, #tpu.memory_space<vmem>>, vector<1x4x1x16xf32>
    %538 = vector.shape_cast %537 : vector<1x4x1x16xf32> to vector<4x16xf32>
    %cst_592 = arith.constant dense<0.000000e+00> : vector<8x16xf32>
    %539 = tpu.matmul %2, %538, %cst_592 {dimension_numbers = #tpu.dot_dimension_numbers<[1], [0], [0], [1], [0, 0, 1, 1], [], []>} : vector<8x4xf32>, vector<4x16xf32>, vector<8x16xf32> -> vector<8x16xf32>
    %540 = arith.addf %536, %539 : vector<8x16xf32>
    %c0_593 = arith.constant 0 : index
    %c0_594 = arith.constant 0 : index
    %c11_595 = arith.constant 11 : index
    %c1_596 = arith.constant 1 : index
    %541 = vector.load %arg2[%c0_593, %c0_594, %c11_595, %c1_596] : memref<1x4x18x18xf32, #tpu.memory_space<vmem>>, vector<1x4x1x16xf32>
    %542 = vector.shape_cast %541 : vector<1x4x1x16xf32> to vector<4x16xf32>
    %cst_597 = arith.constant dense<0.000000e+00> : vector<8x16xf32>
    %543 = tpu.matmul %4, %542, %cst_597 {dimension_numbers = #tpu.dot_dimension_numbers<[1], [0], [0], [1], [0, 0, 1, 1], [], []>} : vector<8x4xf32>, vector<4x16xf32>, vector<8x16xf32> -> vector<8x16xf32>
    %544 = arith.addf %540, %543 : vector<8x16xf32>
    %c0_598 = arith.constant 0 : index
    %c0_599 = arith.constant 0 : index
    %c11_600 = arith.constant 11 : index
    %c2_601 = arith.constant 2 : index
    %545 = vector.load %arg2[%c0_598, %c0_599, %c11_600, %c2_601] : memref<1x4x18x18xf32, #tpu.memory_space<vmem>>, vector<1x4x1x16xf32>
    %546 = vector.shape_cast %545 : vector<1x4x1x16xf32> to vector<4x16xf32>
    %cst_602 = arith.constant dense<0.000000e+00> : vector<8x16xf32>
    %547 = tpu.matmul %6, %546, %cst_602 {dimension_numbers = #tpu.dot_dimension_numbers<[1], [0], [0], [1], [0, 0, 1, 1], [], []>} : vector<8x4xf32>, vector<4x16xf32>, vector<8x16xf32> -> vector<8x16xf32>
    %548 = arith.addf %544, %547 : vector<8x16xf32>
    %c0_603 = arith.constant 0 : index
    %c0_604 = arith.constant 0 : index
    %c12_605 = arith.constant 12 : index
    %c0_606 = arith.constant 0 : index
    %549 = vector.load %arg2[%c0_603, %c0_604, %c12_605, %c0_606] : memref<1x4x18x18xf32, #tpu.memory_space<vmem>>, vector<1x4x1x16xf32>
    %550 = vector.shape_cast %549 : vector<1x4x1x16xf32> to vector<4x16xf32>
    %cst_607 = arith.constant dense<0.000000e+00> : vector<8x16xf32>
    %551 = tpu.matmul %8, %550, %cst_607 {dimension_numbers = #tpu.dot_dimension_numbers<[1], [0], [0], [1], [0, 0, 1, 1], [], []>} : vector<8x4xf32>, vector<4x16xf32>, vector<8x16xf32> -> vector<8x16xf32>
    %552 = arith.addf %548, %551 : vector<8x16xf32>
    %c0_608 = arith.constant 0 : index
    %c0_609 = arith.constant 0 : index
    %c12_610 = arith.constant 12 : index
    %c1_611 = arith.constant 1 : index
    %553 = vector.load %arg2[%c0_608, %c0_609, %c12_610, %c1_611] : memref<1x4x18x18xf32, #tpu.memory_space<vmem>>, vector<1x4x1x16xf32>
    %554 = vector.shape_cast %553 : vector<1x4x1x16xf32> to vector<4x16xf32>
    %cst_612 = arith.constant dense<0.000000e+00> : vector<8x16xf32>
    %555 = tpu.matmul %10, %554, %cst_612 {dimension_numbers = #tpu.dot_dimension_numbers<[1], [0], [0], [1], [0, 0, 1, 1], [], []>} : vector<8x4xf32>, vector<4x16xf32>, vector<8x16xf32> -> vector<8x16xf32>
    %556 = arith.addf %552, %555 : vector<8x16xf32>
    %c0_613 = arith.constant 0 : index
    %c0_614 = arith.constant 0 : index
    %c12_615 = arith.constant 12 : index
    %c2_616 = arith.constant 2 : index
    %557 = vector.load %arg2[%c0_613, %c0_614, %c12_615, %c2_616] : memref<1x4x18x18xf32, #tpu.memory_space<vmem>>, vector<1x4x1x16xf32>
    %558 = vector.shape_cast %557 : vector<1x4x1x16xf32> to vector<4x16xf32>
    %cst_617 = arith.constant dense<0.000000e+00> : vector<8x16xf32>
    %559 = tpu.matmul %12, %558, %cst_617 {dimension_numbers = #tpu.dot_dimension_numbers<[1], [0], [0], [1], [0, 0, 1, 1], [], []>} : vector<8x4xf32>, vector<4x16xf32>, vector<8x16xf32> -> vector<8x16xf32>
    %560 = arith.addf %556, %559 : vector<8x16xf32>
    %c0_618 = arith.constant 0 : index
    %c0_619 = arith.constant 0 : index
    %c13 = arith.constant 13 : index
    %c0_620 = arith.constant 0 : index
    %561 = vector.load %arg2[%c0_618, %c0_619, %c13, %c0_620] : memref<1x4x18x18xf32, #tpu.memory_space<vmem>>, vector<1x4x1x16xf32>
    %562 = vector.shape_cast %561 : vector<1x4x1x16xf32> to vector<4x16xf32>
    %cst_621 = arith.constant dense<0.000000e+00> : vector<8x16xf32>
    %563 = tpu.matmul %14, %562, %cst_621 {dimension_numbers = #tpu.dot_dimension_numbers<[1], [0], [0], [1], [0, 0, 1, 1], [], []>} : vector<8x4xf32>, vector<4x16xf32>, vector<8x16xf32> -> vector<8x16xf32>
    %564 = arith.addf %560, %563 : vector<8x16xf32>
    %c0_622 = arith.constant 0 : index
    %c0_623 = arith.constant 0 : index
    %c13_624 = arith.constant 13 : index
    %c1_625 = arith.constant 1 : index
    %565 = vector.load %arg2[%c0_622, %c0_623, %c13_624, %c1_625] : memref<1x4x18x18xf32, #tpu.memory_space<vmem>>, vector<1x4x1x16xf32>
    %566 = vector.shape_cast %565 : vector<1x4x1x16xf32> to vector<4x16xf32>
    %cst_626 = arith.constant dense<0.000000e+00> : vector<8x16xf32>
    %567 = tpu.matmul %16, %566, %cst_626 {dimension_numbers = #tpu.dot_dimension_numbers<[1], [0], [0], [1], [0, 0, 1, 1], [], []>} : vector<8x4xf32>, vector<4x16xf32>, vector<8x16xf32> -> vector<8x16xf32>
    %568 = arith.addf %564, %567 : vector<8x16xf32>
    %c0_627 = arith.constant 0 : index
    %c0_628 = arith.constant 0 : index
    %c13_629 = arith.constant 13 : index
    %c2_630 = arith.constant 2 : index
    %569 = vector.load %arg2[%c0_627, %c0_628, %c13_629, %c2_630] : memref<1x4x18x18xf32, #tpu.memory_space<vmem>>, vector<1x4x1x16xf32>
    %570 = vector.shape_cast %569 : vector<1x4x1x16xf32> to vector<4x16xf32>
    %cst_631 = arith.constant dense<0.000000e+00> : vector<8x16xf32>
    %571 = tpu.matmul %18, %570, %cst_631 {dimension_numbers = #tpu.dot_dimension_numbers<[1], [0], [0], [1], [0, 0, 1, 1], [], []>} : vector<8x4xf32>, vector<4x16xf32>, vector<8x16xf32> -> vector<8x16xf32>
    %572 = arith.addf %568, %571 : vector<8x16xf32>
    %573 = vector.broadcast %0 : vector<8x1xf32> to vector<8x16xf32>
    %574 = arith.addf %572, %573 : vector<8x16xf32>
    %cst_632 = arith.constant 0.000000e+00 : f32
    %575 = vector.broadcast %cst_632 : f32 to vector<8x16xf32>
    %576 = arith.cmpf oge, %574, %575 : vector<8x16xf32>
    %cst_633 = arith.constant 0.00999999977 : f32
    %577 = vector.broadcast %cst_633 : f32 to vector<8x16xf32>
    %578 = arith.mulf %577, %574 : vector<8x16xf32>
    %579 = arith.select %576, %574, %578 : vector<8x16xi1>, vector<8x16xf32>
    %c0_634 = arith.constant 0 : index
    %c0_635 = arith.constant 0 : index
    %c11_636 = arith.constant 11 : index
    %c0_637 = arith.constant 0 : index
    %580 = vector.load %arg5[%c0_634, %c0_635, %c11_636, %c0_637] : memref<1x8x16x16xf32, #tpu.memory_space<vmem>>, vector<1x8x1x16xf32>
    %581 = vector.shape_cast %580 : vector<1x8x1x16xf32> to vector<8x16xf32>
    %582 = vector.shape_cast %579 : vector<8x16xf32> to vector<1x8x1x16xf32>
    tpu.vector_store %arg5[%c0_634, %c0_635, %c11_636, %c0_637], %582 {strides = array<i32>} : memref<1x8x16x16xf32, #tpu.memory_space<vmem>>, vector<1x8x1x16xf32>,
    %cst_638 = arith.constant 0.000000e+00 : f32
    %583 = vector.broadcast %cst_638 : f32 to vector<8x16xf32>
    %c0_639 = arith.constant 0 : index
    %c0_640 = arith.constant 0 : index
    %c12_641 = arith.constant 12 : index
    %c0_642 = arith.constant 0 : index
    %584 = vector.load %arg2[%c0_639, %c0_640, %c12_641, %c0_642] : memref<1x4x18x18xf32, #tpu.memory_space<vmem>>, vector<1x4x1x16xf32>
    %585 = vector.shape_cast %584 : vector<1x4x1x16xf32> to vector<4x16xf32>
    %cst_643 = arith.constant dense<0.000000e+00> : vector<8x16xf32>
    %586 = tpu.matmul %2, %585, %cst_643 {dimension_numbers = #tpu.dot_dimension_numbers<[1], [0], [0], [1], [0, 0, 1, 1], [], []>} : vector<8x4xf32>, vector<4x16xf32>, vector<8x16xf32> -> vector<8x16xf32>
    %587 = arith.addf %583, %586 : vector<8x16xf32>
    %c0_644 = arith.constant 0 : index
    %c0_645 = arith.constant 0 : index
    %c12_646 = arith.constant 12 : index
    %c1_647 = arith.constant 1 : index
    %588 = vector.load %arg2[%c0_644, %c0_645, %c12_646, %c1_647] : memref<1x4x18x18xf32, #tpu.memory_space<vmem>>, vector<1x4x1x16xf32>
    %589 = vector.shape_cast %588 : vector<1x4x1x16xf32> to vector<4x16xf32>
    %cst_648 = arith.constant dense<0.000000e+00> : vector<8x16xf32>
    %590 = tpu.matmul %4, %589, %cst_648 {dimension_numbers = #tpu.dot_dimension_numbers<[1], [0], [0], [1], [0, 0, 1, 1], [], []>} : vector<8x4xf32>, vector<4x16xf32>, vector<8x16xf32> -> vector<8x16xf32>
    %591 = arith.addf %587, %590 : vector<8x16xf32>
    %c0_649 = arith.constant 0 : index
    %c0_650 = arith.constant 0 : index
    %c12_651 = arith.constant 12 : index
    %c2_652 = arith.constant 2 : index
    %592 = vector.load %arg2[%c0_649, %c0_650, %c12_651, %c2_652] : memref<1x4x18x18xf32, #tpu.memory_space<vmem>>, vector<1x4x1x16xf32>
    %593 = vector.shape_cast %592 : vector<1x4x1x16xf32> to vector<4x16xf32>
    %cst_653 = arith.constant dense<0.000000e+00> : vector<8x16xf32>
    %594 = tpu.matmul %6, %593, %cst_653 {dimension_numbers = #tpu.dot_dimension_numbers<[1], [0], [0], [1], [0, 0, 1, 1], [], []>} : vector<8x4xf32>, vector<4x16xf32>, vector<8x16xf32> -> vector<8x16xf32>
    %595 = arith.addf %591, %594 : vector<8x16xf32>
    %c0_654 = arith.constant 0 : index
    %c0_655 = arith.constant 0 : index
    %c13_656 = arith.constant 13 : index
    %c0_657 = arith.constant 0 : index
    %596 = vector.load %arg2[%c0_654, %c0_655, %c13_656, %c0_657] : memref<1x4x18x18xf32, #tpu.memory_space<vmem>>, vector<1x4x1x16xf32>
    %597 = vector.shape_cast %596 : vector<1x4x1x16xf32> to vector<4x16xf32>
    %cst_658 = arith.constant dense<0.000000e+00> : vector<8x16xf32>
    %598 = tpu.matmul %8, %597, %cst_658 {dimension_numbers = #tpu.dot_dimension_numbers<[1], [0], [0], [1], [0, 0, 1, 1], [], []>} : vector<8x4xf32>, vector<4x16xf32>, vector<8x16xf32> -> vector<8x16xf32>
    %599 = arith.addf %595, %598 : vector<8x16xf32>
    %c0_659 = arith.constant 0 : index
    %c0_660 = arith.constant 0 : index
    %c13_661 = arith.constant 13 : index
    %c1_662 = arith.constant 1 : index
    %600 = vector.load %arg2[%c0_659, %c0_660, %c13_661, %c1_662] : memref<1x4x18x18xf32, #tpu.memory_space<vmem>>, vector<1x4x1x16xf32>
    %601 = vector.shape_cast %600 : vector<1x4x1x16xf32> to vector<4x16xf32>
    %cst_663 = arith.constant dense<0.000000e+00> : vector<8x16xf32>
    %602 = tpu.matmul %10, %601, %cst_663 {dimension_numbers = #tpu.dot_dimension_numbers<[1], [0], [0], [1], [0, 0, 1, 1], [], []>} : vector<8x4xf32>, vector<4x16xf32>, vector<8x16xf32> -> vector<8x16xf32>
    %603 = arith.addf %599, %602 : vector<8x16xf32>
    %c0_664 = arith.constant 0 : index
    %c0_665 = arith.constant 0 : index
    %c13_666 = arith.constant 13 : index
    %c2_667 = arith.constant 2 : index
    %604 = vector.load %arg2[%c0_664, %c0_665, %c13_666, %c2_667] : memref<1x4x18x18xf32, #tpu.memory_space<vmem>>, vector<1x4x1x16xf32>
    %605 = vector.shape_cast %604 : vector<1x4x1x16xf32> to vector<4x16xf32>
    %cst_668 = arith.constant dense<0.000000e+00> : vector<8x16xf32>
    %606 = tpu.matmul %12, %605, %cst_668 {dimension_numbers = #tpu.dot_dimension_numbers<[1], [0], [0], [1], [0, 0, 1, 1], [], []>} : vector<8x4xf32>, vector<4x16xf32>, vector<8x16xf32> -> vector<8x16xf32>
    %607 = arith.addf %603, %606 : vector<8x16xf32>
    %c0_669 = arith.constant 0 : index
    %c0_670 = arith.constant 0 : index
    %c14 = arith.constant 14 : index
    %c0_671 = arith.constant 0 : index
    %608 = vector.load %arg2[%c0_669, %c0_670, %c14, %c0_671] : memref<1x4x18x18xf32, #tpu.memory_space<vmem>>, vector<1x4x1x16xf32>
    %609 = vector.shape_cast %608 : vector<1x4x1x16xf32> to vector<4x16xf32>
    %cst_672 = arith.constant dense<0.000000e+00> : vector<8x16xf32>
    %610 = tpu.matmul %14, %609, %cst_672 {dimension_numbers = #tpu.dot_dimension_numbers<[1], [0], [0], [1], [0, 0, 1, 1], [], []>} : vector<8x4xf32>, vector<4x16xf32>, vector<8x16xf32> -> vector<8x16xf32>
    %611 = arith.addf %607, %610 : vector<8x16xf32>
    %c0_673 = arith.constant 0 : index
    %c0_674 = arith.constant 0 : index
    %c14_675 = arith.constant 14 : index
    %c1_676 = arith.constant 1 : index
    %612 = vector.load %arg2[%c0_673, %c0_674, %c14_675, %c1_676] : memref<1x4x18x18xf32, #tpu.memory_space<vmem>>, vector<1x4x1x16xf32>
    %613 = vector.shape_cast %612 : vector<1x4x1x16xf32> to vector<4x16xf32>
    %cst_677 = arith.constant dense<0.000000e+00> : vector<8x16xf32>
    %614 = tpu.matmul %16, %613, %cst_677 {dimension_numbers = #tpu.dot_dimension_numbers<[1], [0], [0], [1], [0, 0, 1, 1], [], []>} : vector<8x4xf32>, vector<4x16xf32>, vector<8x16xf32> -> vector<8x16xf32>
    %615 = arith.addf %611, %614 : vector<8x16xf32>
    %c0_678 = arith.constant 0 : index
    %c0_679 = arith.constant 0 : index
    %c14_680 = arith.constant 14 : index
    %c2_681 = arith.constant 2 : index
    %616 = vector.load %arg2[%c0_678, %c0_679, %c14_680, %c2_681] : memref<1x4x18x18xf32, #tpu.memory_space<vmem>>, vector<1x4x1x16xf32>
    %617 = vector.shape_cast %616 : vector<1x4x1x16xf32> to vector<4x16xf32>
    %cst_682 = arith.constant dense<0.000000e+00> : vector<8x16xf32>
    %618 = tpu.matmul %18, %617, %cst_682 {dimension_numbers = #tpu.dot_dimension_numbers<[1], [0], [0], [1], [0, 0, 1, 1], [], []>} : vector<8x4xf32>, vector<4x16xf32>, vector<8x16xf32> -> vector<8x16xf32>
    %619 = arith.addf %615, %618 : vector<8x16xf32>
    %620 = vector.broadcast %0 : vector<8x1xf32> to vector<8x16xf32>
    %621 = arith.addf %619, %620 : vector<8x16xf32>
    %cst_683 = arith.constant 0.000000e+00 : f32
    %622 = vector.broadcast %cst_683 : f32 to vector<8x16xf32>
    %623 = arith.cmpf oge, %621, %622 : vector<8x16xf32>
    %cst_684 = arith.constant 0.00999999977 : f32
    %624 = vector.broadcast %cst_684 : f32 to vector<8x16xf32>
    %625 = arith.mulf %624, %621 : vector<8x16xf32>
    %626 = arith.select %623, %621, %625 : vector<8x16xi1>, vector<8x16xf32>
    %c0_685 = arith.constant 0 : index
    %c0_686 = arith.constant 0 : index
    %c12_687 = arith.constant 12 : index
    %c0_688 = arith.constant 0 : index
    %627 = vector.load %arg5[%c0_685, %c0_686, %c12_687, %c0_688] : memref<1x8x16x16xf32, #tpu.memory_space<vmem>>, vector<1x8x1x16xf32>
    %628 = vector.shape_cast %627 : vector<1x8x1x16xf32> to vector<8x16xf32>
    %629 = vector.shape_cast %626 : vector<8x16xf32> to vector<1x8x1x16xf32>
    tpu.vector_store %arg5[%c0_685, %c0_686, %c12_687, %c0_688], %629 {strides = array<i32>} : memref<1x8x16x16xf32, #tpu.memory_space<vmem>>, vector<1x8x1x16xf32>,
    %cst_689 = arith.constant 0.000000e+00 : f32
    %630 = vector.broadcast %cst_689 : f32 to vector<8x16xf32>
    %c0_690 = arith.constant 0 : index
    %c0_691 = arith.constant 0 : index
    %c13_692 = arith.constant 13 : index
    %c0_693 = arith.constant 0 : index
    %631 = vector.load %arg2[%c0_690, %c0_691, %c13_692, %c0_693] : memref<1x4x18x18xf32, #tpu.memory_space<vmem>>, vector<1x4x1x16xf32>
    %632 = vector.shape_cast %631 : vector<1x4x1x16xf32> to vector<4x16xf32>
    %cst_694 = arith.constant dense<0.000000e+00> : vector<8x16xf32>
    %633 = tpu.matmul %2, %632, %cst_694 {dimension_numbers = #tpu.dot_dimension_numbers<[1], [0], [0], [1], [0, 0, 1, 1], [], []>} : vector<8x4xf32>, vector<4x16xf32>, vector<8x16xf32> -> vector<8x16xf32>
    %634 = arith.addf %630, %633 : vector<8x16xf32>
    %c0_695 = arith.constant 0 : index
    %c0_696 = arith.constant 0 : index
    %c13_697 = arith.constant 13 : index
    %c1_698 = arith.constant 1 : index
    %635 = vector.load %arg2[%c0_695, %c0_696, %c13_697, %c1_698] : memref<1x4x18x18xf32, #tpu.memory_space<vmem>>, vector<1x4x1x16xf32>
    %636 = vector.shape_cast %635 : vector<1x4x1x16xf32> to vector<4x16xf32>
    %cst_699 = arith.constant dense<0.000000e+00> : vector<8x16xf32>
    %637 = tpu.matmul %4, %636, %cst_699 {dimension_numbers = #tpu.dot_dimension_numbers<[1], [0], [0], [1], [0, 0, 1, 1], [], []>} : vector<8x4xf32>, vector<4x16xf32>, vector<8x16xf32> -> vector<8x16xf32>
    %638 = arith.addf %634, %637 : vector<8x16xf32>
    %c0_700 = arith.constant 0 : index
    %c0_701 = arith.constant 0 : index
    %c13_702 = arith.constant 13 : index
    %c2_703 = arith.constant 2 : index
    %639 = vector.load %arg2[%c0_700, %c0_701, %c13_702, %c2_703] : memref<1x4x18x18xf32, #tpu.memory_space<vmem>>, vector<1x4x1x16xf32>
    %640 = vector.shape_cast %639 : vector<1x4x1x16xf32> to vector<4x16xf32>
    %cst_704 = arith.constant dense<0.000000e+00> : vector<8x16xf32>
    %641 = tpu.matmul %6, %640, %cst_704 {dimension_numbers = #tpu.dot_dimension_numbers<[1], [0], [0], [1], [0, 0, 1, 1], [], []>} : vector<8x4xf32>, vector<4x16xf32>, vector<8x16xf32> -> vector<8x16xf32>
    %642 = arith.addf %638, %641 : vector<8x16xf32>
    %c0_705 = arith.constant 0 : index
    %c0_706 = arith.constant 0 : index
    %c14_707 = arith.constant 14 : index
    %c0_708 = arith.constant 0 : index
    %643 = vector.load %arg2[%c0_705, %c0_706, %c14_707, %c0_708] : memref<1x4x18x18xf32, #tpu.memory_space<vmem>>, vector<1x4x1x16xf32>
    %644 = vector.shape_cast %643 : vector<1x4x1x16xf32> to vector<4x16xf32>
    %cst_709 = arith.constant dense<0.000000e+00> : vector<8x16xf32>
    %645 = tpu.matmul %8, %644, %cst_709 {dimension_numbers = #tpu.dot_dimension_numbers<[1], [0], [0], [1], [0, 0, 1, 1], [], []>} : vector<8x4xf32>, vector<4x16xf32>, vector<8x16xf32> -> vector<8x16xf32>
    %646 = arith.addf %642, %645 : vector<8x16xf32>
    %c0_710 = arith.constant 0 : index
    %c0_711 = arith.constant 0 : index
    %c14_712 = arith.constant 14 : index
    %c1_713 = arith.constant 1 : index
    %647 = vector.load %arg2[%c0_710, %c0_711, %c14_712, %c1_713] : memref<1x4x18x18xf32, #tpu.memory_space<vmem>>, vector<1x4x1x16xf32>
    %648 = vector.shape_cast %647 : vector<1x4x1x16xf32> to vector<4x16xf32>
    %cst_714 = arith.constant dense<0.000000e+00> : vector<8x16xf32>
    %649 = tpu.matmul %10, %648, %cst_714 {dimension_numbers = #tpu.dot_dimension_numbers<[1], [0], [0], [1], [0, 0, 1, 1], [], []>} : vector<8x4xf32>, vector<4x16xf32>, vector<8x16xf32> -> vector<8x16xf32>
    %650 = arith.addf %646, %649 : vector<8x16xf32>
    %c0_715 = arith.constant 0 : index
    %c0_716 = arith.constant 0 : index
    %c14_717 = arith.constant 14 : index
    %c2_718 = arith.constant 2 : index
    %651 = vector.load %arg2[%c0_715, %c0_716, %c14_717, %c2_718] : memref<1x4x18x18xf32, #tpu.memory_space<vmem>>, vector<1x4x1x16xf32>
    %652 = vector.shape_cast %651 : vector<1x4x1x16xf32> to vector<4x16xf32>
    %cst_719 = arith.constant dense<0.000000e+00> : vector<8x16xf32>
    %653 = tpu.matmul %12, %652, %cst_719 {dimension_numbers = #tpu.dot_dimension_numbers<[1], [0], [0], [1], [0, 0, 1, 1], [], []>} : vector<8x4xf32>, vector<4x16xf32>, vector<8x16xf32> -> vector<8x16xf32>
    %654 = arith.addf %650, %653 : vector<8x16xf32>
    %c0_720 = arith.constant 0 : index
    %c0_721 = arith.constant 0 : index
    %c15 = arith.constant 15 : index
    %c0_722 = arith.constant 0 : index
    %655 = vector.load %arg2[%c0_720, %c0_721, %c15, %c0_722] : memref<1x4x18x18xf32, #tpu.memory_space<vmem>>, vector<1x4x1x16xf32>
    %656 = vector.shape_cast %655 : vector<1x4x1x16xf32> to vector<4x16xf32>
    %cst_723 = arith.constant dense<0.000000e+00> : vector<8x16xf32>
    %657 = tpu.matmul %14, %656, %cst_723 {dimension_numbers = #tpu.dot_dimension_numbers<[1], [0], [0], [1], [0, 0, 1, 1], [], []>} : vector<8x4xf32>, vector<4x16xf32>, vector<8x16xf32> -> vector<8x16xf32>
    %658 = arith.addf %654, %657 : vector<8x16xf32>
    %c0_724 = arith.constant 0 : index
    %c0_725 = arith.constant 0 : index
    %c15_726 = arith.constant 15 : index
    %c1_727 = arith.constant 1 : index
    %659 = vector.load %arg2[%c0_724, %c0_725, %c15_726, %c1_727] : memref<1x4x18x18xf32, #tpu.memory_space<vmem>>, vector<1x4x1x16xf32>
    %660 = vector.shape_cast %659 : vector<1x4x1x16xf32> to vector<4x16xf32>
    %cst_728 = arith.constant dense<0.000000e+00> : vector<8x16xf32>
    %661 = tpu.matmul %16, %660, %cst_728 {dimension_numbers = #tpu.dot_dimension_numbers<[1], [0], [0], [1], [0, 0, 1, 1], [], []>} : vector<8x4xf32>, vector<4x16xf32>, vector<8x16xf32> -> vector<8x16xf32>
    %662 = arith.addf %658, %661 : vector<8x16xf32>
    %c0_729 = arith.constant 0 : index
    %c0_730 = arith.constant 0 : index
    %c15_731 = arith.constant 15 : index
    %c2_732 = arith.constant 2 : index
    %663 = vector.load %arg2[%c0_729, %c0_730, %c15_731, %c2_732] : memref<1x4x18x18xf32, #tpu.memory_space<vmem>>, vector<1x4x1x16xf32>
    %664 = vector.shape_cast %663 : vector<1x4x1x16xf32> to vector<4x16xf32>
    %cst_733 = arith.constant dense<0.000000e+00> : vector<8x16xf32>
    %665 = tpu.matmul %18, %664, %cst_733 {dimension_numbers = #tpu.dot_dimension_numbers<[1], [0], [0], [1], [0, 0, 1, 1], [], []>} : vector<8x4xf32>, vector<4x16xf32>, vector<8x16xf32> -> vector<8x16xf32>
    %666 = arith.addf %662, %665 : vector<8x16xf32>
    %667 = vector.broadcast %0 : vector<8x1xf32> to vector<8x16xf32>
    %668 = arith.addf %666, %667 : vector<8x16xf32>
    %cst_734 = arith.constant 0.000000e+00 : f32
    %669 = vector.broadcast %cst_734 : f32 to vector<8x16xf32>
    %670 = arith.cmpf oge, %668, %669 : vector<8x16xf32>
    %cst_735 = arith.constant 0.00999999977 : f32
    %671 = vector.broadcast %cst_735 : f32 to vector<8x16xf32>
    %672 = arith.mulf %671, %668 : vector<8x16xf32>
    %673 = arith.select %670, %668, %672 : vector<8x16xi1>, vector<8x16xf32>
    %c0_736 = arith.constant 0 : index
    %c0_737 = arith.constant 0 : index
    %c13_738 = arith.constant 13 : index
    %c0_739 = arith.constant 0 : index
    %674 = vector.load %arg5[%c0_736, %c0_737, %c13_738, %c0_739] : memref<1x8x16x16xf32, #tpu.memory_space<vmem>>, vector<1x8x1x16xf32>
    %675 = vector.shape_cast %674 : vector<1x8x1x16xf32> to vector<8x16xf32>
    %676 = vector.shape_cast %673 : vector<8x16xf32> to vector<1x8x1x16xf32>
    tpu.vector_store %arg5[%c0_736, %c0_737, %c13_738, %c0_739], %676 {strides = array<i32>} : memref<1x8x16x16xf32, #tpu.memory_space<vmem>>, vector<1x8x1x16xf32>,
    %cst_740 = arith.constant 0.000000e+00 : f32
    %677 = vector.broadcast %cst_740 : f32 to vector<8x16xf32>
    %c0_741 = arith.constant 0 : index
    %c0_742 = arith.constant 0 : index
    %c14_743 = arith.constant 14 : index
    %c0_744 = arith.constant 0 : index
    %678 = vector.load %arg2[%c0_741, %c0_742, %c14_743, %c0_744] : memref<1x4x18x18xf32, #tpu.memory_space<vmem>>, vector<1x4x1x16xf32>
    %679 = vector.shape_cast %678 : vector<1x4x1x16xf32> to vector<4x16xf32>
    %cst_745 = arith.constant dense<0.000000e+00> : vector<8x16xf32>
    %680 = tpu.matmul %2, %679, %cst_745 {dimension_numbers = #tpu.dot_dimension_numbers<[1], [0], [0], [1], [0, 0, 1, 1], [], []>} : vector<8x4xf32>, vector<4x16xf32>, vector<8x16xf32> -> vector<8x16xf32>
    %681 = arith.addf %677, %680 : vector<8x16xf32>
    %c0_746 = arith.constant 0 : index
    %c0_747 = arith.constant 0 : index
    %c14_748 = arith.constant 14 : index
    %c1_749 = arith.constant 1 : index
    %682 = vector.load %arg2[%c0_746, %c0_747, %c14_748, %c1_749] : memref<1x4x18x18xf32, #tpu.memory_space<vmem>>, vector<1x4x1x16xf32>
    %683 = vector.shape_cast %682 : vector<1x4x1x16xf32> to vector<4x16xf32>
    %cst_750 = arith.constant dense<0.000000e+00> : vector<8x16xf32>
    %684 = tpu.matmul %4, %683, %cst_750 {dimension_numbers = #tpu.dot_dimension_numbers<[1], [0], [0], [1], [0, 0, 1, 1], [], []>} : vector<8x4xf32>, vector<4x16xf32>, vector<8x16xf32> -> vector<8x16xf32>
    %685 = arith.addf %681, %684 : vector<8x16xf32>
    %c0_751 = arith.constant 0 : index
    %c0_752 = arith.constant 0 : index
    %c14_753 = arith.constant 14 : index
    %c2_754 = arith.constant 2 : index
    %686 = vector.load %arg2[%c0_751, %c0_752, %c14_753, %c2_754] : memref<1x4x18x18xf32, #tpu.memory_space<vmem>>, vector<1x4x1x16xf32>
    %687 = vector.shape_cast %686 : vector<1x4x1x16xf32> to vector<4x16xf32>
    %cst_755 = arith.constant dense<0.000000e+00> : vector<8x16xf32>
    %688 = tpu.matmul %6, %687, %cst_755 {dimension_numbers = #tpu.dot_dimension_numbers<[1], [0], [0], [1], [0, 0, 1, 1], [], []>} : vector<8x4xf32>, vector<4x16xf32>, vector<8x16xf32> -> vector<8x16xf32>
    %689 = arith.addf %685, %688 : vector<8x16xf32>
    %c0_756 = arith.constant 0 : index
    %c0_757 = arith.constant 0 : index
    %c15_758 = arith.constant 15 : index
    %c0_759 = arith.constant 0 : index
    %690 = vector.load %arg2[%c0_756, %c0_757, %c15_758, %c0_759] : memref<1x4x18x18xf32, #tpu.memory_space<vmem>>, vector<1x4x1x16xf32>
    %691 = vector.shape_cast %690 : vector<1x4x1x16xf32> to vector<4x16xf32>
    %cst_760 = arith.constant dense<0.000000e+00> : vector<8x16xf32>
    %692 = tpu.matmul %8, %691, %cst_760 {dimension_numbers = #tpu.dot_dimension_numbers<[1], [0], [0], [1], [0, 0, 1, 1], [], []>} : vector<8x4xf32>, vector<4x16xf32>, vector<8x16xf32> -> vector<8x16xf32>
    %693 = arith.addf %689, %692 : vector<8x16xf32>
    %c0_761 = arith.constant 0 : index
    %c0_762 = arith.constant 0 : index
    %c15_763 = arith.constant 15 : index
    %c1_764 = arith.constant 1 : index
    %694 = vector.load %arg2[%c0_761, %c0_762, %c15_763, %c1_764] : memref<1x4x18x18xf32, #tpu.memory_space<vmem>>, vector<1x4x1x16xf32>
    %695 = vector.shape_cast %694 : vector<1x4x1x16xf32> to vector<4x16xf32>
    %cst_765 = arith.constant dense<0.000000e+00> : vector<8x16xf32>
    %696 = tpu.matmul %10, %695, %cst_765 {dimension_numbers = #tpu.dot_dimension_numbers<[1], [0], [0], [1], [0, 0, 1, 1], [], []>} : vector<8x4xf32>, vector<4x16xf32>, vector<8x16xf32> -> vector<8x16xf32>
    %697 = arith.addf %693, %696 : vector<8x16xf32>
    %c0_766 = arith.constant 0 : index
    %c0_767 = arith.constant 0 : index
    %c15_768 = arith.constant 15 : index
    %c2_769 = arith.constant 2 : index
    %698 = vector.load %arg2[%c0_766, %c0_767, %c15_768, %c2_769] : memref<1x4x18x18xf32, #tpu.memory_space<vmem>>, vector<1x4x1x16xf32>
    %699 = vector.shape_cast %698 : vector<1x4x1x16xf32> to vector<4x16xf32>
    %cst_770 = arith.constant dense<0.000000e+00> : vector<8x16xf32>
    %700 = tpu.matmul %12, %699, %cst_770 {dimension_numbers = #tpu.dot_dimension_numbers<[1], [0], [0], [1], [0, 0, 1, 1], [], []>} : vector<8x4xf32>, vector<4x16xf32>, vector<8x16xf32> -> vector<8x16xf32>
    %701 = arith.addf %697, %700 : vector<8x16xf32>
    %c0_771 = arith.constant 0 : index
    %c0_772 = arith.constant 0 : index
    %c16 = arith.constant 16 : index
    %c0_773 = arith.constant 0 : index
    %702 = vector.load %arg2[%c0_771, %c0_772, %c16, %c0_773] : memref<1x4x18x18xf32, #tpu.memory_space<vmem>>, vector<1x4x1x16xf32>
    %703 = vector.shape_cast %702 : vector<1x4x1x16xf32> to vector<4x16xf32>
    %cst_774 = arith.constant dense<0.000000e+00> : vector<8x16xf32>
    %704 = tpu.matmul %14, %703, %cst_774 {dimension_numbers = #tpu.dot_dimension_numbers<[1], [0], [0], [1], [0, 0, 1, 1], [], []>} : vector<8x4xf32>, vector<4x16xf32>, vector<8x16xf32> -> vector<8x16xf32>
    %705 = arith.addf %701, %704 : vector<8x16xf32>
    %c0_775 = arith.constant 0 : index
    %c0_776 = arith.constant 0 : index
    %c16_777 = arith.constant 16 : index
    %c1_778 = arith.constant 1 : index
    %706 = vector.load %arg2[%c0_775, %c0_776, %c16_777, %c1_778] : memref<1x4x18x18xf32, #tpu.memory_space<vmem>>, vector<1x4x1x16xf32>
    %707 = vector.shape_cast %706 : vector<1x4x1x16xf32> to vector<4x16xf32>
    %cst_779 = arith.constant dense<0.000000e+00> : vector<8x16xf32>
    %708 = tpu.matmul %16, %707, %cst_779 {dimension_numbers = #tpu.dot_dimension_numbers<[1], [0], [0], [1], [0, 0, 1, 1], [], []>} : vector<8x4xf32>, vector<4x16xf32>, vector<8x16xf32> -> vector<8x16xf32>
    %709 = arith.addf %705, %708 : vector<8x16xf32>
    %c0_780 = arith.constant 0 : index
    %c0_781 = arith.constant 0 : index
    %c16_782 = arith.constant 16 : index
    %c2_783 = arith.constant 2 : index
    %710 = vector.load %arg2[%c0_780, %c0_781, %c16_782, %c2_783] : memref<1x4x18x18xf32, #tpu.memory_space<vmem>>, vector<1x4x1x16xf32>
    %711 = vector.shape_cast %710 : vector<1x4x1x16xf32> to vector<4x16xf32>
    %cst_784 = arith.constant dense<0.000000e+00> : vector<8x16xf32>
    %712 = tpu.matmul %18, %711, %cst_784 {dimension_numbers = #tpu.dot_dimension_numbers<[1], [0], [0], [1], [0, 0, 1, 1], [], []>} : vector<8x4xf32>, vector<4x16xf32>, vector<8x16xf32> -> vector<8x16xf32>
    %713 = arith.addf %709, %712 : vector<8x16xf32>
    %714 = vector.broadcast %0 : vector<8x1xf32> to vector<8x16xf32>
    %715 = arith.addf %713, %714 : vector<8x16xf32>
    %cst_785 = arith.constant 0.000000e+00 : f32
    %716 = vector.broadcast %cst_785 : f32 to vector<8x16xf32>
    %717 = arith.cmpf oge, %715, %716 : vector<8x16xf32>
    %cst_786 = arith.constant 0.00999999977 : f32
    %718 = vector.broadcast %cst_786 : f32 to vector<8x16xf32>
    %719 = arith.mulf %718, %715 : vector<8x16xf32>
    %720 = arith.select %717, %715, %719 : vector<8x16xi1>, vector<8x16xf32>
    %c0_787 = arith.constant 0 : index
    %c0_788 = arith.constant 0 : index
    %c14_789 = arith.constant 14 : index
    %c0_790 = arith.constant 0 : index
    %721 = vector.load %arg5[%c0_787, %c0_788, %c14_789, %c0_790] : memref<1x8x16x16xf32, #tpu.memory_space<vmem>>, vector<1x8x1x16xf32>
    %722 = vector.shape_cast %721 : vector<1x8x1x16xf32> to vector<8x16xf32>
    %723 = vector.shape_cast %720 : vector<8x16xf32> to vector<1x8x1x16xf32>
    tpu.vector_store %arg5[%c0_787, %c0_788, %c14_789, %c0_790], %723 {strides = array<i32>} : memref<1x8x16x16xf32, #tpu.memory_space<vmem>>, vector<1x8x1x16xf32>,
    %cst_791 = arith.constant 0.000000e+00 : f32
    %724 = vector.broadcast %cst_791 : f32 to vector<8x16xf32>
    %c0_792 = arith.constant 0 : index
    %c0_793 = arith.constant 0 : index
    %c15_794 = arith.constant 15 : index
    %c0_795 = arith.constant 0 : index
    %725 = vector.load %arg2[%c0_792, %c0_793, %c15_794, %c0_795] : memref<1x4x18x18xf32, #tpu.memory_space<vmem>>, vector<1x4x1x16xf32>
    %726 = vector.shape_cast %725 : vector<1x4x1x16xf32> to vector<4x16xf32>
    %cst_796 = arith.constant dense<0.000000e+00> : vector<8x16xf32>
    %727 = tpu.matmul %2, %726, %cst_796 {dimension_numbers = #tpu.dot_dimension_numbers<[1], [0], [0], [1], [0, 0, 1, 1], [], []>} : vector<8x4xf32>, vector<4x16xf32>, vector<8x16xf32> -> vector<8x16xf32>
    %728 = arith.addf %724, %727 : vector<8x16xf32>
    %c0_797 = arith.constant 0 : index
    %c0_798 = arith.constant 0 : index
    %c15_799 = arith.constant 15 : index
    %c1_800 = arith.constant 1 : index
    %729 = vector.load %arg2[%c0_797, %c0_798, %c15_799, %c1_800] : memref<1x4x18x18xf32, #tpu.memory_space<vmem>>, vector<1x4x1x16xf32>
    %730 = vector.shape_cast %729 : vector<1x4x1x16xf32> to vector<4x16xf32>
    %cst_801 = arith.constant dense<0.000000e+00> : vector<8x16xf32>
    %731 = tpu.matmul %4, %730, %cst_801 {dimension_numbers = #tpu.dot_dimension_numbers<[1], [0], [0], [1], [0, 0, 1, 1], [], []>} : vector<8x4xf32>, vector<4x16xf32>, vector<8x16xf32> -> vector<8x16xf32>
    %732 = arith.addf %728, %731 : vector<8x16xf32>
    %c0_802 = arith.constant 0 : index
    %c0_803 = arith.constant 0 : index
    %c15_804 = arith.constant 15 : index
    %c2_805 = arith.constant 2 : index
    %733 = vector.load %arg2[%c0_802, %c0_803, %c15_804, %c2_805] : memref<1x4x18x18xf32, #tpu.memory_space<vmem>>, vector<1x4x1x16xf32>
    %734 = vector.shape_cast %733 : vector<1x4x1x16xf32> to vector<4x16xf32>
    %cst_806 = arith.constant dense<0.000000e+00> : vector<8x16xf32>
    %735 = tpu.matmul %6, %734, %cst_806 {dimension_numbers = #tpu.dot_dimension_numbers<[1], [0], [0], [1], [0, 0, 1, 1], [], []>} : vector<8x4xf32>, vector<4x16xf32>, vector<8x16xf32> -> vector<8x16xf32>
    %736 = arith.addf %732, %735 : vector<8x16xf32>
    %c0_807 = arith.constant 0 : index
    %c0_808 = arith.constant 0 : index
    %c16_809 = arith.constant 16 : index
    %c0_810 = arith.constant 0 : index
    %737 = vector.load %arg2[%c0_807, %c0_808, %c16_809, %c0_810] : memref<1x4x18x18xf32, #tpu.memory_space<vmem>>, vector<1x4x1x16xf32>
    %738 = vector.shape_cast %737 : vector<1x4x1x16xf32> to vector<4x16xf32>
    %cst_811 = arith.constant dense<0.000000e+00> : vector<8x16xf32>
    %739 = tpu.matmul %8, %738, %cst_811 {dimension_numbers = #tpu.dot_dimension_numbers<[1], [0], [0], [1], [0, 0, 1, 1], [], []>} : vector<8x4xf32>, vector<4x16xf32>, vector<8x16xf32> -> vector<8x16xf32>
    %740 = arith.addf %736, %739 : vector<8x16xf32>
    %c0_812 = arith.constant 0 : index
    %c0_813 = arith.constant 0 : index
    %c16_814 = arith.constant 16 : index
    %c1_815 = arith.constant 1 : index
    %741 = vector.load %arg2[%c0_812, %c0_813, %c16_814, %c1_815] : memref<1x4x18x18xf32, #tpu.memory_space<vmem>>, vector<1x4x1x16xf32>
    %742 = vector.shape_cast %741 : vector<1x4x1x16xf32> to vector<4x16xf32>
    %cst_816 = arith.constant dense<0.000000e+00> : vector<8x16xf32>
    %743 = tpu.matmul %10, %742, %cst_816 {dimension_numbers = #tpu.dot_dimension_numbers<[1], [0], [0], [1], [0, 0, 1, 1], [], []>} : vector<8x4xf32>, vector<4x16xf32>, vector<8x16xf32> -> vector<8x16xf32>
    %744 = arith.addf %740, %743 : vector<8x16xf32>
    %c0_817 = arith.constant 0 : index
    %c0_818 = arith.constant 0 : index
    %c16_819 = arith.constant 16 : index
    %c2_820 = arith.constant 2 : index
    %745 = vector.load %arg2[%c0_817, %c0_818, %c16_819, %c2_820] : memref<1x4x18x18xf32, #tpu.memory_space<vmem>>, vector<1x4x1x16xf32>
    %746 = vector.shape_cast %745 : vector<1x4x1x16xf32> to vector<4x16xf32>
    %cst_821 = arith.constant dense<0.000000e+00> : vector<8x16xf32>
    %747 = tpu.matmul %12, %746, %cst_821 {dimension_numbers = #tpu.dot_dimension_numbers<[1], [0], [0], [1], [0, 0, 1, 1], [], []>} : vector<8x4xf32>, vector<4x16xf32>, vector<8x16xf32> -> vector<8x16xf32>
    %748 = arith.addf %744, %747 : vector<8x16xf32>
    %c0_822 = arith.constant 0 : index
    %c0_823 = arith.constant 0 : index
    %c17 = arith.constant 17 : index
    %c0_824 = arith.constant 0 : index
    %749 = vector.load %arg2[%c0_822, %c0_823, %c17, %c0_824] : memref<1x4x18x18xf32, #tpu.memory_space<vmem>>, vector<1x4x1x16xf32>
    %750 = vector.shape_cast %749 : vector<1x4x1x16xf32> to vector<4x16xf32>
    %cst_825 = arith.constant dense<0.000000e+00> : vector<8x16xf32>
    %751 = tpu.matmul %14, %750, %cst_825 {dimension_numbers = #tpu.dot_dimension_numbers<[1], [0], [0], [1], [0, 0, 1, 1], [], []>} : vector<8x4xf32>, vector<4x16xf32>, vector<8x16xf32> -> vector<8x16xf32>
    %752 = arith.addf %748, %751 : vector<8x16xf32>
    %c0_826 = arith.constant 0 : index
    %c0_827 = arith.constant 0 : index
    %c17_828 = arith.constant 17 : index
    %c1_829 = arith.constant 1 : index
    %753 = vector.load %arg2[%c0_826, %c0_827, %c17_828, %c1_829] : memref<1x4x18x18xf32, #tpu.memory_space<vmem>>, vector<1x4x1x16xf32>
    %754 = vector.shape_cast %753 : vector<1x4x1x16xf32> to vector<4x16xf32>
    %cst_830 = arith.constant dense<0.000000e+00> : vector<8x16xf32>
    %755 = tpu.matmul %16, %754, %cst_830 {dimension_numbers = #tpu.dot_dimension_numbers<[1], [0], [0], [1], [0, 0, 1, 1], [], []>} : vector<8x4xf32>, vector<4x16xf32>, vector<8x16xf32> -> vector<8x16xf32>
    %756 = arith.addf %752, %755 : vector<8x16xf32>
    %c0_831 = arith.constant 0 : index
    %c0_832 = arith.constant 0 : index
    %c17_833 = arith.constant 17 : index
    %c2_834 = arith.constant 2 : index
    %757 = vector.load %arg2[%c0_831, %c0_832, %c17_833, %c2_834] : memref<1x4x18x18xf32, #tpu.memory_space<vmem>>, vector<1x4x1x16xf32>
    %758 = vector.shape_cast %757 : vector<1x4x1x16xf32> to vector<4x16xf32>
    %cst_835 = arith.constant dense<0.000000e+00> : vector<8x16xf32>
    %759 = tpu.matmul %18, %758, %cst_835 {dimension_numbers = #tpu.dot_dimension_numbers<[1], [0], [0], [1], [0, 0, 1, 1], [], []>} : vector<8x4xf32>, vector<4x16xf32>, vector<8x16xf32> -> vector<8x16xf32>
    %760 = arith.addf %756, %759 : vector<8x16xf32>
    %761 = vector.broadcast %0 : vector<8x1xf32> to vector<8x16xf32>
    %762 = arith.addf %760, %761 : vector<8x16xf32>
    %cst_836 = arith.constant 0.000000e+00 : f32
    %763 = vector.broadcast %cst_836 : f32 to vector<8x16xf32>
    %764 = arith.cmpf oge, %762, %763 : vector<8x16xf32>
    %cst_837 = arith.constant 0.00999999977 : f32
    %765 = vector.broadcast %cst_837 : f32 to vector<8x16xf32>
    %766 = arith.mulf %765, %762 : vector<8x16xf32>
    %767 = arith.select %764, %762, %766 : vector<8x16xi1>, vector<8x16xf32>
    %c0_838 = arith.constant 0 : index
    %c0_839 = arith.constant 0 : index
    %c15_840 = arith.constant 15 : index
    %c0_841 = arith.constant 0 : index
    %768 = vector.load %arg5[%c0_838, %c0_839, %c15_840, %c0_841] : memref<1x8x16x16xf32, #tpu.memory_space<vmem>>, vector<1x8x1x16xf32>
    %769 = vector.shape_cast %768 : vector<1x8x1x16xf32> to vector<8x16xf32>
    %770 = vector.shape_cast %767 : vector<8x16xf32> to vector<1x8x1x16xf32>
    tpu.vector_store %arg5[%c0_838, %c0_839, %c15_840, %c0_841], %770 {strides = array<i32>} : memref<1x8x16x16xf32, #tpu.memory_space<vmem>>, vector<1x8x1x16xf32>,
    return
  }
  func.func @transform_0(%arg0: i32, %arg1: i32) -> (i32, i32, i32, i32) {
    %c0_i32 = arith.constant 0 : i32
    %c0_i32_0 = arith.constant 0 : i32
    %c0_i32_1 = arith.constant 0 : i32
    %c0_i32_2 = arith.constant 0 : i32
    return %arg0, %c0_i32, %c0_i32_0, %c0_i32_1 : i32, i32, i32, i32
  }
  func.func @transform_1(%arg0: i32, %arg1: i32) -> (i32, i32, i32) {
    %c0_i32 = arith.constant 0 : i32
    %c0_i32_0 = arith.constant 0 : i32
    %c0_i32_1 = arith.constant 0 : i32
    %c0_i32_2 = arith.constant 0 : i32
    return %c0_i32, %c0_i32_0, %c0_i32_1 : i32, i32, i32
  }
  func.func @transform_2(%arg0: i32, %arg1: i32) -> (i32, i32) {
    %c0_i32 = arith.constant 0 : i32
    %c0_i32_0 = arith.constant 0 : i32
    %c0_i32_1 = arith.constant 0 : i32
    return %c0_i32, %c0_i32_0 : i32, i32
  }
  func.func @transform_3(%arg0: i32, %arg1: i32) -> (i32, i32, i32, i32) {
    %c0_i32 = arith.constant 0 : i32
    %c0_i32_0 = arith.constant 0 : i32
    %c0_i32_1 = arith.constant 0 : i32
    return %arg0, %c0_i32, %arg1, %c0_i32_0 : i32, i32, i32, i32
  }
}

</mosaic_0001>

<llo_original>
// kernel: leaky_relu_conv2d.1
$region0: #{leaky_relu_conv2d.1}
  #allocation0 [shape = 'u32[]', space=smem, size = 0x4, offset = 0x4, fixed_abs, tag = 'smem constant byte address 0x4 - core index']
  #allocation1 [shape = 'u32[72,128]{1,0:T(1,128)}', space=vmem, size = 0x9000, scoped, tag = 'internal scratch']
  %s0 = inlined_call_operand.vmem [shape: f32[2,4,18,18], index: 0, kind: input, shape index: {}]
  %s1 = inlined_call_operand.vmem [shape: f32[9,8,4], index: 1, kind: input, shape index: {}]
  %s2 = inlined_call_operand.vmem [shape: f32[8,1], index: 2, kind: input, shape index: {}]
  %s3 = inlined_call_operand.hbm [shape: f32[2,8,16,16], index: 3, kind: output, shape index: {}]
  %s4 = sld [smem:[#allocation0]]
  $region45: #{leaky_relu_conv2d.1} parent=0
    _
  %s6 = ssub.s32 1, %s4
  %s7 = scalar_select 0, %s6, %s4
  $region1: #{leaky_relu_conv2d.1} parent=0
    #allocation2 [shape = 'u8[131072]{0}', space=vmem, size = 0x20000, scoped, tag = 'output window, operand 0']
    #allocation3 [shape = 's32[2]{0}', space=sflag, size = 0x8, scoped, tag = 'scoped memory for leaky_relu_conv2d.1']
    %8 = vsyncpa [#allocation3], 0
    %s9 = scalar_lea.sflag [#allocation3], 1
    %10 = vsyncpa %s9, 0
    loop: start=0, step=1, limit=4
    $region2: #{leaky_relu_conv2d.1} parent=1 // loop_pre_header
      _
    $region3: #{leaky_relu_conv2d.1} parent=1 // loop_header
      %s12 = sphi 0, %s16
      %p13 = scmp.ge.s32.totalorder %s12, 4
      %s19 = sphi 0, %s31
      %s20 = sphi 0, %s27
      %s21 = sphi 0, %s19
      %s22 = sphi 0, %s20
      %s23 = sphi 0, %s21
      %s24 = sphi 0, %s22
      %s34 = sphi 0, %s36
      %s37 = sphi 0, %s34
      %s38 = sphi 0, %s37
      %s54 = sphi 0, %s38
      %s58 = sphi 0, %s58
      %s60 = sphi 0, %s58
      %s61 = sphi 0, %s60
      %s75 = sphi 0, %s61
      %s79 = sphi 0, %s79
      %s81 = sphi 0, %s79
      %s82 = sphi 0, %s81
      %s96 = sphi 0, %s82
      %s104 = sphi 0, %s106
      %s107 = sphi 0, %s104
      %s108 = sphi 0, %s107
      %s124 = sphi 0, %s108
    $region4: #{leaky_relu_conv2d.1} parent=1 // loop_header_branch
      %15 = sbr.rel (%p13) target = $region8
    $region5: #{leaky_relu_conv2d.1} parent=1 // loop_body
      %s17 = ssub.s32 %s12, 1
      %s18 = ssub.s32 %s12, 2
      %s25 = sadd.s32 1, %s20
      %p26 = scmp.ge.s32.totalorder %s25, 1
      %s27 = scalar_select %p26, 0, %s25
      %s28 = sadd.s32 1, %s19
      %s29 = scalar_select %p26, %s28, %s19
      %p30 = scmp.ge.s32.totalorder %s29, 2
      %s31 = scalar_select %p30, 0, %s29
      %s32 = ssub.s32 %s19, %s31
      %p33 = scmp.eq.s32.totalorder %s32, 0
      %s35 = sadd.s32 %s34, 1
      %s36 = scalar_select %p33, %s34, %s35
      %p39 = pneg %p33
      %p40 = scmp.eq.s32.totalorder %s12, 1
      %p41 = por %p39, %p40
      %p42 = scmp.ne.s32.totalorder %s34, %s37
      %p43 = scmp.eq.s32.totalorder %s12, 0
      %p44 = por %p42, %p43
      %p45 = scmp.ne.s32.totalorder %s34, %s37
      %p46 = scmp.eq.s32.totalorder %s17, 1
      %p47 = por %p45, %p46
      %p48 = scmp.ne.s32.totalorder %s37, %s38
      %p49 = scmp.eq.s32.totalorder %s17, 0
      %p50 = por %p48, %p49
      %p51 = scmp.ne.s32.totalorder %s37, %s38
      %p52 = scmp.eq.s32.totalorder %s18, 1
      %p53 = por %p51, %p52
      %p55 = scmp.ne.s32.totalorder %s38, %s54
      %p56 = scmp.eq.s32.totalorder %s18, 0
      %p57 = por %p55, %p56
      %s59 = sadd.s32 %s58, 1
      %p62 = scmp.eq.s32.totalorder %s12, 1
      %p63 = scmp.ne.s32.totalorder %s58, %s60
      %p64 = scmp.eq.s32.totalorder %s12, 0
      %p65 = por %p63, %p64
      %p66 = scmp.ne.s32.totalorder %s58, %s60
      %p67 = scmp.eq.s32.totalorder %s17, 1
      %p68 = por %p66, %p67
      %p69 = scmp.ne.s32.totalorder %s60, %s61
      %p70 = scmp.eq.s32.totalorder %s17, 0
      %p71 = por %p69, %p70
      %p72 = scmp.ne.s32.totalorder %s60, %s61
      %p73 = scmp.eq.s32.totalorder %s18, 1
      %p74 = por %p72, %p73
      %p76 = scmp.ne.s32.totalorder %s61, %s75
      %p77 = scmp.eq.s32.totalorder %s18, 0
      %p78 = por %p76, %p77
      %s80 = sadd.s32 %s79, 1
      %p83 = scmp.eq.s32.totalorder %s12, 1
      %p84 = scmp.ne.s32.totalorder %s79, %s81
      %p85 = scmp.eq.s32.totalorder %s12, 0
      %p86 = por %p84, %p85
      %p87 = scmp.ne.s32.totalorder %s79, %s81
      %p88 = scmp.eq.s32.totalorder %s17, 1
      %p89 = por %p87, %p88
      %p90 = scmp.ne.s32.totalorder %s81, %s82
      %p91 = scmp.eq.s32.totalorder %s17, 0
      %p92 = por %p90, %p91
      %p93 = scmp.ne.s32.totalorder %s81, %s82
      %p94 = scmp.eq.s32.totalorder %s18, 1
      %p95 = por %p93, %p94
      %p97 = scmp.ne.s32.totalorder %s82, %s96
      %p98 = scmp.eq.s32.totalorder %s18, 0
      %p99 = por %p97, %p98
      %s100 = ssub.s32 %s19, %s31
      %s101 = ssub.s32 %s20, %s27
      %s102 = sor.u32 %s100, %s101
      %p103 = scmp.eq.s32.totalorder %s102, 0
      %s105 = sadd.s32 %s104, 1
      %s106 = scalar_select %p103, %s104, %s105
      %p109 = pneg %p103
      %p110 = scmp.eq.s32.totalorder %s12, 1
      %p111 = por %p109, %p110
      %p112 = scmp.ne.s32.totalorder %s104, %s107
      %p113 = scmp.eq.s32.totalorder %s12, 0
      %p114 = por %p112, %p113
      %p115 = scmp.ne.s32.totalorder %s104, %s107
      %p116 = scmp.eq.s32.totalorder %s17, 1
      %p117 = por %p115, %p116
      %p118 = scmp.ne.s32.totalorder %s107, %s108
      %p119 = scmp.eq.s32.totalorder %s17, 0
      %p120 = por %p118, %p119
      %p121 = scmp.ne.s32.totalorder %s107, %s108
      %p122 = scmp.eq.s32.totalorder %s18, 1
      %p123 = por %p121, %p122
      %p125 = scmp.ne.s32.totalorder %s108, %s124
      %p126 = scmp.eq.s32.totalorder %s18, 0
      %p127 = por %p125, %p126
      %p128 = scmp.le.s32.totalorder 1, %s12
      %p129 = scmp.lt.s32.totalorder %s12, 3
      %p130 = pnand %p128, %p129
      %p131 = pneg %p130
      // Predicated region
      $region9: #{leaky_relu_conv2d.1} parent=5 // pred_check
        _
      $region10: #{leaky_relu_conv2d.1} parent=5 // pred_check_branch
        %133 = sbr.rel (%p130) target = $region12
      $region11: #{leaky_relu_conv2d.1} parent=5 // pred_region
        %s134 = ssub.s32 %s12, 1
        // Predicated region
        $region13: #{leaky_relu_conv2d.1} parent=11 // pred_check
          %p135 = pneg %p71
        $region14: #{leaky_relu_conv2d.1} parent=11 // pred_check_branch
          %137 = sbr.rel (%p135) target = $region16
        $region15: #{leaky_relu_conv2d.1} parent=11 // pred_region
          _
        $region16: #{leaky_relu_conv2d.1} parent=11 // pred_fallthru
          _
        // Predicated region
        $region17: #{leaky_relu_conv2d.1} parent=11 // pred_check
          %p138 = pneg %p92
        $region18: #{leaky_relu_conv2d.1} parent=11 // pred_check_branch
          %140 = sbr.rel (%p138) target = $region20
        $region19: #{leaky_relu_conv2d.1} parent=11 // pred_region
          _
        $region20: #{leaky_relu_conv2d.1} parent=11 // pred_fallthru
          _
      $region12: #{leaky_relu_conv2d.1} parent=5 // pred_fallthru
        _
      %p141 = scmp.lt.s32.totalorder %s12, 2
      // Predicated region
      $region21: #{leaky_relu_conv2d.1} parent=5 // pred_check
        %p142 = pneg %p141
      $region22: #{leaky_relu_conv2d.1} parent=5 // pred_check_branch
        %144 = sbr.rel (%p142) target = $region24
      $region23: #{leaky_relu_conv2d.1} parent=5 // pred_region
        // Predicated region
        $region25: #{leaky_relu_conv2d.1} parent=23 // pred_check
          %p145 = pneg %p44
        $region26: #{leaky_relu_conv2d.1} parent=23 // pred_check_branch
          %147 = sbr.rel (%p145) target = $region28
        $region27: #{leaky_relu_conv2d.1} parent=23 // pred_region
          %p148 = scmp.lt.s32.totalorder %s19, 1
          %s149 = scalar_select %p148, %s19, 1
          %s150 = smul.addr %s149, 12
          %s151 = smul.addr %s150, 8
          %s152 = scalar_lea.vmem %s0, %s151
        $region28: #{leaky_relu_conv2d.1} parent=23 // pred_fallthru
          _
      $region24: #{leaky_relu_conv2d.1} parent=5 // pred_fallthru
        _
      %p153 = scmp.le.s32.totalorder 1, %s12
      %p154 = scmp.lt.s32.totalorder %s12, 3
      %p155 = pnand %p153, %p154
      %p156 = pneg %p155
      // Predicated region
      $region29: #{leaky_relu_conv2d.1} parent=5 // pred_check
        _
      $region30: #{leaky_relu_conv2d.1} parent=5 // pred_check_branch
        %158 = sbr.rel (%p155) target = $region32
      $region31: #{leaky_relu_conv2d.1} parent=5 // pred_region
        %s159 = ssub.s32 %s12, 1
        %p160 = scmp.lt.s32.totalorder %s21, 1
        %s161 = scalar_select %p160, %s21, 1
        %s162 = smul.addr %s161, 12
        %s163 = smul.addr %s162, 8
        %s164 = scalar_lea.vmem %s0, %s163
        %p165 = pneg %p50
        %p166 = pneg %p47
        %p167 = pneg %p71
        %p168 = pneg %p68
        %p169 = pneg %p92
        %p170 = pneg %p89
        %p171 = pneg %p120
        %p172 = pneg %p117
        %s173 = sand.u32 %s107, 1
        %s174 = scalar_lea.sflag [#allocation3], %s173
        %s175 = sand.u32 %s107, 1
        %s176 = smul.addr %s175, 128
        %s177 = scalar_lea.vmem [#allocation2], %s176
        %p178 = scmp.lt.s32.totalorder %s21, 1
        %s179 = scalar_select %p178, %s21, 1
        %s180 = smul.addr %s179, 12
        %s181 = smul.addr %s180, 8
        %s182 = scalar_lea.vmem %s0, %s181
        %s183 = smul.u32 2, %s22
        %v184 = vld [vmem:[%s2] sm:$0xff]
        %v185 = vld [vmem:[%s1] sm:$0xff]
        %s186 = scalar_lea.vmem %s1, 8
        %v187 = vld [vmem:[%s186] sm:$0xff]
        %s188 = scalar_lea.vmem %s1, 16
        %v189 = vld [vmem:[%s188] sm:$0xff]
        %s190 = scalar_lea.vmem %s1, 24
        %v191 = vld [vmem:[%s190] sm:$0xff]
        %s192 = scalar_lea.vmem %s1, 32
        %v193 = vld [vmem:[%s192] sm:$0xff]
        %s194 = scalar_lea.vmem %s1, 40
        %v195 = vld [vmem:[%s194] sm:$0xff]
        %s196 = scalar_lea.vmem %s1, 48
        %v197 = vld [vmem:[%s196] sm:$0xff]
        %s198 = scalar_lea.vmem %s1, 56
        %v199 = vld [vmem:[%s198] sm:$0xff]
        %s200 = scalar_lea.vmem %s1, 64
        %v201 = vld [vmem:[%s200] sm:$0xff]
        %v202 = vld [vmem:[%s182] sm:$0x1]
        %v203 = vld [vmem:[%s182 + $0x18] sm:$0x1]
        %v204 = vld [vmem:[%s182 + $0x30] sm:$0x1]
        %v205 = vld [vmem:[%s182 + $0x48] sm:$0x1]
        %v210 = vrot.slane %v203, 7
        %vm211 = vcmask 1041409
        %v212 = vsel %vm211, %v210, %v202
        %v213 = vrot.slane %v204, 6
        %vm214 = vcmask 1042434
        %v215 = vsel %vm214, %v213, %v212
        %v216 = vrot.slane %v205, 5
        %vm217 = vcmask 1043459
        %v218 = vsel %vm217, %v216, %v215
        %219 = vrot.lane.b32.xlu0 %v218, 127
        %v220 = vpop.permute.xlu0 %219
        %vm221 = vcmask 31744
        %v223 = vsel %vm221, %v187, 0
        %vm225 = vcmask 1043456
        %v226 = vsel %vm225, %v220, 0
        %228 = vmatpush.msra.mxu0 0.0
        %229 = vmatpush.msra.mxu0 0.0
        %230 = vmatpush.msra.mxu0 0.0
        %231 = vmatpush.msra.mxu0 0.0
        %232 = vmatpush.msra.mxu0 0.0
        %233 = vmatpush.msra.mxu0 0.0
        %234 = vmatpush.msra.mxu0 0.0
        %235 = vmatpush.msra.mxu0 0.0
        %236 = vmatpush.msra.mxu0 0.0
        %237 = vmatpush.msra.mxu0 0.0
        %238 = vmatpush.msra.mxu0 0.0
        %239 = vmatpush.msra.mxu0 0.0
        %240 = vmatpush.msra.mxu0 0.0
        %241 = vmatpush.msra.mxu0 0.0
        %242 = vmatpush.msra.mxu0 0.0
        %243 = vmatpush.msra.mxu0 %v226
        %244 = vmatmul.f32.gmra.mxu0 %v223
        %v245 = vpop.f32.mrf.mxu0
        %v246 = vadd.f32 0.0, %v245
        %247 = vdwg.mxu0
        %v249 = vsel %vm221, %v185, 0
        %v251 = vsel %vm225, %v218, 0
        %253 = vmatpush.msra.mxu0 0.0
        %254 = vmatpush.msra.mxu0 0.0
        %255 = vmatpush.msra.mxu0 0.0
        %256 = vmatpush.msra.mxu0 0.0
        %257 = vmatpush.msra.mxu0 0.0
        %258 = vmatpush.msra.mxu0 0.0
        %259 = vmatpush.msra.mxu0 0.0
        %260 = vmatpush.msra.mxu0 0.0
        %261 = vmatpush.msra.mxu0 0.0
        %262 = vmatpush.msra.mxu0 0.0
        %263 = vmatpush.msra.mxu0 0.0
        %264 = vmatpush.msra.mxu0 0.0
        %265 = vmatpush.msra.mxu0 0.0
        %266 = vmatpush.msra.mxu0 0.0
        %267 = vmatpush.msra.mxu0 0.0
        %268 = vmatpush.msra.mxu0 %v251
        %269 = vmatmul.f32.gmra.mxu0 %v249
        %v270 = vpop.f32.mrf.mxu0
        %v271 = vadd.f32 %v246, %v270
        %272 = vdwg.mxu0
        %273 = vrot.lane.b32.xlu0 %v218, 126
        %v274 = vpop.permute.xlu0 %273
        %v276 = vsel %vm221, %v189, 0
        %v278 = vsel %vm225, %v274, 0
        %280 = vmatpush.msra.mxu0 0.0
        %281 = vmatpush.msra.mxu0 0.0
        %282 = vmatpush.msra.mxu0 0.0
        %283 = vmatpush.msra.mxu0 0.0
        %284 = vmatpush.msra.mxu0 0.0
        %285 = vmatpush.msra.mxu0 0.0
        %286 = vmatpush.msra.mxu0 0.0
        %287 = vmatpush.msra.mxu0 0.0
        %288 = vmatpush.msra.mxu0 0.0
        %289 = vmatpush.msra.mxu0 0.0
        %290 = vmatpush.msra.mxu0 0.0
        %291 = vmatpush.msra.mxu0 0.0
        %292 = vmatpush.msra.mxu0 0.0
        %293 = vmatpush.msra.mxu0 0.0
        %294 = vmatpush.msra.mxu0 0.0
        %295 = vmatpush.msra.mxu0 %v278
        %296 = vmatmul.f32.gmra.mxu0 %v276
        %v297 = vpop.f32.mrf.mxu0
        %v298 = vadd.f32 0.0, %v297
        %299 = vdwg.mxu0
        %v300 = vadd.f32 %v271, %v298
        %v301 = vld [vmem:[%s182 + $0x1] sm:$0x1]
        %v302 = vld [vmem:[%s182 + $0x19] sm:$0x1]
        %v303 = vld [vmem:[%s182 + $0x31] sm:$0x1]
        %v304 = vld [vmem:[%s182 + $0x49] sm:$0x1]
        %v309 = vrot.slane %v302, 7
        %v310 = vsel %vm211, %v309, %v301
        %v311 = vrot.slane %v303, 6
        %v312 = vsel %vm214, %v311, %v310
        %v313 = vrot.slane %v304, 5
        %v314 = vsel %vm217, %v313, %v312
        %v316 = vsel %vm221, %v191, 0
        %v318 = vsel %vm225, %v314, 0
        %320 = vmatpush.msra.mxu0 0.0
        %321 = vmatpush.msra.mxu0 0.0
        %322 = vmatpush.msra.mxu0 0.0
        %323 = vmatpush.msra.mxu0 0.0
        %324 = vmatpush.msra.mxu0 0.0
        %325 = vmatpush.msra.mxu0 0.0
        %326 = vmatpush.msra.mxu0 0.0
        %327 = vmatpush.msra.mxu0 0.0
        %328 = vmatpush.msra.mxu0 0.0
        %329 = vmatpush.msra.mxu0 0.0
        %330 = vmatpush.msra.mxu0 0.0
        %331 = vmatpush.msra.mxu0 0.0
        %332 = vmatpush.msra.mxu0 0.0
        %333 = vmatpush.msra.mxu0 0.0
        %334 = vmatpush.msra.mxu0 0.0
        %335 = vmatpush.msra.mxu0 %v318
        %336 = vmatmul.f32.gmra.mxu0 %v316
        %v337 = vpop.f32.mrf.mxu0
        %v338 = vadd.f32 0.0, %v337
        %339 = vdwg.mxu0
        %v340 = vadd.f32 %v300, %v338
        %341 = vrot.lane.b32.xlu0 %v314, 127
        %v342 = vpop.permute.xlu0 %341
        %v344 = vsel %vm221, %v193, 0
        %v346 = vsel %vm225, %v342, 0
        %348 = vmatpush.msra.mxu0 0.0
        %349 = vmatpush.msra.mxu0 0.0
        %350 = vmatpush.msra.mxu0 0.0
        %351 = vmatpush.msra.mxu0 0.0
        %352 = vmatpush.msra.mxu0 0.0
        %353 = vmatpush.msra.mxu0 0.0
        %354 = vmatpush.msra.mxu0 0.0
        %355 = vmatpush.msra.mxu0 0.0
        %356 = vmatpush.msra.mxu0 0.0
        %357 = vmatpush.msra.mxu0 0.0
        %358 = vmatpush.msra.mxu0 0.0
        %359 = vmatpush.msra.mxu0 0.0
        %360 = vmatpush.msra.mxu0 0.0
        %361 = vmatpush.msra.mxu0 0.0
        %362 = vmatpush.msra.mxu0 0.0
        %363 = vmatpush.msra.mxu0 %v346
        %364 = vmatmul.f32.gmra.mxu0 %v344
        %v365 = vpop.f32.mrf.mxu0
        %v366 = vadd.f32 0.0, %v365
        %367 = vdwg.mxu0
        %v368 = vadd.f32 %v340, %v366
        %369 = vrot.lane.b32.xlu0 %v314, 126
        %v370 = vpop.permute.xlu0 %369
        %v372 = vsel %vm221, %v195, 0
        %v374 = vsel %vm225, %v370, 0
        %376 = vmatpush.msra.mxu0 0.0
        %377 = vmatpush.msra.mxu0 0.0
        %378 = vmatpush.msra.mxu0 0.0
        %379 = vmatpush.msra.mxu0 0.0
        %380 = vmatpush.msra.mxu0 0.0
        %381 = vmatpush.msra.mxu0 0.0
        %382 = vmatpush.msra.mxu0 0.0
        %383 = vmatpush.msra.mxu0 0.0
        %384 = vmatpush.msra.mxu0 0.0
        %385 = vmatpush.msra.mxu0 0.0
        %386 = vmatpush.msra.mxu0 0.0
        %387 = vmatpush.msra.mxu0 0.0
        %388 = vmatpush.msra.mxu0 0.0
        %389 = vmatpush.msra.mxu0 0.0
        %390 = vmatpush.msra.mxu0 0.0
        %391 = vmatpush.msra.mxu0 %v374
        %392 = vmatmul.f32.gmra.mxu0 %v372
        %v393 = vpop.f32.mrf.mxu0
        %v394 = vadd.f32 0.0, %v393
        %395 = vdwg.mxu0
        %v396 = vadd.f32 %v368, %v394
        %v397 = vld [vmem:[%s182 + $0x2] sm:$0x1]
        %v398 = vld [vmem:[%s182 + $0x1a] sm:$0x1]
        %v399 = vld [vmem:[%s182 + $0x32] sm:$0x1]
        %v400 = vld [vmem:[%s182 + $0x4a] sm:$0x1]
        %v405 = vrot.slane %v398, 7
        %v406 = vsel %vm211, %v405, %v397
        %v407 = vrot.slane %v399, 6
        %v408 = vsel %vm214, %v407, %v406
        %v409 = vrot.slane %v400, 5
        %v410 = vsel %vm217, %v409, %v408
        %v412 = vsel %vm221, %v197, 0
        %v414 = vsel %vm225, %v410, 0
        %416 = vmatpush.msra.mxu0 0.0
        %417 = vmatpush.msra.mxu0 0.0
        %418 = vmatpush.msra.mxu0 0.0
        %419 = vmatpush.msra.mxu0 0.0
        %420 = vmatpush.msra.mxu0 0.0
        %421 = vmatpush.msra.mxu0 0.0
        %422 = vmatpush.msra.mxu0 0.0
        %423 = vmatpush.msra.mxu0 0.0
        %424 = vmatpush.msra.mxu0 0.0
        %425 = vmatpush.msra.mxu0 0.0
        %426 = vmatpush.msra.mxu0 0.0
        %427 = vmatpush.msra.mxu0 0.0
        %428 = vmatpush.msra.mxu0 0.0
        %429 = vmatpush.msra.mxu0 0.0
        %430 = vmatpush.msra.mxu0 0.0
        %431 = vmatpush.msra.mxu0 %v414
        %432 = vmatmul.f32.gmra.mxu0 %v412
        %v433 = vpop.f32.mrf.mxu0
        %v434 = vadd.f32 0.0, %v433
        %435 = vdwg.mxu0
        %v436 = vadd.f32 %v396, %v434
        %437 = vrot.lane.b32.xlu0 %v410, 127
        %v438 = vpop.permute.xlu0 %437
        %v440 = vsel %vm221, %v199, 0
        %v442 = vsel %vm225, %v438, 0
        %444 = vmatpush.msra.mxu0 0.0
        %445 = vmatpush.msra.mxu0 0.0
        %446 = vmatpush.msra.mxu0 0.0
        %447 = vmatpush.msra.mxu0 0.0
        %448 = vmatpush.msra.mxu0 0.0
        %449 = vmatpush.msra.mxu0 0.0
        %450 = vmatpush.msra.mxu0 0.0
        %451 = vmatpush.msra.mxu0 0.0
        %452 = vmatpush.msra.mxu0 0.0
        %453 = vmatpush.msra.mxu0 0.0
        %454 = vmatpush.msra.mxu0 0.0
        %455 = vmatpush.msra.mxu0 0.0
        %456 = vmatpush.msra.mxu0 0.0
        %457 = vmatpush.msra.mxu0 0.0
        %458 = vmatpush.msra.mxu0 0.0
        %459 = vmatpush.msra.mxu0 %v442
        %460 = vmatmul.f32.gmra.mxu0 %v440
        %v461 = vpop.f32.mrf.mxu0
        %v462 = vadd.f32 0.0, %v461
        %463 = vdwg.mxu0
        %v464 = vadd.f32 %v436, %v462
        %465 = vrot.lane.b32.xlu0 %v410, 126
        %v466 = vpop.permute.xlu0 %465
        %v468 = vsel %vm221, %v201, 0
        %v470 = vsel %vm225, %v466, 0
        %472 = vmatpush.msra.mxu0 0.0
        %473 = vmatpush.msra.mxu0 0.0
        %474 = vmatpush.msra.mxu0 0.0
        %475 = vmatpush.msra.mxu0 0.0
        %476 = vmatpush.msra.mxu0 0.0
        %477 = vmatpush.msra.mxu0 0.0
        %478 = vmatpush.msra.mxu0 0.0
        %479 = vmatpush.msra.mxu0 0.0
        %480 = vmatpush.msra.mxu0 0.0
        %481 = vmatpush.msra.mxu0 0.0
        %482 = vmatpush.msra.mxu0 0.0
        %483 = vmatpush.msra.mxu0 0.0
        %484 = vmatpush.msra.mxu0 0.0
        %485 = vmatpush.msra.mxu0 0.0
        %486 = vmatpush.msra.mxu0 0.0
        %487 = vmatpush.msra.mxu0 %v470
        %488 = vmatmul.f32.gmra.mxu0 %v468
        %v489 = vpop.f32.mrf.mxu0
        %v490 = vadd.f32 0.0, %v489
        %491 = vdwg.mxu0
        %v492 = vadd.f32 %v464, %v490
        %494 = vset.pattern.permute.xlu0 0
        %495 = vperm.xlu0 %494, %v184
        %v496 = vpop.permute.xlu0 %495
        %v498 = vadd.f32 %v492, %v496
        %vm499 = vcmp.ge.f32.partialorder %v498, 0.0
        %v500 = vmul.f32 %v498, 0.01
        %v501 = vsel %vm499, %v498, %v500
        %v503 = vrot.slane %v501, 1
        %v504 = vrot.slane %v501, 2
        %v505 = vrot.slane %v501, 3
        %v506 = vrot.slane %v501, 4
        %v507 = vrot.slane %v501, 5
        %v508 = vrot.slane %v501, 6
        %v509 = vrot.slane %v501, 7
        %vm517 = vcmask 122880
        %518 = vst.msk [vmem:[%s177] sm:$0x1] %vm517, %v501
        %519 = vst.msk [vmem:[%s177 + $0x10] sm:$0x1] %vm517, %v503
        %520 = vst.msk [vmem:[%s177 + $0x20] sm:$0x1] %vm517, %v504
        %521 = vst.msk [vmem:[%s177 + $0x30] sm:$0x1] %vm517, %v505
        %522 = vst.msk [vmem:[%s177 + $0x40] sm:$0x1] %vm517, %v506
        %523 = vst.msk [vmem:[%s177 + $0x50] sm:$0x1] %vm517, %v507
        %524 = vst.msk [vmem:[%s177 + $0x60] sm:$0x1] %vm517, %v508
        %525 = vst.msk [vmem:[%s177 + $0x70] sm:$0x1] %vm517, %v509
        %v526 = vld [vmem:[%s182 + $0x1] sm:$0x1]
        %v527 = vld [vmem:[%s182 + $0x19] sm:$0x1]
        %v528 = vld [vmem:[%s182 + $0x31] sm:$0x1]
        %v529 = vld [vmem:[%s182 + $0x49] sm:$0x1]
        %v534 = vrot.slane %v527, 7
        %v535 = vsel %vm211, %v534, %v526
        %v536 = vrot.slane %v528, 6
        %v537 = vsel %vm214, %v536, %v535
        %v538 = vrot.slane %v529, 5
        %v539 = vsel %vm217, %v538, %v537
        %540 = vrot.lane.b32.xlu0 %v539, 127
        %v541 = vpop.permute.xlu0 %540
        %v542 = vsel %vm225, %v541, 0
        %544 = vmatpush.msra.mxu0 0.0
        %545 = vmatpush.msra.mxu0 0.0
        %546 = vmatpush.msra.mxu0 0.0
        %547 = vmatpush.msra.mxu0 0.0
        %548 = vmatpush.msra.mxu0 0.0
        %549 = vmatpush.msra.mxu0 0.0
        %550 = vmatpush.msra.mxu0 0.0
        %551 = vmatpush.msra.mxu0 0.0
        %552 = vmatpush.msra.mxu0 0.0
        %553 = vmatpush.msra.mxu0 0.0
        %554 = vmatpush.msra.mxu0 0.0
        %555 = vmatpush.msra.mxu0 0.0
        %556 = vmatpush.msra.mxu0 0.0
        %557 = vmatpush.msra.mxu0 0.0
        %558 = vmatpush.msra.mxu0 0.0
        %559 = vmatpush.msra.mxu0 %v542
        %560 = vmatmul.f32.gmra.mxu0 %v223
        %v561 = vpop.f32.mrf.mxu0
        %v562 = vadd.f32 0.0, %v561
        %563 = vdwg.mxu0
        %v564 = vsel %vm225, %v539, 0
        %566 = vmatpush.msra.mxu0 0.0
        %567 = vmatpush.msra.mxu0 0.0
        %568 = vmatpush.msra.mxu0 0.0
        %569 = vmatpush.msra.mxu0 0.0
        %570 = vmatpush.msra.mxu0 0.0
        %571 = vmatpush.msra.mxu0 0.0
        %572 = vmatpush.msra.mxu0 0.0
        %573 = vmatpush.msra.mxu0 0.0
        %574 = vmatpush.msra.mxu0 0.0
        %575 = vmatpush.msra.mxu0 0.0
        %576 = vmatpush.msra.mxu0 0.0
        %577 = vmatpush.msra.mxu0 0.0
        %578 = vmatpush.msra.mxu0 0.0
        %579 = vmatpush.msra.mxu0 0.0
        %580 = vmatpush.msra.mxu0 0.0
        %581 = vmatpush.msra.mxu0 %v564
        %582 = vmatmul.f32.gmra.mxu0 %v249
        %v583 = vpop.f32.mrf.mxu0
        %v584 = vadd.f32 %v562, %v583
        %585 = vdwg.mxu0
        %586 = vrot.lane.b32.xlu0 %v539, 126
        %v587 = vpop.permute.xlu0 %586
        %v588 = vsel %vm225, %v587, 0
        %590 = vmatpush.msra.mxu0 0.0
        %591 = vmatpush.msra.mxu0 0.0
        %592 = vmatpush.msra.mxu0 0.0
        %593 = vmatpush.msra.mxu0 0.0
        %594 = vmatpush.msra.mxu0 0.0
        %595 = vmatpush.msra.mxu0 0.0
        %596 = vmatpush.msra.mxu0 0.0
        %597 = vmatpush.msra.mxu0 0.0
        %598 = vmatpush.msra.mxu0 0.0
        %599 = vmatpush.msra.mxu0 0.0
        %600 = vmatpush.msra.mxu0 0.0
        %601 = vmatpush.msra.mxu0 0.0
        %602 = vmatpush.msra.mxu0 0.0
        %603 = vmatpush.msra.mxu0 0.0
        %604 = vmatpush.msra.mxu0 0.0
        %605 = vmatpush.msra.mxu0 %v588
        %606 = vmatmul.f32.gmra.mxu0 %v276
        %v607 = vpop.f32.mrf.mxu0
        %v608 = vadd.f32 0.0, %v607
        %609 = vdwg.mxu0
        %v610 = vadd.f32 %v584, %v608
        %v611 = vld [vmem:[%s182 + $0x2] sm:$0x1]
        %v612 = vld [vmem:[%s182 + $0x1a] sm:$0x1]
        %v613 = vld [vmem:[%s182 + $0x32] sm:$0x1]
        %v614 = vld [vmem:[%s182 + $0x4a] sm:$0x1]
        %v619 = vrot.slane %v612, 7
        %v620 = vsel %vm211, %v619, %v611
        %v621 = vrot.slane %v613, 6
        %v622 = vsel %vm214, %v621, %v620
        %v623 = vrot.slane %v614, 5
        %v624 = vsel %vm217, %v623, %v622
        %v625 = vsel %vm225, %v624, 0
        %627 = vmatpush.msra.mxu0 0.0
        %628 = vmatpush.msra.mxu0 0.0
        %629 = vmatpush.msra.mxu0 0.0
        %630 = vmatpush.msra.mxu0 0.0
        %631 = vmatpush.msra.mxu0 0.0
        %632 = vmatpush.msra.mxu0 0.0
        %633 = vmatpush.msra.mxu0 0.0
        %634 = vmatpush.msra.mxu0 0.0
        %635 = vmatpush.msra.mxu0 0.0
        %636 = vmatpush.msra.mxu0 0.0
        %637 = vmatpush.msra.mxu0 0.0
        %638 = vmatpush.msra.mxu0 0.0
        %639 = vmatpush.msra.mxu0 0.0
        %640 = vmatpush.msra.mxu0 0.0
        %641 = vmatpush.msra.mxu0 0.0
        %642 = vmatpush.msra.mxu0 %v625
        %643 = vmatmul.f32.gmra.mxu0 %v316
        %v644 = vpop.f32.mrf.mxu0
        %v645 = vadd.f32 0.0, %v644
        %646 = vdwg.mxu0
        %v647 = vadd.f32 %v610, %v645
        %648 = vrot.lane.b32.xlu0 %v624, 127
        %v649 = vpop.permute.xlu0 %648
        %v650 = vsel %vm225, %v649, 0
        %652 = vmatpush.msra.mxu0 0.0
        %653 = vmatpush.msra.mxu0 0.0
        %654 = vmatpush.msra.mxu0 0.0
        %655 = vmatpush.msra.mxu0 0.0
        %656 = vmatpush.msra.mxu0 0.0
        %657 = vmatpush.msra.mxu0 0.0
        %658 = vmatpush.msra.mxu0 0.0
        %659 = vmatpush.msra.mxu0 0.0
        %660 = vmatpush.msra.mxu0 0.0
        %661 = vmatpush.msra.mxu0 0.0
        %662 = vmatpush.msra.mxu0 0.0
        %663 = vmatpush.msra.mxu0 0.0
        %664 = vmatpush.msra.mxu0 0.0
        %665 = vmatpush.msra.mxu0 0.0
        %666 = vmatpush.msra.mxu0 0.0
        %667 = vmatpush.msra.mxu0 %v650
        %668 = vmatmul.f32.gmra.mxu0 %v344
        %v669 = vpop.f32.mrf.mxu0
        %v670 = vadd.f32 0.0, %v669
        %671 = vdwg.mxu0
        %v672 = vadd.f32 %v647, %v670
        %673 = vrot.lane.b32.xlu0 %v624, 126
        %v674 = vpop.permute.xlu0 %673
        %v675 = vsel %vm225, %v674, 0
        %677 = vmatpush.msra.mxu0 0.0
        %678 = vmatpush.msra.mxu0 0.0
        %679 = vmatpush.msra.mxu0 0.0
        %680 = vmatpush.msra.mxu0 0.0
        %681 = vmatpush.msra.mxu0 0.0
        %682 = vmatpush.msra.mxu0 0.0
        %683 = vmatpush.msra.mxu0 0.0
        %684 = vmatpush.msra.mxu0 0.0
        %685 = vmatpush.msra.mxu0 0.0
        %686 = vmatpush.msra.mxu0 0.0
        %687 = vmatpush.msra.mxu0 0.0
        %688 = vmatpush.msra.mxu0 0.0
        %689 = vmatpush.msra.mxu0 0.0
        %690 = vmatpush.msra.mxu0 0.0
        %691 = vmatpush.msra.mxu0 0.0
        %692 = vmatpush.msra.mxu0 %v675
        %693 = vmatmul.f32.gmra.mxu0 %v372
        %v694 = vpop.f32.mrf.mxu0
        %v695 = vadd.f32 0.0, %v694
        %696 = vdwg.mxu0
        %v697 = vadd.f32 %v672, %v695
        %v698 = vld [vmem:[%s182 + $0x3] sm:$0x1]
        %v699 = vld [vmem:[%s182 + $0x1b] sm:$0x1]
        %v700 = vld [vmem:[%s182 + $0x33] sm:$0x1]
        %v701 = vld [vmem:[%s182 + $0x4b] sm:$0x1]
        %v706 = vrot.slane %v699, 7
        %v707 = vsel %vm211, %v706, %v698
        %v708 = vrot.slane %v700, 6
        %v709 = vsel %vm214, %v708, %v707
        %v710 = vrot.slane %v701, 5
        %v711 = vsel %vm217, %v710, %v709
        %v712 = vsel %vm225, %v711, 0
        %714 = vmatpush.msra.mxu0 0.0
        %715 = vmatpush.msra.mxu0 0.0
        %716 = vmatpush.msra.mxu0 0.0
        %717 = vmatpush.msra.mxu0 0.0
        %718 = vmatpush.msra.mxu0 0.0
        %719 = vmatpush.msra.mxu0 0.0
        %720 = vmatpush.msra.mxu0 0.0
        %721 = vmatpush.msra.mxu0 0.0
        %722 = vmatpush.msra.mxu0 0.0
        %723 = vmatpush.msra.mxu0 0.0
        %724 = vmatpush.msra.mxu0 0.0
        %725 = vmatpush.msra.mxu0 0.0
        %726 = vmatpush.msra.mxu0 0.0
        %727 = vmatpush.msra.mxu0 0.0
        %728 = vmatpush.msra.mxu0 0.0
        %729 = vmatpush.msra.mxu0 %v712
        %730 = vmatmul.f32.gmra.mxu0 %v412
        %v731 = vpop.f32.mrf.mxu0
        %v732 = vadd.f32 0.0, %v731
        %733 = vdwg.mxu0
        %v734 = vadd.f32 %v697, %v732
        %735 = vrot.lane.b32.xlu0 %v711, 127
        %v736 = vpop.permute.xlu0 %735
        %v737 = vsel %vm225, %v736, 0
        %739 = vmatpush.msra.mxu0 0.0
        %740 = vmatpush.msra.mxu0 0.0
        %741 = vmatpush.msra.mxu0 0.0
        %742 = vmatpush.msra.mxu0 0.0
        %743 = vmatpush.msra.mxu0 0.0
        %744 = vmatpush.msra.mxu0 0.0
        %745 = vmatpush.msra.mxu0 0.0
        %746 = vmatpush.msra.mxu0 0.0
        %747 = vmatpush.msra.mxu0 0.0
        %748 = vmatpush.msra.mxu0 0.0
        %749 = vmatpush.msra.mxu0 0.0
        %750 = vmatpush.msra.mxu0 0.0
        %751 = vmatpush.msra.mxu0 0.0
        %752 = vmatpush.msra.mxu0 0.0
        %753 = vmatpush.msra.mxu0 0.0
        %754 = vmatpush.msra.mxu0 %v737
        %755 = vmatmul.f32.gmra.mxu0 %v440
        %v756 = vpop.f32.mrf.mxu0
        %v757 = vadd.f32 0.0, %v756
        %758 = vdwg.mxu0
        %v759 = vadd.f32 %v734, %v757
        %760 = vrot.lane.b32.xlu0 %v711, 126
        %v761 = vpop.permute.xlu0 %760
        %v762 = vsel %vm225, %v761, 0
        %764 = vmatpush.msra.mxu0 0.0
        %765 = vmatpush.msra.mxu0 0.0
        %766 = vmatpush.msra.mxu0 0.0
        %767 = vmatpush.msra.mxu0 0.0
        %768 = vmatpush.msra.mxu0 0.0
        %769 = vmatpush.msra.mxu0 0.0
        %770 = vmatpush.msra.mxu0 0.0
        %771 = vmatpush.msra.mxu0 0.0
        %772 = vmatpush.msra.mxu0 0.0
        %773 = vmatpush.msra.mxu0 0.0
        %774 = vmatpush.msra.mxu0 0.0
        %775 = vmatpush.msra.mxu0 0.0
        %776 = vmatpush.msra.mxu0 0.0
        %777 = vmatpush.msra.mxu0 0.0
        %778 = vmatpush.msra.mxu0 0.0
        %779 = vmatpush.msra.mxu0 %v762
        %780 = vmatmul.f32.gmra.mxu0 %v468
        %v781 = vpop.f32.mrf.mxu0
        %v782 = vadd.f32 0.0, %v781
        %783 = vdwg.mxu0
        %v784 = vadd.f32 %v759, %v782
        %v785 = vadd.f32 %v784, %v496
        %vm786 = vcmp.ge.f32.partialorder %v785, 0.0
        %v787 = vmul.f32 %v785, 0.01
        %v788 = vsel %vm786, %v785, %v787
        %v790 = vrot.slane %v788, 1
        %v791 = vrot.slane %v788, 2
        %v792 = vrot.slane %v788, 3
        %v793 = vrot.slane %v788, 4
        %v794 = vrot.slane %v788, 5
        %v795 = vrot.slane %v788, 6
        %v796 = vrot.slane %v788, 7
        %804 = vst.msk [vmem:[%s177 + $0x1] sm:$0x1] %vm517, %v788
        %805 = vst.msk [vmem:[%s177 + $0x11] sm:$0x1] %vm517, %v790
        %806 = vst.msk [vmem:[%s177 + $0x21] sm:$0x1] %vm517, %v791
        %807 = vst.msk [vmem:[%s177 + $0x31] sm:$0x1] %vm517, %v792
        %808 = vst.msk [vmem:[%s177 + $0x41] sm:$0x1] %vm517, %v793
        %809 = vst.msk [vmem:[%s177 + $0x51] sm:$0x1] %vm517, %v794
        %810 = vst.msk [vmem:[%s177 + $0x61] sm:$0x1] %vm517, %v795
        %811 = vst.msk [vmem:[%s177 + $0x71] sm:$0x1] %vm517, %v796
        %v812 = vld [vmem:[%s182 + $0x2] sm:$0x1]
        %v813 = vld [vmem:[%s182 + $0x1a] sm:$0x1]
        %v814 = vld [vmem:[%s182 + $0x32] sm:$0x1]
        %v815 = vld [vmem:[%s182 + $0x4a] sm:$0x1]
        %v820 = vrot.slane %v813, 7
        %v821 = vsel %vm211, %v820, %v812
        %v822 = vrot.slane %v814, 6
        %v823 = vsel %vm214, %v822, %v821
        %v824 = vrot.slane %v815, 5
        %v825 = vsel %vm217, %v824, %v823
        %826 = vrot.lane.b32.xlu0 %v825, 127
        %v827 = vpop.permute.xlu0 %826
        %v828 = vsel %vm225, %v827, 0
        %830 = vmatpush.msra.mxu0 0.0
        %831 = vmatpush.msra.mxu0 0.0
        %832 = vmatpush.msra.mxu0 0.0
        %833 = vmatpush.msra.mxu0 0.0
        %834 = vmatpush.msra.mxu0 0.0
        %835 = vmatpush.msra.mxu0 0.0
        %836 = vmatpush.msra.mxu0 0.0
        %837 = vmatpush.msra.mxu0 0.0
        %838 = vmatpush.msra.mxu0 0.0
        %839 = vmatpush.msra.mxu0 0.0
        %840 = vmatpush.msra.mxu0 0.0
        %841 = vmatpush.msra.mxu0 0.0
        %842 = vmatpush.msra.mxu0 0.0
        %843 = vmatpush.msra.mxu0 0.0
        %844 = vmatpush.msra.mxu0 0.0
        %845 = vmatpush.msra.mxu0 %v828
        %846 = vmatmul.f32.gmra.mxu0 %v223
        %v847 = vpop.f32.mrf.mxu0
        %v848 = vadd.f32 0.0, %v847
        %849 = vdwg.mxu0
        %v850 = vsel %vm225, %v825, 0
        %852 = vmatpush.msra.mxu0 0.0
        %853 = vmatpush.msra.mxu0 0.0
        %854 = vmatpush.msra.mxu0 0.0
        %855 = vmatpush.msra.mxu0 0.0
        %856 = vmatpush.msra.mxu0 0.0
        %857 = vmatpush.msra.mxu0 0.0
        %858 = vmatpush.msra.mxu0 0.0
        %859 = vmatpush.msra.mxu0 0.0
        %860 = vmatpush.msra.mxu0 0.0
        %861 = vmatpush.msra.mxu0 0.0
        %862 = vmatpush.msra.mxu0 0.0
        %863 = vmatpush.msra.mxu0 0.0
        %864 = vmatpush.msra.mxu0 0.0
        %865 = vmatpush.msra.mxu0 0.0
        %866 = vmatpush.msra.mxu0 0.0
        %867 = vmatpush.msra.mxu0 %v850
        %868 = vmatmul.f32.gmra.mxu0 %v249
        %v869 = vpop.f32.mrf.mxu0
        %v870 = vadd.f32 %v848, %v869
        %871 = vdwg.mxu0
        %872 = vrot.lane.b32.xlu0 %v825, 126
        %v873 = vpop.permute.xlu0 %872
        %v874 = vsel %vm225, %v873, 0
        %876 = vmatpush.msra.mxu0 0.0
        %877 = vmatpush.msra.mxu0 0.0
        %878 = vmatpush.msra.mxu0 0.0
        %879 = vmatpush.msra.mxu0 0.0
        %880 = vmatpush.msra.mxu0 0.0
        %881 = vmatpush.msra.mxu0 0.0
        %882 = vmatpush.msra.mxu0 0.0
        %883 = vmatpush.msra.mxu0 0.0
        %884 = vmatpush.msra.mxu0 0.0
        %885 = vmatpush.msra.mxu0 0.0
        %886 = vmatpush.msra.mxu0 0.0
        %887 = vmatpush.msra.mxu0 0.0
        %888 = vmatpush.msra.mxu0 0.0
        %889 = vmatpush.msra.mxu0 0.0
        %890 = vmatpush.msra.mxu0 0.0
        %891 = vmatpush.msra.mxu0 %v874
        %892 = vmatmul.f32.gmra.mxu0 %v276
        %v893 = vpop.f32.mrf.mxu0
        %v894 = vadd.f32 0.0, %v893
        %895 = vdwg.mxu0
        %v896 = vadd.f32 %v870, %v894
        %v897 = vld [vmem:[%s182 + $0x3] sm:$0x1]
        %v898 = vld [vmem:[%s182 + $0x1b] sm:$0x1]
        %v899 = vld [vmem:[%s182 + $0x33] sm:$0x1]
        %v900 = vld [vmem:[%s182 + $0x4b] sm:$0x1]
        %v905 = vrot.slane %v898, 7
        %v906 = vsel %vm211, %v905, %v897
        %v907 = vrot.slane %v899, 6
        %v908 = vsel %vm214, %v907, %v906
        %v909 = vrot.slane %v900, 5
        %v910 = vsel %vm217, %v909, %v908
        %v911 = vsel %vm225, %v910, 0
        %913 = vmatpush.msra.mxu0 0.0
        %914 = vmatpush.msra.mxu0 0.0
        %915 = vmatpush.msra.mxu0 0.0
        %916 = vmatpush.msra.mxu0 0.0
        %917 = vmatpush.msra.mxu0 0.0
        %918 = vmatpush.msra.mxu0 0.0
        %919 = vmatpush.msra.mxu0 0.0
        %920 = vmatpush.msra.mxu0 0.0
        %921 = vmatpush.msra.mxu0 0.0
        %922 = vmatpush.msra.mxu0 0.0
        %923 = vmatpush.msra.mxu0 0.0
        %924 = vmatpush.msra.mxu0 0.0
        %925 = vmatpush.msra.mxu0 0.0
        %926 = vmatpush.msra.mxu0 0.0
        %927 = vmatpush.msra.mxu0 0.0
        %928 = vmatpush.msra.mxu0 %v911
        %929 = vmatmul.f32.gmra.mxu0 %v316
        %v930 = vpop.f32.mrf.mxu0
        %v931 = vadd.f32 0.0, %v930
        %932 = vdwg.mxu0
        %v933 = vadd.f32 %v896, %v931
        %934 = vrot.lane.b32.xlu0 %v910, 127
        %v935 = vpop.permute.xlu0 %934
        %v936 = vsel %vm225, %v935, 0
        %938 = vmatpush.msra.mxu0 0.0
        %939 = vmatpush.msra.mxu0 0.0
        %940 = vmatpush.msra.mxu0 0.0
        %941 = vmatpush.msra.mxu0 0.0
        %942 = vmatpush.msra.mxu0 0.0
        %943 = vmatpush.msra.mxu0 0.0
        %944 = vmatpush.msra.mxu0 0.0
        %945 = vmatpush.msra.mxu0 0.0
        %946 = vmatpush.msra.mxu0 0.0
        %947 = vmatpush.msra.mxu0 0.0
        %948 = vmatpush.msra.mxu0 0.0
        %949 = vmatpush.msra.mxu0 0.0
        %950 = vmatpush.msra.mxu0 0.0
        %951 = vmatpush.msra.mxu0 0.0
        %952 = vmatpush.msra.mxu0 0.0
        %953 = vmatpush.msra.mxu0 %v936
        %954 = vmatmul.f32.gmra.mxu0 %v344
        %v955 = vpop.f32.mrf.mxu0
        %v956 = vadd.f32 0.0, %v955
        %957 = vdwg.mxu0
        %v958 = vadd.f32 %v933, %v956
        %959 = vrot.lane.b32.xlu0 %v910, 126
        %v960 = vpop.permute.xlu0 %959
        %v961 = vsel %vm225, %v960, 0
        %963 = vmatpush.msra.mxu0 0.0
        %964 = vmatpush.msra.mxu0 0.0
        %965 = vmatpush.msra.mxu0 0.0
        %966 = vmatpush.msra.mxu0 0.0
        %967 = vmatpush.msra.mxu0 0.0
        %968 = vmatpush.msra.mxu0 0.0
        %969 = vmatpush.msra.mxu0 0.0
        %970 = vmatpush.msra.mxu0 0.0
        %971 = vmatpush.msra.mxu0 0.0
        %972 = vmatpush.msra.mxu0 0.0
        %973 = vmatpush.msra.mxu0 0.0
        %974 = vmatpush.msra.mxu0 0.0
        %975 = vmatpush.msra.mxu0 0.0
        %976 = vmatpush.msra.mxu0 0.0
        %977 = vmatpush.msra.mxu0 0.0
        %978 = vmatpush.msra.mxu0 %v961
        %979 = vmatmul.f32.gmra.mxu0 %v372
        %v980 = vpop.f32.mrf.mxu0
        %v981 = vadd.f32 0.0, %v980
        %982 = vdwg.mxu0
        %v983 = vadd.f32 %v958, %v981
        %v984 = vld [vmem:[%s182 + $0x4] sm:$0x1]
        %v985 = vld [vmem:[%s182 + $0x1c] sm:$0x1]
        %v986 = vld [vmem:[%s182 + $0x34] sm:$0x1]
        %v987 = vld [vmem:[%s182 + $0x4c] sm:$0x1]
        %v992 = vrot.slane %v985, 7
        %v993 = vsel %vm211, %v992, %v984
        %v994 = vrot.slane %v986, 6
        %v995 = vsel %vm214, %v994, %v993
        %v996 = vrot.slane %v987, 5
        %v997 = vsel %vm217, %v996, %v995
        %v998 = vsel %vm225, %v997, 0
        %1000 = vmatpush.msra.mxu0 0.0
        %1001 = vmatpush.msra.mxu0 0.0
        %1002 = vmatpush.msra.mxu0 0.0
        %1003 = vmatpush.msra.mxu0 0.0
        %1004 = vmatpush.msra.mxu0 0.0
        %1005 = vmatpush.msra.mxu0 0.0
        %1006 = vmatpush.msra.mxu0 0.0
        %1007 = vmatpush.msra.mxu0 0.0
        %1008 = vmatpush.msra.mxu0 0.0
        %1009 = vmatpush.msra.mxu0 0.0
        %1010 = vmatpush.msra.mxu0 0.0
        %1011 = vmatpush.msra.mxu0 0.0
        %1012 = vmatpush.msra.mxu0 0.0
        %1013 = vmatpush.msra.mxu0 0.0
        %1014 = vmatpush.msra.mxu0 0.0
        %1015 = vmatpush.msra.mxu0 %v998
        %1016 = vmatmul.f32.gmra.mxu0 %v412
        %v1017 = vpop.f32.mrf.mxu0
        %v1018 = vadd.f32 0.0, %v1017
        %1019 = vdwg.mxu0
        %v1020 = vadd.f32 %v983, %v1018
        %1021 = vrot.lane.b32.xlu0 %v997, 127
        %v1022 = vpop.permute.xlu0 %1021
        %v1023 = vsel %vm225, %v1022, 0
        %1025 = vmatpush.msra.mxu0 0.0
        %1026 = vmatpush.msra.mxu0 0.0
        %1027 = vmatpush.msra.mxu0 0.0
        %1028 = vmatpush.msra.mxu0 0.0
        %1029 = vmatpush.msra.mxu0 0.0
        %1030 = vmatpush.msra.mxu0 0.0
        %1031 = vmatpush.msra.mxu0 0.0
        %1032 = vmatpush.msra.mxu0 0.0
        %1033 = vmatpush.msra.mxu0 0.0
        %1034 = vmatpush.msra.mxu0 0.0
        %1035 = vmatpush.msra.mxu0 0.0
        %1036 = vmatpush.msra.mxu0 0.0
        %1037 = vmatpush.msra.mxu0 0.0
        %1038 = vmatpush.msra.mxu0 0.0
        %1039 = vmatpush.msra.mxu0 0.0
        %1040 = vmatpush.msra.mxu0 %v1023
        %1041 = vmatmul.f32.gmra.mxu0 %v440
        %v1042 = vpop.f32.mrf.mxu0
        %v1043 = vadd.f32 0.0, %v1042
        %1044 = vdwg.mxu0
        %v1045 = vadd.f32 %v1020, %v1043
        %1046 = vrot.lane.b32.xlu0 %v997, 126
        %v1047 = vpop.permute.xlu0 %1046
        %v1048 = vsel %vm225, %v1047, 0
        %1050 = vmatpush.msra.mxu0 0.0
        %1051 = vmatpush.msra.mxu0 0.0
        %1052 = vmatpush.msra.mxu0 0.0
        %1053 = vmatpush.msra.mxu0 0.0
        %1054 = vmatpush.msra.mxu0 0.0
        %1055 = vmatpush.msra.mxu0 0.0
        %1056 = vmatpush.msra.mxu0 0.0
        %1057 = vmatpush.msra.mxu0 0.0
        %1058 = vmatpush.msra.mxu0 0.0
        %1059 = vmatpush.msra.mxu0 0.0
        %1060 = vmatpush.msra.mxu0 0.0
        %1061 = vmatpush.msra.mxu0 0.0
        %1062 = vmatpush.msra.mxu0 0.0
        %1063 = vmatpush.msra.mxu0 0.0
        %1064 = vmatpush.msra.mxu0 0.0
        %1065 = vmatpush.msra.mxu0 %v1048
        %1066 = vmatmul.f32.gmra.mxu0 %v468
        %v1067 = vpop.f32.mrf.mxu0
        %v1068 = vadd.f32 0.0, %v1067
        %1069 = vdwg.mxu0
        %v1070 = vadd.f32 %v1045, %v1068
        %v1071 = vadd.f32 %v1070, %v496
        %vm1072 = vcmp.ge.f32.partialorder %v1071, 0.0
        %v1073 = vmul.f32 %v1071, 0.01
        %v1074 = vsel %vm1072, %v1071, %v1073
        %v1076 = vrot.slane %v1074, 1
        %v1077 = vrot.slane %v1074, 2
        %v1078 = vrot.slane %v1074, 3
        %v1079 = vrot.slane %v1074, 4
        %v1080 = vrot.slane %v1074, 5
        %v1081 = vrot.slane %v1074, 6
        %v1082 = vrot.slane %v1074, 7
        %1090 = vst.msk [vmem:[%s177 + $0x2] sm:$0x1] %vm517, %v1074
        %1091 = vst.msk [vmem:[%s177 + $0x12] sm:$0x1] %vm517, %v1076
        %1092 = vst.msk [vmem:[%s177 + $0x22] sm:$0x1] %vm517, %v1077
        %1093 = vst.msk [vmem:[%s177 + $0x32] sm:$0x1] %vm517, %v1078
        %1094 = vst.msk [vmem:[%s177 + $0x42] sm:$0x1] %vm517, %v1079
        %1095 = vst.msk [vmem:[%s177 + $0x52] sm:$0x1] %vm517, %v1080
        %1096 = vst.msk [vmem:[%s177 + $0x62] sm:$0x1] %vm517, %v1081
        %1097 = vst.msk [vmem:[%s177 + $0x72] sm:$0x1] %vm517, %v1082
        %v1098 = vld [vmem:[%s182 + $0x3] sm:$0x1]
        %v1099 = vld [vmem:[%s182 + $0x1b] sm:$0x1]
        %v1100 = vld [vmem:[%s182 + $0x33] sm:$0x1]
        %v1101 = vld [vmem:[%s182 + $0x4b] sm:$0x1]
        %v1106 = vrot.slane %v1099, 7
        %v1107 = vsel %vm211, %v1106, %v1098
        %v1108 = vrot.slane %v1100, 6
        %v1109 = vsel %vm214, %v1108, %v1107
        %v1110 = vrot.slane %v1101, 5
        %v1111 = vsel %vm217, %v1110, %v1109
        %1112 = vrot.lane.b32.xlu0 %v1111, 127
        %v1113 = vpop.permute.xlu0 %1112
        %v1114 = vsel %vm225, %v1113, 0
        %1116 = vmatpush.msra.mxu0 0.0
        %1117 = vmatpush.msra.mxu0 0.0
        %1118 = vmatpush.msra.mxu0 0.0
        %1119 = vmatpush.msra.mxu0 0.0
        %1120 = vmatpush.msra.mxu0 0.0
        %1121 = vmatpush.msra.mxu0 0.0
        %1122 = vmatpush.msra.mxu0 0.0
        %1123 = vmatpush.msra.mxu0 0.0
        %1124 = vmatpush.msra.mxu0 0.0
        %1125 = vmatpush.msra.mxu0 0.0
        %1126 = vmatpush.msra.mxu0 0.0
        %1127 = vmatpush.msra.mxu0 0.0
        %1128 = vmatpush.msra.mxu0 0.0
        %1129 = vmatpush.msra.mxu0 0.0
        %1130 = vmatpush.msra.mxu0 0.0
        %1131 = vmatpush.msra.mxu0 %v1114
        %1132 = vmatmul.f32.gmra.mxu0 %v223
        %v1133 = vpop.f32.mrf.mxu0
        %v1134 = vadd.f32 0.0, %v1133
        %1135 = vdwg.mxu0
        %v1136 = vsel %vm225, %v1111, 0
        %1138 = vmatpush.msra.mxu0 0.0
        %1139 = vmatpush.msra.mxu0 0.0
        %1140 = vmatpush.msra.mxu0 0.0
        %1141 = vmatpush.msra.mxu0 0.0
        %1142 = vmatpush.msra.mxu0 0.0
        %1143 = vmatpush.msra.mxu0 0.0
        %1144 = vmatpush.msra.mxu0 0.0
        %1145 = vmatpush.msra.mxu0 0.0
        %1146 = vmatpush.msra.mxu0 0.0
        %1147 = vmatpush.msra.mxu0 0.0
        %1148 = vmatpush.msra.mxu0 0.0
        %1149 = vmatpush.msra.mxu0 0.0
        %1150 = vmatpush.msra.mxu0 0.0
        %1151 = vmatpush.msra.mxu0 0.0
        %1152 = vmatpush.msra.mxu0 0.0
        %1153 = vmatpush.msra.mxu0 %v1136
        %1154 = vmatmul.f32.gmra.mxu0 %v249
        %v1155 = vpop.f32.mrf.mxu0
        %v1156 = vadd.f32 %v1134, %v1155
        %1157 = vdwg.mxu0
        %1158 = vrot.lane.b32.xlu0 %v1111, 126
        %v1159 = vpop.permute.xlu0 %1158
        %v1160 = vsel %vm225, %v1159, 0
        %1162 = vmatpush.msra.mxu0 0.0
        %1163 = vmatpush.msra.mxu0 0.0
        %1164 = vmatpush.msra.mxu0 0.0
        %1165 = vmatpush.msra.mxu0 0.0
        %1166 = vmatpush.msra.mxu0 0.0
        %1167 = vmatpush.msra.mxu0 0.0
        %1168 = vmatpush.msra.mxu0 0.0
        %1169 = vmatpush.msra.mxu0 0.0
        %1170 = vmatpush.msra.mxu0 0.0
        %1171 = vmatpush.msra.mxu0 0.0
        %1172 = vmatpush.msra.mxu0 0.0
        %1173 = vmatpush.msra.mxu0 0.0
        %1174 = vmatpush.msra.mxu0 0.0
        %1175 = vmatpush.msra.mxu0 0.0
        %1176 = vmatpush.msra.mxu0 0.0
        %1177 = vmatpush.msra.mxu0 %v1160
        %1178 = vmatmul.f32.gmra.mxu0 %v276
        %v1179 = vpop.f32.mrf.mxu0
        %v1180 = vadd.f32 0.0, %v1179
        %1181 = vdwg.mxu0
        %v1182 = vadd.f32 %v1156, %v1180
        %v1183 = vld [vmem:[%s182 + $0x4] sm:$0x1]
        %v1184 = vld [vmem:[%s182 + $0x1c] sm:$0x1]
        %v1185 = vld [vmem:[%s182 + $0x34] sm:$0x1]
        %v1186 = vld [vmem:[%s182 + $0x4c] sm:$0x1]
        %v1191 = vrot.slane %v1184, 7
        %v1192 = vsel %vm211, %v1191, %v1183
        %v1193 = vrot.slane %v1185, 6
        %v1194 = vsel %vm214, %v1193, %v1192
        %v1195 = vrot.slane %v1186, 5
        %v1196 = vsel %vm217, %v1195, %v1194
        %v1197 = vsel %vm225, %v1196, 0
        %1199 = vmatpush.msra.mxu0 0.0
        %1200 = vmatpush.msra.mxu0 0.0
        %1201 = vmatpush.msra.mxu0 0.0
        %1202 = vmatpush.msra.mxu0 0.0
        %1203 = vmatpush.msra.mxu0 0.0
        %1204 = vmatpush.msra.mxu0 0.0
        %1205 = vmatpush.msra.mxu0 0.0
        %1206 = vmatpush.msra.mxu0 0.0
        %1207 = vmatpush.msra.mxu0 0.0
        %1208 = vmatpush.msra.mxu0 0.0
        %1209 = vmatpush.msra.mxu0 0.0
        %1210 = vmatpush.msra.mxu0 0.0
        %1211 = vmatpush.msra.mxu0 0.0
        %1212 = vmatpush.msra.mxu0 0.0
        %1213 = vmatpush.msra.mxu0 0.0
        %1214 = vmatpush.msra.mxu0 %v1197
        %1215 = vmatmul.f32.gmra.mxu0 %v316
        %v1216 = vpop.f32.mrf.mxu0
        %v1217 = vadd.f32 0.0, %v1216
        %1218 = vdwg.mxu0
        %v1219 = vadd.f32 %v1182, %v1217
        %1220 = vrot.lane.b32.xlu0 %v1196, 127
        %v1221 = vpop.permute.xlu0 %1220
        %v1222 = vsel %vm225, %v1221, 0
        %1224 = vmatpush.msra.mxu0 0.0
        %1225 = vmatpush.msra.mxu0 0.0
        %1226 = vmatpush.msra.mxu0 0.0
        %1227 = vmatpush.msra.mxu0 0.0
        %1228 = vmatpush.msra.mxu0 0.0
        %1229 = vmatpush.msra.mxu0 0.0
        %1230 = vmatpush.msra.mxu0 0.0
        %1231 = vmatpush.msra.mxu0 0.0
        %1232 = vmatpush.msra.mxu0 0.0
        %1233 = vmatpush.msra.mxu0 0.0
        %1234 = vmatpush.msra.mxu0 0.0
        %1235 = vmatpush.msra.mxu0 0.0
        %1236 = vmatpush.msra.mxu0 0.0
        %1237 = vmatpush.msra.mxu0 0.0
        %1238 = vmatpush.msra.mxu0 0.0
        %1239 = vmatpush.msra.mxu0 %v1222
        %1240 = vmatmul.f32.gmra.mxu0 %v344
        %v1241 = vpop.f32.mrf.mxu0
        %v1242 = vadd.f32 0.0, %v1241
        %1243 = vdwg.mxu0
        %v1244 = vadd.f32 %v1219, %v1242
        %1245 = vrot.lane.b32.xlu0 %v1196, 126
        %v1246 = vpop.permute.xlu0 %1245
        %v1247 = vsel %vm225, %v1246, 0
        %1249 = vmatpush.msra.mxu0 0.0
        %1250 = vmatpush.msra.mxu0 0.0
        %1251 = vmatpush.msra.mxu0 0.0
        %1252 = vmatpush.msra.mxu0 0.0
        %1253 = vmatpush.msra.mxu0 0.0
        %1254 = vmatpush.msra.mxu0 0.0
        %1255 = vmatpush.msra.mxu0 0.0
        %1256 = vmatpush.msra.mxu0 0.0
        %1257 = vmatpush.msra.mxu0 0.0
        %1258 = vmatpush.msra.mxu0 0.0
        %1259 = vmatpush.msra.mxu0 0.0
        %1260 = vmatpush.msra.mxu0 0.0
        %1261 = vmatpush.msra.mxu0 0.0
        %1262 = vmatpush.msra.mxu0 0.0
        %1263 = vmatpush.msra.mxu0 0.0
        %1264 = vmatpush.msra.mxu0 %v1247
        %1265 = vmatmul.f32.gmra.mxu0 %v372
        %v1266 = vpop.f32.mrf.mxu0
        %v1267 = vadd.f32 0.0, %v1266
        %1268 = vdwg.mxu0
        %v1269 = vadd.f32 %v1244, %v1267
        %v1270 = vld [vmem:[%s182 + $0x5] sm:$0x1]
        %v1271 = vld [vmem:[%s182 + $0x1d] sm:$0x1]
        %v1272 = vld [vmem:[%s182 + $0x35] sm:$0x1]
        %v1273 = vld [vmem:[%s182 + $0x4d] sm:$0x1]
        %v1278 = vrot.slane %v1271, 7
        %v1279 = vsel %vm211, %v1278, %v1270
        %v1280 = vrot.slane %v1272, 6
        %v1281 = vsel %vm214, %v1280, %v1279
        %v1282 = vrot.slane %v1273, 5
        %v1283 = vsel %vm217, %v1282, %v1281
        %v1284 = vsel %vm225, %v1283, 0
        %1286 = vmatpush.msra.mxu0 0.0
        %1287 = vmatpush.msra.mxu0 0.0
        %1288 = vmatpush.msra.mxu0 0.0
        %1289 = vmatpush.msra.mxu0 0.0
        %1290 = vmatpush.msra.mxu0 0.0
        %1291 = vmatpush.msra.mxu0 0.0
        %1292 = vmatpush.msra.mxu0 0.0
        %1293 = vmatpush.msra.mxu0 0.0
        %1294 = vmatpush.msra.mxu0 0.0
        %1295 = vmatpush.msra.mxu0 0.0
        %1296 = vmatpush.msra.mxu0 0.0
        %1297 = vmatpush.msra.mxu0 0.0
        %1298 = vmatpush.msra.mxu0 0.0
        %1299 = vmatpush.msra.mxu0 0.0
        %1300 = vmatpush.msra.mxu0 0.0
        %1301 = vmatpush.msra.mxu0 %v1284
        %1302 = vmatmul.f32.gmra.mxu0 %v412
        %v1303 = vpop.f32.mrf.mxu0
        %v1304 = vadd.f32 0.0, %v1303
        %1305 = vdwg.mxu0
        %v1306 = vadd.f32 %v1269, %v1304
        %1307 = vrot.lane.b32.xlu0 %v1283, 127
        %v1308 = vpop.permute.xlu0 %1307
        %v1309 = vsel %vm225, %v1308, 0
        %1311 = vmatpush.msra.mxu0 0.0
        %1312 = vmatpush.msra.mxu0 0.0
        %1313 = vmatpush.msra.mxu0 0.0
        %1314 = vmatpush.msra.mxu0 0.0
        %1315 = vmatpush.msra.mxu0 0.0
        %1316 = vmatpush.msra.mxu0 0.0
        %1317 = vmatpush.msra.mxu0 0.0
        %1318 = vmatpush.msra.mxu0 0.0
        %1319 = vmatpush.msra.mxu0 0.0
        %1320 = vmatpush.msra.mxu0 0.0
        %1321 = vmatpush.msra.mxu0 0.0
        %1322 = vmatpush.msra.mxu0 0.0
        %1323 = vmatpush.msra.mxu0 0.0
        %1324 = vmatpush.msra.mxu0 0.0
        %1325 = vmatpush.msra.mxu0 0.0
        %1326 = vmatpush.msra.mxu0 %v1309
        %1327 = vmatmul.f32.gmra.mxu0 %v440
        %v1328 = vpop.f32.mrf.mxu0
        %v1329 = vadd.f32 0.0, %v1328
        %1330 = vdwg.mxu0
        %v1331 = vadd.f32 %v1306, %v1329
        %1332 = vrot.lane.b32.xlu0 %v1283, 126
        %v1333 = vpop.permute.xlu0 %1332
        %v1334 = vsel %vm225, %v1333, 0
        %1336 = vmatpush.msra.mxu0 0.0
        %1337 = vmatpush.msra.mxu0 0.0
        %1338 = vmatpush.msra.mxu0 0.0
        %1339 = vmatpush.msra.mxu0 0.0
        %1340 = vmatpush.msra.mxu0 0.0
        %1341 = vmatpush.msra.mxu0 0.0
        %1342 = vmatpush.msra.mxu0 0.0
        %1343 = vmatpush.msra.mxu0 0.0
        %1344 = vmatpush.msra.mxu0 0.0
        %1345 = vmatpush.msra.mxu0 0.0
        %1346 = vmatpush.msra.mxu0 0.0
        %1347 = vmatpush.msra.mxu0 0.0
        %1348 = vmatpush.msra.mxu0 0.0
        %1349 = vmatpush.msra.mxu0 0.0
        %1350 = vmatpush.msra.mxu0 0.0
        %1351 = vmatpush.msra.mxu0 %v1334
        %1352 = vmatmul.f32.gmra.mxu0 %v468
        %v1353 = vpop.f32.mrf.mxu0
        %v1354 = vadd.f32 0.0, %v1353
        %1355 = vdwg.mxu0
        %v1356 = vadd.f32 %v1331, %v1354
        %v1357 = vadd.f32 %v1356, %v496
        %vm1358 = vcmp.ge.f32.partialorder %v1357, 0.0
        %v1359 = vmul.f32 %v1357, 0.01
        %v1360 = vsel %vm1358, %v1357, %v1359
        %v1362 = vrot.slane %v1360, 1
        %v1363 = vrot.slane %v1360, 2
        %v1364 = vrot.slane %v1360, 3
        %v1365 = vrot.slane %v1360, 4
        %v1366 = vrot.slane %v1360, 5
        %v1367 = vrot.slane %v1360, 6
        %v1368 = vrot.slane %v1360, 7
        %1376 = vst.msk [vmem:[%s177 + $0x3] sm:$0x1] %vm517, %v1360
        %1377 = vst.msk [vmem:[%s177 + $0x13] sm:$0x1] %vm517, %v1362
        %1378 = vst.msk [vmem:[%s177 + $0x23] sm:$0x1] %vm517, %v1363
        %1379 = vst.msk [vmem:[%s177 + $0x33] sm:$0x1] %vm517, %v1364
        %1380 = vst.msk [vmem:[%s177 + $0x43] sm:$0x1] %vm517, %v1365
        %1381 = vst.msk [vmem:[%s177 + $0x53] sm:$0x1] %vm517, %v1366
        %1382 = vst.msk [vmem:[%s177 + $0x63] sm:$0x1] %vm517, %v1367
        %1383 = vst.msk [vmem:[%s177 + $0x73] sm:$0x1] %vm517, %v1368
        %v1384 = vld [vmem:[%s182 + $0x4] sm:$0x1]
        %v1385 = vld [vmem:[%s182 + $0x1c] sm:$0x1]
        %v1386 = vld [vmem:[%s182 + $0x34] sm:$0x1]
        %v1387 = vld [vmem:[%s182 + $0x4c] sm:$0x1]
        %v1392 = vrot.slane %v1385, 7
        %v1393 = vsel %vm211, %v1392, %v1384
        %v1394 = vrot.slane %v1386, 6
        %v1395 = vsel %vm214, %v1394, %v1393
        %v1396 = vrot.slane %v1387, 5
        %v1397 = vsel %vm217, %v1396, %v1395
        %1398 = vrot.lane.b32.xlu0 %v1397, 127
        %v1399 = vpop.permute.xlu0 %1398
        %v1400 = vsel %vm225, %v1399, 0
        %1402 = vmatpush.msra.mxu0 0.0
        %1403 = vmatpush.msra.mxu0 0.0
        %1404 = vmatpush.msra.mxu0 0.0
        %1405 = vmatpush.msra.mxu0 0.0
        %1406 = vmatpush.msra.mxu0 0.0
        %1407 = vmatpush.msra.mxu0 0.0
        %1408 = vmatpush.msra.mxu0 0.0
        %1409 = vmatpush.msra.mxu0 0.0
        %1410 = vmatpush.msra.mxu0 0.0
        %1411 = vmatpush.msra.mxu0 0.0
        %1412 = vmatpush.msra.mxu0 0.0
        %1413 = vmatpush.msra.mxu0 0.0
        %1414 = vmatpush.msra.mxu0 0.0
        %1415 = vmatpush.msra.mxu0 0.0
        %1416 = vmatpush.msra.mxu0 0.0
        %1417 = vmatpush.msra.mxu0 %v1400
        %1418 = vmatmul.f32.gmra.mxu0 %v223
        %v1419 = vpop.f32.mrf.mxu0
        %v1420 = vadd.f32 0.0, %v1419
        %1421 = vdwg.mxu0
        %v1422 = vsel %vm225, %v1397, 0
        %1424 = vmatpush.msra.mxu0 0.0
        %1425 = vmatpush.msra.mxu0 0.0
        %1426 = vmatpush.msra.mxu0 0.0
        %1427 = vmatpush.msra.mxu0 0.0
        %1428 = vmatpush.msra.mxu0 0.0
        %1429 = vmatpush.msra.mxu0 0.0
        %1430 = vmatpush.msra.mxu0 0.0
        %1431 = vmatpush.msra.mxu0 0.0
        %1432 = vmatpush.msra.mxu0 0.0
        %1433 = vmatpush.msra.mxu0 0.0
        %1434 = vmatpush.msra.mxu0 0.0
        %1435 = vmatpush.msra.mxu0 0.0
        %1436 = vmatpush.msra.mxu0 0.0
        %1437 = vmatpush.msra.mxu0 0.0
        %1438 = vmatpush.msra.mxu0 0.0
        %1439 = vmatpush.msra.mxu0 %v1422
        %1440 = vmatmul.f32.gmra.mxu0 %v249
        %v1441 = vpop.f32.mrf.mxu0
        %v1442 = vadd.f32 %v1420, %v1441
        %1443 = vdwg.mxu0
        %1444 = vrot.lane.b32.xlu0 %v1397, 126
        %v1445 = vpop.permute.xlu0 %1444
        %v1446 = vsel %vm225, %v1445, 0
        %1448 = vmatpush.msra.mxu0 0.0
        %1449 = vmatpush.msra.mxu0 0.0
        %1450 = vmatpush.msra.mxu0 0.0
        %1451 = vmatpush.msra.mxu0 0.0
        %1452 = vmatpush.msra.mxu0 0.0
        %1453 = vmatpush.msra.mxu0 0.0
        %1454 = vmatpush.msra.mxu0 0.0
        %1455 = vmatpush.msra.mxu0 0.0
        %1456 = vmatpush.msra.mxu0 0.0
        %1457 = vmatpush.msra.mxu0 0.0
        %1458 = vmatpush.msra.mxu0 0.0
        %1459 = vmatpush.msra.mxu0 0.0
        %1460 = vmatpush.msra.mxu0 0.0
        %1461 = vmatpush.msra.mxu0 0.0
        %1462 = vmatpush.msra.mxu0 0.0
        %1463 = vmatpush.msra.mxu0 %v1446
        %1464 = vmatmul.f32.gmra.mxu0 %v276
        %v1465 = vpop.f32.mrf.mxu0
        %v1466 = vadd.f32 0.0, %v1465
        %1467 = vdwg.mxu0
        %v1468 = vadd.f32 %v1442, %v1466
        %v1469 = vld [vmem:[%s182 + $0x5] sm:$0x1]
        %v1470 = vld [vmem:[%s182 + $0x1d] sm:$0x1]
        %v1471 = vld [vmem:[%s182 + $0x35] sm:$0x1]
        %v1472 = vld [vmem:[%s182 + $0x4d] sm:$0x1]
        %v1477 = vrot.slane %v1470, 7
        %v1478 = vsel %vm211, %v1477, %v1469
        %v1479 = vrot.slane %v1471, 6
        %v1480 = vsel %vm214, %v1479, %v1478
        %v1481 = vrot.slane %v1472, 5
        %v1482 = vsel %vm217, %v1481, %v1480
        %v1483 = vsel %vm225, %v1482, 0
        %1485 = vmatpush.msra.mxu0 0.0
        %1486 = vmatpush.msra.mxu0 0.0
        %1487 = vmatpush.msra.mxu0 0.0
        %1488 = vmatpush.msra.mxu0 0.0
        %1489 = vmatpush.msra.mxu0 0.0
        %1490 = vmatpush.msra.mxu0 0.0
        %1491 = vmatpush.msra.mxu0 0.0
        %1492 = vmatpush.msra.mxu0 0.0
        %1493 = vmatpush.msra.mxu0 0.0
        %1494 = vmatpush.msra.mxu0 0.0
        %1495 = vmatpush.msra.mxu0 0.0
        %1496 = vmatpush.msra.mxu0 0.0
        %1497 = vmatpush.msra.mxu0 0.0
        %1498 = vmatpush.msra.mxu0 0.0
        %1499 = vmatpush.msra.mxu0 0.0
        %1500 = vmatpush.msra.mxu0 %v1483
        %1501 = vmatmul.f32.gmra.mxu0 %v316
        %v1502 = vpop.f32.mrf.mxu0
        %v1503 = vadd.f32 0.0, %v1502
        %1504 = vdwg.mxu0
        %v1505 = vadd.f32 %v1468, %v1503
        %1506 = vrot.lane.b32.xlu0 %v1482, 127
        %v1507 = vpop.permute.xlu0 %1506
        %v1508 = vsel %vm225, %v1507, 0
        %1510 = vmatpush.msra.mxu0 0.0
        %1511 = vmatpush.msra.mxu0 0.0
        %1512 = vmatpush.msra.mxu0 0.0
        %1513 = vmatpush.msra.mxu0 0.0
        %1514 = vmatpush.msra.mxu0 0.0
        %1515 = vmatpush.msra.mxu0 0.0
        %1516 = vmatpush.msra.mxu0 0.0
        %1517 = vmatpush.msra.mxu0 0.0
        %1518 = vmatpush.msra.mxu0 0.0
        %1519 = vmatpush.msra.mxu0 0.0
        %1520 = vmatpush.msra.mxu0 0.0
        %1521 = vmatpush.msra.mxu0 0.0
        %1522 = vmatpush.msra.mxu0 0.0
        %1523 = vmatpush.msra.mxu0 0.0
        %1524 = vmatpush.msra.mxu0 0.0
        %1525 = vmatpush.msra.mxu0 %v1508
        %1526 = vmatmul.f32.gmra.mxu0 %v344
        %v1527 = vpop.f32.mrf.mxu0
        %v1528 = vadd.f32 0.0, %v1527
        %1529 = vdwg.mxu0
        %v1530 = vadd.f32 %v1505, %v1528
        %1531 = vrot.lane.b32.xlu0 %v1482, 126
        %v1532 = vpop.permute.xlu0 %1531
        %v1533 = vsel %vm225, %v1532, 0
        %1535 = vmatpush.msra.mxu0 0.0
        %1536 = vmatpush.msra.mxu0 0.0
        %1537 = vmatpush.msra.mxu0 0.0
        %1538 = vmatpush.msra.mxu0 0.0
        %1539 = vmatpush.msra.mxu0 0.0
        %1540 = vmatpush.msra.mxu0 0.0
        %1541 = vmatpush.msra.mxu0 0.0
        %1542 = vmatpush.msra.mxu0 0.0
        %1543 = vmatpush.msra.mxu0 0.0
        %1544 = vmatpush.msra.mxu0 0.0
        %1545 = vmatpush.msra.mxu0 0.0
        %1546 = vmatpush.msra.mxu0 0.0
        %1547 = vmatpush.msra.mxu0 0.0
        %1548 = vmatpush.msra.mxu0 0.0
        %1549 = vmatpush.msra.mxu0 0.0
        %1550 = vmatpush.msra.mxu0 %v1533
        %1551 = vmatmul.f32.gmra.mxu0 %v372
        %v1552 = vpop.f32.mrf.mxu0
        %v1553 = vadd.f32 0.0, %v1552
        %1554 = vdwg.mxu0
        %v1555 = vadd.f32 %v1530, %v1553
        %v1556 = vld [vmem:[%s182 + $0x6] sm:$0x1]
        %v1557 = vld [vmem:[%s182 + $0x1e] sm:$0x1]
        %v1558 = vld [vmem:[%s182 + $0x36] sm:$0x1]
        %v1559 = vld [vmem:[%s182 + $0x4e] sm:$0x1]
        %v1564 = vrot.slane %v1557, 7
        %v1565 = vsel %vm211, %v1564, %v1556
        %v1566 = vrot.slane %v1558, 6
        %v1567 = vsel %vm214, %v1566, %v1565
        %v1568 = vrot.slane %v1559, 5
        %v1569 = vsel %vm217, %v1568, %v1567
        %v1570 = vsel %vm225, %v1569, 0
        %1572 = vmatpush.msra.mxu0 0.0
        %1573 = vmatpush.msra.mxu0 0.0
        %1574 = vmatpush.msra.mxu0 0.0
        %1575 = vmatpush.msra.mxu0 0.0
        %1576 = vmatpush.msra.mxu0 0.0
        %1577 = vmatpush.msra.mxu0 0.0
        %1578 = vmatpush.msra.mxu0 0.0
        %1579 = vmatpush.msra.mxu0 0.0
        %1580 = vmatpush.msra.mxu0 0.0
        %1581 = vmatpush.msra.mxu0 0.0
        %1582 = vmatpush.msra.mxu0 0.0
        %1583 = vmatpush.msra.mxu0 0.0
        %1584 = vmatpush.msra.mxu0 0.0
        %1585 = vmatpush.msra.mxu0 0.0
        %1586 = vmatpush.msra.mxu0 0.0
        %1587 = vmatpush.msra.mxu0 %v1570
        %1588 = vmatmul.f32.gmra.mxu0 %v412
        %v1589 = vpop.f32.mrf.mxu0
        %v1590 = vadd.f32 0.0, %v1589
        %1591 = vdwg.mxu0
        %v1592 = vadd.f32 %v1555, %v1590
        %1593 = vrot.lane.b32.xlu0 %v1569, 127
        %v1594 = vpop.permute.xlu0 %1593
        %v1595 = vsel %vm225, %v1594, 0
        %1597 = vmatpush.msra.mxu0 0.0
        %1598 = vmatpush.msra.mxu0 0.0
        %1599 = vmatpush.msra.mxu0 0.0
        %1600 = vmatpush.msra.mxu0 0.0
        %1601 = vmatpush.msra.mxu0 0.0
        %1602 = vmatpush.msra.mxu0 0.0
        %1603 = vmatpush.msra.mxu0 0.0
        %1604 = vmatpush.msra.mxu0 0.0
        %1605 = vmatpush.msra.mxu0 0.0
        %1606 = vmatpush.msra.mxu0 0.0
        %1607 = vmatpush.msra.mxu0 0.0
        %1608 = vmatpush.msra.mxu0 0.0
        %1609 = vmatpush.msra.mxu0 0.0
        %1610 = vmatpush.msra.mxu0 0.0
        %1611 = vmatpush.msra.mxu0 0.0
        %1612 = vmatpush.msra.mxu0 %v1595
        %1613 = vmatmul.f32.gmra.mxu0 %v440
        %v1614 = vpop.f32.mrf.mxu0
        %v1615 = vadd.f32 0.0, %v1614
        %1616 = vdwg.mxu0
        %v1617 = vadd.f32 %v1592, %v1615
        %1618 = vrot.lane.b32.xlu0 %v1569, 126
        %v1619 = vpop.permute.xlu0 %1618
        %v1620 = vsel %vm225, %v1619, 0
        %1622 = vmatpush.msra.mxu0 0.0
        %1623 = vmatpush.msra.mxu0 0.0
        %1624 = vmatpush.msra.mxu0 0.0
        %1625 = vmatpush.msra.mxu0 0.0
        %1626 = vmatpush.msra.mxu0 0.0
        %1627 = vmatpush.msra.mxu0 0.0
        %1628 = vmatpush.msra.mxu0 0.0
        %1629 = vmatpush.msra.mxu0 0.0
        %1630 = vmatpush.msra.mxu0 0.0
        %1631 = vmatpush.msra.mxu0 0.0
        %1632 = vmatpush.msra.mxu0 0.0
        %1633 = vmatpush.msra.mxu0 0.0
        %1634 = vmatpush.msra.mxu0 0.0
        %1635 = vmatpush.msra.mxu0 0.0
        %1636 = vmatpush.msra.mxu0 0.0
        %1637 = vmatpush.msra.mxu0 %v1620
        %1638 = vmatmul.f32.gmra.mxu0 %v468
        %v1639 = vpop.f32.mrf.mxu0
        %v1640 = vadd.f32 0.0, %v1639
        %1641 = vdwg.mxu0
        %v1642 = vadd.f32 %v1617, %v1640
        %v1643 = vadd.f32 %v1642, %v496
        %vm1644 = vcmp.ge.f32.partialorder %v1643, 0.0
        %v1645 = vmul.f32 %v1643, 0.01
        %v1646 = vsel %vm1644, %v1643, %v1645
        %v1648 = vrot.slane %v1646, 1
        %v1649 = vrot.slane %v1646, 2
        %v1650 = vrot.slane %v1646, 3
        %v1651 = vrot.slane %v1646, 4
        %v1652 = vrot.slane %v1646, 5
        %v1653 = vrot.slane %v1646, 6
        %v1654 = vrot.slane %v1646, 7
        %1662 = vst.msk [vmem:[%s177 + $0x4] sm:$0x1] %vm517, %v1646
        %1663 = vst.msk [vmem:[%s177 + $0x14] sm:$0x1] %vm517, %v1648
        %1664 = vst.msk [vmem:[%s177 + $0x24] sm:$0x1] %vm517, %v1649
        %1665 = vst.msk [vmem:[%s177 + $0x34] sm:$0x1] %vm517, %v1650
        %1666 = vst.msk [vmem:[%s177 + $0x44] sm:$0x1] %vm517, %v1651
        %1667 = vst.msk [vmem:[%s177 + $0x54] sm:$0x1] %vm517, %v1652
        %1668 = vst.msk [vmem:[%s177 + $0x64] sm:$0x1] %vm517, %v1653
        %1669 = vst.msk [vmem:[%s177 + $0x74] sm:$0x1] %vm517, %v1654
        %v1670 = vld [vmem:[%s182 + $0x5] sm:$0x1]
        %v1671 = vld [vmem:[%s182 + $0x1d] sm:$0x1]
        %v1672 = vld [vmem:[%s182 + $0x35] sm:$0x1]
        %v1673 = vld [vmem:[%s182 + $0x4d] sm:$0x1]
        %v1678 = vrot.slane %v1671, 7
        %v1679 = vsel %vm211, %v1678, %v1670
        %v1680 = vrot.slane %v1672, 6
        %v1681 = vsel %vm214, %v1680, %v1679
        %v1682 = vrot.slane %v1673, 5
        %v1683 = vsel %vm217, %v1682, %v1681
        %1684 = vrot.lane.b32.xlu0 %v1683, 127
        %v1685 = vpop.permute.xlu0 %1684
        %v1686 = vsel %vm225, %v1685, 0
        %1688 = vmatpush.msra.mxu0 0.0
        %1689 = vmatpush.msra.mxu0 0.0
        %1690 = vmatpush.msra.mxu0 0.0
        %1691 = vmatpush.msra.mxu0 0.0
        %1692 = vmatpush.msra.mxu0 0.0
        %1693 = vmatpush.msra.mxu0 0.0
        %1694 = vmatpush.msra.mxu0 0.0
        %1695 = vmatpush.msra.mxu0 0.0
        %1696 = vmatpush.msra.mxu0 0.0
        %1697 = vmatpush.msra.mxu0 0.0
        %1698 = vmatpush.msra.mxu0 0.0
        %1699 = vmatpush.msra.mxu0 0.0
        %1700 = vmatpush.msra.mxu0 0.0
        %1701 = vmatpush.msra.mxu0 0.0
        %1702 = vmatpush.msra.mxu0 0.0
        %1703 = vmatpush.msra.mxu0 %v1686
        %1704 = vmatmul.f32.gmra.mxu0 %v223
        %v1705 = vpop.f32.mrf.mxu0
        %v1706 = vadd.f32 0.0, %v1705
        %1707 = vdwg.mxu0
        %v1708 = vsel %vm225, %v1683, 0
        %1710 = vmatpush.msra.mxu0 0.0
        %1711 = vmatpush.msra.mxu0 0.0
        %1712 = vmatpush.msra.mxu0 0.0
        %1713 = vmatpush.msra.mxu0 0.0
        %1714 = vmatpush.msra.mxu0 0.0
        %1715 = vmatpush.msra.mxu0 0.0
        %1716 = vmatpush.msra.mxu0 0.0
        %1717 = vmatpush.msra.mxu0 0.0
        %1718 = vmatpush.msra.mxu0 0.0
        %1719 = vmatpush.msra.mxu0 0.0
        %1720 = vmatpush.msra.mxu0 0.0
        %1721 = vmatpush.msra.mxu0 0.0
        %1722 = vmatpush.msra.mxu0 0.0
        %1723 = vmatpush.msra.mxu0 0.0
        %1724 = vmatpush.msra.mxu0 0.0
        %1725 = vmatpush.msra.mxu0 %v1708
        %1726 = vmatmul.f32.gmra.mxu0 %v249
        %v1727 = vpop.f32.mrf.mxu0
        %v1728 = vadd.f32 %v1706, %v1727
        %1729 = vdwg.mxu0
        %1730 = vrot.lane.b32.xlu0 %v1683, 126
        %v1731 = vpop.permute.xlu0 %1730
        %v1732 = vsel %vm225, %v1731, 0
        %1734 = vmatpush.msra.mxu0 0.0
        %1735 = vmatpush.msra.mxu0 0.0
        %1736 = vmatpush.msra.mxu0 0.0
        %1737 = vmatpush.msra.mxu0 0.0
        %1738 = vmatpush.msra.mxu0 0.0
        %1739 = vmatpush.msra.mxu0 0.0
        %1740 = vmatpush.msra.mxu0 0.0
        %1741 = vmatpush.msra.mxu0 0.0
        %1742 = vmatpush.msra.mxu0 0.0
        %1743 = vmatpush.msra.mxu0 0.0
        %1744 = vmatpush.msra.mxu0 0.0
        %1745 = vmatpush.msra.mxu0 0.0
        %1746 = vmatpush.msra.mxu0 0.0
        %1747 = vmatpush.msra.mxu0 0.0
        %1748 = vmatpush.msra.mxu0 0.0
        %1749 = vmatpush.msra.mxu0 %v1732
        %1750 = vmatmul.f32.gmra.mxu0 %v276
        %v1751 = vpop.f32.mrf.mxu0
        %v1752 = vadd.f32 0.0, %v1751
        %1753 = vdwg.mxu0
        %v1754 = vadd.f32 %v1728, %v1752
        %v1755 = vld [vmem:[%s182 + $0x6] sm:$0x1]
        %v1756 = vld [vmem:[%s182 + $0x1e] sm:$0x1]
        %v1757 = vld [vmem:[%s182 + $0x36] sm:$0x1]
        %v1758 = vld [vmem:[%s182 + $0x4e] sm:$0x1]
        %v1763 = vrot.slane %v1756, 7
        %v1764 = vsel %vm211, %v1763, %v1755
        %v1765 = vrot.slane %v1757, 6
        %v1766 = vsel %vm214, %v1765, %v1764
        %v1767 = vrot.slane %v1758, 5
        %v1768 = vsel %vm217, %v1767, %v1766
        %v1769 = vsel %vm225, %v1768, 0
        %1771 = vmatpush.msra.mxu0 0.0
        %1772 = vmatpush.msra.mxu0 0.0
        %1773 = vmatpush.msra.mxu0 0.0
        %1774 = vmatpush.msra.mxu0 0.0
        %1775 = vmatpush.msra.mxu0 0.0
        %1776 = vmatpush.msra.mxu0 0.0
        %1777 = vmatpush.msra.mxu0 0.0
        %1778 = vmatpush.msra.mxu0 0.0
        %1779 = vmatpush.msra.mxu0 0.0
        %1780 = vmatpush.msra.mxu0 0.0
        %1781 = vmatpush.msra.mxu0 0.0
        %1782 = vmatpush.msra.mxu0 0.0
        %1783 = vmatpush.msra.mxu0 0.0
        %1784 = vmatpush.msra.mxu0 0.0
        %1785 = vmatpush.msra.mxu0 0.0
        %1786 = vmatpush.msra.mxu0 %v1769
        %1787 = vmatmul.f32.gmra.mxu0 %v316
        %v1788 = vpop.f32.mrf.mxu0
        %v1789 = vadd.f32 0.0, %v1788
        %1790 = vdwg.mxu0
        %v1791 = vadd.f32 %v1754, %v1789
        %1792 = vrot.lane.b32.xlu0 %v1768, 127
        %v1793 = vpop.permute.xlu0 %1792
        %v1794 = vsel %vm225, %v1793, 0
        %1796 = vmatpush.msra.mxu0 0.0
        %1797 = vmatpush.msra.mxu0 0.0
        %1798 = vmatpush.msra.mxu0 0.0
        %1799 = vmatpush.msra.mxu0 0.0
        %1800 = vmatpush.msra.mxu0 0.0
        %1801 = vmatpush.msra.mxu0 0.0
        %1802 = vmatpush.msra.mxu0 0.0
        %1803 = vmatpush.msra.mxu0 0.0
        %1804 = vmatpush.msra.mxu0 0.0
        %1805 = vmatpush.msra.mxu0 0.0
        %1806 = vmatpush.msra.mxu0 0.0
        %1807 = vmatpush.msra.mxu0 0.0
        %1808 = vmatpush.msra.mxu0 0.0
        %1809 = vmatpush.msra.mxu0 0.0
        %1810 = vmatpush.msra.mxu0 0.0
        %1811 = vmatpush.msra.mxu0 %v1794
        %1812 = vmatmul.f32.gmra.mxu0 %v344
        %v1813 = vpop.f32.mrf.mxu0
        %v1814 = vadd.f32 0.0, %v1813
        %1815 = vdwg.mxu0
        %v1816 = vadd.f32 %v1791, %v1814
        %1817 = vrot.lane.b32.xlu0 %v1768, 126
        %v1818 = vpop.permute.xlu0 %1817
        %v1819 = vsel %vm225, %v1818, 0
        %1821 = vmatpush.msra.mxu0 0.0
        %1822 = vmatpush.msra.mxu0 0.0
        %1823 = vmatpush.msra.mxu0 0.0
        %1824 = vmatpush.msra.mxu0 0.0
        %1825 = vmatpush.msra.mxu0 0.0
        %1826 = vmatpush.msra.mxu0 0.0
        %1827 = vmatpush.msra.mxu0 0.0
        %1828 = vmatpush.msra.mxu0 0.0
        %1829 = vmatpush.msra.mxu0 0.0
        %1830 = vmatpush.msra.mxu0 0.0
        %1831 = vmatpush.msra.mxu0 0.0
        %1832 = vmatpush.msra.mxu0 0.0
        %1833 = vmatpush.msra.mxu0 0.0
        %1834 = vmatpush.msra.mxu0 0.0
        %1835 = vmatpush.msra.mxu0 0.0
        %1836 = vmatpush.msra.mxu0 %v1819
        %1837 = vmatmul.f32.gmra.mxu0 %v372
        %v1838 = vpop.f32.mrf.mxu0
        %v1839 = vadd.f32 0.0, %v1838
        %1840 = vdwg.mxu0
        %v1841 = vadd.f32 %v1816, %v1839
        %v1842 = vld [vmem:[%s182 + $0x7] sm:$0x1]
        %v1843 = vld [vmem:[%s182 + $0x1f] sm:$0x1]
        %v1844 = vld [vmem:[%s182 + $0x37] sm:$0x1]
        %v1845 = vld [vmem:[%s182 + $0x4f] sm:$0x1]
        %v1850 = vrot.slane %v1843, 7
        %v1851 = vsel %vm211, %v1850, %v1842
        %v1852 = vrot.slane %v1844, 6
        %v1853 = vsel %vm214, %v1852, %v1851
        %v1854 = vrot.slane %v1845, 5
        %v1855 = vsel %vm217, %v1854, %v1853
        %v1856 = vsel %vm225, %v1855, 0
        %1858 = vmatpush.msra.mxu0 0.0
        %1859 = vmatpush.msra.mxu0 0.0
        %1860 = vmatpush.msra.mxu0 0.0
        %1861 = vmatpush.msra.mxu0 0.0
        %1862 = vmatpush.msra.mxu0 0.0
        %1863 = vmatpush.msra.mxu0 0.0
        %1864 = vmatpush.msra.mxu0 0.0
        %1865 = vmatpush.msra.mxu0 0.0
        %1866 = vmatpush.msra.mxu0 0.0
        %1867 = vmatpush.msra.mxu0 0.0
        %1868 = vmatpush.msra.mxu0 0.0
        %1869 = vmatpush.msra.mxu0 0.0
        %1870 = vmatpush.msra.mxu0 0.0
        %1871 = vmatpush.msra.mxu0 0.0
        %1872 = vmatpush.msra.mxu0 0.0
        %1873 = vmatpush.msra.mxu0 %v1856
        %1874 = vmatmul.f32.gmra.mxu0 %v412
        %v1875 = vpop.f32.mrf.mxu0
        %v1876 = vadd.f32 0.0, %v1875
        %1877 = vdwg.mxu0
        %v1878 = vadd.f32 %v1841, %v1876
        %1879 = vrot.lane.b32.xlu0 %v1855, 127
        %v1880 = vpop.permute.xlu0 %1879
        %v1881 = vsel %vm225, %v1880, 0
        %1883 = vmatpush.msra.mxu0 0.0
        %1884 = vmatpush.msra.mxu0 0.0
        %1885 = vmatpush.msra.mxu0 0.0
        %1886 = vmatpush.msra.mxu0 0.0
        %1887 = vmatpush.msra.mxu0 0.0
        %1888 = vmatpush.msra.mxu0 0.0
        %1889 = vmatpush.msra.mxu0 0.0
        %1890 = vmatpush.msra.mxu0 0.0
        %1891 = vmatpush.msra.mxu0 0.0
        %1892 = vmatpush.msra.mxu0 0.0
        %1893 = vmatpush.msra.mxu0 0.0
        %1894 = vmatpush.msra.mxu0 0.0
        %1895 = vmatpush.msra.mxu0 0.0
        %1896 = vmatpush.msra.mxu0 0.0
        %1897 = vmatpush.msra.mxu0 0.0
        %1898 = vmatpush.msra.mxu0 %v1881
        %1899 = vmatmul.f32.gmra.mxu0 %v440
        %v1900 = vpop.f32.mrf.mxu0
        %v1901 = vadd.f32 0.0, %v1900
        %1902 = vdwg.mxu0
        %v1903 = vadd.f32 %v1878, %v1901
        %1904 = vrot.lane.b32.xlu0 %v1855, 126
        %v1905 = vpop.permute.xlu0 %1904
        %v1906 = vsel %vm225, %v1905, 0
        %1908 = vmatpush.msra.mxu0 0.0
        %1909 = vmatpush.msra.mxu0 0.0
        %1910 = vmatpush.msra.mxu0 0.0
        %1911 = vmatpush.msra.mxu0 0.0
        %1912 = vmatpush.msra.mxu0 0.0
        %1913 = vmatpush.msra.mxu0 0.0
        %1914 = vmatpush.msra.mxu0 0.0
        %1915 = vmatpush.msra.mxu0 0.0
        %1916 = vmatpush.msra.mxu0 0.0
        %1917 = vmatpush.msra.mxu0 0.0
        %1918 = vmatpush.msra.mxu0 0.0
        %1919 = vmatpush.msra.mxu0 0.0
        %1920 = vmatpush.msra.mxu0 0.0
        %1921 = vmatpush.msra.mxu0 0.0
        %1922 = vmatpush.msra.mxu0 0.0
        %1923 = vmatpush.msra.mxu0 %v1906
        %1924 = vmatmul.f32.gmra.mxu0 %v468
        %v1925 = vpop.f32.mrf.mxu0
        %v1926 = vadd.f32 0.0, %v1925
        %1927 = vdwg.mxu0
        %v1928 = vadd.f32 %v1903, %v1926
        %v1929 = vadd.f32 %v1928, %v496
        %vm1930 = vcmp.ge.f32.partialorder %v1929, 0.0
        %v1931 = vmul.f32 %v1929, 0.01
        %v1932 = vsel %vm1930, %v1929, %v1931
        %v1934 = vrot.slane %v1932, 1
        %v1935 = vrot.slane %v1932, 2
        %v1936 = vrot.slane %v1932, 3
        %v1937 = vrot.slane %v1932, 4
        %v1938 = vrot.slane %v1932, 5
        %v1939 = vrot.slane %v1932, 6
        %v1940 = vrot.slane %v1932, 7
        %1948 = vst.msk [vmem:[%s177 + $0x5] sm:$0x1] %vm517, %v1932
        %1949 = vst.msk [vmem:[%s177 + $0x15] sm:$0x1] %vm517, %v1934
        %1950 = vst.msk [vmem:[%s177 + $0x25] sm:$0x1] %vm517, %v1935
        %1951 = vst.msk [vmem:[%s177 + $0x35] sm:$0x1] %vm517, %v1936
        %1952 = vst.msk [vmem:[%s177 + $0x45] sm:$0x1] %vm517, %v1937
        %1953 = vst.msk [vmem:[%s177 + $0x55] sm:$0x1] %vm517, %v1938
        %1954 = vst.msk [vmem:[%s177 + $0x65] sm:$0x1] %vm517, %v1939
        %1955 = vst.msk [vmem:[%s177 + $0x75] sm:$0x1] %vm517, %v1940
        %v1956 = vld [vmem:[%s182 + $0x6] sm:$0x1]
        %v1957 = vld [vmem:[%s182 + $0x1e] sm:$0x1]
        %v1958 = vld [vmem:[%s182 + $0x36] sm:$0x1]
        %v1959 = vld [vmem:[%s182 + $0x4e] sm:$0x1]
        %v1964 = vrot.slane %v1957, 7
        %v1965 = vsel %vm211, %v1964, %v1956
        %v1966 = vrot.slane %v1958, 6
        %v1967 = vsel %vm214, %v1966, %v1965
        %v1968 = vrot.slane %v1959, 5
        %v1969 = vsel %vm217, %v1968, %v1967
        %1970 = vrot.lane.b32.xlu0 %v1969, 127
        %v1971 = vpop.permute.xlu0 %1970
        %v1972 = vsel %vm225, %v1971, 0
        %1974 = vmatpush.msra.mxu0 0.0
        %1975 = vmatpush.msra.mxu0 0.0
        %1976 = vmatpush.msra.mxu0 0.0
        %1977 = vmatpush.msra.mxu0 0.0
        %1978 = vmatpush.msra.mxu0 0.0
        %1979 = vmatpush.msra.mxu0 0.0
        %1980 = vmatpush.msra.mxu0 0.0
        %1981 = vmatpush.msra.mxu0 0.0
        %1982 = vmatpush.msra.mxu0 0.0
        %1983 = vmatpush.msra.mxu0 0.0
        %1984 = vmatpush.msra.mxu0 0.0
        %1985 = vmatpush.msra.mxu0 0.0
        %1986 = vmatpush.msra.mxu0 0.0
        %1987 = vmatpush.msra.mxu0 0.0
        %1988 = vmatpush.msra.mxu0 0.0
        %1989 = vmatpush.msra.mxu0 %v1972
        %1990 = vmatmul.f32.gmra.mxu0 %v223
        %v1991 = vpop.f32.mrf.mxu0
        %v1992 = vadd.f32 0.0, %v1991
        %1993 = vdwg.mxu0
        %v1994 = vsel %vm225, %v1969, 0
        %1996 = vmatpush.msra.mxu0 0.0
        %1997 = vmatpush.msra.mxu0 0.0
        %1998 = vmatpush.msra.mxu0 0.0
        %1999 = vmatpush.msra.mxu0 0.0
        %2000 = vmatpush.msra.mxu0 0.0
        %2001 = vmatpush.msra.mxu0 0.0
        %2002 = vmatpush.msra.mxu0 0.0
        %2003 = vmatpush.msra.mxu0 0.0
        %2004 = vmatpush.msra.mxu0 0.0
        %2005 = vmatpush.msra.mxu0 0.0
        %2006 = vmatpush.msra.mxu0 0.0
        %2007 = vmatpush.msra.mxu0 0.0
        %2008 = vmatpush.msra.mxu0 0.0
        %2009 = vmatpush.msra.mxu0 0.0
        %2010 = vmatpush.msra.mxu0 0.0
        %2011 = vmatpush.msra.mxu0 %v1994
        %2012 = vmatmul.f32.gmra.mxu0 %v249
        %v2013 = vpop.f32.mrf.mxu0
        %v2014 = vadd.f32 %v1992, %v2013
        %2015 = vdwg.mxu0
        %2016 = vrot.lane.b32.xlu0 %v1969, 126
        %v2017 = vpop.permute.xlu0 %2016
        %v2018 = vsel %vm225, %v2017, 0
        %2020 = vmatpush.msra.mxu0 0.0
        %2021 = vmatpush.msra.mxu0 0.0
        %2022 = vmatpush.msra.mxu0 0.0
        %2023 = vmatpush.msra.mxu0 0.0
        %2024 = vmatpush.msra.mxu0 0.0
        %2025 = vmatpush.msra.mxu0 0.0
        %2026 = vmatpush.msra.mxu0 0.0
        %2027 = vmatpush.msra.mxu0 0.0
        %2028 = vmatpush.msra.mxu0 0.0
        %2029 = vmatpush.msra.mxu0 0.0
        %2030 = vmatpush.msra.mxu0 0.0
        %2031 = vmatpush.msra.mxu0 0.0
        %2032 = vmatpush.msra.mxu0 0.0
        %2033 = vmatpush.msra.mxu0 0.0
        %2034 = vmatpush.msra.mxu0 0.0
        %2035 = vmatpush.msra.mxu0 %v2018
        %2036 = vmatmul.f32.gmra.mxu0 %v276
        %v2037 = vpop.f32.mrf.mxu0
        %v2038 = vadd.f32 0.0, %v2037
        %2039 = vdwg.mxu0
        %v2040 = vadd.f32 %v2014, %v2038
        %v2041 = vld [vmem:[%s182 + $0x7] sm:$0x1]
        %v2042 = vld [vmem:[%s182 + $0x1f] sm:$0x1]
        %v2043 = vld [vmem:[%s182 + $0x37] sm:$0x1]
        %v2044 = vld [vmem:[%s182 + $0x4f] sm:$0x1]
        %v2049 = vrot.slane %v2042, 7
        %v2050 = vsel %vm211, %v2049, %v2041
        %v2051 = vrot.slane %v2043, 6
        %v2052 = vsel %vm214, %v2051, %v2050
        %v2053 = vrot.slane %v2044, 5
        %v2054 = vsel %vm217, %v2053, %v2052
        %v2055 = vsel %vm225, %v2054, 0
        %2057 = vmatpush.msra.mxu0 0.0
        %2058 = vmatpush.msra.mxu0 0.0
        %2059 = vmatpush.msra.mxu0 0.0
        %2060 = vmatpush.msra.mxu0 0.0
        %2061 = vmatpush.msra.mxu0 0.0
        %2062 = vmatpush.msra.mxu0 0.0
        %2063 = vmatpush.msra.mxu0 0.0
        %2064 = vmatpush.msra.mxu0 0.0
        %2065 = vmatpush.msra.mxu0 0.0
        %2066 = vmatpush.msra.mxu0 0.0
        %2067 = vmatpush.msra.mxu0 0.0
        %2068 = vmatpush.msra.mxu0 0.0
        %2069 = vmatpush.msra.mxu0 0.0
        %2070 = vmatpush.msra.mxu0 0.0
        %2071 = vmatpush.msra.mxu0 0.0
        %2072 = vmatpush.msra.mxu0 %v2055
        %2073 = vmatmul.f32.gmra.mxu0 %v316
        %v2074 = vpop.f32.mrf.mxu0
        %v2075 = vadd.f32 0.0, %v2074
        %2076 = vdwg.mxu0
        %v2077 = vadd.f32 %v2040, %v2075
        %2078 = vrot.lane.b32.xlu0 %v2054, 127
        %v2079 = vpop.permute.xlu0 %2078
        %v2080 = vsel %vm225, %v2079, 0
        %2082 = vmatpush.msra.mxu0 0.0
        %2083 = vmatpush.msra.mxu0 0.0
        %2084 = vmatpush.msra.mxu0 0.0
        %2085 = vmatpush.msra.mxu0 0.0
        %2086 = vmatpush.msra.mxu0 0.0
        %2087 = vmatpush.msra.mxu0 0.0
        %2088 = vmatpush.msra.mxu0 0.0
        %2089 = vmatpush.msra.mxu0 0.0
        %2090 = vmatpush.msra.mxu0 0.0
        %2091 = vmatpush.msra.mxu0 0.0
        %2092 = vmatpush.msra.mxu0 0.0
        %2093 = vmatpush.msra.mxu0 0.0
        %2094 = vmatpush.msra.mxu0 0.0
        %2095 = vmatpush.msra.mxu0 0.0
        %2096 = vmatpush.msra.mxu0 0.0
        %2097 = vmatpush.msra.mxu0 %v2080
        %2098 = vmatmul.f32.gmra.mxu0 %v344
        %v2099 = vpop.f32.mrf.mxu0
        %v2100 = vadd.f32 0.0, %v2099
        %2101 = vdwg.mxu0
        %v2102 = vadd.f32 %v2077, %v2100
        %2103 = vrot.lane.b32.xlu0 %v2054, 126
        %v2104 = vpop.permute.xlu0 %2103
        %v2105 = vsel %vm225, %v2104, 0
        %2107 = vmatpush.msra.mxu0 0.0
        %2108 = vmatpush.msra.mxu0 0.0
        %2109 = vmatpush.msra.mxu0 0.0
        %2110 = vmatpush.msra.mxu0 0.0
        %2111 = vmatpush.msra.mxu0 0.0
        %2112 = vmatpush.msra.mxu0 0.0
        %2113 = vmatpush.msra.mxu0 0.0
        %2114 = vmatpush.msra.mxu0 0.0
        %2115 = vmatpush.msra.mxu0 0.0
        %2116 = vmatpush.msra.mxu0 0.0
        %2117 = vmatpush.msra.mxu0 0.0
        %2118 = vmatpush.msra.mxu0 0.0
        %2119 = vmatpush.msra.mxu0 0.0
        %2120 = vmatpush.msra.mxu0 0.0
        %2121 = vmatpush.msra.mxu0 0.0
        %2122 = vmatpush.msra.mxu0 %v2105
        %2123 = vmatmul.f32.gmra.mxu0 %v372
        %v2124 = vpop.f32.mrf.mxu0
        %v2125 = vadd.f32 0.0, %v2124
        %2126 = vdwg.mxu0
        %v2127 = vadd.f32 %v2102, %v2125
        %v2128 = vld [vmem:[%s182 + $0x8] sm:$0x1]
        %v2129 = vld [vmem:[%s182 + $0x20] sm:$0x1]
        %v2130 = vld [vmem:[%s182 + $0x38] sm:$0x1]
        %v2131 = vld [vmem:[%s182 + $0x50] sm:$0x1]
        %v2136 = vrot.slane %v2129, 7
        %v2137 = vsel %vm211, %v2136, %v2128
        %v2138 = vrot.slane %v2130, 6
        %v2139 = vsel %vm214, %v2138, %v2137
        %v2140 = vrot.slane %v2131, 5
        %v2141 = vsel %vm217, %v2140, %v2139
        %v2142 = vsel %vm225, %v2141, 0
        %2144 = vmatpush.msra.mxu0 0.0
        %2145 = vmatpush.msra.mxu0 0.0
        %2146 = vmatpush.msra.mxu0 0.0
        %2147 = vmatpush.msra.mxu0 0.0
        %2148 = vmatpush.msra.mxu0 0.0
        %2149 = vmatpush.msra.mxu0 0.0
        %2150 = vmatpush.msra.mxu0 0.0
        %2151 = vmatpush.msra.mxu0 0.0
        %2152 = vmatpush.msra.mxu0 0.0
        %2153 = vmatpush.msra.mxu0 0.0
        %2154 = vmatpush.msra.mxu0 0.0
        %2155 = vmatpush.msra.mxu0 0.0
        %2156 = vmatpush.msra.mxu0 0.0
        %2157 = vmatpush.msra.mxu0 0.0
        %2158 = vmatpush.msra.mxu0 0.0
        %2159 = vmatpush.msra.mxu0 %v2142
        %2160 = vmatmul.f32.gmra.mxu0 %v412
        %v2161 = vpop.f32.mrf.mxu0
        %v2162 = vadd.f32 0.0, %v2161
        %2163 = vdwg.mxu0
        %v2164 = vadd.f32 %v2127, %v2162
        %2165 = vrot.lane.b32.xlu0 %v2141, 127
        %v2166 = vpop.permute.xlu0 %2165
        %v2167 = vsel %vm225, %v2166, 0
        %2169 = vmatpush.msra.mxu0 0.0
        %2170 = vmatpush.msra.mxu0 0.0
        %2171 = vmatpush.msra.mxu0 0.0
        %2172 = vmatpush.msra.mxu0 0.0
        %2173 = vmatpush.msra.mxu0 0.0
        %2174 = vmatpush.msra.mxu0 0.0
        %2175 = vmatpush.msra.mxu0 0.0
        %2176 = vmatpush.msra.mxu0 0.0
        %2177 = vmatpush.msra.mxu0 0.0
        %2178 = vmatpush.msra.mxu0 0.0
        %2179 = vmatpush.msra.mxu0 0.0
        %2180 = vmatpush.msra.mxu0 0.0
        %2181 = vmatpush.msra.mxu0 0.0
        %2182 = vmatpush.msra.mxu0 0.0
        %2183 = vmatpush.msra.mxu0 0.0
        %2184 = vmatpush.msra.mxu0 %v2167
        %2185 = vmatmul.f32.gmra.mxu0 %v440
        %v2186 = vpop.f32.mrf.mxu0
        %v2187 = vadd.f32 0.0, %v2186
        %2188 = vdwg.mxu0
        %v2189 = vadd.f32 %v2164, %v2187
        %2190 = vrot.lane.b32.xlu0 %v2141, 126
        %v2191 = vpop.permute.xlu0 %2190
        %v2192 = vsel %vm225, %v2191, 0
        %2194 = vmatpush.msra.mxu0 0.0
        %2195 = vmatpush.msra.mxu0 0.0
        %2196 = vmatpush.msra.mxu0 0.0
        %2197 = vmatpush.msra.mxu0 0.0
        %2198 = vmatpush.msra.mxu0 0.0
        %2199 = vmatpush.msra.mxu0 0.0
        %2200 = vmatpush.msra.mxu0 0.0
        %2201 = vmatpush.msra.mxu0 0.0
        %2202 = vmatpush.msra.mxu0 0.0
        %2203 = vmatpush.msra.mxu0 0.0
        %2204 = vmatpush.msra.mxu0 0.0
        %2205 = vmatpush.msra.mxu0 0.0
        %2206 = vmatpush.msra.mxu0 0.0
        %2207 = vmatpush.msra.mxu0 0.0
        %2208 = vmatpush.msra.mxu0 0.0
        %2209 = vmatpush.msra.mxu0 %v2192
        %2210 = vmatmul.f32.gmra.mxu0 %v468
        %v2211 = vpop.f32.mrf.mxu0
        %v2212 = vadd.f32 0.0, %v2211
        %2213 = vdwg.mxu0
        %v2214 = vadd.f32 %v2189, %v2212
        %v2215 = vadd.f32 %v2214, %v496
        %vm2216 = vcmp.ge.f32.partialorder %v2215, 0.0
        %v2217 = vmul.f32 %v2215, 0.01
        %v2218 = vsel %vm2216, %v2215, %v2217
        %v2220 = vrot.slane %v2218, 1
        %v2221 = vrot.slane %v2218, 2
        %v2222 = vrot.slane %v2218, 3
        %v2223 = vrot.slane %v2218, 4
        %v2224 = vrot.slane %v2218, 5
        %v2225 = vrot.slane %v2218, 6
        %v2226 = vrot.slane %v2218, 7
        %2234 = vst.msk [vmem:[%s177 + $0x6] sm:$0x1] %vm517, %v2218
        %2235 = vst.msk [vmem:[%s177 + $0x16] sm:$0x1] %vm517, %v2220
        %2236 = vst.msk [vmem:[%s177 + $0x26] sm:$0x1] %vm517, %v2221
        %2237 = vst.msk [vmem:[%s177 + $0x36] sm:$0x1] %vm517, %v2222
        %2238 = vst.msk [vmem:[%s177 + $0x46] sm:$0x1] %vm517, %v2223
        %2239 = vst.msk [vmem:[%s177 + $0x56] sm:$0x1] %vm517, %v2224
        %2240 = vst.msk [vmem:[%s177 + $0x66] sm:$0x1] %vm517, %v2225
        %2241 = vst.msk [vmem:[%s177 + $0x76] sm:$0x1] %vm517, %v2226
        %v2242 = vld [vmem:[%s182 + $0x7] sm:$0x1]
        %v2243 = vld [vmem:[%s182 + $0x1f] sm:$0x1]
        %v2244 = vld [vmem:[%s182 + $0x37] sm:$0x1]
        %v2245 = vld [vmem:[%s182 + $0x4f] sm:$0x1]
        %v2250 = vrot.slane %v2243, 7
        %v2251 = vsel %vm211, %v2250, %v2242
        %v2252 = vrot.slane %v2244, 6
        %v2253 = vsel %vm214, %v2252, %v2251
        %v2254 = vrot.slane %v2245, 5
        %v2255 = vsel %vm217, %v2254, %v2253
        %2256 = vrot.lane.b32.xlu0 %v2255, 127
        %v2257 = vpop.permute.xlu0 %2256
        %v2258 = vsel %vm225, %v2257, 0
        %2260 = vmatpush.msra.mxu0 0.0
        %2261 = vmatpush.msra.mxu0 0.0
        %2262 = vmatpush.msra.mxu0 0.0
        %2263 = vmatpush.msra.mxu0 0.0
        %2264 = vmatpush.msra.mxu0 0.0
        %2265 = vmatpush.msra.mxu0 0.0
        %2266 = vmatpush.msra.mxu0 0.0
        %2267 = vmatpush.msra.mxu0 0.0
        %2268 = vmatpush.msra.mxu0 0.0
        %2269 = vmatpush.msra.mxu0 0.0
        %2270 = vmatpush.msra.mxu0 0.0
        %2271 = vmatpush.msra.mxu0 0.0
        %2272 = vmatpush.msra.mxu0 0.0
        %2273 = vmatpush.msra.mxu0 0.0
        %2274 = vmatpush.msra.mxu0 0.0
        %2275 = vmatpush.msra.mxu0 %v2258
        %2276 = vmatmul.f32.gmra.mxu0 %v223
        %v2277 = vpop.f32.mrf.mxu0
        %v2278 = vadd.f32 0.0, %v2277
        %2279 = vdwg.mxu0
        %v2280 = vsel %vm225, %v2255, 0
        %2282 = vmatpush.msra.mxu0 0.0
        %2283 = vmatpush.msra.mxu0 0.0
        %2284 = vmatpush.msra.mxu0 0.0
        %2285 = vmatpush.msra.mxu0 0.0
        %2286 = vmatpush.msra.mxu0 0.0
        %2287 = vmatpush.msra.mxu0 0.0
        %2288 = vmatpush.msra.mxu0 0.0
        %2289 = vmatpush.msra.mxu0 0.0
        %2290 = vmatpush.msra.mxu0 0.0
        %2291 = vmatpush.msra.mxu0 0.0
        %2292 = vmatpush.msra.mxu0 0.0
        %2293 = vmatpush.msra.mxu0 0.0
        %2294 = vmatpush.msra.mxu0 0.0
        %2295 = vmatpush.msra.mxu0 0.0
        %2296 = vmatpush.msra.mxu0 0.0
        %2297 = vmatpush.msra.mxu0 %v2280
        %2298 = vmatmul.f32.gmra.mxu0 %v249
        %v2299 = vpop.f32.mrf.mxu0
        %v2300 = vadd.f32 %v2278, %v2299
        %2301 = vdwg.mxu0
        %2302 = vrot.lane.b32.xlu0 %v2255, 126
        %v2303 = vpop.permute.xlu0 %2302
        %v2304 = vsel %vm225, %v2303, 0
        %2306 = vmatpush.msra.mxu0 0.0
        %2307 = vmatpush.msra.mxu0 0.0
        %2308 = vmatpush.msra.mxu0 0.0
        %2309 = vmatpush.msra.mxu0 0.0
        %2310 = vmatpush.msra.mxu0 0.0
        %2311 = vmatpush.msra.mxu0 0.0
        %2312 = vmatpush.msra.mxu0 0.0
        %2313 = vmatpush.msra.mxu0 0.0
        %2314 = vmatpush.msra.mxu0 0.0
        %2315 = vmatpush.msra.mxu0 0.0
        %2316 = vmatpush.msra.mxu0 0.0
        %2317 = vmatpush.msra.mxu0 0.0
        %2318 = vmatpush.msra.mxu0 0.0
        %2319 = vmatpush.msra.mxu0 0.0
        %2320 = vmatpush.msra.mxu0 0.0
        %2321 = vmatpush.msra.mxu0 %v2304
        %2322 = vmatmul.f32.gmra.mxu0 %v276
        %v2323 = vpop.f32.mrf.mxu0
        %v2324 = vadd.f32 0.0, %v2323
        %2325 = vdwg.mxu0
        %v2326 = vadd.f32 %v2300, %v2324
        %v2327 = vld [vmem:[%s182 + $0x8] sm:$0x1]
        %v2328 = vld [vmem:[%s182 + $0x20] sm:$0x1]
        %v2329 = vld [vmem:[%s182 + $0x38] sm:$0x1]
        %v2330 = vld [vmem:[%s182 + $0x50] sm:$0x1]
        %v2335 = vrot.slane %v2328, 7
        %v2336 = vsel %vm211, %v2335, %v2327
        %v2337 = vrot.slane %v2329, 6
        %v2338 = vsel %vm214, %v2337, %v2336
        %v2339 = vrot.slane %v2330, 5
        %v2340 = vsel %vm217, %v2339, %v2338
        %v2341 = vsel %vm225, %v2340, 0
        %2343 = vmatpush.msra.mxu0 0.0
        %2344 = vmatpush.msra.mxu0 0.0
        %2345 = vmatpush.msra.mxu0 0.0
        %2346 = vmatpush.msra.mxu0 0.0
        %2347 = vmatpush.msra.mxu0 0.0
        %2348 = vmatpush.msra.mxu0 0.0
        %2349 = vmatpush.msra.mxu0 0.0
        %2350 = vmatpush.msra.mxu0 0.0
        %2351 = vmatpush.msra.mxu0 0.0
        %2352 = vmatpush.msra.mxu0 0.0
        %2353 = vmatpush.msra.mxu0 0.0
        %2354 = vmatpush.msra.mxu0 0.0
        %2355 = vmatpush.msra.mxu0 0.0
        %2356 = vmatpush.msra.mxu0 0.0
        %2357 = vmatpush.msra.mxu0 0.0
        %2358 = vmatpush.msra.mxu0 %v2341
        %2359 = vmatmul.f32.gmra.mxu0 %v316
        %v2360 = vpop.f32.mrf.mxu0
        %v2361 = vadd.f32 0.0, %v2360
        %2362 = vdwg.mxu0
        %v2363 = vadd.f32 %v2326, %v2361
        %2364 = vrot.lane.b32.xlu0 %v2340, 127
        %v2365 = vpop.permute.xlu0 %2364
        %v2366 = vsel %vm225, %v2365, 0
        %2368 = vmatpush.msra.mxu0 0.0
        %2369 = vmatpush.msra.mxu0 0.0
        %2370 = vmatpush.msra.mxu0 0.0
        %2371 = vmatpush.msra.mxu0 0.0
        %2372 = vmatpush.msra.mxu0 0.0
        %2373 = vmatpush.msra.mxu0 0.0
        %2374 = vmatpush.msra.mxu0 0.0
        %2375 = vmatpush.msra.mxu0 0.0
        %2376 = vmatpush.msra.mxu0 0.0
        %2377 = vmatpush.msra.mxu0 0.0
        %2378 = vmatpush.msra.mxu0 0.0
        %2379 = vmatpush.msra.mxu0 0.0
        %2380 = vmatpush.msra.mxu0 0.0
        %2381 = vmatpush.msra.mxu0 0.0
        %2382 = vmatpush.msra.mxu0 0.0
        %2383 = vmatpush.msra.mxu0 %v2366
        %2384 = vmatmul.f32.gmra.mxu0 %v344
        %v2385 = vpop.f32.mrf.mxu0
        %v2386 = vadd.f32 0.0, %v2385
        %2387 = vdwg.mxu0
        %v2388 = vadd.f32 %v2363, %v2386
        %2389 = vrot.lane.b32.xlu0 %v2340, 126
        %v2390 = vpop.permute.xlu0 %2389
        %v2391 = vsel %vm225, %v2390, 0
        %2393 = vmatpush.msra.mxu0 0.0
        %2394 = vmatpush.msra.mxu0 0.0
        %2395 = vmatpush.msra.mxu0 0.0
        %2396 = vmatpush.msra.mxu0 0.0
        %2397 = vmatpush.msra.mxu0 0.0
        %2398 = vmatpush.msra.mxu0 0.0
        %2399 = vmatpush.msra.mxu0 0.0
        %2400 = vmatpush.msra.mxu0 0.0
        %2401 = vmatpush.msra.mxu0 0.0
        %2402 = vmatpush.msra.mxu0 0.0
        %2403 = vmatpush.msra.mxu0 0.0
        %2404 = vmatpush.msra.mxu0 0.0
        %2405 = vmatpush.msra.mxu0 0.0
        %2406 = vmatpush.msra.mxu0 0.0
        %2407 = vmatpush.msra.mxu0 0.0
        %2408 = vmatpush.msra.mxu0 %v2391
        %2409 = vmatmul.f32.gmra.mxu0 %v372
        %v2410 = vpop.f32.mrf.mxu0
        %v2411 = vadd.f32 0.0, %v2410
        %2412 = vdwg.mxu0
        %v2413 = vadd.f32 %v2388, %v2411
        %v2414 = vld [vmem:[%s182 + $0x9] sm:$0x1]
        %v2415 = vld [vmem:[%s182 + $0x21] sm:$0x1]
        %v2416 = vld [vmem:[%s182 + $0x39] sm:$0x1]
        %v2417 = vld [vmem:[%s182 + $0x51] sm:$0x1]
        %v2422 = vrot.slane %v2415, 7
        %v2423 = vsel %vm211, %v2422, %v2414
        %v2424 = vrot.slane %v2416, 6
        %v2425 = vsel %vm214, %v2424, %v2423
        %v2426 = vrot.slane %v2417, 5
        %v2427 = vsel %vm217, %v2426, %v2425
        %v2428 = vsel %vm225, %v2427, 0
        %2430 = vmatpush.msra.mxu0 0.0
        %2431 = vmatpush.msra.mxu0 0.0
        %2432 = vmatpush.msra.mxu0 0.0
        %2433 = vmatpush.msra.mxu0 0.0
        %2434 = vmatpush.msra.mxu0 0.0
        %2435 = vmatpush.msra.mxu0 0.0
        %2436 = vmatpush.msra.mxu0 0.0
        %2437 = vmatpush.msra.mxu0 0.0
        %2438 = vmatpush.msra.mxu0 0.0
        %2439 = vmatpush.msra.mxu0 0.0
        %2440 = vmatpush.msra.mxu0 0.0
        %2441 = vmatpush.msra.mxu0 0.0
        %2442 = vmatpush.msra.mxu0 0.0
        %2443 = vmatpush.msra.mxu0 0.0
        %2444 = vmatpush.msra.mxu0 0.0
        %2445 = vmatpush.msra.mxu0 %v2428
        %2446 = vmatmul.f32.gmra.mxu0 %v412
        %v2447 = vpop.f32.mrf.mxu0
        %v2448 = vadd.f32 0.0, %v2447
        %2449 = vdwg.mxu0
        %v2450 = vadd.f32 %v2413, %v2448
        %2451 = vrot.lane.b32.xlu0 %v2427, 127
        %v2452 = vpop.permute.xlu0 %2451
        %v2453 = vsel %vm225, %v2452, 0
        %2455 = vmatpush.msra.mxu0 0.0
        %2456 = vmatpush.msra.mxu0 0.0
        %2457 = vmatpush.msra.mxu0 0.0
        %2458 = vmatpush.msra.mxu0 0.0
        %2459 = vmatpush.msra.mxu0 0.0
        %2460 = vmatpush.msra.mxu0 0.0
        %2461 = vmatpush.msra.mxu0 0.0
        %2462 = vmatpush.msra.mxu0 0.0
        %2463 = vmatpush.msra.mxu0 0.0
        %2464 = vmatpush.msra.mxu0 0.0
        %2465 = vmatpush.msra.mxu0 0.0
        %2466 = vmatpush.msra.mxu0 0.0
        %2467 = vmatpush.msra.mxu0 0.0
        %2468 = vmatpush.msra.mxu0 0.0
        %2469 = vmatpush.msra.mxu0 0.0
        %2470 = vmatpush.msra.mxu0 %v2453
        %2471 = vmatmul.f32.gmra.mxu0 %v440
        %v2472 = vpop.f32.mrf.mxu0
        %v2473 = vadd.f32 0.0, %v2472
        %2474 = vdwg.mxu0
        %v2475 = vadd.f32 %v2450, %v2473
        %2476 = vrot.lane.b32.xlu0 %v2427, 126
        %v2477 = vpop.permute.xlu0 %2476
        %v2478 = vsel %vm225, %v2477, 0
        %2480 = vmatpush.msra.mxu0 0.0
        %2481 = vmatpush.msra.mxu0 0.0
        %2482 = vmatpush.msra.mxu0 0.0
        %2483 = vmatpush.msra.mxu0 0.0
        %2484 = vmatpush.msra.mxu0 0.0
        %2485 = vmatpush.msra.mxu0 0.0
        %2486 = vmatpush.msra.mxu0 0.0
        %2487 = vmatpush.msra.mxu0 0.0
        %2488 = vmatpush.msra.mxu0 0.0
        %2489 = vmatpush.msra.mxu0 0.0
        %2490 = vmatpush.msra.mxu0 0.0
        %2491 = vmatpush.msra.mxu0 0.0
        %2492 = vmatpush.msra.mxu0 0.0
        %2493 = vmatpush.msra.mxu0 0.0
        %2494 = vmatpush.msra.mxu0 0.0
        %2495 = vmatpush.msra.mxu0 %v2478
        %2496 = vmatmul.f32.gmra.mxu0 %v468
        %v2497 = vpop.f32.mrf.mxu0
        %v2498 = vadd.f32 0.0, %v2497
        %2499 = vdwg.mxu0
        %v2500 = vadd.f32 %v2475, %v2498
        %v2501 = vadd.f32 %v2500, %v496
        %vm2502 = vcmp.ge.f32.partialorder %v2501, 0.0
        %v2503 = vmul.f32 %v2501, 0.01
        %v2504 = vsel %vm2502, %v2501, %v2503
        %v2506 = vrot.slane %v2504, 1
        %v2507 = vrot.slane %v2504, 2
        %v2508 = vrot.slane %v2504, 3
        %v2509 = vrot.slane %v2504, 4
        %v2510 = vrot.slane %v2504, 5
        %v2511 = vrot.slane %v2504, 6
        %v2512 = vrot.slane %v2504, 7
        %2520 = vst.msk [vmem:[%s177 + $0x7] sm:$0x1] %vm517, %v2504
        %2521 = vst.msk [vmem:[%s177 + $0x17] sm:$0x1] %vm517, %v2506
        %2522 = vst.msk [vmem:[%s177 + $0x27] sm:$0x1] %vm517, %v2507
        %2523 = vst.msk [vmem:[%s177 + $0x37] sm:$0x1] %vm517, %v2508
        %2524 = vst.msk [vmem:[%s177 + $0x47] sm:$0x1] %vm517, %v2509
        %2525 = vst.msk [vmem:[%s177 + $0x57] sm:$0x1] %vm517, %v2510
        %2526 = vst.msk [vmem:[%s177 + $0x67] sm:$0x1] %vm517, %v2511
        %2527 = vst.msk [vmem:[%s177 + $0x77] sm:$0x1] %vm517, %v2512
        %v2528 = vld [vmem:[%s182 + $0x8] sm:$0x1]
        %v2529 = vld [vmem:[%s182 + $0x20] sm:$0x1]
        %v2530 = vld [vmem:[%s182 + $0x38] sm:$0x1]
        %v2531 = vld [vmem:[%s182 + $0x50] sm:$0x1]
        %v2536 = vrot.slane %v2529, 7
        %v2537 = vsel %vm211, %v2536, %v2528
        %v2538 = vrot.slane %v2530, 6
        %v2539 = vsel %vm214, %v2538, %v2537
        %v2540 = vrot.slane %v2531, 5
        %v2541 = vsel %vm217, %v2540, %v2539
        %2542 = vrot.lane.b32.xlu0 %v2541, 127
        %v2543 = vpop.permute.xlu0 %2542
        %v2544 = vsel %vm225, %v2543, 0
        %2546 = vmatpush.msra.mxu0 0.0
        %2547 = vmatpush.msra.mxu0 0.0
        %2548 = vmatpush.msra.mxu0 0.0
        %2549 = vmatpush.msra.mxu0 0.0
        %2550 = vmatpush.msra.mxu0 0.0
        %2551 = vmatpush.msra.mxu0 0.0
        %2552 = vmatpush.msra.mxu0 0.0
        %2553 = vmatpush.msra.mxu0 0.0
        %2554 = vmatpush.msra.mxu0 0.0
        %2555 = vmatpush.msra.mxu0 0.0
        %2556 = vmatpush.msra.mxu0 0.0
        %2557 = vmatpush.msra.mxu0 0.0
        %2558 = vmatpush.msra.mxu0 0.0
        %2559 = vmatpush.msra.mxu0 0.0
        %2560 = vmatpush.msra.mxu0 0.0
        %2561 = vmatpush.msra.mxu0 %v2544
        %2562 = vmatmul.f32.gmra.mxu0 %v223
        %v2563 = vpop.f32.mrf.mxu0
        %v2564 = vadd.f32 0.0, %v2563
        %2565 = vdwg.mxu0
        %v2566 = vsel %vm225, %v2541, 0
        %2568 = vmatpush.msra.mxu0 0.0
        %2569 = vmatpush.msra.mxu0 0.0
        %2570 = vmatpush.msra.mxu0 0.0
        %2571 = vmatpush.msra.mxu0 0.0
        %2572 = vmatpush.msra.mxu0 0.0
        %2573 = vmatpush.msra.mxu0 0.0
        %2574 = vmatpush.msra.mxu0 0.0
        %2575 = vmatpush.msra.mxu0 0.0
        %2576 = vmatpush.msra.mxu0 0.0
        %2577 = vmatpush.msra.mxu0 0.0
        %2578 = vmatpush.msra.mxu0 0.0
        %2579 = vmatpush.msra.mxu0 0.0
        %2580 = vmatpush.msra.mxu0 0.0
        %2581 = vmatpush.msra.mxu0 0.0
        %2582 = vmatpush.msra.mxu0 0.0
        %2583 = vmatpush.msra.mxu0 %v2566
        %2584 = vmatmul.f32.gmra.mxu0 %v249
        %v2585 = vpop.f32.mrf.mxu0
        %v2586 = vadd.f32 %v2564, %v2585
        %2587 = vdwg.mxu0
        %2588 = vrot.lane.b32.xlu0 %v2541, 126
        %v2589 = vpop.permute.xlu0 %2588
        %v2590 = vsel %vm225, %v2589, 0
        %2592 = vmatpush.msra.mxu0 0.0
        %2593 = vmatpush.msra.mxu0 0.0
        %2594 = vmatpush.msra.mxu0 0.0
        %2595 = vmatpush.msra.mxu0 0.0
        %2596 = vmatpush.msra.mxu0 0.0
        %2597 = vmatpush.msra.mxu0 0.0
        %2598 = vmatpush.msra.mxu0 0.0
        %2599 = vmatpush.msra.mxu0 0.0
        %2600 = vmatpush.msra.mxu0 0.0
        %2601 = vmatpush.msra.mxu0 0.0
        %2602 = vmatpush.msra.mxu0 0.0
        %2603 = vmatpush.msra.mxu0 0.0
        %2604 = vmatpush.msra.mxu0 0.0
        %2605 = vmatpush.msra.mxu0 0.0
        %2606 = vmatpush.msra.mxu0 0.0
        %2607 = vmatpush.msra.mxu0 %v2590
        %2608 = vmatmul.f32.gmra.mxu0 %v276
        %v2609 = vpop.f32.mrf.mxu0
        %v2610 = vadd.f32 0.0, %v2609
        %2611 = vdwg.mxu0
        %v2612 = vadd.f32 %v2586, %v2610
        %v2613 = vld [vmem:[%s182 + $0x9] sm:$0x1]
        %v2614 = vld [vmem:[%s182 + $0x21] sm:$0x1]
        %v2615 = vld [vmem:[%s182 + $0x39] sm:$0x1]
        %v2616 = vld [vmem:[%s182 + $0x51] sm:$0x1]
        %v2621 = vrot.slane %v2614, 7
        %v2622 = vsel %vm211, %v2621, %v2613
        %v2623 = vrot.slane %v2615, 6
        %v2624 = vsel %vm214, %v2623, %v2622
        %v2625 = vrot.slane %v2616, 5
        %v2626 = vsel %vm217, %v2625, %v2624
        %v2627 = vsel %vm225, %v2626, 0
        %2629 = vmatpush.msra.mxu0 0.0
        %2630 = vmatpush.msra.mxu0 0.0
        %2631 = vmatpush.msra.mxu0 0.0
        %2632 = vmatpush.msra.mxu0 0.0
        %2633 = vmatpush.msra.mxu0 0.0
        %2634 = vmatpush.msra.mxu0 0.0
        %2635 = vmatpush.msra.mxu0 0.0
        %2636 = vmatpush.msra.mxu0 0.0
        %2637 = vmatpush.msra.mxu0 0.0
        %2638 = vmatpush.msra.mxu0 0.0
        %2639 = vmatpush.msra.mxu0 0.0
        %2640 = vmatpush.msra.mxu0 0.0
        %2641 = vmatpush.msra.mxu0 0.0
        %2642 = vmatpush.msra.mxu0 0.0
        %2643 = vmatpush.msra.mxu0 0.0
        %2644 = vmatpush.msra.mxu0 %v2627
        %2645 = vmatmul.f32.gmra.mxu0 %v316
        %v2646 = vpop.f32.mrf.mxu0
        %v2647 = vadd.f32 0.0, %v2646
        %2648 = vdwg.mxu0
        %v2649 = vadd.f32 %v2612, %v2647
        %2650 = vrot.lane.b32.xlu0 %v2626, 127
        %v2651 = vpop.permute.xlu0 %2650
        %v2652 = vsel %vm225, %v2651, 0
        %2654 = vmatpush.msra.mxu0 0.0
        %2655 = vmatpush.msra.mxu0 0.0
        %2656 = vmatpush.msra.mxu0 0.0
        %2657 = vmatpush.msra.mxu0 0.0
        %2658 = vmatpush.msra.mxu0 0.0
        %2659 = vmatpush.msra.mxu0 0.0
        %2660 = vmatpush.msra.mxu0 0.0
        %2661 = vmatpush.msra.mxu0 0.0
        %2662 = vmatpush.msra.mxu0 0.0
        %2663 = vmatpush.msra.mxu0 0.0
        %2664 = vmatpush.msra.mxu0 0.0
        %2665 = vmatpush.msra.mxu0 0.0
        %2666 = vmatpush.msra.mxu0 0.0
        %2667 = vmatpush.msra.mxu0 0.0
        %2668 = vmatpush.msra.mxu0 0.0
        %2669 = vmatpush.msra.mxu0 %v2652
        %2670 = vmatmul.f32.gmra.mxu0 %v344
        %v2671 = vpop.f32.mrf.mxu0
        %v2672 = vadd.f32 0.0, %v2671
        %2673 = vdwg.mxu0
        %v2674 = vadd.f32 %v2649, %v2672
        %2675 = vrot.lane.b32.xlu0 %v2626, 126
        %v2676 = vpop.permute.xlu0 %2675
        %v2677 = vsel %vm225, %v2676, 0
        %2679 = vmatpush.msra.mxu0 0.0
        %2680 = vmatpush.msra.mxu0 0.0
        %2681 = vmatpush.msra.mxu0 0.0
        %2682 = vmatpush.msra.mxu0 0.0
        %2683 = vmatpush.msra.mxu0 0.0
        %2684 = vmatpush.msra.mxu0 0.0
        %2685 = vmatpush.msra.mxu0 0.0
        %2686 = vmatpush.msra.mxu0 0.0
        %2687 = vmatpush.msra.mxu0 0.0
        %2688 = vmatpush.msra.mxu0 0.0
        %2689 = vmatpush.msra.mxu0 0.0
        %2690 = vmatpush.msra.mxu0 0.0
        %2691 = vmatpush.msra.mxu0 0.0
        %2692 = vmatpush.msra.mxu0 0.0
        %2693 = vmatpush.msra.mxu0 0.0
        %2694 = vmatpush.msra.mxu0 %v2677
        %2695 = vmatmul.f32.gmra.mxu0 %v372
        %v2696 = vpop.f32.mrf.mxu0
        %v2697 = vadd.f32 0.0, %v2696
        %2698 = vdwg.mxu0
        %v2699 = vadd.f32 %v2674, %v2697
        %v2700 = vld [vmem:[%s182 + $0xa] sm:$0x1]
        %v2701 = vld [vmem:[%s182 + $0x22] sm:$0x1]
        %v2702 = vld [vmem:[%s182 + $0x3a] sm:$0x1]
        %v2703 = vld [vmem:[%s182 + $0x52] sm:$0x1]
        %v2708 = vrot.slane %v2701, 7
        %v2709 = vsel %vm211, %v2708, %v2700
        %v2710 = vrot.slane %v2702, 6
        %v2711 = vsel %vm214, %v2710, %v2709
        %v2712 = vrot.slane %v2703, 5
        %v2713 = vsel %vm217, %v2712, %v2711
        %v2714 = vsel %vm225, %v2713, 0
        %2716 = vmatpush.msra.mxu0 0.0
        %2717 = vmatpush.msra.mxu0 0.0
        %2718 = vmatpush.msra.mxu0 0.0
        %2719 = vmatpush.msra.mxu0 0.0
        %2720 = vmatpush.msra.mxu0 0.0
        %2721 = vmatpush.msra.mxu0 0.0
        %2722 = vmatpush.msra.mxu0 0.0
        %2723 = vmatpush.msra.mxu0 0.0
        %2724 = vmatpush.msra.mxu0 0.0
        %2725 = vmatpush.msra.mxu0 0.0
        %2726 = vmatpush.msra.mxu0 0.0
        %2727 = vmatpush.msra.mxu0 0.0
        %2728 = vmatpush.msra.mxu0 0.0
        %2729 = vmatpush.msra.mxu0 0.0
        %2730 = vmatpush.msra.mxu0 0.0
        %2731 = vmatpush.msra.mxu0 %v2714
        %2732 = vmatmul.f32.gmra.mxu0 %v412
        %v2733 = vpop.f32.mrf.mxu0
        %v2734 = vadd.f32 0.0, %v2733
        %2735 = vdwg.mxu0
        %v2736 = vadd.f32 %v2699, %v2734
        %2737 = vrot.lane.b32.xlu0 %v2713, 127
        %v2738 = vpop.permute.xlu0 %2737
        %v2739 = vsel %vm225, %v2738, 0
        %2741 = vmatpush.msra.mxu0 0.0
        %2742 = vmatpush.msra.mxu0 0.0
        %2743 = vmatpush.msra.mxu0 0.0
        %2744 = vmatpush.msra.mxu0 0.0
        %2745 = vmatpush.msra.mxu0 0.0
        %2746 = vmatpush.msra.mxu0 0.0
        %2747 = vmatpush.msra.mxu0 0.0
        %2748 = vmatpush.msra.mxu0 0.0
        %2749 = vmatpush.msra.mxu0 0.0
        %2750 = vmatpush.msra.mxu0 0.0
        %2751 = vmatpush.msra.mxu0 0.0
        %2752 = vmatpush.msra.mxu0 0.0
        %2753 = vmatpush.msra.mxu0 0.0
        %2754 = vmatpush.msra.mxu0 0.0
        %2755 = vmatpush.msra.mxu0 0.0
        %2756 = vmatpush.msra.mxu0 %v2739
        %2757 = vmatmul.f32.gmra.mxu0 %v440
        %v2758 = vpop.f32.mrf.mxu0
        %v2759 = vadd.f32 0.0, %v2758
        %2760 = vdwg.mxu0
        %v2761 = vadd.f32 %v2736, %v2759
        %2762 = vrot.lane.b32.xlu0 %v2713, 126
        %v2763 = vpop.permute.xlu0 %2762
        %v2764 = vsel %vm225, %v2763, 0
        %2766 = vmatpush.msra.mxu0 0.0
        %2767 = vmatpush.msra.mxu0 0.0
        %2768 = vmatpush.msra.mxu0 0.0
        %2769 = vmatpush.msra.mxu0 0.0
        %2770 = vmatpush.msra.mxu0 0.0
        %2771 = vmatpush.msra.mxu0 0.0
        %2772 = vmatpush.msra.mxu0 0.0
        %2773 = vmatpush.msra.mxu0 0.0
        %2774 = vmatpush.msra.mxu0 0.0
        %2775 = vmatpush.msra.mxu0 0.0
        %2776 = vmatpush.msra.mxu0 0.0
        %2777 = vmatpush.msra.mxu0 0.0
        %2778 = vmatpush.msra.mxu0 0.0
        %2779 = vmatpush.msra.mxu0 0.0
        %2780 = vmatpush.msra.mxu0 0.0
        %2781 = vmatpush.msra.mxu0 %v2764
        %2782 = vmatmul.f32.gmra.mxu0 %v468
        %v2783 = vpop.f32.mrf.mxu0
        %v2784 = vadd.f32 0.0, %v2783
        %2785 = vdwg.mxu0
        %v2786 = vadd.f32 %v2761, %v2784
        %v2787 = vadd.f32 %v2786, %v496
        %vm2788 = vcmp.ge.f32.partialorder %v2787, 0.0
        %v2789 = vmul.f32 %v2787, 0.01
        %v2790 = vsel %vm2788, %v2787, %v2789
        %v2792 = vrot.slane %v2790, 1
        %v2793 = vrot.slane %v2790, 2
        %v2794 = vrot.slane %v2790, 3
        %v2795 = vrot.slane %v2790, 4
        %v2796 = vrot.slane %v2790, 5
        %v2797 = vrot.slane %v2790, 6
        %v2798 = vrot.slane %v2790, 7
        %2806 = vst.msk [vmem:[%s177 + $0x8] sm:$0x1] %vm517, %v2790
        %2807 = vst.msk [vmem:[%s177 + $0x18] sm:$0x1] %vm517, %v2792
        %2808 = vst.msk [vmem:[%s177 + $0x28] sm:$0x1] %vm517, %v2793
        %2809 = vst.msk [vmem:[%s177 + $0x38] sm:$0x1] %vm517, %v2794
        %2810 = vst.msk [vmem:[%s177 + $0x48] sm:$0x1] %vm517, %v2795
        %2811 = vst.msk [vmem:[%s177 + $0x58] sm:$0x1] %vm517, %v2796
        %2812 = vst.msk [vmem:[%s177 + $0x68] sm:$0x1] %vm517, %v2797
        %2813 = vst.msk [vmem:[%s177 + $0x78] sm:$0x1] %vm517, %v2798
        %v2814 = vld [vmem:[%s182 + $0x9] sm:$0x1]
        %v2815 = vld [vmem:[%s182 + $0x21] sm:$0x1]
        %v2816 = vld [vmem:[%s182 + $0x39] sm:$0x1]
        %v2817 = vld [vmem:[%s182 + $0x51] sm:$0x1]
        %v2822 = vrot.slane %v2815, 7
        %v2823 = vsel %vm211, %v2822, %v2814
        %v2824 = vrot.slane %v2816, 6
        %v2825 = vsel %vm214, %v2824, %v2823
        %v2826 = vrot.slane %v2817, 5
        %v2827 = vsel %vm217, %v2826, %v2825
        %2828 = vrot.lane.b32.xlu0 %v2827, 127
        %v2829 = vpop.permute.xlu0 %2828
        %v2830 = vsel %vm225, %v2829, 0
        %2832 = vmatpush.msra.mxu0 0.0
        %2833 = vmatpush.msra.mxu0 0.0
        %2834 = vmatpush.msra.mxu0 0.0
        %2835 = vmatpush.msra.mxu0 0.0
        %2836 = vmatpush.msra.mxu0 0.0
        %2837 = vmatpush.msra.mxu0 0.0
        %2838 = vmatpush.msra.mxu0 0.0
        %2839 = vmatpush.msra.mxu0 0.0
        %2840 = vmatpush.msra.mxu0 0.0
        %2841 = vmatpush.msra.mxu0 0.0
        %2842 = vmatpush.msra.mxu0 0.0
        %2843 = vmatpush.msra.mxu0 0.0
        %2844 = vmatpush.msra.mxu0 0.0
        %2845 = vmatpush.msra.mxu0 0.0
        %2846 = vmatpush.msra.mxu0 0.0
        %2847 = vmatpush.msra.mxu0 %v2830
        %2848 = vmatmul.f32.gmra.mxu0 %v223
        %v2849 = vpop.f32.mrf.mxu0
        %v2850 = vadd.f32 0.0, %v2849
        %2851 = vdwg.mxu0
        %v2852 = vsel %vm225, %v2827, 0
        %2854 = vmatpush.msra.mxu0 0.0
        %2855 = vmatpush.msra.mxu0 0.0
        %2856 = vmatpush.msra.mxu0 0.0
        %2857 = vmatpush.msra.mxu0 0.0
        %2858 = vmatpush.msra.mxu0 0.0
        %2859 = vmatpush.msra.mxu0 0.0
        %2860 = vmatpush.msra.mxu0 0.0
        %2861 = vmatpush.msra.mxu0 0.0
        %2862 = vmatpush.msra.mxu0 0.0
        %2863 = vmatpush.msra.mxu0 0.0
        %2864 = vmatpush.msra.mxu0 0.0
        %2865 = vmatpush.msra.mxu0 0.0
        %2866 = vmatpush.msra.mxu0 0.0
        %2867 = vmatpush.msra.mxu0 0.0
        %2868 = vmatpush.msra.mxu0 0.0
        %2869 = vmatpush.msra.mxu0 %v2852
        %2870 = vmatmul.f32.gmra.mxu0 %v249
        %v2871 = vpop.f32.mrf.mxu0
        %v2872 = vadd.f32 %v2850, %v2871
        %2873 = vdwg.mxu0
        %2874 = vrot.lane.b32.xlu0 %v2827, 126
        %v2875 = vpop.permute.xlu0 %2874
        %v2876 = vsel %vm225, %v2875, 0
        %2878 = vmatpush.msra.mxu0 0.0
        %2879 = vmatpush.msra.mxu0 0.0
        %2880 = vmatpush.msra.mxu0 0.0
        %2881 = vmatpush.msra.mxu0 0.0
        %2882 = vmatpush.msra.mxu0 0.0
        %2883 = vmatpush.msra.mxu0 0.0
        %2884 = vmatpush.msra.mxu0 0.0
        %2885 = vmatpush.msra.mxu0 0.0
        %2886 = vmatpush.msra.mxu0 0.0
        %2887 = vmatpush.msra.mxu0 0.0
        %2888 = vmatpush.msra.mxu0 0.0
        %2889 = vmatpush.msra.mxu0 0.0
        %2890 = vmatpush.msra.mxu0 0.0
        %2891 = vmatpush.msra.mxu0 0.0
        %2892 = vmatpush.msra.mxu0 0.0
        %2893 = vmatpush.msra.mxu0 %v2876
        %2894 = vmatmul.f32.gmra.mxu0 %v276
        %v2895 = vpop.f32.mrf.mxu0
        %v2896 = vadd.f32 0.0, %v2895
        %2897 = vdwg.mxu0
        %v2898 = vadd.f32 %v2872, %v2896
        %v2899 = vld [vmem:[%s182 + $0xa] sm:$0x1]
        %v2900 = vld [vmem:[%s182 + $0x22] sm:$0x1]
        %v2901 = vld [vmem:[%s182 + $0x3a] sm:$0x1]
        %v2902 = vld [vmem:[%s182 + $0x52] sm:$0x1]
        %v2907 = vrot.slane %v2900, 7
        %v2908 = vsel %vm211, %v2907, %v2899
        %v2909 = vrot.slane %v2901, 6
        %v2910 = vsel %vm214, %v2909, %v2908
        %v2911 = vrot.slane %v2902, 5
        %v2912 = vsel %vm217, %v2911, %v2910
        %v2913 = vsel %vm225, %v2912, 0
        %2915 = vmatpush.msra.mxu0 0.0
        %2916 = vmatpush.msra.mxu0 0.0
        %2917 = vmatpush.msra.mxu0 0.0
        %2918 = vmatpush.msra.mxu0 0.0
        %2919 = vmatpush.msra.mxu0 0.0
        %2920 = vmatpush.msra.mxu0 0.0
        %2921 = vmatpush.msra.mxu0 0.0
        %2922 = vmatpush.msra.mxu0 0.0
        %2923 = vmatpush.msra.mxu0 0.0
        %2924 = vmatpush.msra.mxu0 0.0
        %2925 = vmatpush.msra.mxu0 0.0
        %2926 = vmatpush.msra.mxu0 0.0
        %2927 = vmatpush.msra.mxu0 0.0
        %2928 = vmatpush.msra.mxu0 0.0
        %2929 = vmatpush.msra.mxu0 0.0
        %2930 = vmatpush.msra.mxu0 %v2913
        %2931 = vmatmul.f32.gmra.mxu0 %v316
        %v2932 = vpop.f32.mrf.mxu0
        %v2933 = vadd.f32 0.0, %v2932
        %2934 = vdwg.mxu0
        %v2935 = vadd.f32 %v2898, %v2933
        %2936 = vrot.lane.b32.xlu0 %v2912, 127
        %v2937 = vpop.permute.xlu0 %2936
        %v2938 = vsel %vm225, %v2937, 0
        %2940 = vmatpush.msra.mxu0 0.0
        %2941 = vmatpush.msra.mxu0 0.0
        %2942 = vmatpush.msra.mxu0 0.0
        %2943 = vmatpush.msra.mxu0 0.0
        %2944 = vmatpush.msra.mxu0 0.0
        %2945 = vmatpush.msra.mxu0 0.0
        %2946 = vmatpush.msra.mxu0 0.0
        %2947 = vmatpush.msra.mxu0 0.0
        %2948 = vmatpush.msra.mxu0 0.0
        %2949 = vmatpush.msra.mxu0 0.0
        %2950 = vmatpush.msra.mxu0 0.0
        %2951 = vmatpush.msra.mxu0 0.0
        %2952 = vmatpush.msra.mxu0 0.0
        %2953 = vmatpush.msra.mxu0 0.0
        %2954 = vmatpush.msra.mxu0 0.0
        %2955 = vmatpush.msra.mxu0 %v2938
        %2956 = vmatmul.f32.gmra.mxu0 %v344
        %v2957 = vpop.f32.mrf.mxu0
        %v2958 = vadd.f32 0.0, %v2957
        %2959 = vdwg.mxu0
        %v2960 = vadd.f32 %v2935, %v2958
        %2961 = vrot.lane.b32.xlu0 %v2912, 126
        %v2962 = vpop.permute.xlu0 %2961
        %v2963 = vsel %vm225, %v2962, 0
        %2965 = vmatpush.msra.mxu0 0.0
        %2966 = vmatpush.msra.mxu0 0.0
        %2967 = vmatpush.msra.mxu0 0.0
        %2968 = vmatpush.msra.mxu0 0.0
        %2969 = vmatpush.msra.mxu0 0.0
        %2970 = vmatpush.msra.mxu0 0.0
        %2971 = vmatpush.msra.mxu0 0.0
        %2972 = vmatpush.msra.mxu0 0.0
        %2973 = vmatpush.msra.mxu0 0.0
        %2974 = vmatpush.msra.mxu0 0.0
        %2975 = vmatpush.msra.mxu0 0.0
        %2976 = vmatpush.msra.mxu0 0.0
        %2977 = vmatpush.msra.mxu0 0.0
        %2978 = vmatpush.msra.mxu0 0.0
        %2979 = vmatpush.msra.mxu0 0.0
        %2980 = vmatpush.msra.mxu0 %v2963
        %2981 = vmatmul.f32.gmra.mxu0 %v372
        %v2982 = vpop.f32.mrf.mxu0
        %v2983 = vadd.f32 0.0, %v2982
        %2984 = vdwg.mxu0
        %v2985 = vadd.f32 %v2960, %v2983
        %v2986 = vld [vmem:[%s182 + $0xb] sm:$0x1]
        %v2987 = vld [vmem:[%s182 + $0x23] sm:$0x1]
        %v2988 = vld [vmem:[%s182 + $0x3b] sm:$0x1]
        %v2989 = vld [vmem:[%s182 + $0x53] sm:$0x1]
        %v2994 = vrot.slane %v2987, 7
        %v2995 = vsel %vm211, %v2994, %v2986
        %v2996 = vrot.slane %v2988, 6
        %v2997 = vsel %vm214, %v2996, %v2995
        %v2998 = vrot.slane %v2989, 5
        %v2999 = vsel %vm217, %v2998, %v2997
        %v3000 = vsel %vm225, %v2999, 0
        %3002 = vmatpush.msra.mxu0 0.0
        %3003 = vmatpush.msra.mxu0 0.0
        %3004 = vmatpush.msra.mxu0 0.0
        %3005 = vmatpush.msra.mxu0 0.0
        %3006 = vmatpush.msra.mxu0 0.0
        %3007 = vmatpush.msra.mxu0 0.0
        %3008 = vmatpush.msra.mxu0 0.0
        %3009 = vmatpush.msra.mxu0 0.0
        %3010 = vmatpush.msra.mxu0 0.0
        %3011 = vmatpush.msra.mxu0 0.0
        %3012 = vmatpush.msra.mxu0 0.0
        %3013 = vmatpush.msra.mxu0 0.0
        %3014 = vmatpush.msra.mxu0 0.0
        %3015 = vmatpush.msra.mxu0 0.0
        %3016 = vmatpush.msra.mxu0 0.0
        %3017 = vmatpush.msra.mxu0 %v3000
        %3018 = vmatmul.f32.gmra.mxu0 %v412
        %v3019 = vpop.f32.mrf.mxu0
        %v3020 = vadd.f32 0.0, %v3019
        %3021 = vdwg.mxu0
        %v3022 = vadd.f32 %v2985, %v3020
        %3023 = vrot.lane.b32.xlu0 %v2999, 127
        %v3024 = vpop.permute.xlu0 %3023
        %v3025 = vsel %vm225, %v3024, 0
        %3027 = vmatpush.msra.mxu0 0.0
        %3028 = vmatpush.msra.mxu0 0.0
        %3029 = vmatpush.msra.mxu0 0.0
        %3030 = vmatpush.msra.mxu0 0.0
        %3031 = vmatpush.msra.mxu0 0.0
        %3032 = vmatpush.msra.mxu0 0.0
        %3033 = vmatpush.msra.mxu0 0.0
        %3034 = vmatpush.msra.mxu0 0.0
        %3035 = vmatpush.msra.mxu0 0.0
        %3036 = vmatpush.msra.mxu0 0.0
        %3037 = vmatpush.msra.mxu0 0.0
        %3038 = vmatpush.msra.mxu0 0.0
        %3039 = vmatpush.msra.mxu0 0.0
        %3040 = vmatpush.msra.mxu0 0.0
        %3041 = vmatpush.msra.mxu0 0.0
        %3042 = vmatpush.msra.mxu0 %v3025
        %3043 = vmatmul.f32.gmra.mxu0 %v440
        %v3044 = vpop.f32.mrf.mxu0
        %v3045 = vadd.f32 0.0, %v3044
        %3046 = vdwg.mxu0
        %v3047 = vadd.f32 %v3022, %v3045
        %3048 = vrot.lane.b32.xlu0 %v2999, 126
        %v3049 = vpop.permute.xlu0 %3048
        %v3050 = vsel %vm225, %v3049, 0
        %3052 = vmatpush.msra.mxu0 0.0
        %3053 = vmatpush.msra.mxu0 0.0
        %3054 = vmatpush.msra.mxu0 0.0
        %3055 = vmatpush.msra.mxu0 0.0
        %3056 = vmatpush.msra.mxu0 0.0
        %3057 = vmatpush.msra.mxu0 0.0
        %3058 = vmatpush.msra.mxu0 0.0
        %3059 = vmatpush.msra.mxu0 0.0
        %3060 = vmatpush.msra.mxu0 0.0
        %3061 = vmatpush.msra.mxu0 0.0
        %3062 = vmatpush.msra.mxu0 0.0
        %3063 = vmatpush.msra.mxu0 0.0
        %3064 = vmatpush.msra.mxu0 0.0
        %3065 = vmatpush.msra.mxu0 0.0
        %3066 = vmatpush.msra.mxu0 0.0
        %3067 = vmatpush.msra.mxu0 %v3050
        %3068 = vmatmul.f32.gmra.mxu0 %v468
        %v3069 = vpop.f32.mrf.mxu0
        %v3070 = vadd.f32 0.0, %v3069
        %3071 = vdwg.mxu0
        %v3072 = vadd.f32 %v3047, %v3070
        %v3073 = vadd.f32 %v3072, %v496
        %vm3074 = vcmp.ge.f32.partialorder %v3073, 0.0
        %v3075 = vmul.f32 %v3073, 0.01
        %v3076 = vsel %vm3074, %v3073, %v3075
        %v3078 = vrot.slane %v3076, 1
        %v3079 = vrot.slane %v3076, 2
        %v3080 = vrot.slane %v3076, 3
        %v3081 = vrot.slane %v3076, 4
        %v3082 = vrot.slane %v3076, 5
        %v3083 = vrot.slane %v3076, 6
        %v3084 = vrot.slane %v3076, 7
        %3092 = vst.msk [vmem:[%s177 + $0x9] sm:$0x1] %vm517, %v3076
        %3093 = vst.msk [vmem:[%s177 + $0x19] sm:$0x1] %vm517, %v3078
        %3094 = vst.msk [vmem:[%s177 + $0x29] sm:$0x1] %vm517, %v3079
        %3095 = vst.msk [vmem:[%s177 + $0x39] sm:$0x1] %vm517, %v3080
        %3096 = vst.msk [vmem:[%s177 + $0x49] sm:$0x1] %vm517, %v3081
        %3097 = vst.msk [vmem:[%s177 + $0x59] sm:$0x1] %vm517, %v3082
        %3098 = vst.msk [vmem:[%s177 + $0x69] sm:$0x1] %vm517, %v3083
        %3099 = vst.msk [vmem:[%s177 + $0x79] sm:$0x1] %vm517, %v3084
        %v3100 = vld [vmem:[%s182 + $0xa] sm:$0x1]
        %v3101 = vld [vmem:[%s182 + $0x22] sm:$0x1]
        %v3102 = vld [vmem:[%s182 + $0x3a] sm:$0x1]
        %v3103 = vld [vmem:[%s182 + $0x52] sm:$0x1]
        %v3108 = vrot.slane %v3101, 7
        %v3109 = vsel %vm211, %v3108, %v3100
        %v3110 = vrot.slane %v3102, 6
        %v3111 = vsel %vm214, %v3110, %v3109
        %v3112 = vrot.slane %v3103, 5
        %v3113 = vsel %vm217, %v3112, %v3111
        %3114 = vrot.lane.b32.xlu0 %v3113, 127
        %v3115 = vpop.permute.xlu0 %3114
        %v3116 = vsel %vm225, %v3115, 0
        %3118 = vmatpush.msra.mxu0 0.0
        %3119 = vmatpush.msra.mxu0 0.0
        %3120 = vmatpush.msra.mxu0 0.0
        %3121 = vmatpush.msra.mxu0 0.0
        %3122 = vmatpush.msra.mxu0 0.0
        %3123 = vmatpush.msra.mxu0 0.0
        %3124 = vmatpush.msra.mxu0 0.0
        %3125 = vmatpush.msra.mxu0 0.0
        %3126 = vmatpush.msra.mxu0 0.0
        %3127 = vmatpush.msra.mxu0 0.0
        %3128 = vmatpush.msra.mxu0 0.0
        %3129 = vmatpush.msra.mxu0 0.0
        %3130 = vmatpush.msra.mxu0 0.0
        %3131 = vmatpush.msra.mxu0 0.0
        %3132 = vmatpush.msra.mxu0 0.0
        %3133 = vmatpush.msra.mxu0 %v3116
        %3134 = vmatmul.f32.gmra.mxu0 %v223
        %v3135 = vpop.f32.mrf.mxu0
        %v3136 = vadd.f32 0.0, %v3135
        %3137 = vdwg.mxu0
        %v3138 = vsel %vm225, %v3113, 0
        %3140 = vmatpush.msra.mxu0 0.0
        %3141 = vmatpush.msra.mxu0 0.0
        %3142 = vmatpush.msra.mxu0 0.0
        %3143 = vmatpush.msra.mxu0 0.0
        %3144 = vmatpush.msra.mxu0 0.0
        %3145 = vmatpush.msra.mxu0 0.0
        %3146 = vmatpush.msra.mxu0 0.0
        %3147 = vmatpush.msra.mxu0 0.0
        %3148 = vmatpush.msra.mxu0 0.0
        %3149 = vmatpush.msra.mxu0 0.0
        %3150 = vmatpush.msra.mxu0 0.0
        %3151 = vmatpush.msra.mxu0 0.0
        %3152 = vmatpush.msra.mxu0 0.0
        %3153 = vmatpush.msra.mxu0 0.0
        %3154 = vmatpush.msra.mxu0 0.0
        %3155 = vmatpush.msra.mxu0 %v3138
        %3156 = vmatmul.f32.gmra.mxu0 %v249
        %v3157 = vpop.f32.mrf.mxu0
        %v3158 = vadd.f32 %v3136, %v3157
        %3159 = vdwg.mxu0
        %3160 = vrot.lane.b32.xlu0 %v3113, 126
        %v3161 = vpop.permute.xlu0 %3160
        %v3162 = vsel %vm225, %v3161, 0
        %3164 = vmatpush.msra.mxu0 0.0
        %3165 = vmatpush.msra.mxu0 0.0
        %3166 = vmatpush.msra.mxu0 0.0
        %3167 = vmatpush.msra.mxu0 0.0
        %3168 = vmatpush.msra.mxu0 0.0
        %3169 = vmatpush.msra.mxu0 0.0
        %3170 = vmatpush.msra.mxu0 0.0
        %3171 = vmatpush.msra.mxu0 0.0
        %3172 = vmatpush.msra.mxu0 0.0
        %3173 = vmatpush.msra.mxu0 0.0
        %3174 = vmatpush.msra.mxu0 0.0
        %3175 = vmatpush.msra.mxu0 0.0
        %3176 = vmatpush.msra.mxu0 0.0
        %3177 = vmatpush.msra.mxu0 0.0
        %3178 = vmatpush.msra.mxu0 0.0
        %3179 = vmatpush.msra.mxu0 %v3162
        %3180 = vmatmul.f32.gmra.mxu0 %v276
        %v3181 = vpop.f32.mrf.mxu0
        %v3182 = vadd.f32 0.0, %v3181
        %3183 = vdwg.mxu0
        %v3184 = vadd.f32 %v3158, %v3182
        %v3185 = vld [vmem:[%s182 + $0xb] sm:$0x1]
        %v3186 = vld [vmem:[%s182 + $0x23] sm:$0x1]
        %v3187 = vld [vmem:[%s182 + $0x3b] sm:$0x1]
        %v3188 = vld [vmem:[%s182 + $0x53] sm:$0x1]
        %v3193 = vrot.slane %v3186, 7
        %v3194 = vsel %vm211, %v3193, %v3185
        %v3195 = vrot.slane %v3187, 6
        %v3196 = vsel %vm214, %v3195, %v3194
        %v3197 = vrot.slane %v3188, 5
        %v3198 = vsel %vm217, %v3197, %v3196
        %v3199 = vsel %vm225, %v3198, 0
        %3201 = vmatpush.msra.mxu0 0.0
        %3202 = vmatpush.msra.mxu0 0.0
        %3203 = vmatpush.msra.mxu0 0.0
        %3204 = vmatpush.msra.mxu0 0.0
        %3205 = vmatpush.msra.mxu0 0.0
        %3206 = vmatpush.msra.mxu0 0.0
        %3207 = vmatpush.msra.mxu0 0.0
        %3208 = vmatpush.msra.mxu0 0.0
        %3209 = vmatpush.msra.mxu0 0.0
        %3210 = vmatpush.msra.mxu0 0.0
        %3211 = vmatpush.msra.mxu0 0.0
        %3212 = vmatpush.msra.mxu0 0.0
        %3213 = vmatpush.msra.mxu0 0.0
        %3214 = vmatpush.msra.mxu0 0.0
        %3215 = vmatpush.msra.mxu0 0.0
        %3216 = vmatpush.msra.mxu0 %v3199
        %3217 = vmatmul.f32.gmra.mxu0 %v316
        %v3218 = vpop.f32.mrf.mxu0
        %v3219 = vadd.f32 0.0, %v3218
        %3220 = vdwg.mxu0
        %v3221 = vadd.f32 %v3184, %v3219
        %3222 = vrot.lane.b32.xlu0 %v3198, 127
        %v3223 = vpop.permute.xlu0 %3222
        %v3224 = vsel %vm225, %v3223, 0
        %3226 = vmatpush.msra.mxu0 0.0
        %3227 = vmatpush.msra.mxu0 0.0
        %3228 = vmatpush.msra.mxu0 0.0
        %3229 = vmatpush.msra.mxu0 0.0
        %3230 = vmatpush.msra.mxu0 0.0
        %3231 = vmatpush.msra.mxu0 0.0
        %3232 = vmatpush.msra.mxu0 0.0
        %3233 = vmatpush.msra.mxu0 0.0
        %3234 = vmatpush.msra.mxu0 0.0
        %3235 = vmatpush.msra.mxu0 0.0
        %3236 = vmatpush.msra.mxu0 0.0
        %3237 = vmatpush.msra.mxu0 0.0
        %3238 = vmatpush.msra.mxu0 0.0
        %3239 = vmatpush.msra.mxu0 0.0
        %3240 = vmatpush.msra.mxu0 0.0
        %3241 = vmatpush.msra.mxu0 %v3224
        %3242 = vmatmul.f32.gmra.mxu0 %v344
        %v3243 = vpop.f32.mrf.mxu0
        %v3244 = vadd.f32 0.0, %v3243
        %3245 = vdwg.mxu0
        %v3246 = vadd.f32 %v3221, %v3244
        %3247 = vrot.lane.b32.xlu0 %v3198, 126
        %v3248 = vpop.permute.xlu0 %3247
        %v3249 = vsel %vm225, %v3248, 0
        %3251 = vmatpush.msra.mxu0 0.0
        %3252 = vmatpush.msra.mxu0 0.0
        %3253 = vmatpush.msra.mxu0 0.0
        %3254 = vmatpush.msra.mxu0 0.0
        %3255 = vmatpush.msra.mxu0 0.0
        %3256 = vmatpush.msra.mxu0 0.0
        %3257 = vmatpush.msra.mxu0 0.0
        %3258 = vmatpush.msra.mxu0 0.0
        %3259 = vmatpush.msra.mxu0 0.0
        %3260 = vmatpush.msra.mxu0 0.0
        %3261 = vmatpush.msra.mxu0 0.0
        %3262 = vmatpush.msra.mxu0 0.0
        %3263 = vmatpush.msra.mxu0 0.0
        %3264 = vmatpush.msra.mxu0 0.0
        %3265 = vmatpush.msra.mxu0 0.0
        %3266 = vmatpush.msra.mxu0 %v3249
        %3267 = vmatmul.f32.gmra.mxu0 %v372
        %v3268 = vpop.f32.mrf.mxu0
        %v3269 = vadd.f32 0.0, %v3268
        %3270 = vdwg.mxu0
        %v3271 = vadd.f32 %v3246, %v3269
        %v3272 = vld [vmem:[%s182 + $0xc] sm:$0x1]
        %v3273 = vld [vmem:[%s182 + $0x24] sm:$0x1]
        %v3274 = vld [vmem:[%s182 + $0x3c] sm:$0x1]
        %v3275 = vld [vmem:[%s182 + $0x54] sm:$0x1]
        %v3280 = vrot.slane %v3273, 7
        %v3281 = vsel %vm211, %v3280, %v3272
        %v3282 = vrot.slane %v3274, 6
        %v3283 = vsel %vm214, %v3282, %v3281
        %v3284 = vrot.slane %v3275, 5
        %v3285 = vsel %vm217, %v3284, %v3283
        %v3286 = vsel %vm225, %v3285, 0
        %3288 = vmatpush.msra.mxu0 0.0
        %3289 = vmatpush.msra.mxu0 0.0
        %3290 = vmatpush.msra.mxu0 0.0
        %3291 = vmatpush.msra.mxu0 0.0
        %3292 = vmatpush.msra.mxu0 0.0
        %3293 = vmatpush.msra.mxu0 0.0
        %3294 = vmatpush.msra.mxu0 0.0
        %3295 = vmatpush.msra.mxu0 0.0
        %3296 = vmatpush.msra.mxu0 0.0
        %3297 = vmatpush.msra.mxu0 0.0
        %3298 = vmatpush.msra.mxu0 0.0
        %3299 = vmatpush.msra.mxu0 0.0
        %3300 = vmatpush.msra.mxu0 0.0
        %3301 = vmatpush.msra.mxu0 0.0
        %3302 = vmatpush.msra.mxu0 0.0
        %3303 = vmatpush.msra.mxu0 %v3286
        %3304 = vmatmul.f32.gmra.mxu0 %v412
        %v3305 = vpop.f32.mrf.mxu0
        %v3306 = vadd.f32 0.0, %v3305
        %3307 = vdwg.mxu0
        %v3308 = vadd.f32 %v3271, %v3306
        %3309 = vrot.lane.b32.xlu0 %v3285, 127
        %v3310 = vpop.permute.xlu0 %3309
        %v3311 = vsel %vm225, %v3310, 0
        %3313 = vmatpush.msra.mxu0 0.0
        %3314 = vmatpush.msra.mxu0 0.0
        %3315 = vmatpush.msra.mxu0 0.0
        %3316 = vmatpush.msra.mxu0 0.0
        %3317 = vmatpush.msra.mxu0 0.0
        %3318 = vmatpush.msra.mxu0 0.0
        %3319 = vmatpush.msra.mxu0 0.0
        %3320 = vmatpush.msra.mxu0 0.0
        %3321 = vmatpush.msra.mxu0 0.0
        %3322 = vmatpush.msra.mxu0 0.0
        %3323 = vmatpush.msra.mxu0 0.0
        %3324 = vmatpush.msra.mxu0 0.0
        %3325 = vmatpush.msra.mxu0 0.0
        %3326 = vmatpush.msra.mxu0 0.0
        %3327 = vmatpush.msra.mxu0 0.0
        %3328 = vmatpush.msra.mxu0 %v3311
        %3329 = vmatmul.f32.gmra.mxu0 %v440
        %v3330 = vpop.f32.mrf.mxu0
        %v3331 = vadd.f32 0.0, %v3330
        %3332 = vdwg.mxu0
        %v3333 = vadd.f32 %v3308, %v3331
        %3334 = vrot.lane.b32.xlu0 %v3285, 126
        %v3335 = vpop.permute.xlu0 %3334
        %v3336 = vsel %vm225, %v3335, 0
        %3338 = vmatpush.msra.mxu0 0.0
        %3339 = vmatpush.msra.mxu0 0.0
        %3340 = vmatpush.msra.mxu0 0.0
        %3341 = vmatpush.msra.mxu0 0.0
        %3342 = vmatpush.msra.mxu0 0.0
        %3343 = vmatpush.msra.mxu0 0.0
        %3344 = vmatpush.msra.mxu0 0.0
        %3345 = vmatpush.msra.mxu0 0.0
        %3346 = vmatpush.msra.mxu0 0.0
        %3347 = vmatpush.msra.mxu0 0.0
        %3348 = vmatpush.msra.mxu0 0.0
        %3349 = vmatpush.msra.mxu0 0.0
        %3350 = vmatpush.msra.mxu0 0.0
        %3351 = vmatpush.msra.mxu0 0.0
        %3352 = vmatpush.msra.mxu0 0.0
        %3353 = vmatpush.msra.mxu0 %v3336
        %3354 = vmatmul.f32.gmra.mxu0 %v468
        %v3355 = vpop.f32.mrf.mxu0
        %v3356 = vadd.f32 0.0, %v3355
        %3357 = vdwg.mxu0
        %v3358 = vadd.f32 %v3333, %v3356
        %v3359 = vadd.f32 %v3358, %v496
        %vm3360 = vcmp.ge.f32.partialorder %v3359, 0.0
        %v3361 = vmul.f32 %v3359, 0.01
        %v3362 = vsel %vm3360, %v3359, %v3361
        %v3364 = vrot.slane %v3362, 1
        %v3365 = vrot.slane %v3362, 2
        %v3366 = vrot.slane %v3362, 3
        %v3367 = vrot.slane %v3362, 4
        %v3368 = vrot.slane %v3362, 5
        %v3369 = vrot.slane %v3362, 6
        %v3370 = vrot.slane %v3362, 7
        %3378 = vst.msk [vmem:[%s177 + $0xa] sm:$0x1] %vm517, %v3362
        %3379 = vst.msk [vmem:[%s177 + $0x1a] sm:$0x1] %vm517, %v3364
        %3380 = vst.msk [vmem:[%s177 + $0x2a] sm:$0x1] %vm517, %v3365
        %3381 = vst.msk [vmem:[%s177 + $0x3a] sm:$0x1] %vm517, %v3366
        %3382 = vst.msk [vmem:[%s177 + $0x4a] sm:$0x1] %vm517, %v3367
        %3383 = vst.msk [vmem:[%s177 + $0x5a] sm:$0x1] %vm517, %v3368
        %3384 = vst.msk [vmem:[%s177 + $0x6a] sm:$0x1] %vm517, %v3369
        %3385 = vst.msk [vmem:[%s177 + $0x7a] sm:$0x1] %vm517, %v3370
        %v3386 = vld [vmem:[%s182 + $0xb] sm:$0x1]
        %v3387 = vld [vmem:[%s182 + $0x23] sm:$0x1]
        %v3388 = vld [vmem:[%s182 + $0x3b] sm:$0x1]
        %v3389 = vld [vmem:[%s182 + $0x53] sm:$0x1]
        %v3394 = vrot.slane %v3387, 7
        %v3395 = vsel %vm211, %v3394, %v3386
        %v3396 = vrot.slane %v3388, 6
        %v3397 = vsel %vm214, %v3396, %v3395
        %v3398 = vrot.slane %v3389, 5
        %v3399 = vsel %vm217, %v3398, %v3397
        %3400 = vrot.lane.b32.xlu0 %v3399, 127
        %v3401 = vpop.permute.xlu0 %3400
        %v3402 = vsel %vm225, %v3401, 0
        %3404 = vmatpush.msra.mxu0 0.0
        %3405 = vmatpush.msra.mxu0 0.0
        %3406 = vmatpush.msra.mxu0 0.0
        %3407 = vmatpush.msra.mxu0 0.0
        %3408 = vmatpush.msra.mxu0 0.0
        %3409 = vmatpush.msra.mxu0 0.0
        %3410 = vmatpush.msra.mxu0 0.0
        %3411 = vmatpush.msra.mxu0 0.0
        %3412 = vmatpush.msra.mxu0 0.0
        %3413 = vmatpush.msra.mxu0 0.0
        %3414 = vmatpush.msra.mxu0 0.0
        %3415 = vmatpush.msra.mxu0 0.0
        %3416 = vmatpush.msra.mxu0 0.0
        %3417 = vmatpush.msra.mxu0 0.0
        %3418 = vmatpush.msra.mxu0 0.0
        %3419 = vmatpush.msra.mxu0 %v3402
        %3420 = vmatmul.f32.gmra.mxu0 %v223
        %v3421 = vpop.f32.mrf.mxu0
        %v3422 = vadd.f32 0.0, %v3421
        %3423 = vdwg.mxu0
        %v3424 = vsel %vm225, %v3399, 0
        %3426 = vmatpush.msra.mxu0 0.0
        %3427 = vmatpush.msra.mxu0 0.0
        %3428 = vmatpush.msra.mxu0 0.0
        %3429 = vmatpush.msra.mxu0 0.0
        %3430 = vmatpush.msra.mxu0 0.0
        %3431 = vmatpush.msra.mxu0 0.0
        %3432 = vmatpush.msra.mxu0 0.0
        %3433 = vmatpush.msra.mxu0 0.0
        %3434 = vmatpush.msra.mxu0 0.0
        %3435 = vmatpush.msra.mxu0 0.0
        %3436 = vmatpush.msra.mxu0 0.0
        %3437 = vmatpush.msra.mxu0 0.0
        %3438 = vmatpush.msra.mxu0 0.0
        %3439 = vmatpush.msra.mxu0 0.0
        %3440 = vmatpush.msra.mxu0 0.0
        %3441 = vmatpush.msra.mxu0 %v3424
        %3442 = vmatmul.f32.gmra.mxu0 %v249
        %v3443 = vpop.f32.mrf.mxu0
        %v3444 = vadd.f32 %v3422, %v3443
        %3445 = vdwg.mxu0
        %3446 = vrot.lane.b32.xlu0 %v3399, 126
        %v3447 = vpop.permute.xlu0 %3446
        %v3448 = vsel %vm225, %v3447, 0
        %3450 = vmatpush.msra.mxu0 0.0
        %3451 = vmatpush.msra.mxu0 0.0
        %3452 = vmatpush.msra.mxu0 0.0
        %3453 = vmatpush.msra.mxu0 0.0
        %3454 = vmatpush.msra.mxu0 0.0
        %3455 = vmatpush.msra.mxu0 0.0
        %3456 = vmatpush.msra.mxu0 0.0
        %3457 = vmatpush.msra.mxu0 0.0
        %3458 = vmatpush.msra.mxu0 0.0
        %3459 = vmatpush.msra.mxu0 0.0
        %3460 = vmatpush.msra.mxu0 0.0
        %3461 = vmatpush.msra.mxu0 0.0
        %3462 = vmatpush.msra.mxu0 0.0
        %3463 = vmatpush.msra.mxu0 0.0
        %3464 = vmatpush.msra.mxu0 0.0
        %3465 = vmatpush.msra.mxu0 %v3448
        %3466 = vmatmul.f32.gmra.mxu0 %v276
        %v3467 = vpop.f32.mrf.mxu0
        %v3468 = vadd.f32 0.0, %v3467
        %3469 = vdwg.mxu0
        %v3470 = vadd.f32 %v3444, %v3468
        %v3471 = vld [vmem:[%s182 + $0xc] sm:$0x1]
        %v3472 = vld [vmem:[%s182 + $0x24] sm:$0x1]
        %v3473 = vld [vmem:[%s182 + $0x3c] sm:$0x1]
        %v3474 = vld [vmem:[%s182 + $0x54] sm:$0x1]
        %v3479 = vrot.slane %v3472, 7
        %v3480 = vsel %vm211, %v3479, %v3471
        %v3481 = vrot.slane %v3473, 6
        %v3482 = vsel %vm214, %v3481, %v3480
        %v3483 = vrot.slane %v3474, 5
        %v3484 = vsel %vm217, %v3483, %v3482
        %v3485 = vsel %vm225, %v3484, 0
        %3487 = vmatpush.msra.mxu0 0.0
        %3488 = vmatpush.msra.mxu0 0.0
        %3489 = vmatpush.msra.mxu0 0.0
        %3490 = vmatpush.msra.mxu0 0.0
        %3491 = vmatpush.msra.mxu0 0.0
        %3492 = vmatpush.msra.mxu0 0.0
        %3493 = vmatpush.msra.mxu0 0.0
        %3494 = vmatpush.msra.mxu0 0.0
        %3495 = vmatpush.msra.mxu0 0.0
        %3496 = vmatpush.msra.mxu0 0.0
        %3497 = vmatpush.msra.mxu0 0.0
        %3498 = vmatpush.msra.mxu0 0.0
        %3499 = vmatpush.msra.mxu0 0.0
        %3500 = vmatpush.msra.mxu0 0.0
        %3501 = vmatpush.msra.mxu0 0.0
        %3502 = vmatpush.msra.mxu0 %v3485
        %3503 = vmatmul.f32.gmra.mxu0 %v316
        %v3504 = vpop.f32.mrf.mxu0
        %v3505 = vadd.f32 0.0, %v3504
        %3506 = vdwg.mxu0
        %v3507 = vadd.f32 %v3470, %v3505
        %3508 = vrot.lane.b32.xlu0 %v3484, 127
        %v3509 = vpop.permute.xlu0 %3508
        %v3510 = vsel %vm225, %v3509, 0
        %3512 = vmatpush.msra.mxu0 0.0
        %3513 = vmatpush.msra.mxu0 0.0
        %3514 = vmatpush.msra.mxu0 0.0
        %3515 = vmatpush.msra.mxu0 0.0
        %3516 = vmatpush.msra.mxu0 0.0
        %3517 = vmatpush.msra.mxu0 0.0
        %3518 = vmatpush.msra.mxu0 0.0
        %3519 = vmatpush.msra.mxu0 0.0
        %3520 = vmatpush.msra.mxu0 0.0
        %3521 = vmatpush.msra.mxu0 0.0
        %3522 = vmatpush.msra.mxu0 0.0
        %3523 = vmatpush.msra.mxu0 0.0
        %3524 = vmatpush.msra.mxu0 0.0
        %3525 = vmatpush.msra.mxu0 0.0
        %3526 = vmatpush.msra.mxu0 0.0
        %3527 = vmatpush.msra.mxu0 %v3510
        %3528 = vmatmul.f32.gmra.mxu0 %v344
        %v3529 = vpop.f32.mrf.mxu0
        %v3530 = vadd.f32 0.0, %v3529
        %3531 = vdwg.mxu0
        %v3532 = vadd.f32 %v3507, %v3530
        %3533 = vrot.lane.b32.xlu0 %v3484, 126
        %v3534 = vpop.permute.xlu0 %3533
        %v3535 = vsel %vm225, %v3534, 0
        %3537 = vmatpush.msra.mxu0 0.0
        %3538 = vmatpush.msra.mxu0 0.0
        %3539 = vmatpush.msra.mxu0 0.0
        %3540 = vmatpush.msra.mxu0 0.0
        %3541 = vmatpush.msra.mxu0 0.0
        %3542 = vmatpush.msra.mxu0 0.0
        %3543 = vmatpush.msra.mxu0 0.0
        %3544 = vmatpush.msra.mxu0 0.0
        %3545 = vmatpush.msra.mxu0 0.0
        %3546 = vmatpush.msra.mxu0 0.0
        %3547 = vmatpush.msra.mxu0 0.0
        %3548 = vmatpush.msra.mxu0 0.0
        %3549 = vmatpush.msra.mxu0 0.0
        %3550 = vmatpush.msra.mxu0 0.0
        %3551 = vmatpush.msra.mxu0 0.0
        %3552 = vmatpush.msra.mxu0 %v3535
        %3553 = vmatmul.f32.gmra.mxu0 %v372
        %v3554 = vpop.f32.mrf.mxu0
        %v3555 = vadd.f32 0.0, %v3554
        %3556 = vdwg.mxu0
        %v3557 = vadd.f32 %v3532, %v3555
        %v3558 = vld [vmem:[%s182 + $0xd] sm:$0x1]
        %v3559 = vld [vmem:[%s182 + $0x25] sm:$0x1]
        %v3560 = vld [vmem:[%s182 + $0x3d] sm:$0x1]
        %v3561 = vld [vmem:[%s182 + $0x55] sm:$0x1]
        %v3566 = vrot.slane %v3559, 7
        %v3567 = vsel %vm211, %v3566, %v3558
        %v3568 = vrot.slane %v3560, 6
        %v3569 = vsel %vm214, %v3568, %v3567
        %v3570 = vrot.slane %v3561, 5
        %v3571 = vsel %vm217, %v3570, %v3569
        %v3572 = vsel %vm225, %v3571, 0
        %3574 = vmatpush.msra.mxu0 0.0
        %3575 = vmatpush.msra.mxu0 0.0
        %3576 = vmatpush.msra.mxu0 0.0
        %3577 = vmatpush.msra.mxu0 0.0
        %3578 = vmatpush.msra.mxu0 0.0
        %3579 = vmatpush.msra.mxu0 0.0
        %3580 = vmatpush.msra.mxu0 0.0
        %3581 = vmatpush.msra.mxu0 0.0
        %3582 = vmatpush.msra.mxu0 0.0
        %3583 = vmatpush.msra.mxu0 0.0
        %3584 = vmatpush.msra.mxu0 0.0
        %3585 = vmatpush.msra.mxu0 0.0
        %3586 = vmatpush.msra.mxu0 0.0
        %3587 = vmatpush.msra.mxu0 0.0
        %3588 = vmatpush.msra.mxu0 0.0
        %3589 = vmatpush.msra.mxu0 %v3572
        %3590 = vmatmul.f32.gmra.mxu0 %v412
        %v3591 = vpop.f32.mrf.mxu0
        %v3592 = vadd.f32 0.0, %v3591
        %3593 = vdwg.mxu0
        %v3594 = vadd.f32 %v3557, %v3592
        %3595 = vrot.lane.b32.xlu0 %v3571, 127
        %v3596 = vpop.permute.xlu0 %3595
        %v3597 = vsel %vm225, %v3596, 0
        %3599 = vmatpush.msra.mxu0 0.0
        %3600 = vmatpush.msra.mxu0 0.0
        %3601 = vmatpush.msra.mxu0 0.0
        %3602 = vmatpush.msra.mxu0 0.0
        %3603 = vmatpush.msra.mxu0 0.0
        %3604 = vmatpush.msra.mxu0 0.0
        %3605 = vmatpush.msra.mxu0 0.0
        %3606 = vmatpush.msra.mxu0 0.0
        %3607 = vmatpush.msra.mxu0 0.0
        %3608 = vmatpush.msra.mxu0 0.0
        %3609 = vmatpush.msra.mxu0 0.0
        %3610 = vmatpush.msra.mxu0 0.0
        %3611 = vmatpush.msra.mxu0 0.0
        %3612 = vmatpush.msra.mxu0 0.0
        %3613 = vmatpush.msra.mxu0 0.0
        %3614 = vmatpush.msra.mxu0 %v3597
        %3615 = vmatmul.f32.gmra.mxu0 %v440
        %v3616 = vpop.f32.mrf.mxu0
        %v3617 = vadd.f32 0.0, %v3616
        %3618 = vdwg.mxu0
        %v3619 = vadd.f32 %v3594, %v3617
        %3620 = vrot.lane.b32.xlu0 %v3571, 126
        %v3621 = vpop.permute.xlu0 %3620
        %v3622 = vsel %vm225, %v3621, 0
        %3624 = vmatpush.msra.mxu0 0.0
        %3625 = vmatpush.msra.mxu0 0.0
        %3626 = vmatpush.msra.mxu0 0.0
        %3627 = vmatpush.msra.mxu0 0.0
        %3628 = vmatpush.msra.mxu0 0.0
        %3629 = vmatpush.msra.mxu0 0.0
        %3630 = vmatpush.msra.mxu0 0.0
        %3631 = vmatpush.msra.mxu0 0.0
        %3632 = vmatpush.msra.mxu0 0.0
        %3633 = vmatpush.msra.mxu0 0.0
        %3634 = vmatpush.msra.mxu0 0.0
        %3635 = vmatpush.msra.mxu0 0.0
        %3636 = vmatpush.msra.mxu0 0.0
        %3637 = vmatpush.msra.mxu0 0.0
        %3638 = vmatpush.msra.mxu0 0.0
        %3639 = vmatpush.msra.mxu0 %v3622
        %3640 = vmatmul.f32.gmra.mxu0 %v468
        %v3641 = vpop.f32.mrf.mxu0
        %v3642 = vadd.f32 0.0, %v3641
        %3643 = vdwg.mxu0
        %v3644 = vadd.f32 %v3619, %v3642
        %v3645 = vadd.f32 %v3644, %v496
        %vm3646 = vcmp.ge.f32.partialorder %v3645, 0.0
        %v3647 = vmul.f32 %v3645, 0.01
        %v3648 = vsel %vm3646, %v3645, %v3647
        %v3650 = vrot.slane %v3648, 1
        %v3651 = vrot.slane %v3648, 2
        %v3652 = vrot.slane %v3648, 3
        %v3653 = vrot.slane %v3648, 4
        %v3654 = vrot.slane %v3648, 5
        %v3655 = vrot.slane %v3648, 6
        %v3656 = vrot.slane %v3648, 7
        %3664 = vst.msk [vmem:[%s177 + $0xb] sm:$0x1] %vm517, %v3648
        %3665 = vst.msk [vmem:[%s177 + $0x1b] sm:$0x1] %vm517, %v3650
        %3666 = vst.msk [vmem:[%s177 + $0x2b] sm:$0x1] %vm517, %v3651
        %3667 = vst.msk [vmem:[%s177 + $0x3b] sm:$0x1] %vm517, %v3652
        %3668 = vst.msk [vmem:[%s177 + $0x4b] sm:$0x1] %vm517, %v3653
        %3669 = vst.msk [vmem:[%s177 + $0x5b] sm:$0x1] %vm517, %v3654
        %3670 = vst.msk [vmem:[%s177 + $0x6b] sm:$0x1] %vm517, %v3655
        %3671 = vst.msk [vmem:[%s177 + $0x7b] sm:$0x1] %vm517, %v3656
        %v3672 = vld [vmem:[%s182 + $0xc] sm:$0x1]
        %v3673 = vld [vmem:[%s182 + $0x24] sm:$0x1]
        %v3674 = vld [vmem:[%s182 + $0x3c] sm:$0x1]
        %v3675 = vld [vmem:[%s182 + $0x54] sm:$0x1]
        %v3680 = vrot.slane %v3673, 7
        %v3681 = vsel %vm211, %v3680, %v3672
        %v3682 = vrot.slane %v3674, 6
        %v3683 = vsel %vm214, %v3682, %v3681
        %v3684 = vrot.slane %v3675, 5
        %v3685 = vsel %vm217, %v3684, %v3683
        %3686 = vrot.lane.b32.xlu0 %v3685, 127
        %v3687 = vpop.permute.xlu0 %3686
        %v3688 = vsel %vm225, %v3687, 0
        %3690 = vmatpush.msra.mxu0 0.0
        %3691 = vmatpush.msra.mxu0 0.0
        %3692 = vmatpush.msra.mxu0 0.0
        %3693 = vmatpush.msra.mxu0 0.0
        %3694 = vmatpush.msra.mxu0 0.0
        %3695 = vmatpush.msra.mxu0 0.0
        %3696 = vmatpush.msra.mxu0 0.0
        %3697 = vmatpush.msra.mxu0 0.0
        %3698 = vmatpush.msra.mxu0 0.0
        %3699 = vmatpush.msra.mxu0 0.0
        %3700 = vmatpush.msra.mxu0 0.0
        %3701 = vmatpush.msra.mxu0 0.0
        %3702 = vmatpush.msra.mxu0 0.0
        %3703 = vmatpush.msra.mxu0 0.0
        %3704 = vmatpush.msra.mxu0 0.0
        %3705 = vmatpush.msra.mxu0 %v3688
        %3706 = vmatmul.f32.gmra.mxu0 %v223
        %v3707 = vpop.f32.mrf.mxu0
        %v3708 = vadd.f32 0.0, %v3707
        %3709 = vdwg.mxu0
        %v3710 = vsel %vm225, %v3685, 0
        %3712 = vmatpush.msra.mxu0 0.0
        %3713 = vmatpush.msra.mxu0 0.0
        %3714 = vmatpush.msra.mxu0 0.0
        %3715 = vmatpush.msra.mxu0 0.0
        %3716 = vmatpush.msra.mxu0 0.0
        %3717 = vmatpush.msra.mxu0 0.0
        %3718 = vmatpush.msra.mxu0 0.0
        %3719 = vmatpush.msra.mxu0 0.0
        %3720 = vmatpush.msra.mxu0 0.0
        %3721 = vmatpush.msra.mxu0 0.0
        %3722 = vmatpush.msra.mxu0 0.0
        %3723 = vmatpush.msra.mxu0 0.0
        %3724 = vmatpush.msra.mxu0 0.0
        %3725 = vmatpush.msra.mxu0 0.0
        %3726 = vmatpush.msra.mxu0 0.0
        %3727 = vmatpush.msra.mxu0 %v3710
        %3728 = vmatmul.f32.gmra.mxu0 %v249
        %v3729 = vpop.f32.mrf.mxu0
        %v3730 = vadd.f32 %v3708, %v3729
        %3731 = vdwg.mxu0
        %3732 = vrot.lane.b32.xlu0 %v3685, 126
        %v3733 = vpop.permute.xlu0 %3732
        %v3734 = vsel %vm225, %v3733, 0
        %3736 = vmatpush.msra.mxu0 0.0
        %3737 = vmatpush.msra.mxu0 0.0
        %3738 = vmatpush.msra.mxu0 0.0
        %3739 = vmatpush.msra.mxu0 0.0
        %3740 = vmatpush.msra.mxu0 0.0
        %3741 = vmatpush.msra.mxu0 0.0
        %3742 = vmatpush.msra.mxu0 0.0
        %3743 = vmatpush.msra.mxu0 0.0
        %3744 = vmatpush.msra.mxu0 0.0
        %3745 = vmatpush.msra.mxu0 0.0
        %3746 = vmatpush.msra.mxu0 0.0
        %3747 = vmatpush.msra.mxu0 0.0
        %3748 = vmatpush.msra.mxu0 0.0
        %3749 = vmatpush.msra.mxu0 0.0
        %3750 = vmatpush.msra.mxu0 0.0
        %3751 = vmatpush.msra.mxu0 %v3734
        %3752 = vmatmul.f32.gmra.mxu0 %v276
        %v3753 = vpop.f32.mrf.mxu0
        %v3754 = vadd.f32 0.0, %v3753
        %3755 = vdwg.mxu0
        %v3756 = vadd.f32 %v3730, %v3754
        %v3757 = vld [vmem:[%s182 + $0xd] sm:$0x1]
        %v3758 = vld [vmem:[%s182 + $0x25] sm:$0x1]
        %v3759 = vld [vmem:[%s182 + $0x3d] sm:$0x1]
        %v3760 = vld [vmem:[%s182 + $0x55] sm:$0x1]
        %v3765 = vrot.slane %v3758, 7
        %v3766 = vsel %vm211, %v3765, %v3757
        %v3767 = vrot.slane %v3759, 6
        %v3768 = vsel %vm214, %v3767, %v3766
        %v3769 = vrot.slane %v3760, 5
        %v3770 = vsel %vm217, %v3769, %v3768
        %v3771 = vsel %vm225, %v3770, 0
        %3773 = vmatpush.msra.mxu0 0.0
        %3774 = vmatpush.msra.mxu0 0.0
        %3775 = vmatpush.msra.mxu0 0.0
        %3776 = vmatpush.msra.mxu0 0.0
        %3777 = vmatpush.msra.mxu0 0.0
        %3778 = vmatpush.msra.mxu0 0.0
        %3779 = vmatpush.msra.mxu0 0.0
        %3780 = vmatpush.msra.mxu0 0.0
        %3781 = vmatpush.msra.mxu0 0.0
        %3782 = vmatpush.msra.mxu0 0.0
        %3783 = vmatpush.msra.mxu0 0.0
        %3784 = vmatpush.msra.mxu0 0.0
        %3785 = vmatpush.msra.mxu0 0.0
        %3786 = vmatpush.msra.mxu0 0.0
        %3787 = vmatpush.msra.mxu0 0.0
        %3788 = vmatpush.msra.mxu0 %v3771
        %3789 = vmatmul.f32.gmra.mxu0 %v316
        %v3790 = vpop.f32.mrf.mxu0
        %v3791 = vadd.f32 0.0, %v3790
        %3792 = vdwg.mxu0
        %v3793 = vadd.f32 %v3756, %v3791
        %3794 = vrot.lane.b32.xlu0 %v3770, 127
        %v3795 = vpop.permute.xlu0 %3794
        %v3796 = vsel %vm225, %v3795, 0
        %3798 = vmatpush.msra.mxu0 0.0
        %3799 = vmatpush.msra.mxu0 0.0
        %3800 = vmatpush.msra.mxu0 0.0
        %3801 = vmatpush.msra.mxu0 0.0
        %3802 = vmatpush.msra.mxu0 0.0
        %3803 = vmatpush.msra.mxu0 0.0
        %3804 = vmatpush.msra.mxu0 0.0
        %3805 = vmatpush.msra.mxu0 0.0
        %3806 = vmatpush.msra.mxu0 0.0
        %3807 = vmatpush.msra.mxu0 0.0
        %3808 = vmatpush.msra.mxu0 0.0
        %3809 = vmatpush.msra.mxu0 0.0
        %3810 = vmatpush.msra.mxu0 0.0
        %3811 = vmatpush.msra.mxu0 0.0
        %3812 = vmatpush.msra.mxu0 0.0
        %3813 = vmatpush.msra.mxu0 %v3796
        %3814 = vmatmul.f32.gmra.mxu0 %v344
        %v3815 = vpop.f32.mrf.mxu0
        %v3816 = vadd.f32 0.0, %v3815
        %3817 = vdwg.mxu0
        %v3818 = vadd.f32 %v3793, %v3816
        %3819 = vrot.lane.b32.xlu0 %v3770, 126
        %v3820 = vpop.permute.xlu0 %3819
        %v3821 = vsel %vm225, %v3820, 0
        %3823 = vmatpush.msra.mxu0 0.0
        %3824 = vmatpush.msra.mxu0 0.0
        %3825 = vmatpush.msra.mxu0 0.0
        %3826 = vmatpush.msra.mxu0 0.0
        %3827 = vmatpush.msra.mxu0 0.0
        %3828 = vmatpush.msra.mxu0 0.0
        %3829 = vmatpush.msra.mxu0 0.0
        %3830 = vmatpush.msra.mxu0 0.0
        %3831 = vmatpush.msra.mxu0 0.0
        %3832 = vmatpush.msra.mxu0 0.0
        %3833 = vmatpush.msra.mxu0 0.0
        %3834 = vmatpush.msra.mxu0 0.0
        %3835 = vmatpush.msra.mxu0 0.0
        %3836 = vmatpush.msra.mxu0 0.0
        %3837 = vmatpush.msra.mxu0 0.0
        %3838 = vmatpush.msra.mxu0 %v3821
        %3839 = vmatmul.f32.gmra.mxu0 %v372
        %v3840 = vpop.f32.mrf.mxu0
        %v3841 = vadd.f32 0.0, %v3840
        %3842 = vdwg.mxu0
        %v3843 = vadd.f32 %v3818, %v3841
        %v3844 = vld [vmem:[%s182 + $0xe] sm:$0x1]
        %v3845 = vld [vmem:[%s182 + $0x26] sm:$0x1]
        %v3846 = vld [vmem:[%s182 + $0x3e] sm:$0x1]
        %v3847 = vld [vmem:[%s182 + $0x56] sm:$0x1]
        %v3852 = vrot.slane %v3845, 7
        %v3853 = vsel %vm211, %v3852, %v3844
        %v3854 = vrot.slane %v3846, 6
        %v3855 = vsel %vm214, %v3854, %v3853
        %v3856 = vrot.slane %v3847, 5
        %v3857 = vsel %vm217, %v3856, %v3855
        %v3858 = vsel %vm225, %v3857, 0
        %3860 = vmatpush.msra.mxu0 0.0
        %3861 = vmatpush.msra.mxu0 0.0
        %3862 = vmatpush.msra.mxu0 0.0
        %3863 = vmatpush.msra.mxu0 0.0
        %3864 = vmatpush.msra.mxu0 0.0
        %3865 = vmatpush.msra.mxu0 0.0
        %3866 = vmatpush.msra.mxu0 0.0
        %3867 = vmatpush.msra.mxu0 0.0
        %3868 = vmatpush.msra.mxu0 0.0
        %3869 = vmatpush.msra.mxu0 0.0
        %3870 = vmatpush.msra.mxu0 0.0
        %3871 = vmatpush.msra.mxu0 0.0
        %3872 = vmatpush.msra.mxu0 0.0
        %3873 = vmatpush.msra.mxu0 0.0
        %3874 = vmatpush.msra.mxu0 0.0
        %3875 = vmatpush.msra.mxu0 %v3858
        %3876 = vmatmul.f32.gmra.mxu0 %v412
        %v3877 = vpop.f32.mrf.mxu0
        %v3878 = vadd.f32 0.0, %v3877
        %3879 = vdwg.mxu0
        %v3880 = vadd.f32 %v3843, %v3878
        %3881 = vrot.lane.b32.xlu0 %v3857, 127
        %v3882 = vpop.permute.xlu0 %3881
        %v3883 = vsel %vm225, %v3882, 0
        %3885 = vmatpush.msra.mxu0 0.0
        %3886 = vmatpush.msra.mxu0 0.0
        %3887 = vmatpush.msra.mxu0 0.0
        %3888 = vmatpush.msra.mxu0 0.0
        %3889 = vmatpush.msra.mxu0 0.0
        %3890 = vmatpush.msra.mxu0 0.0
        %3891 = vmatpush.msra.mxu0 0.0
        %3892 = vmatpush.msra.mxu0 0.0
        %3893 = vmatpush.msra.mxu0 0.0
        %3894 = vmatpush.msra.mxu0 0.0
        %3895 = vmatpush.msra.mxu0 0.0
        %3896 = vmatpush.msra.mxu0 0.0
        %3897 = vmatpush.msra.mxu0 0.0
        %3898 = vmatpush.msra.mxu0 0.0
        %3899 = vmatpush.msra.mxu0 0.0
        %3900 = vmatpush.msra.mxu0 %v3883
        %3901 = vmatmul.f32.gmra.mxu0 %v440
        %v3902 = vpop.f32.mrf.mxu0
        %v3903 = vadd.f32 0.0, %v3902
        %3904 = vdwg.mxu0
        %v3905 = vadd.f32 %v3880, %v3903
        %3906 = vrot.lane.b32.xlu0 %v3857, 126
        %v3907 = vpop.permute.xlu0 %3906
        %v3908 = vsel %vm225, %v3907, 0
        %3910 = vmatpush.msra.mxu0 0.0
        %3911 = vmatpush.msra.mxu0 0.0
        %3912 = vmatpush.msra.mxu0 0.0
        %3913 = vmatpush.msra.mxu0 0.0
        %3914 = vmatpush.msra.mxu0 0.0
        %3915 = vmatpush.msra.mxu0 0.0
        %3916 = vmatpush.msra.mxu0 0.0
        %3917 = vmatpush.msra.mxu0 0.0
        %3918 = vmatpush.msra.mxu0 0.0
        %3919 = vmatpush.msra.mxu0 0.0
        %3920 = vmatpush.msra.mxu0 0.0
        %3921 = vmatpush.msra.mxu0 0.0
        %3922 = vmatpush.msra.mxu0 0.0
        %3923 = vmatpush.msra.mxu0 0.0
        %3924 = vmatpush.msra.mxu0 0.0
        %3925 = vmatpush.msra.mxu0 %v3908
        %3926 = vmatmul.f32.gmra.mxu0 %v468
        %v3927 = vpop.f32.mrf.mxu0
        %v3928 = vadd.f32 0.0, %v3927
        %3929 = vdwg.mxu0
        %v3930 = vadd.f32 %v3905, %v3928
        %v3931 = vadd.f32 %v3930, %v496
        %vm3932 = vcmp.ge.f32.partialorder %v3931, 0.0
        %v3933 = vmul.f32 %v3931, 0.01
        %v3934 = vsel %vm3932, %v3931, %v3933
        %v3936 = vrot.slane %v3934, 1
        %v3937 = vrot.slane %v3934, 2
        %v3938 = vrot.slane %v3934, 3
        %v3939 = vrot.slane %v3934, 4
        %v3940 = vrot.slane %v3934, 5
        %v3941 = vrot.slane %v3934, 6
        %v3942 = vrot.slane %v3934, 7
        %3950 = vst.msk [vmem:[%s177 + $0xc] sm:$0x1] %vm517, %v3934
        %3951 = vst.msk [vmem:[%s177 + $0x1c] sm:$0x1] %vm517, %v3936
        %3952 = vst.msk [vmem:[%s177 + $0x2c] sm:$0x1] %vm517, %v3937
        %3953 = vst.msk [vmem:[%s177 + $0x3c] sm:$0x1] %vm517, %v3938
        %3954 = vst.msk [vmem:[%s177 + $0x4c] sm:$0x1] %vm517, %v3939
        %3955 = vst.msk [vmem:[%s177 + $0x5c] sm:$0x1] %vm517, %v3940
        %3956 = vst.msk [vmem:[%s177 + $0x6c] sm:$0x1] %vm517, %v3941
        %3957 = vst.msk [vmem:[%s177 + $0x7c] sm:$0x1] %vm517, %v3942
        %v3958 = vld [vmem:[%s182 + $0xd] sm:$0x1]
        %v3959 = vld [vmem:[%s182 + $0x25] sm:$0x1]
        %v3960 = vld [vmem:[%s182 + $0x3d] sm:$0x1]
        %v3961 = vld [vmem:[%s182 + $0x55] sm:$0x1]
        %v3966 = vrot.slane %v3959, 7
        %v3967 = vsel %vm211, %v3966, %v3958
        %v3968 = vrot.slane %v3960, 6
        %v3969 = vsel %vm214, %v3968, %v3967
        %v3970 = vrot.slane %v3961, 5
        %v3971 = vsel %vm217, %v3970, %v3969
        %3972 = vrot.lane.b32.xlu0 %v3971, 127
        %v3973 = vpop.permute.xlu0 %3972
        %v3974 = vsel %vm225, %v3973, 0
        %3976 = vmatpush.msra.mxu0 0.0
        %3977 = vmatpush.msra.mxu0 0.0
        %3978 = vmatpush.msra.mxu0 0.0
        %3979 = vmatpush.msra.mxu0 0.0
        %3980 = vmatpush.msra.mxu0 0.0
        %3981 = vmatpush.msra.mxu0 0.0
        %3982 = vmatpush.msra.mxu0 0.0
        %3983 = vmatpush.msra.mxu0 0.0
        %3984 = vmatpush.msra.mxu0 0.0
        %3985 = vmatpush.msra.mxu0 0.0
        %3986 = vmatpush.msra.mxu0 0.0
        %3987 = vmatpush.msra.mxu0 0.0
        %3988 = vmatpush.msra.mxu0 0.0
        %3989 = vmatpush.msra.mxu0 0.0
        %3990 = vmatpush.msra.mxu0 0.0
        %3991 = vmatpush.msra.mxu0 %v3974
        %3992 = vmatmul.f32.gmra.mxu0 %v223
        %v3993 = vpop.f32.mrf.mxu0
        %v3994 = vadd.f32 0.0, %v3993
        %3995 = vdwg.mxu0
        %v3996 = vsel %vm225, %v3971, 0
        %3998 = vmatpush.msra.mxu0 0.0
        %3999 = vmatpush.msra.mxu0 0.0
        %4000 = vmatpush.msra.mxu0 0.0
        %4001 = vmatpush.msra.mxu0 0.0
        %4002 = vmatpush.msra.mxu0 0.0
        %4003 = vmatpush.msra.mxu0 0.0
        %4004 = vmatpush.msra.mxu0 0.0
        %4005 = vmatpush.msra.mxu0 0.0
        %4006 = vmatpush.msra.mxu0 0.0
        %4007 = vmatpush.msra.mxu0 0.0
        %4008 = vmatpush.msra.mxu0 0.0
        %4009 = vmatpush.msra.mxu0 0.0
        %4010 = vmatpush.msra.mxu0 0.0
        %4011 = vmatpush.msra.mxu0 0.0
        %4012 = vmatpush.msra.mxu0 0.0
        %4013 = vmatpush.msra.mxu0 %v3996
        %4014 = vmatmul.f32.gmra.mxu0 %v249
        %v4015 = vpop.f32.mrf.mxu0
        %v4016 = vadd.f32 %v3994, %v4015
        %4017 = vdwg.mxu0
        %4018 = vrot.lane.b32.xlu0 %v3971, 126
        %v4019 = vpop.permute.xlu0 %4018
        %v4020 = vsel %vm225, %v4019, 0
        %4022 = vmatpush.msra.mxu0 0.0
        %4023 = vmatpush.msra.mxu0 0.0
        %4024 = vmatpush.msra.mxu0 0.0
        %4025 = vmatpush.msra.mxu0 0.0
        %4026 = vmatpush.msra.mxu0 0.0
        %4027 = vmatpush.msra.mxu0 0.0
        %4028 = vmatpush.msra.mxu0 0.0
        %4029 = vmatpush.msra.mxu0 0.0
        %4030 = vmatpush.msra.mxu0 0.0
        %4031 = vmatpush.msra.mxu0 0.0
        %4032 = vmatpush.msra.mxu0 0.0
        %4033 = vmatpush.msra.mxu0 0.0
        %4034 = vmatpush.msra.mxu0 0.0
        %4035 = vmatpush.msra.mxu0 0.0
        %4036 = vmatpush.msra.mxu0 0.0
        %4037 = vmatpush.msra.mxu0 %v4020
        %4038 = vmatmul.f32.gmra.mxu0 %v276
        %v4039 = vpop.f32.mrf.mxu0
        %v4040 = vadd.f32 0.0, %v4039
        %4041 = vdwg.mxu0
        %v4042 = vadd.f32 %v4016, %v4040
        %v4043 = vld [vmem:[%s182 + $0xe] sm:$0x1]
        %v4044 = vld [vmem:[%s182 + $0x26] sm:$0x1]
        %v4045 = vld [vmem:[%s182 + $0x3e] sm:$0x1]
        %v4046 = vld [vmem:[%s182 + $0x56] sm:$0x1]
        %v4051 = vrot.slane %v4044, 7
        %v4052 = vsel %vm211, %v4051, %v4043
        %v4053 = vrot.slane %v4045, 6
        %v4054 = vsel %vm214, %v4053, %v4052
        %v4055 = vrot.slane %v4046, 5
        %v4056 = vsel %vm217, %v4055, %v4054
        %v4057 = vsel %vm225, %v4056, 0
        %4059 = vmatpush.msra.mxu0 0.0
        %4060 = vmatpush.msra.mxu0 0.0
        %4061 = vmatpush.msra.mxu0 0.0
        %4062 = vmatpush.msra.mxu0 0.0
        %4063 = vmatpush.msra.mxu0 0.0
        %4064 = vmatpush.msra.mxu0 0.0
        %4065 = vmatpush.msra.mxu0 0.0
        %4066 = vmatpush.msra.mxu0 0.0
        %4067 = vmatpush.msra.mxu0 0.0
        %4068 = vmatpush.msra.mxu0 0.0
        %4069 = vmatpush.msra.mxu0 0.0
        %4070 = vmatpush.msra.mxu0 0.0
        %4071 = vmatpush.msra.mxu0 0.0
        %4072 = vmatpush.msra.mxu0 0.0
        %4073 = vmatpush.msra.mxu0 0.0
        %4074 = vmatpush.msra.mxu0 %v4057
        %4075 = vmatmul.f32.gmra.mxu0 %v316
        %v4076 = vpop.f32.mrf.mxu0
        %v4077 = vadd.f32 0.0, %v4076
        %4078 = vdwg.mxu0
        %v4079 = vadd.f32 %v4042, %v4077
        %4080 = vrot.lane.b32.xlu0 %v4056, 127
        %v4081 = vpop.permute.xlu0 %4080
        %v4082 = vsel %vm225, %v4081, 0
        %4084 = vmatpush.msra.mxu0 0.0
        %4085 = vmatpush.msra.mxu0 0.0
        %4086 = vmatpush.msra.mxu0 0.0
        %4087 = vmatpush.msra.mxu0 0.0
        %4088 = vmatpush.msra.mxu0 0.0
        %4089 = vmatpush.msra.mxu0 0.0
        %4090 = vmatpush.msra.mxu0 0.0
        %4091 = vmatpush.msra.mxu0 0.0
        %4092 = vmatpush.msra.mxu0 0.0
        %4093 = vmatpush.msra.mxu0 0.0
        %4094 = vmatpush.msra.mxu0 0.0
        %4095 = vmatpush.msra.mxu0 0.0
        %4096 = vmatpush.msra.mxu0 0.0
        %4097 = vmatpush.msra.mxu0 0.0
        %4098 = vmatpush.msra.mxu0 0.0
        %4099 = vmatpush.msra.mxu0 %v4082
        %4100 = vmatmul.f32.gmra.mxu0 %v344
        %v4101 = vpop.f32.mrf.mxu0
        %v4102 = vadd.f32 0.0, %v4101
        %4103 = vdwg.mxu0
        %v4104 = vadd.f32 %v4079, %v4102
        %4105 = vrot.lane.b32.xlu0 %v4056, 126
        %v4106 = vpop.permute.xlu0 %4105
        %v4107 = vsel %vm225, %v4106, 0
        %4109 = vmatpush.msra.mxu0 0.0
        %4110 = vmatpush.msra.mxu0 0.0
        %4111 = vmatpush.msra.mxu0 0.0
        %4112 = vmatpush.msra.mxu0 0.0
        %4113 = vmatpush.msra.mxu0 0.0
        %4114 = vmatpush.msra.mxu0 0.0
        %4115 = vmatpush.msra.mxu0 0.0
        %4116 = vmatpush.msra.mxu0 0.0
        %4117 = vmatpush.msra.mxu0 0.0
        %4118 = vmatpush.msra.mxu0 0.0
        %4119 = vmatpush.msra.mxu0 0.0
        %4120 = vmatpush.msra.mxu0 0.0
        %4121 = vmatpush.msra.mxu0 0.0
        %4122 = vmatpush.msra.mxu0 0.0
        %4123 = vmatpush.msra.mxu0 0.0
        %4124 = vmatpush.msra.mxu0 %v4107
        %4125 = vmatmul.f32.gmra.mxu0 %v372
        %v4126 = vpop.f32.mrf.mxu0
        %v4127 = vadd.f32 0.0, %v4126
        %4128 = vdwg.mxu0
        %v4129 = vadd.f32 %v4104, %v4127
        %v4130 = vld [vmem:[%s182 + $0xf] sm:$0x1]
        %v4131 = vld [vmem:[%s182 + $0x27] sm:$0x1]
        %v4132 = vld [vmem:[%s182 + $0x3f] sm:$0x1]
        %v4133 = vld [vmem:[%s182 + $0x57] sm:$0x1]
        %v4138 = vrot.slane %v4131, 7
        %v4139 = vsel %vm211, %v4138, %v4130
        %v4140 = vrot.slane %v4132, 6
        %v4141 = vsel %vm214, %v4140, %v4139
        %v4142 = vrot.slane %v4133, 5
        %v4143 = vsel %vm217, %v4142, %v4141
        %v4144 = vsel %vm225, %v4143, 0
        %4146 = vmatpush.msra.mxu0 0.0
        %4147 = vmatpush.msra.mxu0 0.0
        %4148 = vmatpush.msra.mxu0 0.0
        %4149 = vmatpush.msra.mxu0 0.0
        %4150 = vmatpush.msra.mxu0 0.0
        %4151 = vmatpush.msra.mxu0 0.0
        %4152 = vmatpush.msra.mxu0 0.0
        %4153 = vmatpush.msra.mxu0 0.0
        %4154 = vmatpush.msra.mxu0 0.0
        %4155 = vmatpush.msra.mxu0 0.0
        %4156 = vmatpush.msra.mxu0 0.0
        %4157 = vmatpush.msra.mxu0 0.0
        %4158 = vmatpush.msra.mxu0 0.0
        %4159 = vmatpush.msra.mxu0 0.0
        %4160 = vmatpush.msra.mxu0 0.0
        %4161 = vmatpush.msra.mxu0 %v4144
        %4162 = vmatmul.f32.gmra.mxu0 %v412
        %v4163 = vpop.f32.mrf.mxu0
        %v4164 = vadd.f32 0.0, %v4163
        %4165 = vdwg.mxu0
        %v4166 = vadd.f32 %v4129, %v4164
        %4167 = vrot.lane.b32.xlu0 %v4143, 127
        %v4168 = vpop.permute.xlu0 %4167
        %v4169 = vsel %vm225, %v4168, 0
        %4171 = vmatpush.msra.mxu0 0.0
        %4172 = vmatpush.msra.mxu0 0.0
        %4173 = vmatpush.msra.mxu0 0.0
        %4174 = vmatpush.msra.mxu0 0.0
        %4175 = vmatpush.msra.mxu0 0.0
        %4176 = vmatpush.msra.mxu0 0.0
        %4177 = vmatpush.msra.mxu0 0.0
        %4178 = vmatpush.msra.mxu0 0.0
        %4179 = vmatpush.msra.mxu0 0.0
        %4180 = vmatpush.msra.mxu0 0.0
        %4181 = vmatpush.msra.mxu0 0.0
        %4182 = vmatpush.msra.mxu0 0.0
        %4183 = vmatpush.msra.mxu0 0.0
        %4184 = vmatpush.msra.mxu0 0.0
        %4185 = vmatpush.msra.mxu0 0.0
        %4186 = vmatpush.msra.mxu0 %v4169
        %4187 = vmatmul.f32.gmra.mxu0 %v440
        %v4188 = vpop.f32.mrf.mxu0
        %v4189 = vadd.f32 0.0, %v4188
        %4190 = vdwg.mxu0
        %v4191 = vadd.f32 %v4166, %v4189
        %4192 = vrot.lane.b32.xlu0 %v4143, 126
        %v4193 = vpop.permute.xlu0 %4192
        %v4194 = vsel %vm225, %v4193, 0
        %4196 = vmatpush.msra.mxu0 0.0
        %4197 = vmatpush.msra.mxu0 0.0
        %4198 = vmatpush.msra.mxu0 0.0
        %4199 = vmatpush.msra.mxu0 0.0
        %4200 = vmatpush.msra.mxu0 0.0
        %4201 = vmatpush.msra.mxu0 0.0
        %4202 = vmatpush.msra.mxu0 0.0
        %4203 = vmatpush.msra.mxu0 0.0
        %4204 = vmatpush.msra.mxu0 0.0
        %4205 = vmatpush.msra.mxu0 0.0
        %4206 = vmatpush.msra.mxu0 0.0
        %4207 = vmatpush.msra.mxu0 0.0
        %4208 = vmatpush.msra.mxu0 0.0
        %4209 = vmatpush.msra.mxu0 0.0
        %4210 = vmatpush.msra.mxu0 0.0
        %4211 = vmatpush.msra.mxu0 %v4194
        %4212 = vmatmul.f32.gmra.mxu0 %v468
        %v4213 = vpop.f32.mrf.mxu0
        %v4214 = vadd.f32 0.0, %v4213
        %4215 = vdwg.mxu0
        %v4216 = vadd.f32 %v4191, %v4214
        %v4217 = vadd.f32 %v4216, %v496
        %vm4218 = vcmp.ge.f32.partialorder %v4217, 0.0
        %v4219 = vmul.f32 %v4217, 0.01
        %v4220 = vsel %vm4218, %v4217, %v4219
        %v4222 = vrot.slane %v4220, 1
        %v4223 = vrot.slane %v4220, 2
        %v4224 = vrot.slane %v4220, 3
        %v4225 = vrot.slane %v4220, 4
        %v4226 = vrot.slane %v4220, 5
        %v4227 = vrot.slane %v4220, 6
        %v4228 = vrot.slane %v4220, 7
        %4236 = vst.msk [vmem:[%s177 + $0xd] sm:$0x1] %vm517, %v4220
        %4237 = vst.msk [vmem:[%s177 + $0x1d] sm:$0x1] %vm517, %v4222
        %4238 = vst.msk [vmem:[%s177 + $0x2d] sm:$0x1] %vm517, %v4223
        %4239 = vst.msk [vmem:[%s177 + $0x3d] sm:$0x1] %vm517, %v4224
        %4240 = vst.msk [vmem:[%s177 + $0x4d] sm:$0x1] %vm517, %v4225
        %4241 = vst.msk [vmem:[%s177 + $0x5d] sm:$0x1] %vm517, %v4226
        %4242 = vst.msk [vmem:[%s177 + $0x6d] sm:$0x1] %vm517, %v4227
        %4243 = vst.msk [vmem:[%s177 + $0x7d] sm:$0x1] %vm517, %v4228
        %v4244 = vld [vmem:[%s182 + $0xe] sm:$0x1]
        %v4245 = vld [vmem:[%s182 + $0x26] sm:$0x1]
        %v4246 = vld [vmem:[%s182 + $0x3e] sm:$0x1]
        %v4247 = vld [vmem:[%s182 + $0x56] sm:$0x1]
        %v4252 = vrot.slane %v4245, 7
        %v4253 = vsel %vm211, %v4252, %v4244
        %v4254 = vrot.slane %v4246, 6
        %v4255 = vsel %vm214, %v4254, %v4253
        %v4256 = vrot.slane %v4247, 5
        %v4257 = vsel %vm217, %v4256, %v4255
        %4258 = vrot.lane.b32.xlu0 %v4257, 127
        %v4259 = vpop.permute.xlu0 %4258
        %v4260 = vsel %vm225, %v4259, 0
        %4262 = vmatpush.msra.mxu0 0.0
        %4263 = vmatpush.msra.mxu0 0.0
        %4264 = vmatpush.msra.mxu0 0.0
        %4265 = vmatpush.msra.mxu0 0.0
        %4266 = vmatpush.msra.mxu0 0.0
        %4267 = vmatpush.msra.mxu0 0.0
        %4268 = vmatpush.msra.mxu0 0.0
        %4269 = vmatpush.msra.mxu0 0.0
        %4270 = vmatpush.msra.mxu0 0.0
        %4271 = vmatpush.msra.mxu0 0.0
        %4272 = vmatpush.msra.mxu0 0.0
        %4273 = vmatpush.msra.mxu0 0.0
        %4274 = vmatpush.msra.mxu0 0.0
        %4275 = vmatpush.msra.mxu0 0.0
        %4276 = vmatpush.msra.mxu0 0.0
        %4277 = vmatpush.msra.mxu0 %v4260
        %4278 = vmatmul.f32.gmra.mxu0 %v223
        %v4279 = vpop.f32.mrf.mxu0
        %v4280 = vadd.f32 0.0, %v4279
        %4281 = vdwg.mxu0
        %v4282 = vsel %vm225, %v4257, 0
        %4284 = vmatpush.msra.mxu0 0.0
        %4285 = vmatpush.msra.mxu0 0.0
        %4286 = vmatpush.msra.mxu0 0.0
        %4287 = vmatpush.msra.mxu0 0.0
        %4288 = vmatpush.msra.mxu0 0.0
        %4289 = vmatpush.msra.mxu0 0.0
        %4290 = vmatpush.msra.mxu0 0.0
        %4291 = vmatpush.msra.mxu0 0.0
        %4292 = vmatpush.msra.mxu0 0.0
        %4293 = vmatpush.msra.mxu0 0.0
        %4294 = vmatpush.msra.mxu0 0.0
        %4295 = vmatpush.msra.mxu0 0.0
        %4296 = vmatpush.msra.mxu0 0.0
        %4297 = vmatpush.msra.mxu0 0.0
        %4298 = vmatpush.msra.mxu0 0.0
        %4299 = vmatpush.msra.mxu0 %v4282
        %4300 = vmatmul.f32.gmra.mxu0 %v249
        %v4301 = vpop.f32.mrf.mxu0
        %v4302 = vadd.f32 %v4280, %v4301
        %4303 = vdwg.mxu0
        %4304 = vrot.lane.b32.xlu0 %v4257, 126
        %v4305 = vpop.permute.xlu0 %4304
        %v4306 = vsel %vm225, %v4305, 0
        %4308 = vmatpush.msra.mxu0 0.0
        %4309 = vmatpush.msra.mxu0 0.0
        %4310 = vmatpush.msra.mxu0 0.0
        %4311 = vmatpush.msra.mxu0 0.0
        %4312 = vmatpush.msra.mxu0 0.0
        %4313 = vmatpush.msra.mxu0 0.0
        %4314 = vmatpush.msra.mxu0 0.0
        %4315 = vmatpush.msra.mxu0 0.0
        %4316 = vmatpush.msra.mxu0 0.0
        %4317 = vmatpush.msra.mxu0 0.0
        %4318 = vmatpush.msra.mxu0 0.0
        %4319 = vmatpush.msra.mxu0 0.0
        %4320 = vmatpush.msra.mxu0 0.0
        %4321 = vmatpush.msra.mxu0 0.0
        %4322 = vmatpush.msra.mxu0 0.0
        %4323 = vmatpush.msra.mxu0 %v4306
        %4324 = vmatmul.f32.gmra.mxu0 %v276
        %v4325 = vpop.f32.mrf.mxu0
        %v4326 = vadd.f32 0.0, %v4325
        %4327 = vdwg.mxu0
        %v4328 = vadd.f32 %v4302, %v4326
        %v4329 = vld [vmem:[%s182 + $0xf] sm:$0x1]
        %v4330 = vld [vmem:[%s182 + $0x27] sm:$0x1]
        %v4331 = vld [vmem:[%s182 + $0x3f] sm:$0x1]
        %v4332 = vld [vmem:[%s182 + $0x57] sm:$0x1]
        %v4337 = vrot.slane %v4330, 7
        %v4338 = vsel %vm211, %v4337, %v4329
        %v4339 = vrot.slane %v4331, 6
        %v4340 = vsel %vm214, %v4339, %v4338
        %v4341 = vrot.slane %v4332, 5
        %v4342 = vsel %vm217, %v4341, %v4340
        %v4343 = vsel %vm225, %v4342, 0
        %4345 = vmatpush.msra.mxu0 0.0
        %4346 = vmatpush.msra.mxu0 0.0
        %4347 = vmatpush.msra.mxu0 0.0
        %4348 = vmatpush.msra.mxu0 0.0
        %4349 = vmatpush.msra.mxu0 0.0
        %4350 = vmatpush.msra.mxu0 0.0
        %4351 = vmatpush.msra.mxu0 0.0
        %4352 = vmatpush.msra.mxu0 0.0
        %4353 = vmatpush.msra.mxu0 0.0
        %4354 = vmatpush.msra.mxu0 0.0
        %4355 = vmatpush.msra.mxu0 0.0
        %4356 = vmatpush.msra.mxu0 0.0
        %4357 = vmatpush.msra.mxu0 0.0
        %4358 = vmatpush.msra.mxu0 0.0
        %4359 = vmatpush.msra.mxu0 0.0
        %4360 = vmatpush.msra.mxu0 %v4343
        %4361 = vmatmul.f32.gmra.mxu0 %v316
        %v4362 = vpop.f32.mrf.mxu0
        %v4363 = vadd.f32 0.0, %v4362
        %4364 = vdwg.mxu0
        %v4365 = vadd.f32 %v4328, %v4363
        %4366 = vrot.lane.b32.xlu0 %v4342, 127
        %v4367 = vpop.permute.xlu0 %4366
        %v4368 = vsel %vm225, %v4367, 0
        %4370 = vmatpush.msra.mxu0 0.0
        %4371 = vmatpush.msra.mxu0 0.0
        %4372 = vmatpush.msra.mxu0 0.0
        %4373 = vmatpush.msra.mxu0 0.0
        %4374 = vmatpush.msra.mxu0 0.0
        %4375 = vmatpush.msra.mxu0 0.0
        %4376 = vmatpush.msra.mxu0 0.0
        %4377 = vmatpush.msra.mxu0 0.0
        %4378 = vmatpush.msra.mxu0 0.0
        %4379 = vmatpush.msra.mxu0 0.0
        %4380 = vmatpush.msra.mxu0 0.0
        %4381 = vmatpush.msra.mxu0 0.0
        %4382 = vmatpush.msra.mxu0 0.0
        %4383 = vmatpush.msra.mxu0 0.0
        %4384 = vmatpush.msra.mxu0 0.0
        %4385 = vmatpush.msra.mxu0 %v4368
        %4386 = vmatmul.f32.gmra.mxu0 %v344
        %v4387 = vpop.f32.mrf.mxu0
        %v4388 = vadd.f32 0.0, %v4387
        %4389 = vdwg.mxu0
        %v4390 = vadd.f32 %v4365, %v4388
        %4391 = vrot.lane.b32.xlu0 %v4342, 126
        %v4392 = vpop.permute.xlu0 %4391
        %v4393 = vsel %vm225, %v4392, 0
        %4395 = vmatpush.msra.mxu0 0.0
        %4396 = vmatpush.msra.mxu0 0.0
        %4397 = vmatpush.msra.mxu0 0.0
        %4398 = vmatpush.msra.mxu0 0.0
        %4399 = vmatpush.msra.mxu0 0.0
        %4400 = vmatpush.msra.mxu0 0.0
        %4401 = vmatpush.msra.mxu0 0.0
        %4402 = vmatpush.msra.mxu0 0.0
        %4403 = vmatpush.msra.mxu0 0.0
        %4404 = vmatpush.msra.mxu0 0.0
        %4405 = vmatpush.msra.mxu0 0.0
        %4406 = vmatpush.msra.mxu0 0.0
        %4407 = vmatpush.msra.mxu0 0.0
        %4408 = vmatpush.msra.mxu0 0.0
        %4409 = vmatpush.msra.mxu0 0.0
        %4410 = vmatpush.msra.mxu0 %v4393
        %4411 = vmatmul.f32.gmra.mxu0 %v372
        %v4412 = vpop.f32.mrf.mxu0
        %v4413 = vadd.f32 0.0, %v4412
        %4414 = vdwg.mxu0
        %v4415 = vadd.f32 %v4390, %v4413
        %v4416 = vld [vmem:[%s182 + $0x10] sm:$0x1]
        %v4417 = vld [vmem:[%s182 + $0x28] sm:$0x1]
        %v4418 = vld [vmem:[%s182 + $0x40] sm:$0x1]
        %v4419 = vld [vmem:[%s182 + $0x58] sm:$0x1]
        %v4424 = vrot.slane %v4417, 7
        %v4425 = vsel %vm211, %v4424, %v4416
        %v4426 = vrot.slane %v4418, 6
        %v4427 = vsel %vm214, %v4426, %v4425
        %v4428 = vrot.slane %v4419, 5
        %v4429 = vsel %vm217, %v4428, %v4427
        %v4430 = vsel %vm225, %v4429, 0
        %4432 = vmatpush.msra.mxu0 0.0
        %4433 = vmatpush.msra.mxu0 0.0
        %4434 = vmatpush.msra.mxu0 0.0
        %4435 = vmatpush.msra.mxu0 0.0
        %4436 = vmatpush.msra.mxu0 0.0
        %4437 = vmatpush.msra.mxu0 0.0
        %4438 = vmatpush.msra.mxu0 0.0
        %4439 = vmatpush.msra.mxu0 0.0
        %4440 = vmatpush.msra.mxu0 0.0
        %4441 = vmatpush.msra.mxu0 0.0
        %4442 = vmatpush.msra.mxu0 0.0
        %4443 = vmatpush.msra.mxu0 0.0
        %4444 = vmatpush.msra.mxu0 0.0
        %4445 = vmatpush.msra.mxu0 0.0
        %4446 = vmatpush.msra.mxu0 0.0
        %4447 = vmatpush.msra.mxu0 %v4430
        %4448 = vmatmul.f32.gmra.mxu0 %v412
        %v4449 = vpop.f32.mrf.mxu0
        %v4450 = vadd.f32 0.0, %v4449
        %4451 = vdwg.mxu0
        %v4452 = vadd.f32 %v4415, %v4450
        %4453 = vrot.lane.b32.xlu0 %v4429, 127
        %v4454 = vpop.permute.xlu0 %4453
        %v4455 = vsel %vm225, %v4454, 0
        %4457 = vmatpush.msra.mxu0 0.0
        %4458 = vmatpush.msra.mxu0 0.0
        %4459 = vmatpush.msra.mxu0 0.0
        %4460 = vmatpush.msra.mxu0 0.0
        %4461 = vmatpush.msra.mxu0 0.0
        %4462 = vmatpush.msra.mxu0 0.0
        %4463 = vmatpush.msra.mxu0 0.0
        %4464 = vmatpush.msra.mxu0 0.0
        %4465 = vmatpush.msra.mxu0 0.0
        %4466 = vmatpush.msra.mxu0 0.0
        %4467 = vmatpush.msra.mxu0 0.0
        %4468 = vmatpush.msra.mxu0 0.0
        %4469 = vmatpush.msra.mxu0 0.0
        %4470 = vmatpush.msra.mxu0 0.0
        %4471 = vmatpush.msra.mxu0 0.0
        %4472 = vmatpush.msra.mxu0 %v4455
        %4473 = vmatmul.f32.gmra.mxu0 %v440
        %v4474 = vpop.f32.mrf.mxu0
        %v4475 = vadd.f32 0.0, %v4474
        %4476 = vdwg.mxu0
        %v4477 = vadd.f32 %v4452, %v4475
        %4478 = vrot.lane.b32.xlu0 %v4429, 126
        %v4479 = vpop.permute.xlu0 %4478
        %v4480 = vsel %vm225, %v4479, 0
        %4482 = vmatpush.msra.mxu0 0.0
        %4483 = vmatpush.msra.mxu0 0.0
        %4484 = vmatpush.msra.mxu0 0.0
        %4485 = vmatpush.msra.mxu0 0.0
        %4486 = vmatpush.msra.mxu0 0.0
        %4487 = vmatpush.msra.mxu0 0.0
        %4488 = vmatpush.msra.mxu0 0.0
        %4489 = vmatpush.msra.mxu0 0.0
        %4490 = vmatpush.msra.mxu0 0.0
        %4491 = vmatpush.msra.mxu0 0.0
        %4492 = vmatpush.msra.mxu0 0.0
        %4493 = vmatpush.msra.mxu0 0.0
        %4494 = vmatpush.msra.mxu0 0.0
        %4495 = vmatpush.msra.mxu0 0.0
        %4496 = vmatpush.msra.mxu0 0.0
        %4497 = vmatpush.msra.mxu0 %v4480
        %4498 = vmatmul.f32.gmra.mxu0 %v468
        %v4499 = vpop.f32.mrf.mxu0
        %v4500 = vadd.f32 0.0, %v4499
        %4501 = vdwg.mxu0
        %v4502 = vadd.f32 %v4477, %v4500
        %v4503 = vadd.f32 %v4502, %v496
        %vm4504 = vcmp.ge.f32.partialorder %v4503, 0.0
        %v4505 = vmul.f32 %v4503, 0.01
        %v4506 = vsel %vm4504, %v4503, %v4505
        %v4508 = vrot.slane %v4506, 1
        %v4509 = vrot.slane %v4506, 2
        %v4510 = vrot.slane %v4506, 3
        %v4511 = vrot.slane %v4506, 4
        %v4512 = vrot.slane %v4506, 5
        %v4513 = vrot.slane %v4506, 6
        %v4514 = vrot.slane %v4506, 7
        %4522 = vst.msk [vmem:[%s177 + $0xe] sm:$0x1] %vm517, %v4506
        %4523 = vst.msk [vmem:[%s177 + $0x1e] sm:$0x1] %vm517, %v4508
        %4524 = vst.msk [vmem:[%s177 + $0x2e] sm:$0x1] %vm517, %v4509
        %4525 = vst.msk [vmem:[%s177 + $0x3e] sm:$0x1] %vm517, %v4510
        %4526 = vst.msk [vmem:[%s177 + $0x4e] sm:$0x1] %vm517, %v4511
        %4527 = vst.msk [vmem:[%s177 + $0x5e] sm:$0x1] %vm517, %v4512
        %4528 = vst.msk [vmem:[%s177 + $0x6e] sm:$0x1] %vm517, %v4513
        %4529 = vst.msk [vmem:[%s177 + $0x7e] sm:$0x1] %vm517, %v4514
        %v4530 = vld [vmem:[%s182 + $0xf] sm:$0x1]
        %v4531 = vld [vmem:[%s182 + $0x27] sm:$0x1]
        %v4532 = vld [vmem:[%s182 + $0x3f] sm:$0x1]
        %v4533 = vld [vmem:[%s182 + $0x57] sm:$0x1]
        %v4538 = vrot.slane %v4531, 7
        %v4539 = vsel %vm211, %v4538, %v4530
        %v4540 = vrot.slane %v4532, 6
        %v4541 = vsel %vm214, %v4540, %v4539
        %v4542 = vrot.slane %v4533, 5
        %v4543 = vsel %vm217, %v4542, %v4541
        %4544 = vrot.lane.b32.xlu0 %v4543, 127
        %v4545 = vpop.permute.xlu0 %4544
        %v4546 = vsel %vm225, %v4545, 0
        %4548 = vmatpush.msra.mxu0 0.0
        %4549 = vmatpush.msra.mxu0 0.0
        %4550 = vmatpush.msra.mxu0 0.0
        %4551 = vmatpush.msra.mxu0 0.0
        %4552 = vmatpush.msra.mxu0 0.0
        %4553 = vmatpush.msra.mxu0 0.0
        %4554 = vmatpush.msra.mxu0 0.0
        %4555 = vmatpush.msra.mxu0 0.0
        %4556 = vmatpush.msra.mxu0 0.0
        %4557 = vmatpush.msra.mxu0 0.0
        %4558 = vmatpush.msra.mxu0 0.0
        %4559 = vmatpush.msra.mxu0 0.0
        %4560 = vmatpush.msra.mxu0 0.0
        %4561 = vmatpush.msra.mxu0 0.0
        %4562 = vmatpush.msra.mxu0 0.0
        %4563 = vmatpush.msra.mxu0 %v4546
        %4564 = vmatmul.f32.gmra.mxu0 %v223
        %v4565 = vpop.f32.mrf.mxu0
        %v4566 = vadd.f32 0.0, %v4565
        %4567 = vdwg.mxu0
        %v4568 = vsel %vm225, %v4543, 0
        %4570 = vmatpush.msra.mxu0 0.0
        %4571 = vmatpush.msra.mxu0 0.0
        %4572 = vmatpush.msra.mxu0 0.0
        %4573 = vmatpush.msra.mxu0 0.0
        %4574 = vmatpush.msra.mxu0 0.0
        %4575 = vmatpush.msra.mxu0 0.0
        %4576 = vmatpush.msra.mxu0 0.0
        %4577 = vmatpush.msra.mxu0 0.0
        %4578 = vmatpush.msra.mxu0 0.0
        %4579 = vmatpush.msra.mxu0 0.0
        %4580 = vmatpush.msra.mxu0 0.0
        %4581 = vmatpush.msra.mxu0 0.0
        %4582 = vmatpush.msra.mxu0 0.0
        %4583 = vmatpush.msra.mxu0 0.0
        %4584 = vmatpush.msra.mxu0 0.0
        %4585 = vmatpush.msra.mxu0 %v4568
        %4586 = vmatmul.f32.gmra.mxu0 %v249
        %v4587 = vpop.f32.mrf.mxu0
        %v4588 = vadd.f32 %v4566, %v4587
        %4589 = vdwg.mxu0
        %4590 = vrot.lane.b32.xlu0 %v4543, 126
        %v4591 = vpop.permute.xlu0 %4590
        %v4592 = vsel %vm225, %v4591, 0
        %4594 = vmatpush.msra.mxu0 0.0
        %4595 = vmatpush.msra.mxu0 0.0
        %4596 = vmatpush.msra.mxu0 0.0
        %4597 = vmatpush.msra.mxu0 0.0
        %4598 = vmatpush.msra.mxu0 0.0
        %4599 = vmatpush.msra.mxu0 0.0
        %4600 = vmatpush.msra.mxu0 0.0
        %4601 = vmatpush.msra.mxu0 0.0
        %4602 = vmatpush.msra.mxu0 0.0
        %4603 = vmatpush.msra.mxu0 0.0
        %4604 = vmatpush.msra.mxu0 0.0
        %4605 = vmatpush.msra.mxu0 0.0
        %4606 = vmatpush.msra.mxu0 0.0
        %4607 = vmatpush.msra.mxu0 0.0
        %4608 = vmatpush.msra.mxu0 0.0
        %4609 = vmatpush.msra.mxu0 %v4592
        %4610 = vmatmul.f32.gmra.mxu0 %v276
        %v4611 = vpop.f32.mrf.mxu0
        %v4612 = vadd.f32 0.0, %v4611
        %4613 = vdwg.mxu0
        %v4614 = vadd.f32 %v4588, %v4612
        %v4615 = vld [vmem:[%s182 + $0x10] sm:$0x1]
        %v4616 = vld [vmem:[%s182 + $0x28] sm:$0x1]
        %v4617 = vld [vmem:[%s182 + $0x40] sm:$0x1]
        %v4618 = vld [vmem:[%s182 + $0x58] sm:$0x1]
        %v4623 = vrot.slane %v4616, 7
        %v4624 = vsel %vm211, %v4623, %v4615
        %v4625 = vrot.slane %v4617, 6
        %v4626 = vsel %vm214, %v4625, %v4624
        %v4627 = vrot.slane %v4618, 5
        %v4628 = vsel %vm217, %v4627, %v4626
        %v4629 = vsel %vm225, %v4628, 0
        %4631 = vmatpush.msra.mxu0 0.0
        %4632 = vmatpush.msra.mxu0 0.0
        %4633 = vmatpush.msra.mxu0 0.0
        %4634 = vmatpush.msra.mxu0 0.0
        %4635 = vmatpush.msra.mxu0 0.0
        %4636 = vmatpush.msra.mxu0 0.0
        %4637 = vmatpush.msra.mxu0 0.0
        %4638 = vmatpush.msra.mxu0 0.0
        %4639 = vmatpush.msra.mxu0 0.0
        %4640 = vmatpush.msra.mxu0 0.0
        %4641 = vmatpush.msra.mxu0 0.0
        %4642 = vmatpush.msra.mxu0 0.0
        %4643 = vmatpush.msra.mxu0 0.0
        %4644 = vmatpush.msra.mxu0 0.0
        %4645 = vmatpush.msra.mxu0 0.0
        %4646 = vmatpush.msra.mxu0 %v4629
        %4647 = vmatmul.f32.gmra.mxu0 %v316
        %v4648 = vpop.f32.mrf.mxu0
        %v4649 = vadd.f32 0.0, %v4648
        %4650 = vdwg.mxu0
        %v4651 = vadd.f32 %v4614, %v4649
        %4652 = vrot.lane.b32.xlu0 %v4628, 127
        %v4653 = vpop.permute.xlu0 %4652
        %v4654 = vsel %vm225, %v4653, 0
        %4656 = vmatpush.msra.mxu0 0.0
        %4657 = vmatpush.msra.mxu0 0.0
        %4658 = vmatpush.msra.mxu0 0.0
        %4659 = vmatpush.msra.mxu0 0.0
        %4660 = vmatpush.msra.mxu0 0.0
        %4661 = vmatpush.msra.mxu0 0.0
        %4662 = vmatpush.msra.mxu0 0.0
        %4663 = vmatpush.msra.mxu0 0.0
        %4664 = vmatpush.msra.mxu0 0.0
        %4665 = vmatpush.msra.mxu0 0.0
        %4666 = vmatpush.msra.mxu0 0.0
        %4667 = vmatpush.msra.mxu0 0.0
        %4668 = vmatpush.msra.mxu0 0.0
        %4669 = vmatpush.msra.mxu0 0.0
        %4670 = vmatpush.msra.mxu0 0.0
        %4671 = vmatpush.msra.mxu0 %v4654
        %4672 = vmatmul.f32.gmra.mxu0 %v344
        %v4673 = vpop.f32.mrf.mxu0
        %v4674 = vadd.f32 0.0, %v4673
        %4675 = vdwg.mxu0
        %v4676 = vadd.f32 %v4651, %v4674
        %4677 = vrot.lane.b32.xlu0 %v4628, 126
        %v4678 = vpop.permute.xlu0 %4677
        %v4679 = vsel %vm225, %v4678, 0
        %4681 = vmatpush.msra.mxu0 0.0
        %4682 = vmatpush.msra.mxu0 0.0
        %4683 = vmatpush.msra.mxu0 0.0
        %4684 = vmatpush.msra.mxu0 0.0
        %4685 = vmatpush.msra.mxu0 0.0
        %4686 = vmatpush.msra.mxu0 0.0
        %4687 = vmatpush.msra.mxu0 0.0
        %4688 = vmatpush.msra.mxu0 0.0
        %4689 = vmatpush.msra.mxu0 0.0
        %4690 = vmatpush.msra.mxu0 0.0
        %4691 = vmatpush.msra.mxu0 0.0
        %4692 = vmatpush.msra.mxu0 0.0
        %4693 = vmatpush.msra.mxu0 0.0
        %4694 = vmatpush.msra.mxu0 0.0
        %4695 = vmatpush.msra.mxu0 0.0
        %4696 = vmatpush.msra.mxu0 %v4679
        %4697 = vmatmul.f32.gmra.mxu0 %v372
        %v4698 = vpop.f32.mrf.mxu0
        %v4699 = vadd.f32 0.0, %v4698
        %4700 = vdwg.mxu0
        %v4701 = vadd.f32 %v4676, %v4699
        %v4702 = vld [vmem:[%s182 + $0x11] sm:$0x1]
        %v4703 = vld [vmem:[%s182 + $0x29] sm:$0x1]
        %v4704 = vld [vmem:[%s182 + $0x41] sm:$0x1]
        %v4705 = vld [vmem:[%s182 + $0x59] sm:$0x1]
        %v4710 = vrot.slane %v4703, 7
        %v4711 = vsel %vm211, %v4710, %v4702
        %v4712 = vrot.slane %v4704, 6
        %v4713 = vsel %vm214, %v4712, %v4711
        %v4714 = vrot.slane %v4705, 5
        %v4715 = vsel %vm217, %v4714, %v4713
        %v4716 = vsel %vm225, %v4715, 0
        %4718 = vmatpush.msra.mxu0 0.0
        %4719 = vmatpush.msra.mxu0 0.0
        %4720 = vmatpush.msra.mxu0 0.0
        %4721 = vmatpush.msra.mxu0 0.0
        %4722 = vmatpush.msra.mxu0 0.0
        %4723 = vmatpush.msra.mxu0 0.0
        %4724 = vmatpush.msra.mxu0 0.0
        %4725 = vmatpush.msra.mxu0 0.0
        %4726 = vmatpush.msra.mxu0 0.0
        %4727 = vmatpush.msra.mxu0 0.0
        %4728 = vmatpush.msra.mxu0 0.0
        %4729 = vmatpush.msra.mxu0 0.0
        %4730 = vmatpush.msra.mxu0 0.0
        %4731 = vmatpush.msra.mxu0 0.0
        %4732 = vmatpush.msra.mxu0 0.0
        %4733 = vmatpush.msra.mxu0 %v4716
        %4734 = vmatmul.f32.gmra.mxu0 %v412
        %v4735 = vpop.f32.mrf.mxu0
        %v4736 = vadd.f32 0.0, %v4735
        %4737 = vdwg.mxu0
        %v4738 = vadd.f32 %v4701, %v4736
        %4739 = vrot.lane.b32.xlu0 %v4715, 127
        %v4740 = vpop.permute.xlu0 %4739
        %v4741 = vsel %vm225, %v4740, 0
        %4743 = vmatpush.msra.mxu0 0.0
        %4744 = vmatpush.msra.mxu0 0.0
        %4745 = vmatpush.msra.mxu0 0.0
        %4746 = vmatpush.msra.mxu0 0.0
        %4747 = vmatpush.msra.mxu0 0.0
        %4748 = vmatpush.msra.mxu0 0.0
        %4749 = vmatpush.msra.mxu0 0.0
        %4750 = vmatpush.msra.mxu0 0.0
        %4751 = vmatpush.msra.mxu0 0.0
        %4752 = vmatpush.msra.mxu0 0.0
        %4753 = vmatpush.msra.mxu0 0.0
        %4754 = vmatpush.msra.mxu0 0.0
        %4755 = vmatpush.msra.mxu0 0.0
        %4756 = vmatpush.msra.mxu0 0.0
        %4757 = vmatpush.msra.mxu0 0.0
        %4758 = vmatpush.msra.mxu0 %v4741
        %4759 = vmatmul.f32.gmra.mxu0 %v440
        %v4760 = vpop.f32.mrf.mxu0
        %v4761 = vadd.f32 0.0, %v4760
        %4762 = vdwg.mxu0
        %v4763 = vadd.f32 %v4738, %v4761
        %4764 = vrot.lane.b32.xlu0 %v4715, 126
        %v4765 = vpop.permute.xlu0 %4764
        %v4766 = vsel %vm225, %v4765, 0
        %4768 = vmatpush.msra.mxu0 0.0
        %4769 = vmatpush.msra.mxu0 0.0
        %4770 = vmatpush.msra.mxu0 0.0
        %4771 = vmatpush.msra.mxu0 0.0
        %4772 = vmatpush.msra.mxu0 0.0
        %4773 = vmatpush.msra.mxu0 0.0
        %4774 = vmatpush.msra.mxu0 0.0
        %4775 = vmatpush.msra.mxu0 0.0
        %4776 = vmatpush.msra.mxu0 0.0
        %4777 = vmatpush.msra.mxu0 0.0
        %4778 = vmatpush.msra.mxu0 0.0
        %4779 = vmatpush.msra.mxu0 0.0
        %4780 = vmatpush.msra.mxu0 0.0
        %4781 = vmatpush.msra.mxu0 0.0
        %4782 = vmatpush.msra.mxu0 0.0
        %4783 = vmatpush.msra.mxu0 %v4766
        %4784 = vmatmul.f32.gmra.mxu0 %v468
        %v4785 = vpop.f32.mrf.mxu0
        %v4786 = vadd.f32 0.0, %v4785
        %4787 = vdwg.mxu0
        %v4788 = vadd.f32 %v4763, %v4786
        %v4789 = vadd.f32 %v4788, %v496
        %vm4790 = vcmp.ge.f32.partialorder %v4789, 0.0
        %v4791 = vmul.f32 %v4789, 0.01
        %v4792 = vsel %vm4790, %v4789, %v4791
        %v4794 = vrot.slane %v4792, 1
        %v4795 = vrot.slane %v4792, 2
        %v4796 = vrot.slane %v4792, 3
        %v4797 = vrot.slane %v4792, 4
        %v4798 = vrot.slane %v4792, 5
        %v4799 = vrot.slane %v4792, 6
        %v4800 = vrot.slane %v4792, 7
        %4808 = vst.msk [vmem:[%s177 + $0xf] sm:$0x1] %vm517, %v4792
        %4809 = vst.msk [vmem:[%s177 + $0x1f] sm:$0x1] %vm517, %v4794
        %4810 = vst.msk [vmem:[%s177 + $0x2f] sm:$0x1] %vm517, %v4795
        %4811 = vst.msk [vmem:[%s177 + $0x3f] sm:$0x1] %vm517, %v4796
        %4812 = vst.msk [vmem:[%s177 + $0x4f] sm:$0x1] %vm517, %v4797
        %4813 = vst.msk [vmem:[%s177 + $0x5f] sm:$0x1] %vm517, %v4798
        %4814 = vst.msk [vmem:[%s177 + $0x6f] sm:$0x1] %vm517, %v4799
        %4815 = vst.msk [vmem:[%s177 + $0x7f] sm:$0x1] %vm517, %v4800
        %s4816 = sand.u32 %s107, 1
        %s4817 = scalar_lea.sflag [#allocation3], %s4816
        %s4818 = sand.u32 %s107, 1
        %s4819 = smul.addr %s4818, 128
        %s4820 = scalar_lea.vmem [#allocation2], %s4819
        // Predicated region
        $region33: #{leaky_relu_conv2d.1} parent=31 // pred_check
          %p4821 = pneg %p117
        $region34: #{leaky_relu_conv2d.1} parent=31 // pred_check_branch
          %4823 = sbr.rel (%p4821) target = $region36
        $region35: #{leaky_relu_conv2d.1} parent=31 // pred_region
          %s4824 = smul.u32 2, %s22
          %4826 = vsyncadd %s4817, 0
          %s4827 = smul.addr %s21, 16
          %s4828 = sadd.s32 %s4824, %s4827
          %s4829 = smul.addr %s4828, 8
          %s4830 = scalar_lea.hbm %s3, %s4829
          %s4831 = sshll.u32 %s4820, 4
          %s4832 = int_to_ptr.vmem [resolvable:$true] %s4831
          %s4833 = sshll.u32 %s4830, 4
          %s4834 = int_to_ptr.hbm [resolvable:$true] %s4833
          %4839 = dma.vmem_to_hbm [thread:$0]  %s4832, 2048, %s4834, %s4817, 128, 128, 8
        $region36: #{leaky_relu_conv2d.1} parent=31 // pred_fallthru
          _
      $region32: #{leaky_relu_conv2d.1} parent=5 // pred_fallthru
        _
      %p4840 = scmp.le.s32.totalorder 2, %s12
      // Predicated region
      $region37: #{leaky_relu_conv2d.1} parent=5 // pred_check
        %p4841 = pneg %p4840
      $region38: #{leaky_relu_conv2d.1} parent=5 // pred_check_branch
        %4843 = sbr.rel (%p4841) target = $region40
      $region39: #{leaky_relu_conv2d.1} parent=5 // pred_region
        %s4844 = ssub.s32 %s12, 2
        // Predicated region
        $region41: #{leaky_relu_conv2d.1} parent=39 // pred_check
          %p4845 = pneg %p123
        $region42: #{leaky_relu_conv2d.1} parent=39 // pred_check_branch
          %4847 = sbr.rel (%p4845) target = $region44
        $region43: #{leaky_relu_conv2d.1} parent=39 // pred_region
          %s4848 = sand.u32 %s108, 1
          %s4849 = scalar_lea.sflag [#allocation3], %s4848
          %s4850 = sand.u32 %s108, 1
          %s4851 = smul.addr %s4850, 128
          %s4852 = scalar_lea.vmem [#allocation2], %s4851
          %4854 = dma.done %s4849, 2048
        $region44: #{leaky_relu_conv2d.1} parent=39 // pred_fallthru
          _
      $region40: #{leaky_relu_conv2d.1} parent=5 // pred_fallthru
        _
    $region6: #{leaky_relu_conv2d.1} parent=1 // loop_footer
      %s16 = sadd.s32 1, %s12
    $region7: #{leaky_relu_conv2d.1} parent=1 // loop_footer_branch
      %11 = sbr.rel target = $region3
    $region8: #{leaky_relu_conv2d.1} parent=1 // loop_exit
      _
    %4855 = vsyncpa [#allocation3], 1
    %s4856 = scalar_lea.sflag [#allocation3], 1
    %4857 = vsyncpa %s4856, 1

</llo_original>
